<compile_context>
chip_gen: v7x
topology: tpu7x:2x2x1
jax: 0.10.0
libtpu: 0.0.40
codegen_flags: <defaults>
</compile_context>

<pallas_src>
import numpy as np

import jax
import jax.numpy as jnp
from jax.experimental import pallas as pl
from jax.experimental.pallas import tpu as pltpu


NB_MAX = 8  # samples folded onto the lane axis per grid step


# ------------------------------ Pallas kernel -------------------------------
def _blk_kernel(x_ref,
                l1_ref, s1_ref, b1_ref, a1_ref, g1_ref, e1_ref,
                l2_ref, s2_ref, b2_ref, a2_ref, g2_ref, e2_ref,
                q1_ref, t1_ref, c1_ref,
                q2_ref, t2_ref, c2_ref,
                q3_ref, t3_ref, c3_ref,
                i48_ref, o_ref):
    """One grid step == NB samples.

    x_ref : (NB, 96, 32)   one page per sample, rows (c,h), lanes w
    o_ref : (NB, 96, 48)   rows = patch index, lanes = embed dim
    Feature maps inside the kernel are (C*H, NB*W): batch folded onto lanes.
    """
    f32 = jnp.float32
    nb = x_ref.shape[0]

    def conv(xv, s_ref, l_ref, nt, bias_ref):
        # out = L @ [X@S_0 ; X@S_1 ; ...]; the S_t are block-diagonal over batch.
        tmp = jnp.concatenate(
            [jnp.dot(xv, s_ref[t], preferred_element_type=f32)
             for t in range(nt)], axis=0)
        return jnp.dot(l_ref[...], tmp,
                       preferred_element_type=f32) + bias_ref[...]

    def lnorm(v, a_ref, g_ref, b_ref):
        # Per-sample LayerNorm over W via a block-diagonal averaging matmul
        # (mean/var broadcast within each sample's lane group).
        mu = jnp.dot(v, a_ref[...], preferred_element_type=f32)
        d = v - mu
        var = jnp.dot(d * d, a_ref[...], preferred_element_type=f32)
        return d * jax.lax.rsqrt(var + 1e-5) * g_ref[...] + b_ref[...]

    # Fold batch pages onto the lane axis: (96, NB*32), lane = b*32 + w.
    x0 = jnp.concatenate([x_ref[b] for b in range(nb)], axis=1)

    # Pyrmid stage 1: conv3x3/s2/p1 + conv1x1/s2 (4 taps), LN over W=16.
    x1 = lnorm(conv(x0, s1_ref, l1_ref, 4, b1_ref),
               a1_ref, g1_ref, e1_ref)                 # (6*16, NB*16)
    # Pyrmid stage 2: conv3x3/s2/p1 + conv1x1/s2, LN over W=8.
    x2 = lnorm(conv(x1, s2_ref, l2_ref, 4, b2_ref),
               a2_ref, g2_ref, e2_ref)                 # (12*8, NB*8)

    # Patch embeddings: rows (gh, e), lanes (b, gw).
    pe1 = conv(x0, t1_ref, q1_ref, 4, c1_ref)          # (8*48, NB*8)
    pe2 = conv(x1, t2_ref, q2_ref, 4, c2_ref)          # (4*48, NB*4)
    pe3 = conv(x2, t3_ref, q3_ref, 2, c3_ref)          # (4*48, NB*4)

    # Transpose each gh-slab to (patch, embed) on the MXU (dot against I48,
    # contracting the embed rows) and write it into the output block.
    i48 = i48_ref[...]
    dn = (((0,), (0,)), ((), ()))
    for gh in range(8):                                # patches 0..63  (PE1)
        t = jax.lax.dot_general(pe1[gh * 48:(gh + 1) * 48, :], i48, dn,
                                preferred_element_type=f32)   # (NB*8, 48)
        o_ref[:, gh * 8:(gh + 1) * 8, :] = t.reshape(nb, 8, 48)
    for gh in range(4):                                # patches 64..79 (PE2)
        t = jax.lax.dot_general(pe2[gh * 48:(gh + 1) * 48, :], i48, dn,
                                preferred_element_type=f32)   # (NB*4, 48)
        o_ref[:, 64 + gh * 4:64 + (gh + 1) * 4, :] = t.reshape(nb, 4, 48)
    for gh in range(4):                                # patches 80..95 (PE3)
        t = jax.lax.dot_general(pe3[gh * 48:(gh + 1) * 48, :], i48, dn,
                                preferred_element_type=f32)   # (NB*4, 48)
        o_ref[:, 80 + gh * 4:80 + (gh + 1) * 4, :] = t.reshape(nb, 4, 48)


# ------------------- host-side constant folding (weights) -------------------
def _conv_taps_np(w, hin, win, stride, pad):
    """Per-kw-tap (L, S) factors for a strided conv, NCHW/OIHW semantics."""
    co, ci, kh, kw = w.shape
    ho = (hin + 2 * pad - kh) // stride + 1
    wo = (win + 2 * pad - kw) // stride + 1
    w = np.asarray(w, np.float32)
    ls, ss = [], []
    for j in range(kw):
        L = np.zeros((co * ho, ci * hin), np.float32)
        for oh in range(ho):
            for i in range(kh):
                h = stride * oh - pad + i
                if 0 <= h < hin:
                    L[oh::ho, h::hin] = w[:, :, i, j]
        S = np.zeros((win, wo), np.float32)
        for ow in range(wo):
            ww = stride * ow - pad + j
            if 0 <= ww < win:
                S[ww, ow] = 1.0
        ls.append(L)
        ss.append(S)
    return ls, ss


def _pe_taps_np(w, hin, win):
    """Patch-embed conv (kernel == stride, pad 0); rows ordered (gh, e)."""
    e, ci, kh, kw = w.shape
    s = kh
    gh, gw = hin // s, win // s
    w = np.asarray(w, np.float32)
    ls, ss = [], []
    for j in range(kw):
        L = np.zeros((gh * e, ci * hin), np.float32)
        for g in range(gh):
            for i in range(kh):
                h = s * g + i
                L[g * e:(g + 1) * e, h::hin] = w[:, :, i, j]
        S = np.zeros((win, gw), np.float32)
        for ow in range(gw):
            S[s * ow + j, ow] = 1.0
        ls.append(L)
        ss.append(S)
    return ls, ss


def _stage_consts(w3, b3, w1, b1, hin, win):
    l3, s3 = _conv_taps_np(w3, hin, win, 2, 1)
    l1, s1 = _conv_taps_np(w1, hin, win, 2, 0)
    lcat = np.concatenate(l3 + l1, axis=1)                     # (Co*Ho, 4*Ci*Hin)
    sstk = np.stack(s3 + s1, axis=0)                           # (4, Win, Wo)
    ho = (hin + 2 - 3) // 2 + 1
    bias = np.repeat(np.asarray(b3, np.float32) + np.asarray(b1, np.float32),
                     ho)[:, None]                              # (Co*Ho, 1)
    return lcat, sstk, bias


def _pe_consts(w, b, hin, win):
    ls, ss = _pe_taps_np(w, hin, win)
    lcat = np.concatenate(ls, axis=1)                          # (Gh*E, kw*Ci*Hin)
    sstk = np.stack(ss, axis=0)                                # (kw, Win, Gw)
    gh = hin // w.shape[2]
    bias = np.tile(np.asarray(b, np.float32), gh)[:, None]     # (Gh*E, 1)
    return lcat, sstk, bias


def build_constants(p, nb=NB_MAX):
    """Fold the module weights into lane-batched kernel constants (block = nb)."""
    l1, s1, b1 = _stage_consts(p["p1_w"], p["p1_b"], p["p2_w"], p["p2_b"], 32, 32)
    l2, s2, b2 = _stage_consts(p["p3_w"], p["p3_b"], p["p4_w"], p["p4_b"], 16, 16)
    q1, t1, c1 = _pe_consts(p["pe1_w"], p["pe1_b"], 32, 32)
    q2, t2, c2 = _pe_consts(p["pe2_w"], p["pe2_b"], 16, 16)
    q3, t3, c3 = _pe_consts(p["pe3_w"], p["pe3_b"], 8, 8)

    eye_b = np.eye(nb, dtype=np.float32)

    def blk_diag(stk):      # (ntap, K, N) per-sample -> (ntap, nb*K, nb*N)
        return np.stack([np.kron(eye_b, s) for s in stk], axis=0)

    def avg(width):         # per-sample mean-broadcast matrix over W lanes
        return np.kron(eye_b, np.full((width, width), 1.0 / width, np.float32))

    def tile_b(v):          # LayerNorm gamma/beta tiled across batch lanes
        return np.tile(np.asarray(v, np.float32), nb)[None, :]

    consts = [l1, blk_diag(s1), b1, avg(16), tile_b(p["ln1_g"]), tile_b(p["ln1_b"]),
              l2, blk_diag(s2), b2, avg(8),  tile_b(p["ln2_g"]), tile_b(p["ln2_b"]),
              q1, blk_diag(t1), c1,
              q2, blk_diag(t2), c2,
              q3, blk_diag(t3), c3,
              np.eye(48, dtype=np.float32)]
    return [jnp.asarray(c) for c in consts]


# --------------------------------- wrapper ----------------------------------
def blk_forward(x, consts, block_b=NB_MAX):
    """x: (B, 3, 32, 32) float32 -> (B, 96, 48) float32."""
    b, c, h, w = x.shape
    nb = block_b
    bpad = ((b + nb - 1) // nb) * nb
    xr = x.reshape(b, c * h, w)                 # free reshape: rows (c,h), lanes w
    if bpad != b:
        xr = jnp.pad(xr, ((0, bpad - b), (0, 0), (0, 0)))

    in_specs = [pl.BlockSpec((nb, c * h, w), lambda g: (g, 0, 0))]
    for cst in consts:                          # constants: resident, one block
        nd = cst.ndim
        in_specs.append(pl.BlockSpec(cst.shape, lambda g, _nd=nd: (0,) * _nd))

    out = pl.pallas_call(
        _blk_kernel,
        out_shape=jax.ShapeDtypeStruct((bpad, 96, 48), jnp.float32),
        grid=(bpad // nb,),
        in_specs=in_specs,
        out_specs=pl.BlockSpec((nb, 96, 48), lambda g: (g, 0, 0)),
        compiler_params=pltpu.CompilerParams(
            dimension_semantics=("parallel",),
            vmem_limit_bytes=32 * 1024 * 1024),
    )(xr, *consts)
    return out[:b]


# ------------------------ pure-JAX reference (check) -------------------------
def _conv_ref(x, w, b, stride, pad):
    o = jax.lax.conv_general_dilated(
        x, w, (stride, stride), [(pad, pad), (pad, pad)],
        dimension_numbers=("NCHW", "OIHW", "NCHW"))
    return o + b.reshape(1, -1, 1, 1)


def _ln_ref(x, g, bta, eps=1e-5):
    mu = x.mean(-1, keepdims=True)
    var = ((x - mu) ** 2).mean(-1, keepdims=True)
    return (x - mu) / jnp.sqrt(var + eps) * g + bta


def _patch_ref(x, w, b, patch):
    o = _conv_ref(x, w, b, patch, 0)                  # (B, E, Gh, Gw)
    bsz, e = o.shape[0], o.shape[1]
    return o.reshape(bsz, e, -1).transpose(0, 2, 1)


def blk_ref(x, p):
    x1 = _conv_ref(x, p["p1_w"], p["p1_b"], 2, 1) + _conv_ref(
        x, p["p2_w"], p["p2_b"], 2, 0)
    x1 = _ln_ref(x1, p["ln1_g"], p["ln1_b"])
    x2 = _conv_ref(x1, p["p3_w"], p["p3_b"], 2, 1) + _conv_ref(
        x1, p["p4_w"], p["p4_b"], 2, 0)
    x2 = _ln_ref(x2, p["ln2_g"], p["ln2_b"])
    y1 = _patch_ref(x, p["pe1_w"], p["pe1_b"], 4)
    y2 = _patch_ref(x1, p["pe2_w"], p["pe2_b"], 4)
    y3 = _patch_ref(x2, p["pe3_w"], p["pe3_b"], 2)
    return jnp.concatenate([y1, y2, y3], axis=1)


# ---------------------------------- main -------------------------------------
def init_params(key):
    ks = jax.random.split(key, 16)
    n = lambda k, s, sc=0.05: (sc * jax.random.normal(k, s)).astype(jnp.float32)
    return {
        # Pyrmid convs (OIHW)
        "p1_w": n(ks[0], (6, 3, 3, 3)),  "p1_b": n(ks[1], (6,)),
        "p2_w": n(ks[2], (6, 3, 1, 1)),  "p2_b": n(ks[3], (6,)),
        "p3_w": n(ks[4], (12, 6, 3, 3)), "p3_b": n(ks[5], (12,)),
        "p4_w": n(ks[6], (12, 6, 1, 1)), "p4_b": n(ks[7], (12,)),
        # LayerNorms
        "ln1_g": jnp.ones((16,), jnp.float32), "ln1_b": jnp.zeros((16,), jnp.float32),
        "ln2_g": jnp.ones((8,), jnp.float32),  "ln2_b": jnp.zeros((8,), jnp.float32),
        # PatchEmbed projections
        "pe1_w": n(ks[8], (48, 3, 4, 4)),   "pe1_b": n(ks[9], (48,)),
        "pe2_w": n(ks[10], (48, 6, 4, 4)),  "pe2_b": n(ks[11], (48,)),
        "pe3_w": n(ks[12], (48, 12, 2, 2)), "pe3_b": n(ks[13], (48,)),
    }


if __name__ == "__main__":
    key = jax.random.PRNGKey(0)
    kx, kp = jax.random.split(key)
    params = init_params(kp)
    x = jax.random.normal(kx, (2, 3, 32, 32), dtype=jnp.float32)

    nb = min(NB_MAX, x.shape[0])                # block size (no padding at B=2)
    consts = build_constants(params, nb)        # host-side, weights are static
    fwd = jax.jit(blk_forward, static_argnames=("block_b",))
    y = fwd(x, consts, block_b=nb)
    jax.block_until_ready(y)
    assert y.shape == (2, 96, 48) and y.dtype == jnp.float32

    y_ref = blk_ref(x, params)
    assert jnp.allclose(y, y_ref, rtol=1e-4, atol=2e-4), "mismatch vs reference"

    print("KERNEL_OK")
</pallas_src>

<mosaic_0001>
module attributes {stable_mosaic.version = 11 : i64} {
  func.func @_blk_kernel(%arg0: i32, %arg1: memref<2x96x32xf32, #tpu.memory_space<vmem>>, %arg2: memref<96x384xf32, #tpu.memory_space<vmem>>, %arg3: memref<4x64x32xf32, #tpu.memory_space<vmem>>, %arg4: memref<96x1xf32, #tpu.memory_space<vmem>>, %arg5: memref<32x32xf32, #tpu.memory_space<vmem>>, %arg6: memref<1x32xf32, #tpu.memory_space<vmem>>, %arg7: memref<1x32xf32, #tpu.memory_space<vmem>>, %arg8: memref<96x384xf32, #tpu.memory_space<vmem>>, %arg9: memref<4x32x16xf32, #tpu.memory_space<vmem>>, %arg10: memref<96x1xf32, #tpu.memory_space<vmem>>, %arg11: memref<16x16xf32, #tpu.memory_space<vmem>>, %arg12: memref<1x16xf32, #tpu.memory_space<vmem>>, %arg13: memref<1x16xf32, #tpu.memory_space<vmem>>, %arg14: memref<384x384xf32, #tpu.memory_space<vmem>>, %arg15: memref<4x64x16xf32, #tpu.memory_space<vmem>>, %arg16: memref<384x1xf32, #tpu.memory_space<vmem>>, %arg17: memref<192x384xf32, #tpu.memory_space<vmem>>, %arg18: memref<4x32x8xf32, #tpu.memory_space<vmem>>, %arg19: memref<192x1xf32, #tpu.memory_space<vmem>>, %arg20: memref<192x192xf32, #tpu.memory_space<vmem>>, %arg21: memref<2x16x8xf32, #tpu.memory_space<vmem>>, %arg22: memref<192x1xf32, #tpu.memory_space<vmem>>, %arg23: memref<48x48xf32, #tpu.memory_space<vmem>>, %arg24: memref<2x96x48xf32, #tpu.memory_space<vmem>>) attributes {dimension_semantics = [#tpu.dimension_semantics<parallel>], iteration_bounds = array<i64: 1>, scalar_prefetch = 0 : i64, scratch_operands = 0 : i64, tpu.core_type = #tpu.core_type<tc>, window_params = [{transform_indices = @transform_0, window_bounds = array<i64: 2, 96, 32>}, {pipeline_mode = #tpu.pipeline_mode<synchronous>, transform_indices = @transform_1, window_bounds = array<i64: 96, 384>}, {pipeline_mode = #tpu.pipeline_mode<synchronous>, transform_indices = @transform_2, window_bounds = array<i64: 4, 64, 32>}, {pipeline_mode = #tpu.pipeline_mode<synchronous>, transform_indices = @transform_3, window_bounds = array<i64: 96, 1>}, {pipeline_mode = #tpu.pipeline_mode<synchronous>, transform_indices = @transform_4, window_bounds = array<i64: 32, 32>}, {pipeline_mode = #tpu.pipeline_mode<synchronous>, transform_indices = @transform_5, window_bounds = array<i64: 1, 32>}, {pipeline_mode = #tpu.pipeline_mode<synchronous>, transform_indices = @transform_6, window_bounds = array<i64: 1, 32>}, {pipeline_mode = #tpu.pipeline_mode<synchronous>, transform_indices = @transform_7, window_bounds = array<i64: 96, 384>}, {pipeline_mode = #tpu.pipeline_mode<synchronous>, transform_indices = @transform_8, window_bounds = array<i64: 4, 32, 16>}, {pipeline_mode = #tpu.pipeline_mode<synchronous>, transform_indices = @transform_9, window_bounds = array<i64: 96, 1>}, {pipeline_mode = #tpu.pipeline_mode<synchronous>, transform_indices = @transform_10, window_bounds = array<i64: 16, 16>}, {pipeline_mode = #tpu.pipeline_mode<synchronous>, transform_indices = @transform_11, window_bounds = array<i64: 1, 16>}, {pipeline_mode = #tpu.pipeline_mode<synchronous>, transform_indices = @transform_12, window_bounds = array<i64: 1, 16>}, {pipeline_mode = #tpu.pipeline_mode<synchronous>, transform_indices = @transform_13, window_bounds = array<i64: 384, 384>}, {pipeline_mode = #tpu.pipeline_mode<synchronous>, transform_indices = @transform_14, window_bounds = array<i64: 4, 64, 16>}, {pipeline_mode = #tpu.pipeline_mode<synchronous>, transform_indices = @transform_15, window_bounds = array<i64: 384, 1>}, {pipeline_mode = #tpu.pipeline_mode<synchronous>, transform_indices = @transform_16, window_bounds = array<i64: 192, 384>}, {pipeline_mode = #tpu.pipeline_mode<synchronous>, transform_indices = @transform_17, window_bounds = array<i64: 4, 32, 8>}, {pipeline_mode = #tpu.pipeline_mode<synchronous>, transform_indices = @transform_18, window_bounds = array<i64: 192, 1>}, {pipeline_mode = #tpu.pipeline_mode<synchronous>, transform_indices = @transform_19, window_bounds = array<i64: 192, 192>}, {pipeline_mode = #tpu.pipeline_mode<synchronous>, transform_indices = @transform_20, window_bounds = array<i64: 2, 16, 8>}, {pipeline_mode = #tpu.pipeline_mode<synchronous>, transform_indices = @transform_21, window_bounds = array<i64: 192, 1>}, {pipeline_mode = #tpu.pipeline_mode<synchronous>, transform_indices = @transform_22, window_bounds = array<i64: 48, 48>}, {transform_indices = @transform_23, window_bounds = array<i64: 2, 96, 48>}]} {
    %c0 = arith.constant 0 : index
    %c0_0 = arith.constant 0 : index
    %c0_1 = arith.constant 0 : index
    %0 = vector.load %arg1[%c0, %c0_0, %c0_1] : memref<2x96x32xf32, #tpu.memory_space<vmem>>, vector<1x96x32xf32>
    %1 = vector.shape_cast %0 : vector<1x96x32xf32> to vector<96x32xf32>
    %c1 = arith.constant 1 : index
    %c0_2 = arith.constant 0 : index
    %c0_3 = arith.constant 0 : index
    %2 = vector.load %arg1[%c1, %c0_2, %c0_3] : memref<2x96x32xf32, #tpu.memory_space<vmem>>, vector<1x96x32xf32>
    %3 = vector.shape_cast %2 : vector<1x96x32xf32> to vector<96x32xf32>
    %4 = tpu.concatenate %1, %3 in 1 : vector<96x32xf32>, vector<96x32xf32> -> vector<96x64xf32>
    %c0_4 = arith.constant 0 : index
    %c0_5 = arith.constant 0 : index
    %c0_6 = arith.constant 0 : index
    %5 = vector.load %arg3[%c0_4, %c0_5, %c0_6] : memref<4x64x32xf32, #tpu.memory_space<vmem>>, vector<1x64x32xf32>
    %6 = vector.shape_cast %5 : vector<1x64x32xf32> to vector<64x32xf32>
    %cst = arith.constant dense<0.000000e+00> : vector<96x32xf32>
    %7 = tpu.matmul %4, %6, %cst {dimension_numbers = #tpu.dot_dimension_numbers<[1], [0], [0], [1], [0, 0, 1, 1], [], []>} : vector<96x64xf32>, vector<64x32xf32>, vector<96x32xf32> -> vector<96x32xf32>
    %c1_7 = arith.constant 1 : index
    %c0_8 = arith.constant 0 : index
    %c0_9 = arith.constant 0 : index
    %8 = vector.load %arg3[%c1_7, %c0_8, %c0_9] : memref<4x64x32xf32, #tpu.memory_space<vmem>>, vector<1x64x32xf32>
    %9 = vector.shape_cast %8 : vector<1x64x32xf32> to vector<64x32xf32>
    %cst_10 = arith.constant dense<0.000000e+00> : vector<96x32xf32>
    %10 = tpu.matmul %4, %9, %cst_10 {dimension_numbers = #tpu.dot_dimension_numbers<[1], [0], [0], [1], [0, 0, 1, 1], [], []>} : vector<96x64xf32>, vector<64x32xf32>, vector<96x32xf32> -> vector<96x32xf32>
    %c2 = arith.constant 2 : index
    %c0_11 = arith.constant 0 : index
    %c0_12 = arith.constant 0 : index
    %11 = vector.load %arg3[%c2, %c0_11, %c0_12] : memref<4x64x32xf32, #tpu.memory_space<vmem>>, vector<1x64x32xf32>
    %12 = vector.shape_cast %11 : vector<1x64x32xf32> to vector<64x32xf32>
    %cst_13 = arith.constant dense<0.000000e+00> : vector<96x32xf32>
    %13 = tpu.matmul %4, %12, %cst_13 {dimension_numbers = #tpu.dot_dimension_numbers<[1], [0], [0], [1], [0, 0, 1, 1], [], []>} : vector<96x64xf32>, vector<64x32xf32>, vector<96x32xf32> -> vector<96x32xf32>
    %c3 = arith.constant 3 : index
    %c0_14 = arith.constant 0 : index
    %c0_15 = arith.constant 0 : index
    %14 = vector.load %arg3[%c3, %c0_14, %c0_15] : memref<4x64x32xf32, #tpu.memory_space<vmem>>, vector<1x64x32xf32>
    %15 = vector.shape_cast %14 : vector<1x64x32xf32> to vector<64x32xf32>
    %cst_16 = arith.constant dense<0.000000e+00> : vector<96x32xf32>
    %16 = tpu.matmul %4, %15, %cst_16 {dimension_numbers = #tpu.dot_dimension_numbers<[1], [0], [0], [1], [0, 0, 1, 1], [], []>} : vector<96x64xf32>, vector<64x32xf32>, vector<96x32xf32> -> vector<96x32xf32>
    %17 = tpu.concatenate %7, %10, %13, %16 in 0 : vector<96x32xf32>, vector<96x32xf32>, vector<96x32xf32>, vector<96x32xf32> -> vector<384x32xf32>
    %c0_17 = arith.constant 0 : index
    %c0_18 = arith.constant 0 : index
    %18 = vector.load %arg2[%c0_17, %c0_18] : memref<96x384xf32, #tpu.memory_space<vmem>>, vector<96x384xf32>
    %cst_19 = arith.constant dense<0.000000e+00> : vector<96x32xf32>
    %19 = tpu.matmul %18, %17, %cst_19 {dimension_numbers = #tpu.dot_dimension_numbers<[1], [0], [0], [1], [0, 0, 1, 1], [], []>} : vector<96x384xf32>, vector<384x32xf32>, vector<96x32xf32> -> vector<96x32xf32>
    %c0_20 = arith.constant 0 : index
    %c0_21 = arith.constant 0 : index
    %20 = vector.load %arg4[%c0_20, %c0_21] : memref<96x1xf32, #tpu.memory_space<vmem>>, vector<96x1xf32>
    %21 = vector.broadcast %20 : vector<96x1xf32> to vector<96x32xf32>
    %22 = arith.addf %19, %21 : vector<96x32xf32>
    %c0_22 = arith.constant 0 : index
    %c0_23 = arith.constant 0 : index
    %23 = vector.load %arg5[%c0_22, %c0_23] : memref<32x32xf32, #tpu.memory_space<vmem>>, vector<32x32xf32>
    %cst_24 = arith.constant dense<0.000000e+00> : vector<96x32xf32>
    %24 = tpu.matmul %22, %23, %cst_24 {dimension_numbers = #tpu.dot_dimension_numbers<[1], [0], [0], [1], [0, 0, 1, 1], [], []>} : vector<96x32xf32>, vector<32x32xf32>, vector<96x32xf32> -> vector<96x32xf32>
    %25 = arith.subf %22, %24 : vector<96x32xf32>
    %26 = arith.mulf %25, %25 : vector<96x32xf32>
    %c0_25 = arith.constant 0 : index
    %c0_26 = arith.constant 0 : index
    %27 = vector.load %arg5[%c0_25, %c0_26] : memref<32x32xf32, #tpu.memory_space<vmem>>, vector<32x32xf32>
    %cst_27 = arith.constant dense<0.000000e+00> : vector<96x32xf32>
    %28 = tpu.matmul %26, %27, %cst_27 {dimension_numbers = #tpu.dot_dimension_numbers<[1], [0], [0], [1], [0, 0, 1, 1], [], []>} : vector<96x32xf32>, vector<32x32xf32>, vector<96x32xf32> -> vector<96x32xf32>
    %cst_28 = arith.constant 9.99999974E-6 : f32
    %29 = vector.broadcast %cst_28 : f32 to vector<96x32xf32>
    %30 = arith.addf %28, %29 : vector<96x32xf32>
    %31 = math.rsqrt %30 : vector<96x32xf32>
    %32 = arith.mulf %25, %31 : vector<96x32xf32>
    %c0_29 = arith.constant 0 : index
    %c0_30 = arith.constant 0 : index
    %33 = vector.load %arg6[%c0_29, %c0_30] : memref<1x32xf32, #tpu.memory_space<vmem>>, vector<1x32xf32>
    %34 = vector.broadcast %33 : vector<1x32xf32> to vector<96x32xf32>
    %35 = arith.mulf %32, %34 : vector<96x32xf32>
    %c0_31 = arith.constant 0 : index
    %c0_32 = arith.constant 0 : index
    %36 = vector.load %arg7[%c0_31, %c0_32] : memref<1x32xf32, #tpu.memory_space<vmem>>, vector<1x32xf32>
    %37 = vector.broadcast %36 : vector<1x32xf32> to vector<96x32xf32>
    %38 = arith.addf %35, %37 : vector<96x32xf32>
    %c0_33 = arith.constant 0 : index
    %c0_34 = arith.constant 0 : index
    %c0_35 = arith.constant 0 : index
    %39 = vector.load %arg9[%c0_33, %c0_34, %c0_35] : memref<4x32x16xf32, #tpu.memory_space<vmem>>, vector<1x32x16xf32>
    %40 = vector.shape_cast %39 : vector<1x32x16xf32> to vector<32x16xf32>
    %cst_36 = arith.constant dense<0.000000e+00> : vector<96x16xf32>
    %41 = tpu.matmul %38, %40, %cst_36 {dimension_numbers = #tpu.dot_dimension_numbers<[1], [0], [0], [1], [0, 0, 1, 1], [], []>} : vector<96x32xf32>, vector<32x16xf32>, vector<96x16xf32> -> vector<96x16xf32>
    %c1_37 = arith.constant 1 : index
    %c0_38 = arith.constant 0 : index
    %c0_39 = arith.constant 0 : index
    %42 = vector.load %arg9[%c1_37, %c0_38, %c0_39] : memref<4x32x16xf32, #tpu.memory_space<vmem>>, vector<1x32x16xf32>
    %43 = vector.shape_cast %42 : vector<1x32x16xf32> to vector<32x16xf32>
    %cst_40 = arith.constant dense<0.000000e+00> : vector<96x16xf32>
    %44 = tpu.matmul %38, %43, %cst_40 {dimension_numbers = #tpu.dot_dimension_numbers<[1], [0], [0], [1], [0, 0, 1, 1], [], []>} : vector<96x32xf32>, vector<32x16xf32>, vector<96x16xf32> -> vector<96x16xf32>
    %c2_41 = arith.constant 2 : index
    %c0_42 = arith.constant 0 : index
    %c0_43 = arith.constant 0 : index
    %45 = vector.load %arg9[%c2_41, %c0_42, %c0_43] : memref<4x32x16xf32, #tpu.memory_space<vmem>>, vector<1x32x16xf32>
    %46 = vector.shape_cast %45 : vector<1x32x16xf32> to vector<32x16xf32>
    %cst_44 = arith.constant dense<0.000000e+00> : vector<96x16xf32>
    %47 = tpu.matmul %38, %46, %cst_44 {dimension_numbers = #tpu.dot_dimension_numbers<[1], [0], [0], [1], [0, 0, 1, 1], [], []>} : vector<96x32xf32>, vector<32x16xf32>, vector<96x16xf32> -> vector<96x16xf32>
    %c3_45 = arith.constant 3 : index
    %c0_46 = arith.constant 0 : index
    %c0_47 = arith.constant 0 : index
    %48 = vector.load %arg9[%c3_45, %c0_46, %c0_47] : memref<4x32x16xf32, #tpu.memory_space<vmem>>, vector<1x32x16xf32>
    %49 = vector.shape_cast %48 : vector<1x32x16xf32> to vector<32x16xf32>
    %cst_48 = arith.constant dense<0.000000e+00> : vector<96x16xf32>
    %50 = tpu.matmul %38, %49, %cst_48 {dimension_numbers = #tpu.dot_dimension_numbers<[1], [0], [0], [1], [0, 0, 1, 1], [], []>} : vector<96x32xf32>, vector<32x16xf32>, vector<96x16xf32> -> vector<96x16xf32>
    %51 = tpu.concatenate %41, %44, %47, %50 in 0 : vector<96x16xf32>, vector<96x16xf32>, vector<96x16xf32>, vector<96x16xf32> -> vector<384x16xf32>
    %c0_49 = arith.constant 0 : index
    %c0_50 = arith.constant 0 : index
    %52 = vector.load %arg8[%c0_49, %c0_50] : memref<96x384xf32, #tpu.memory_space<vmem>>, vector<96x384xf32>
    %cst_51 = arith.constant dense<0.000000e+00> : vector<96x16xf32>
    %53 = tpu.matmul %52, %51, %cst_51 {dimension_numbers = #tpu.dot_dimension_numbers<[1], [0], [0], [1], [0, 0, 1, 1], [], []>} : vector<96x384xf32>, vector<384x16xf32>, vector<96x16xf32> -> vector<96x16xf32>
    %c0_52 = arith.constant 0 : index
    %c0_53 = arith.constant 0 : index
    %54 = vector.load %arg10[%c0_52, %c0_53] : memref<96x1xf32, #tpu.memory_space<vmem>>, vector<96x1xf32>
    %55 = vector.broadcast %54 : vector<96x1xf32> to vector<96x16xf32>
    %56 = arith.addf %53, %55 : vector<96x16xf32>
    %c0_54 = arith.constant 0 : index
    %c0_55 = arith.constant 0 : index
    %57 = vector.load %arg11[%c0_54, %c0_55] : memref<16x16xf32, #tpu.memory_space<vmem>>, vector<16x16xf32>
    %cst_56 = arith.constant dense<0.000000e+00> : vector<96x16xf32>
    %58 = tpu.matmul %56, %57, %cst_56 {dimension_numbers = #tpu.dot_dimension_numbers<[1], [0], [0], [1], [0, 0, 1, 1], [], []>} : vector<96x16xf32>, vector<16x16xf32>, vector<96x16xf32> -> vector<96x16xf32>
    %59 = arith.subf %56, %58 : vector<96x16xf32>
    %60 = arith.mulf %59, %59 : vector<96x16xf32>
    %c0_57 = arith.constant 0 : index
    %c0_58 = arith.constant 0 : index
    %61 = vector.load %arg11[%c0_57, %c0_58] : memref<16x16xf32, #tpu.memory_space<vmem>>, vector<16x16xf32>
    %cst_59 = arith.constant dense<0.000000e+00> : vector<96x16xf32>
    %62 = tpu.matmul %60, %61, %cst_59 {dimension_numbers = #tpu.dot_dimension_numbers<[1], [0], [0], [1], [0, 0, 1, 1], [], []>} : vector<96x16xf32>, vector<16x16xf32>, vector<96x16xf32> -> vector<96x16xf32>
    %cst_60 = arith.constant 9.99999974E-6 : f32
    %63 = vector.broadcast %cst_60 : f32 to vector<96x16xf32>
    %64 = arith.addf %62, %63 : vector<96x16xf32>
    %65 = math.rsqrt %64 : vector<96x16xf32>
    %66 = arith.mulf %59, %65 : vector<96x16xf32>
    %c0_61 = arith.constant 0 : index
    %c0_62 = arith.constant 0 : index
    %67 = vector.load %arg12[%c0_61, %c0_62] : memref<1x16xf32, #tpu.memory_space<vmem>>, vector<1x16xf32>
    %68 = vector.broadcast %67 : vector<1x16xf32> to vector<96x16xf32>
    %69 = arith.mulf %66, %68 : vector<96x16xf32>
    %c0_63 = arith.constant 0 : index
    %c0_64 = arith.constant 0 : index
    %70 = vector.load %arg13[%c0_63, %c0_64] : memref<1x16xf32, #tpu.memory_space<vmem>>, vector<1x16xf32>
    %71 = vector.broadcast %70 : vector<1x16xf32> to vector<96x16xf32>
    %72 = arith.addf %69, %71 : vector<96x16xf32>
    %c0_65 = arith.constant 0 : index
    %c0_66 = arith.constant 0 : index
    %c0_67 = arith.constant 0 : index
    %73 = vector.load %arg15[%c0_65, %c0_66, %c0_67] : memref<4x64x16xf32, #tpu.memory_space<vmem>>, vector<1x64x16xf32>
    %74 = vector.shape_cast %73 : vector<1x64x16xf32> to vector<64x16xf32>
    %cst_68 = arith.constant dense<0.000000e+00> : vector<96x16xf32>
    %75 = tpu.matmul %4, %74, %cst_68 {dimension_numbers = #tpu.dot_dimension_numbers<[1], [0], [0], [1], [0, 0, 1, 1], [], []>} : vector<96x64xf32>, vector<64x16xf32>, vector<96x16xf32> -> vector<96x16xf32>
    %c1_69 = arith.constant 1 : index
    %c0_70 = arith.constant 0 : index
    %c0_71 = arith.constant 0 : index
    %76 = vector.load %arg15[%c1_69, %c0_70, %c0_71] : memref<4x64x16xf32, #tpu.memory_space<vmem>>, vector<1x64x16xf32>
    %77 = vector.shape_cast %76 : vector<1x64x16xf32> to vector<64x16xf32>
    %cst_72 = arith.constant dense<0.000000e+00> : vector<96x16xf32>
    %78 = tpu.matmul %4, %77, %cst_72 {dimension_numbers = #tpu.dot_dimension_numbers<[1], [0], [0], [1], [0, 0, 1, 1], [], []>} : vector<96x64xf32>, vector<64x16xf32>, vector<96x16xf32> -> vector<96x16xf32>
    %c2_73 = arith.constant 2 : index
    %c0_74 = arith.constant 0 : index
    %c0_75 = arith.constant 0 : index
    %79 = vector.load %arg15[%c2_73, %c0_74, %c0_75] : memref<4x64x16xf32, #tpu.memory_space<vmem>>, vector<1x64x16xf32>
    %80 = vector.shape_cast %79 : vector<1x64x16xf32> to vector<64x16xf32>
    %cst_76 = arith.constant dense<0.000000e+00> : vector<96x16xf32>
    %81 = tpu.matmul %4, %80, %cst_76 {dimension_numbers = #tpu.dot_dimension_numbers<[1], [0], [0], [1], [0, 0, 1, 1], [], []>} : vector<96x64xf32>, vector<64x16xf32>, vector<96x16xf32> -> vector<96x16xf32>
    %c3_77 = arith.constant 3 : index
    %c0_78 = arith.constant 0 : index
    %c0_79 = arith.constant 0 : index
    %82 = vector.load %arg15[%c3_77, %c0_78, %c0_79] : memref<4x64x16xf32, #tpu.memory_space<vmem>>, vector<1x64x16xf32>
    %83 = vector.shape_cast %82 : vector<1x64x16xf32> to vector<64x16xf32>
    %cst_80 = arith.constant dense<0.000000e+00> : vector<96x16xf32>
    %84 = tpu.matmul %4, %83, %cst_80 {dimension_numbers = #tpu.dot_dimension_numbers<[1], [0], [0], [1], [0, 0, 1, 1], [], []>} : vector<96x64xf32>, vector<64x16xf32>, vector<96x16xf32> -> vector<96x16xf32>
    %85 = tpu.concatenate %75, %78, %81, %84 in 0 : vector<96x16xf32>, vector<96x16xf32>, vector<96x16xf32>, vector<96x16xf32> -> vector<384x16xf32>
    %c0_81 = arith.constant 0 : index
    %c0_82 = arith.constant 0 : index
    %86 = vector.load %arg14[%c0_81, %c0_82] : memref<384x384xf32, #tpu.memory_space<vmem>>, vector<384x384xf32>
    %cst_83 = arith.constant dense<0.000000e+00> : vector<384x16xf32>
    %87 = tpu.matmul %86, %85, %cst_83 {dimension_numbers = #tpu.dot_dimension_numbers<[1], [0], [0], [1], [0, 0, 1, 1], [], []>} : vector<384x384xf32>, vector<384x16xf32>, vector<384x16xf32> -> vector<384x16xf32>
    %c0_84 = arith.constant 0 : index
    %c0_85 = arith.constant 0 : index
    %88 = vector.load %arg16[%c0_84, %c0_85] : memref<384x1xf32, #tpu.memory_space<vmem>>, vector<384x1xf32>
    %89 = vector.broadcast %88 : vector<384x1xf32> to vector<384x16xf32>
    %90 = arith.addf %87, %89 : vector<384x16xf32>
    %c0_86 = arith.constant 0 : index
    %c0_87 = arith.constant 0 : index
    %c0_88 = arith.constant 0 : index
    %91 = vector.load %arg18[%c0_86, %c0_87, %c0_88] : memref<4x32x8xf32, #tpu.memory_space<vmem>>, vector<1x32x8xf32>
    %92 = vector.shape_cast %91 : vector<1x32x8xf32> to vector<32x8xf32>
    %cst_89 = arith.constant dense<0.000000e+00> : vector<96x8xf32>
    %93 = tpu.matmul %38, %92, %cst_89 {dimension_numbers = #tpu.dot_dimension_numbers<[1], [0], [0], [1], [0, 0, 1, 1], [], []>} : vector<96x32xf32>, vector<32x8xf32>, vector<96x8xf32> -> vector<96x8xf32>
    %c1_90 = arith.constant 1 : index
    %c0_91 = arith.constant 0 : index
    %c0_92 = arith.constant 0 : index
    %94 = vector.load %arg18[%c1_90, %c0_91, %c0_92] : memref<4x32x8xf32, #tpu.memory_space<vmem>>, vector<1x32x8xf32>
    %95 = vector.shape_cast %94 : vector<1x32x8xf32> to vector<32x8xf32>
    %cst_93 = arith.constant dense<0.000000e+00> : vector<96x8xf32>
    %96 = tpu.matmul %38, %95, %cst_93 {dimension_numbers = #tpu.dot_dimension_numbers<[1], [0], [0], [1], [0, 0, 1, 1], [], []>} : vector<96x32xf32>, vector<32x8xf32>, vector<96x8xf32> -> vector<96x8xf32>
    %c2_94 = arith.constant 2 : index
    %c0_95 = arith.constant 0 : index
    %c0_96 = arith.constant 0 : index
    %97 = vector.load %arg18[%c2_94, %c0_95, %c0_96] : memref<4x32x8xf32, #tpu.memory_space<vmem>>, vector<1x32x8xf32>
    %98 = vector.shape_cast %97 : vector<1x32x8xf32> to vector<32x8xf32>
    %cst_97 = arith.constant dense<0.000000e+00> : vector<96x8xf32>
    %99 = tpu.matmul %38, %98, %cst_97 {dimension_numbers = #tpu.dot_dimension_numbers<[1], [0], [0], [1], [0, 0, 1, 1], [], []>} : vector<96x32xf32>, vector<32x8xf32>, vector<96x8xf32> -> vector<96x8xf32>
    %c3_98 = arith.constant 3 : index
    %c0_99 = arith.constant 0 : index
    %c0_100 = arith.constant 0 : index
    %100 = vector.load %arg18[%c3_98, %c0_99, %c0_100] : memref<4x32x8xf32, #tpu.memory_space<vmem>>, vector<1x32x8xf32>
    %101 = vector.shape_cast %100 : vector<1x32x8xf32> to vector<32x8xf32>
    %cst_101 = arith.constant dense<0.000000e+00> : vector<96x8xf32>
    %102 = tpu.matmul %38, %101, %cst_101 {dimension_numbers = #tpu.dot_dimension_numbers<[1], [0], [0], [1], [0, 0, 1, 1], [], []>} : vector<96x32xf32>, vector<32x8xf32>, vector<96x8xf32> -> vector<96x8xf32>
    %103 = tpu.concatenate %93, %96, %99, %102 in 0 : vector<96x8xf32>, vector<96x8xf32>, vector<96x8xf32>, vector<96x8xf32> -> vector<384x8xf32>
    %c0_102 = arith.constant 0 : index
    %c0_103 = arith.constant 0 : index
    %104 = vector.load %arg17[%c0_102, %c0_103] : memref<192x384xf32, #tpu.memory_space<vmem>>, vector<192x384xf32>
    %cst_104 = arith.constant dense<0.000000e+00> : vector<192x8xf32>
    %105 = tpu.matmul %104, %103, %cst_104 {dimension_numbers = #tpu.dot_dimension_numbers<[1], [0], [0], [1], [0, 0, 1, 1], [], []>} : vector<192x384xf32>, vector<384x8xf32>, vector<192x8xf32> -> vector<192x8xf32>
    %c0_105 = arith.constant 0 : index
    %c0_106 = arith.constant 0 : index
    %106 = vector.load %arg19[%c0_105, %c0_106] : memref<192x1xf32, #tpu.memory_space<vmem>>, vector<192x1xf32>
    %107 = vector.broadcast %106 : vector<192x1xf32> to vector<192x8xf32>
    %108 = arith.addf %105, %107 : vector<192x8xf32>
    %c0_107 = arith.constant 0 : index
    %c0_108 = arith.constant 0 : index
    %c0_109 = arith.constant 0 : index
    %109 = vector.load %arg21[%c0_107, %c0_108, %c0_109] : memref<2x16x8xf32, #tpu.memory_space<vmem>>, vector<1x16x8xf32>
    %110 = vector.shape_cast %109 : vector<1x16x8xf32> to vector<16x8xf32>
    %cst_110 = arith.constant dense<0.000000e+00> : vector<96x8xf32>
    %111 = tpu.matmul %72, %110, %cst_110 {dimension_numbers = #tpu.dot_dimension_numbers<[1], [0], [0], [1], [0, 0, 1, 1], [], []>} : vector<96x16xf32>, vector<16x8xf32>, vector<96x8xf32> -> vector<96x8xf32>
    %c1_111 = arith.constant 1 : index
    %c0_112 = arith.constant 0 : index
    %c0_113 = arith.constant 0 : index
    %112 = vector.load %arg21[%c1_111, %c0_112, %c0_113] : memref<2x16x8xf32, #tpu.memory_space<vmem>>, vector<1x16x8xf32>
    %113 = vector.shape_cast %112 : vector<1x16x8xf32> to vector<16x8xf32>
    %cst_114 = arith.constant dense<0.000000e+00> : vector<96x8xf32>
    %114 = tpu.matmul %72, %113, %cst_114 {dimension_numbers = #tpu.dot_dimension_numbers<[1], [0], [0], [1], [0, 0, 1, 1], [], []>} : vector<96x16xf32>, vector<16x8xf32>, vector<96x8xf32> -> vector<96x8xf32>
    %115 = tpu.concatenate %111, %114 in 0 : vector<96x8xf32>, vector<96x8xf32> -> vector<192x8xf32>
    %c0_115 = arith.constant 0 : index
    %c0_116 = arith.constant 0 : index
    %116 = vector.load %arg20[%c0_115, %c0_116] : memref<192x192xf32, #tpu.memory_space<vmem>>, vector<192x192xf32>
    %cst_117 = arith.constant dense<0.000000e+00> : vector<192x8xf32>
    %117 = tpu.matmul %116, %115, %cst_117 {dimension_numbers = #tpu.dot_dimension_numbers<[1], [0], [0], [1], [0, 0, 1, 1], [], []>} : vector<192x192xf32>, vector<192x8xf32>, vector<192x8xf32> -> vector<192x8xf32>
    %c0_118 = arith.constant 0 : index
    %c0_119 = arith.constant 0 : index
    %118 = vector.load %arg22[%c0_118, %c0_119] : memref<192x1xf32, #tpu.memory_space<vmem>>, vector<192x1xf32>
    %119 = vector.broadcast %118 : vector<192x1xf32> to vector<192x8xf32>
    %120 = arith.addf %117, %119 : vector<192x8xf32>
    %c0_120 = arith.constant 0 : index
    %c0_121 = arith.constant 0 : index
    %121 = vector.load %arg23[%c0_120, %c0_121] : memref<48x48xf32, #tpu.memory_space<vmem>>, vector<48x48xf32>
    %122 = vector.extract_strided_slice %90 {offsets = [0, 0], sizes = [48, 16], strides = [1, 1]} : vector<384x16xf32> to vector<48x16xf32>
    %cst_122 = arith.constant dense<0.000000e+00> : vector<16x48xf32>
    %123 = tpu.matmul %122, %121, %cst_122 {dimension_numbers = #tpu.dot_dimension_numbers<[0], [0], [1], [1], [0, 1, 1, 1], [], []>} : vector<48x16xf32>, vector<48x48xf32>, vector<16x48xf32> -> vector<16x48xf32>
    %124 = vector.shape_cast %123 : vector<16x48xf32> to vector<2x8x48xf32>
    %c0_123 = arith.constant 0 : index
    %c0_124 = arith.constant 0 : index
    %c0_125 = arith.constant 0 : index
    %125 = vector.load %arg24[%c0_123, %c0_124, %c0_125] : memref<2x96x48xf32, #tpu.memory_space<vmem>>, vector<2x8x48xf32>
    tpu.vector_store %arg24[%c0_123, %c0_124, %c0_125], %124 {strides = array<i32>} : memref<2x96x48xf32, #tpu.memory_space<vmem>>, vector<2x8x48xf32>,
    %126 = vector.extract_strided_slice %90 {offsets = [48, 0], sizes = [48, 16], strides = [1, 1]} : vector<384x16xf32> to vector<48x16xf32>
    %cst_126 = arith.constant dense<0.000000e+00> : vector<16x48xf32>
    %127 = tpu.matmul %126, %121, %cst_126 {dimension_numbers = #tpu.dot_dimension_numbers<[0], [0], [1], [1], [0, 1, 1, 1], [], []>} : vector<48x16xf32>, vector<48x48xf32>, vector<16x48xf32> -> vector<16x48xf32>
    %128 = vector.shape_cast %127 : vector<16x48xf32> to vector<2x8x48xf32>
    %c0_127 = arith.constant 0 : index
    %c8 = arith.constant 8 : index
    %c0_128 = arith.constant 0 : index
    %129 = vector.load %arg24[%c0_127, %c8, %c0_128] : memref<2x96x48xf32, #tpu.memory_space<vmem>>, vector<2x8x48xf32>
    tpu.vector_store %arg24[%c0_127, %c8, %c0_128], %128 {strides = array<i32>} : memref<2x96x48xf32, #tpu.memory_space<vmem>>, vector<2x8x48xf32>,
    %130 = vector.extract_strided_slice %90 {offsets = [96, 0], sizes = [48, 16], strides = [1, 1]} : vector<384x16xf32> to vector<48x16xf32>
    %cst_129 = arith.constant dense<0.000000e+00> : vector<16x48xf32>
    %131 = tpu.matmul %130, %121, %cst_129 {dimension_numbers = #tpu.dot_dimension_numbers<[0], [0], [1], [1], [0, 1, 1, 1], [], []>} : vector<48x16xf32>, vector<48x48xf32>, vector<16x48xf32> -> vector<16x48xf32>
    %132 = vector.shape_cast %131 : vector<16x48xf32> to vector<2x8x48xf32>
    %c0_130 = arith.constant 0 : index
    %c16 = arith.constant 16 : index
    %c0_131 = arith.constant 0 : index
    %133 = vector.load %arg24[%c0_130, %c16, %c0_131] : memref<2x96x48xf32, #tpu.memory_space<vmem>>, vector<2x8x48xf32>
    tpu.vector_store %arg24[%c0_130, %c16, %c0_131], %132 {strides = array<i32>} : memref<2x96x48xf32, #tpu.memory_space<vmem>>, vector<2x8x48xf32>,
    %134 = vector.extract_strided_slice %90 {offsets = [144, 0], sizes = [48, 16], strides = [1, 1]} : vector<384x16xf32> to vector<48x16xf32>
    %cst_132 = arith.constant dense<0.000000e+00> : vector<16x48xf32>
    %135 = tpu.matmul %134, %121, %cst_132 {dimension_numbers = #tpu.dot_dimension_numbers<[0], [0], [1], [1], [0, 1, 1, 1], [], []>} : vector<48x16xf32>, vector<48x48xf32>, vector<16x48xf32> -> vector<16x48xf32>
    %136 = vector.shape_cast %135 : vector<16x48xf32> to vector<2x8x48xf32>
    %c0_133 = arith.constant 0 : index
    %c24 = arith.constant 24 : index
    %c0_134 = arith.constant 0 : index
    %137 = vector.load %arg24[%c0_133, %c24, %c0_134] : memref<2x96x48xf32, #tpu.memory_space<vmem>>, vector<2x8x48xf32>
    tpu.vector_store %arg24[%c0_133, %c24, %c0_134], %136 {strides = array<i32>} : memref<2x96x48xf32, #tpu.memory_space<vmem>>, vector<2x8x48xf32>,
    %138 = vector.extract_strided_slice %90 {offsets = [192, 0], sizes = [48, 16], strides = [1, 1]} : vector<384x16xf32> to vector<48x16xf32>
    %cst_135 = arith.constant dense<0.000000e+00> : vector<16x48xf32>
    %139 = tpu.matmul %138, %121, %cst_135 {dimension_numbers = #tpu.dot_dimension_numbers<[0], [0], [1], [1], [0, 1, 1, 1], [], []>} : vector<48x16xf32>, vector<48x48xf32>, vector<16x48xf32> -> vector<16x48xf32>
    %140 = vector.shape_cast %139 : vector<16x48xf32> to vector<2x8x48xf32>
    %c0_136 = arith.constant 0 : index
    %c32 = arith.constant 32 : index
    %c0_137 = arith.constant 0 : index
    %141 = vector.load %arg24[%c0_136, %c32, %c0_137] : memref<2x96x48xf32, #tpu.memory_space<vmem>>, vector<2x8x48xf32>
    tpu.vector_store %arg24[%c0_136, %c32, %c0_137], %140 {strides = array<i32>} : memref<2x96x48xf32, #tpu.memory_space<vmem>>, vector<2x8x48xf32>,
    %142 = vector.extract_strided_slice %90 {offsets = [240, 0], sizes = [48, 16], strides = [1, 1]} : vector<384x16xf32> to vector<48x16xf32>
    %cst_138 = arith.constant dense<0.000000e+00> : vector<16x48xf32>
    %143 = tpu.matmul %142, %121, %cst_138 {dimension_numbers = #tpu.dot_dimension_numbers<[0], [0], [1], [1], [0, 1, 1, 1], [], []>} : vector<48x16xf32>, vector<48x48xf32>, vector<16x48xf32> -> vector<16x48xf32>
    %144 = vector.shape_cast %143 : vector<16x48xf32> to vector<2x8x48xf32>
    %c0_139 = arith.constant 0 : index
    %c40 = arith.constant 40 : index
    %c0_140 = arith.constant 0 : index
    %145 = vector.load %arg24[%c0_139, %c40, %c0_140] : memref<2x96x48xf32, #tpu.memory_space<vmem>>, vector<2x8x48xf32>
    tpu.vector_store %arg24[%c0_139, %c40, %c0_140], %144 {strides = array<i32>} : memref<2x96x48xf32, #tpu.memory_space<vmem>>, vector<2x8x48xf32>,
    %146 = vector.extract_strided_slice %90 {offsets = [288, 0], sizes = [48, 16], strides = [1, 1]} : vector<384x16xf32> to vector<48x16xf32>
    %cst_141 = arith.constant dense<0.000000e+00> : vector<16x48xf32>
    %147 = tpu.matmul %146, %121, %cst_141 {dimension_numbers = #tpu.dot_dimension_numbers<[0], [0], [1], [1], [0, 1, 1, 1], [], []>} : vector<48x16xf32>, vector<48x48xf32>, vector<16x48xf32> -> vector<16x48xf32>
    %148 = vector.shape_cast %147 : vector<16x48xf32> to vector<2x8x48xf32>
    %c0_142 = arith.constant 0 : index
    %c48 = arith.constant 48 : index
    %c0_143 = arith.constant 0 : index
    %149 = vector.load %arg24[%c0_142, %c48, %c0_143] : memref<2x96x48xf32, #tpu.memory_space<vmem>>, vector<2x8x48xf32>
    tpu.vector_store %arg24[%c0_142, %c48, %c0_143], %148 {strides = array<i32>} : memref<2x96x48xf32, #tpu.memory_space<vmem>>, vector<2x8x48xf32>,
    %150 = vector.extract_strided_slice %90 {offsets = [336, 0], sizes = [48, 16], strides = [1, 1]} : vector<384x16xf32> to vector<48x16xf32>
    %cst_144 = arith.constant dense<0.000000e+00> : vector<16x48xf32>
    %151 = tpu.matmul %150, %121, %cst_144 {dimension_numbers = #tpu.dot_dimension_numbers<[0], [0], [1], [1], [0, 1, 1, 1], [], []>} : vector<48x16xf32>, vector<48x48xf32>, vector<16x48xf32> -> vector<16x48xf32>
    %152 = vector.shape_cast %151 : vector<16x48xf32> to vector<2x8x48xf32>
    %c0_145 = arith.constant 0 : index
    %c56 = arith.constant 56 : index
    %c0_146 = arith.constant 0 : index
    %153 = vector.load %arg24[%c0_145, %c56, %c0_146] : memref<2x96x48xf32, #tpu.memory_space<vmem>>, vector<2x8x48xf32>
    tpu.vector_store %arg24[%c0_145, %c56, %c0_146], %152 {strides = array<i32>} : memref<2x96x48xf32, #tpu.memory_space<vmem>>, vector<2x8x48xf32>,
    %154 = vector.extract_strided_slice %108 {offsets = [0, 0], sizes = [48, 8], strides = [1, 1]} : vector<192x8xf32> to vector<48x8xf32>
    %cst_147 = arith.constant dense<0.000000e+00> : vector<8x48xf32>
    %155 = tpu.matmul %154, %121, %cst_147 {dimension_numbers = #tpu.dot_dimension_numbers<[0], [0], [1], [1], [0, 1, 1, 1], [], []>} : vector<48x8xf32>, vector<48x48xf32>, vector<8x48xf32> -> vector<8x48xf32>
    %156 = vector.shape_cast %155 : vector<8x48xf32> to vector<2x4x48xf32>
    %c0_148 = arith.constant 0 : index
    %c64 = arith.constant 64 : index
    %c0_149 = arith.constant 0 : index
    %157 = vector.load %arg24[%c0_148, %c64, %c0_149] : memref<2x96x48xf32, #tpu.memory_space<vmem>>, vector<2x4x48xf32>
    tpu.vector_store %arg24[%c0_148, %c64, %c0_149], %156 {strides = array<i32>} : memref<2x96x48xf32, #tpu.memory_space<vmem>>, vector<2x4x48xf32>,
    %158 = vector.extract_strided_slice %108 {offsets = [48, 0], sizes = [48, 8], strides = [1, 1]} : vector<192x8xf32> to vector<48x8xf32>
    %cst_150 = arith.constant dense<0.000000e+00> : vector<8x48xf32>
    %159 = tpu.matmul %158, %121, %cst_150 {dimension_numbers = #tpu.dot_dimension_numbers<[0], [0], [1], [1], [0, 1, 1, 1], [], []>} : vector<48x8xf32>, vector<48x48xf32>, vector<8x48xf32> -> vector<8x48xf32>
    %160 = vector.shape_cast %159 : vector<8x48xf32> to vector<2x4x48xf32>
    %c0_151 = arith.constant 0 : index
    %c68 = arith.constant 68 : index
    %c0_152 = arith.constant 0 : index
    %161 = vector.load %arg24[%c0_151, %c68, %c0_152] : memref<2x96x48xf32, #tpu.memory_space<vmem>>, vector<2x4x48xf32>
    tpu.vector_store %arg24[%c0_151, %c68, %c0_152], %160 {strides = array<i32>} : memref<2x96x48xf32, #tpu.memory_space<vmem>>, vector<2x4x48xf32>,
    %162 = vector.extract_strided_slice %108 {offsets = [96, 0], sizes = [48, 8], strides = [1, 1]} : vector<192x8xf32> to vector<48x8xf32>
    %cst_153 = arith.constant dense<0.000000e+00> : vector<8x48xf32>
    %163 = tpu.matmul %162, %121, %cst_153 {dimension_numbers = #tpu.dot_dimension_numbers<[0], [0], [1], [1], [0, 1, 1, 1], [], []>} : vector<48x8xf32>, vector<48x48xf32>, vector<8x48xf32> -> vector<8x48xf32>
    %164 = vector.shape_cast %163 : vector<8x48xf32> to vector<2x4x48xf32>
    %c0_154 = arith.constant 0 : index
    %c72 = arith.constant 72 : index
    %c0_155 = arith.constant 0 : index
    %165 = vector.load %arg24[%c0_154, %c72, %c0_155] : memref<2x96x48xf32, #tpu.memory_space<vmem>>, vector<2x4x48xf32>
    tpu.vector_store %arg24[%c0_154, %c72, %c0_155], %164 {strides = array<i32>} : memref<2x96x48xf32, #tpu.memory_space<vmem>>, vector<2x4x48xf32>,
    %166 = vector.extract_strided_slice %108 {offsets = [144, 0], sizes = [48, 8], strides = [1, 1]} : vector<192x8xf32> to vector<48x8xf32>
    %cst_156 = arith.constant dense<0.000000e+00> : vector<8x48xf32>
    %167 = tpu.matmul %166, %121, %cst_156 {dimension_numbers = #tpu.dot_dimension_numbers<[0], [0], [1], [1], [0, 1, 1, 1], [], []>} : vector<48x8xf32>, vector<48x48xf32>, vector<8x48xf32> -> vector<8x48xf32>
    %168 = vector.shape_cast %167 : vector<8x48xf32> to vector<2x4x48xf32>
    %c0_157 = arith.constant 0 : index
    %c76 = arith.constant 76 : index
    %c0_158 = arith.constant 0 : index
    %169 = vector.load %arg24[%c0_157, %c76, %c0_158] : memref<2x96x48xf32, #tpu.memory_space<vmem>>, vector<2x4x48xf32>
    tpu.vector_store %arg24[%c0_157, %c76, %c0_158], %168 {strides = array<i32>} : memref<2x96x48xf32, #tpu.memory_space<vmem>>, vector<2x4x48xf32>,
    %170 = vector.extract_strided_slice %120 {offsets = [0, 0], sizes = [48, 8], strides = [1, 1]} : vector<192x8xf32> to vector<48x8xf32>
    %cst_159 = arith.constant dense<0.000000e+00> : vector<8x48xf32>
    %171 = tpu.matmul %170, %121, %cst_159 {dimension_numbers = #tpu.dot_dimension_numbers<[0], [0], [1], [1], [0, 1, 1, 1], [], []>} : vector<48x8xf32>, vector<48x48xf32>, vector<8x48xf32> -> vector<8x48xf32>
    %172 = vector.shape_cast %171 : vector<8x48xf32> to vector<2x4x48xf32>
    %c0_160 = arith.constant 0 : index
    %c80 = arith.constant 80 : index
    %c0_161 = arith.constant 0 : index
    %173 = vector.load %arg24[%c0_160, %c80, %c0_161] : memref<2x96x48xf32, #tpu.memory_space<vmem>>, vector<2x4x48xf32>
    tpu.vector_store %arg24[%c0_160, %c80, %c0_161], %172 {strides = array<i32>} : memref<2x96x48xf32, #tpu.memory_space<vmem>>, vector<2x4x48xf32>,
    %174 = vector.extract_strided_slice %120 {offsets = [48, 0], sizes = [48, 8], strides = [1, 1]} : vector<192x8xf32> to vector<48x8xf32>
    %cst_162 = arith.constant dense<0.000000e+00> : vector<8x48xf32>
    %175 = tpu.matmul %174, %121, %cst_162 {dimension_numbers = #tpu.dot_dimension_numbers<[0], [0], [1], [1], [0, 1, 1, 1], [], []>} : vector<48x8xf32>, vector<48x48xf32>, vector<8x48xf32> -> vector<8x48xf32>
    %176 = vector.shape_cast %175 : vector<8x48xf32> to vector<2x4x48xf32>
    %c0_163 = arith.constant 0 : index
    %c84 = arith.constant 84 : index
    %c0_164 = arith.constant 0 : index
    %177 = vector.load %arg24[%c0_163, %c84, %c0_164] : memref<2x96x48xf32, #tpu.memory_space<vmem>>, vector<2x4x48xf32>
    tpu.vector_store %arg24[%c0_163, %c84, %c0_164], %176 {strides = array<i32>} : memref<2x96x48xf32, #tpu.memory_space<vmem>>, vector<2x4x48xf32>,
    %178 = vector.extract_strided_slice %120 {offsets = [96, 0], sizes = [48, 8], strides = [1, 1]} : vector<192x8xf32> to vector<48x8xf32>
    %cst_165 = arith.constant dense<0.000000e+00> : vector<8x48xf32>
    %179 = tpu.matmul %178, %121, %cst_165 {dimension_numbers = #tpu.dot_dimension_numbers<[0], [0], [1], [1], [0, 1, 1, 1], [], []>} : vector<48x8xf32>, vector<48x48xf32>, vector<8x48xf32> -> vector<8x48xf32>
    %180 = vector.shape_cast %179 : vector<8x48xf32> to vector<2x4x48xf32>
    %c0_166 = arith.constant 0 : index
    %c88 = arith.constant 88 : index
    %c0_167 = arith.constant 0 : index
    %181 = vector.load %arg24[%c0_166, %c88, %c0_167] : memref<2x96x48xf32, #tpu.memory_space<vmem>>, vector<2x4x48xf32>
    tpu.vector_store %arg24[%c0_166, %c88, %c0_167], %180 {strides = array<i32>} : memref<2x96x48xf32, #tpu.memory_space<vmem>>, vector<2x4x48xf32>,
    %182 = vector.extract_strided_slice %120 {offsets = [144, 0], sizes = [48, 8], strides = [1, 1]} : vector<192x8xf32> to vector<48x8xf32>
    %cst_168 = arith.constant dense<0.000000e+00> : vector<8x48xf32>
    %183 = tpu.matmul %182, %121, %cst_168 {dimension_numbers = #tpu.dot_dimension_numbers<[0], [0], [1], [1], [0, 1, 1, 1], [], []>} : vector<48x8xf32>, vector<48x48xf32>, vector<8x48xf32> -> vector<8x48xf32>
    %184 = vector.shape_cast %183 : vector<8x48xf32> to vector<2x4x48xf32>
    %c0_169 = arith.constant 0 : index
    %c92 = arith.constant 92 : index
    %c0_170 = arith.constant 0 : index
    %185 = vector.load %arg24[%c0_169, %c92, %c0_170] : memref<2x96x48xf32, #tpu.memory_space<vmem>>, vector<2x4x48xf32>
    tpu.vector_store %arg24[%c0_169, %c92, %c0_170], %184 {strides = array<i32>} : memref<2x96x48xf32, #tpu.memory_space<vmem>>, vector<2x4x48xf32>,
    return
  }
  func.func @transform_0(%arg0: i32) -> (i32, i32, i32) {
    %c0_i32 = arith.constant 0 : i32
    %c0_i32_0 = arith.constant 0 : i32
    %c0_i32_1 = arith.constant 0 : i32
    return %arg0, %c0_i32, %c0_i32_0 : i32, i32, i32
  }
  func.func @transform_1(%arg0: i32) -> (i32, i32) {
    %c0_i32 = arith.constant 0 : i32
    %c0_i32_0 = arith.constant 0 : i32
    %c0_i32_1 = arith.constant 0 : i32
    return %c0_i32, %c0_i32_0 : i32, i32
  }
  func.func @transform_2(%arg0: i32) -> (i32, i32, i32) {
    %c0_i32 = arith.constant 0 : i32
    %c0_i32_0 = arith.constant 0 : i32
    %c0_i32_1 = arith.constant 0 : i32
    %c0_i32_2 = arith.constant 0 : i32
    return %c0_i32, %c0_i32_0, %c0_i32_1 : i32, i32, i32
  }
  func.func @transform_3(%arg0: i32) -> (i32, i32) {
    %c0_i32 = arith.constant 0 : i32
    %c0_i32_0 = arith.constant 0 : i32
    %c0_i32_1 = arith.constant 0 : i32
    return %c0_i32, %c0_i32_0 : i32, i32
  }
  func.func @transform_4(%arg0: i32) -> (i32, i32) {
    %c0_i32 = arith.constant 0 : i32
    %c0_i32_0 = arith.constant 0 : i32
    %c0_i32_1 = arith.constant 0 : i32
    return %c0_i32, %c0_i32_0 : i32, i32
  }
  func.func @transform_5(%arg0: i32) -> (i32, i32) {
    %c0_i32 = arith.constant 0 : i32
    %c0_i32_0 = arith.constant 0 : i32
    %c0_i32_1 = arith.constant 0 : i32
    return %c0_i32, %c0_i32_0 : i32, i32
  }
  func.func @transform_6(%arg0: i32) -> (i32, i32) {
    %c0_i32 = arith.constant 0 : i32
    %c0_i32_0 = arith.constant 0 : i32
    %c0_i32_1 = arith.constant 0 : i32
    return %c0_i32, %c0_i32_0 : i32, i32
  }
  func.func @transform_7(%arg0: i32) -> (i32, i32) {
    %c0_i32 = arith.constant 0 : i32
    %c0_i32_0 = arith.constant 0 : i32
    %c0_i32_1 = arith.constant 0 : i32
    return %c0_i32, %c0_i32_0 : i32, i32
  }
  func.func @transform_8(%arg0: i32) -> (i32, i32, i32) {
    %c0_i32 = arith.constant 0 : i32
    %c0_i32_0 = arith.constant 0 : i32
    %c0_i32_1 = arith.constant 0 : i32
    %c0_i32_2 = arith.constant 0 : i32
    return %c0_i32, %c0_i32_0, %c0_i32_1 : i32, i32, i32
  }
  func.func @transform_9(%arg0: i32) -> (i32, i32) {
    %c0_i32 = arith.constant 0 : i32
    %c0_i32_0 = arith.constant 0 : i32
    %c0_i32_1 = arith.constant 0 : i32
    return %c0_i32, %c0_i32_0 : i32, i32
  }
  func.func @transform_10(%arg0: i32) -> (i32, i32) {
    %c0_i32 = arith.constant 0 : i32
    %c0_i32_0 = arith.constant 0 : i32
    %c0_i32_1 = arith.constant 0 : i32
    return %c0_i32, %c0_i32_0 : i32, i32
  }
  func.func @transform_11(%arg0: i32) -> (i32, i32) {
    %c0_i32 = arith.constant 0 : i32
    %c0_i32_0 = arith.constant 0 : i32
    %c0_i32_1 = arith.constant 0 : i32
    return %c0_i32, %c0_i32_0 : i32, i32
  }
  func.func @transform_12(%arg0: i32) -> (i32, i32) {
    %c0_i32 = arith.constant 0 : i32
    %c0_i32_0 = arith.constant 0 : i32
    %c0_i32_1 = arith.constant 0 : i32
    return %c0_i32, %c0_i32_0 : i32, i32
  }
  func.func @transform_13(%arg0: i32) -> (i32, i32) {
    %c0_i32 = arith.constant 0 : i32
    %c0_i32_0 = arith.constant 0 : i32
    %c0_i32_1 = arith.constant 0 : i32
    return %c0_i32, %c0_i32_0 : i32, i32
  }
  func.func @transform_14(%arg0: i32) -> (i32, i32, i32) {
    %c0_i32 = arith.constant 0 : i32
    %c0_i32_0 = arith.constant 0 : i32
    %c0_i32_1 = arith.constant 0 : i32
    %c0_i32_2 = arith.constant 0 : i32
    return %c0_i32, %c0_i32_0, %c0_i32_1 : i32, i32, i32
  }
  func.func @transform_15(%arg0: i32) -> (i32, i32) {
    %c0_i32 = arith.constant 0 : i32
    %c0_i32_0 = arith.constant 0 : i32
    %c0_i32_1 = arith.constant 0 : i32
    return %c0_i32, %c0_i32_0 : i32, i32
  }
  func.func @transform_16(%arg0: i32) -> (i32, i32) {
    %c0_i32 = arith.constant 0 : i32
    %c0_i32_0 = arith.constant 0 : i32
    %c0_i32_1 = arith.constant 0 : i32
    return %c0_i32, %c0_i32_0 : i32, i32
  }
  func.func @transform_17(%arg0: i32) -> (i32, i32, i32) {
    %c0_i32 = arith.constant 0 : i32
    %c0_i32_0 = arith.constant 0 : i32
    %c0_i32_1 = arith.constant 0 : i32
    %c0_i32_2 = arith.constant 0 : i32
    return %c0_i32, %c0_i32_0, %c0_i32_1 : i32, i32, i32
  }
  func.func @transform_18(%arg0: i32) -> (i32, i32) {
    %c0_i32 = arith.constant 0 : i32
    %c0_i32_0 = arith.constant 0 : i32
    %c0_i32_1 = arith.constant 0 : i32
    return %c0_i32, %c0_i32_0 : i32, i32
  }
  func.func @transform_19(%arg0: i32) -> (i32, i32) {
    %c0_i32 = arith.constant 0 : i32
    %c0_i32_0 = arith.constant 0 : i32
    %c0_i32_1 = arith.constant 0 : i32
    return %c0_i32, %c0_i32_0 : i32, i32
  }
  func.func @transform_20(%arg0: i32) -> (i32, i32, i32) {
    %c0_i32 = arith.constant 0 : i32
    %c0_i32_0 = arith.constant 0 : i32
    %c0_i32_1 = arith.constant 0 : i32
    %c0_i32_2 = arith.constant 0 : i32
    return %c0_i32, %c0_i32_0, %c0_i32_1 : i32, i32, i32
  }
  func.func @transform_21(%arg0: i32) -> (i32, i32) {
    %c0_i32 = arith.constant 0 : i32
    %c0_i32_0 = arith.constant 0 : i32
    %c0_i32_1 = arith.constant 0 : i32
    return %c0_i32, %c0_i32_0 : i32, i32
  }
  func.func @transform_22(%arg0: i32) -> (i32, i32) {
    %c0_i32 = arith.constant 0 : i32
    %c0_i32_0 = arith.constant 0 : i32
    %c0_i32_1 = arith.constant 0 : i32
    return %c0_i32, %c0_i32_0 : i32, i32
  }
  func.func @transform_23(%arg0: i32) -> (i32, i32, i32) {
    %c0_i32 = arith.constant 0 : i32
    %c0_i32_0 = arith.constant 0 : i32
    %c0_i32_1 = arith.constant 0 : i32
    return %arg0, %c0_i32, %c0_i32_0 : i32, i32, i32
  }
}

</mosaic_0001>

<llo_original>
// kernel: blk_forward.1
$region0: #{blk_forward.1}
  #allocation0 [shape = 'u32[]', space=smem, size = 0x4, offset = 0x4, fixed_abs, tag = 'smem constant byte address 0x4 - core index']
  #allocation1 [shape = 'u32[144,128]{1,0:T(1,128)}', space=vmem, size = 0x12000, scoped, tag = 'internal scratch']
  %s0 = inlined_call_operand.hbm [shape: f32[2,96,32], index: 0, kind: input, shape index: {}]
  %s1 = inlined_call_operand.hbm [shape: f32[96,384], index: 1, kind: input, shape index: {}]
  %s2 = inlined_call_operand.vmem [shape: f32[4,64,32], index: 2, kind: input, shape index: {}]
  %s3 = inlined_call_operand.vmem [shape: f32[96,1], index: 3, kind: input, shape index: {}]
  %s4 = inlined_call_operand.hbm [shape: f32[32,32], index: 4, kind: input, shape index: {}]
  %s5 = inlined_call_operand.vmem [shape: f32[1,32], index: 5, kind: input, shape index: {}]
  %s6 = inlined_call_operand.hbm [shape: f32[1,32], index: 6, kind: input, shape index: {}]
  %s7 = inlined_call_operand.hbm [shape: f32[96,384], index: 7, kind: input, shape index: {}]
  %s8 = inlined_call_operand.vmem [shape: f32[4,32,16], index: 8, kind: input, shape index: {}]
  %s9 = inlined_call_operand.vmem [shape: f32[96,1], index: 9, kind: input, shape index: {}]
  %s10 = inlined_call_operand.hbm [shape: f32[16,16], index: 10, kind: input, shape index: {}]
  %s11 = inlined_call_operand.hbm [shape: f32[1,16], index: 11, kind: input, shape index: {}]
  %s12 = inlined_call_operand.hbm [shape: f32[1,16], index: 12, kind: input, shape index: {}]
  %s13 = inlined_call_operand.vmem [shape: f32[384,384], index: 13, kind: input, shape index: {}]
  %s14 = inlined_call_operand.vmem [shape: f32[4,64,16], index: 14, kind: input, shape index: {}]
  %s15 = inlined_call_operand.vmem [shape: f32[384,1], index: 15, kind: input, shape index: {}]
  %s16 = inlined_call_operand.vmem [shape: f32[192,384], index: 16, kind: input, shape index: {}]
  %s17 = inlined_call_operand.vmem [shape: f32[4,32,8], index: 17, kind: input, shape index: {}]
  %s18 = inlined_call_operand.vmem [shape: f32[192,1], index: 18, kind: input, shape index: {}]
  %s19 = inlined_call_operand.vmem [shape: f32[192,192], index: 19, kind: input, shape index: {}]
  %s20 = inlined_call_operand.vmem [shape: f32[2,16,8], index: 20, kind: input, shape index: {}]
  %s21 = inlined_call_operand.vmem [shape: f32[192,1], index: 21, kind: input, shape index: {}]
  %s22 = inlined_call_operand.hbm [shape: f32[48,48], index: 22, kind: input, shape index: {}]
  %s23 = inlined_call_operand.vmem [shape: f32[2,96,48], index: 23, kind: output, shape index: {}]
  %s24 = sld [smem:[#allocation0]]
  $region138: #{blk_forward.1} parent=0
    _
  %s26 = ssub.s32 1, %s24
  %s27 = scalar_select 0, %s26, %s24
  $region1: #{blk_forward.1} parent=0
    #allocation2 [shape = 'u8[98304]{0}', space=vmem, size = 0x18000, scoped, tag = 'input window, operand 0, single buffered']
    #allocation3 [shape = 's32[1]{0}', space=sflag, size = 0x4, scoped, tag = 'scoped memory for blk_forward.1']
    #allocation4 [shape = 'u8[147456]{0}', space=vmem, size = 0x24000, scoped, tag = 'input window, operand 1, single buffered']
    #allocation5 [shape = 's32[1]{0}', space=sflag, size = 0x4, scoped, tag = 'scoped memory for blk_forward.1']
    #allocation6 [shape = 'u8[16384]{0}', space=vmem, size = 0x4000, scoped, tag = 'input window, operand 4, single buffered']
    #allocation7 [shape = 'u8[512]{0}', space=vmem, size = 0x400, scoped, tag = 'input window, operand 6, single buffered']
    #allocation8 [shape = 's32[1]{0}', space=sflag, size = 0x4, scoped, tag = 'scoped memory for blk_forward.1']
    #allocation9 [shape = 'u8[147456]{0}', space=vmem, size = 0x24000, scoped, tag = 'input window, operand 7, single buffered']
    #allocation10 [shape = 'u8[8192]{0}', space=vmem, size = 0x2000, scoped, tag = 'input window, operand 10, single buffered']
    #allocation11 [shape = 's32[1]{0}', space=sflag, size = 0x4, scoped, tag = 'scoped memory for blk_forward.1']
    #allocation12 [shape = 'u8[512]{0}', space=vmem, size = 0x400, scoped, tag = 'input window, operand 11, single buffered']
    #allocation13 [shape = 'u8[512]{0}', space=vmem, size = 0x400, scoped, tag = 'input window, operand 12, single buffered']
    #allocation14 [shape = 's32[1]{0}', space=sflag, size = 0x4, scoped, tag = 'scoped memory for blk_forward.1']
    #allocation15 [shape = 'u8[24576]{0}', space=vmem, size = 0x6000, scoped, tag = 'input window, operand 22, single buffered']
    %28 = vsyncpa [#allocation3], 0
    %29 = vsyncpa [#allocation5], 0
    %30 = vsyncpa [#allocation8], 0
    %31 = vsyncpa [#allocation11], 0
    %32 = vsyncpa [#allocation14], 0
    // Predicated region
    $region2: #{blk_forward.1} parent=1 // pred_check
      _
    $region3: #{blk_forward.1} parent=1 // pred_check_branch
      %34 = sbr.rel (0) target = $region5
    $region4: #{blk_forward.1} parent=1 // pred_region
      %s36 = ssub.s32 3072, 3072
      %37 = vsyncadd [#allocation3], %s36
      %s38 = sshll.u32 [#allocation2], 4
      %s39 = int_to_ptr.vmem [resolvable:$true] %s38
      %44 = dma.hbm_to_vmem [thread:$0]  %s0, 3072, %s39, [#allocation3], 128, 128, 8
    $region5: #{blk_forward.1} parent=1 // pred_fallthru
      _
    // Predicated region
    $region6: #{blk_forward.1} parent=1 // pred_check
      _
    $region7: #{blk_forward.1} parent=1 // pred_check_branch
      %46 = sbr.rel (0) target = $region9
    $region8: #{blk_forward.1} parent=1 // pred_region
      %s48 = ssub.s32 4608, 4608
      %49 = vsyncadd [#allocation5], %s48
      %s50 = sshll.u32 [#allocation4], 4
      %s51 = int_to_ptr.vmem [resolvable:$true] %s50
      %56 = dma.hbm_to_vmem [thread:$0]  %s1, 4608, %s51, [#allocation5], 384, 384, 24
    $region9: #{blk_forward.1} parent=1 // pred_fallthru
      _
    // Predicated region
    $region10: #{blk_forward.1} parent=1 // pred_check
      _
    $region11: #{blk_forward.1} parent=1 // pred_check_branch
      %58 = sbr.rel (0) target = $region13
    $region12: #{blk_forward.1} parent=1 // pred_region
      _
    $region13: #{blk_forward.1} parent=1 // pred_fallthru
      _
    // Predicated region
    $region14: #{blk_forward.1} parent=1 // pred_check
      _
    $region15: #{blk_forward.1} parent=1 // pred_check_branch
      %60 = sbr.rel (0) target = $region17
    $region16: #{blk_forward.1} parent=1 // pred_region
      _
    $region17: #{blk_forward.1} parent=1 // pred_fallthru
      _
    // Predicated region
    $region18: #{blk_forward.1} parent=1 // pred_check
      _
    $region19: #{blk_forward.1} parent=1 // pred_check_branch
      %62 = sbr.rel (0) target = $region21
    $region20: #{blk_forward.1} parent=1 // pred_region
      %s64 = ssub.s32 512, 512
      %65 = vsyncadd [#allocation5], %s64
      %s66 = sshll.u32 [#allocation6], 4
      %s67 = int_to_ptr.vmem [resolvable:$true] %s66
      %72 = dma.hbm_to_vmem [thread:$0]  %s4, 512, %s67, [#allocation5], 128, 128, 8
    $region21: #{blk_forward.1} parent=1 // pred_fallthru
      _
    // Predicated region
    $region22: #{blk_forward.1} parent=1 // pred_check
      _
    $region23: #{blk_forward.1} parent=1 // pred_check_branch
      %74 = sbr.rel (0) target = $region25
    $region24: #{blk_forward.1} parent=1 // pred_region
      _
    $region25: #{blk_forward.1} parent=1 // pred_fallthru
      _
    // Predicated region
    $region26: #{blk_forward.1} parent=1 // pred_check
      _
    $region27: #{blk_forward.1} parent=1 // pred_check_branch
      %76 = sbr.rel (0) target = $region29
    $region28: #{blk_forward.1} parent=1 // pred_region
      %s78 = ssub.s32 16, 16
      %79 = vsyncadd [#allocation8], %s78
      %s81 = sshll.u32 [#allocation7], 4
      %s82 = int_to_ptr.vmem [resolvable:$true] %s81
      %84 = dma.hbm_to_vmem [thread:$0]  %s6, 16, %s82, [#allocation8]
    $region29: #{blk_forward.1} parent=1 // pred_fallthru
      _
    // Predicated region
    $region30: #{blk_forward.1} parent=1 // pred_check
      _
    $region31: #{blk_forward.1} parent=1 // pred_check_branch
      %86 = sbr.rel (0) target = $region33
    $region32: #{blk_forward.1} parent=1 // pred_region
      %s88 = ssub.s32 4608, 4608
      %89 = vsyncadd [#allocation8], %s88
      %s90 = sshll.u32 [#allocation9], 4
      %s91 = int_to_ptr.vmem [resolvable:$true] %s90
      %96 = dma.hbm_to_vmem [thread:$0]  %s7, 4608, %s91, [#allocation8], 384, 384, 24
    $region33: #{blk_forward.1} parent=1 // pred_fallthru
      _
    // Predicated region
    $region34: #{blk_forward.1} parent=1 // pred_check
      _
    $region35: #{blk_forward.1} parent=1 // pred_check_branch
      %98 = sbr.rel (0) target = $region37
    $region36: #{blk_forward.1} parent=1 // pred_region
      _
    $region37: #{blk_forward.1} parent=1 // pred_fallthru
      _
    // Predicated region
    $region38: #{blk_forward.1} parent=1 // pred_check
      _
    $region39: #{blk_forward.1} parent=1 // pred_check_branch
      %100 = sbr.rel (0) target = $region41
    $region40: #{blk_forward.1} parent=1 // pred_region
      _
    $region41: #{blk_forward.1} parent=1 // pred_fallthru
      _
    // Predicated region
    $region42: #{blk_forward.1} parent=1 // pred_check
      _
    $region43: #{blk_forward.1} parent=1 // pred_check_branch
      %102 = sbr.rel (0) target = $region45
    $region44: #{blk_forward.1} parent=1 // pred_region
      %s104 = ssub.s32 256, 256
      %105 = vsyncadd [#allocation11], %s104
      %s106 = sshll.u32 [#allocation10], 4
      %s107 = int_to_ptr.vmem [resolvable:$true] %s106
      %112 = dma.hbm_to_vmem [thread:$0]  %s10, 256, %s107, [#allocation11], 128, 128, 8
    $region45: #{blk_forward.1} parent=1 // pred_fallthru
      _
    // Predicated region
    $region46: #{blk_forward.1} parent=1 // pred_check
      _
    $region47: #{blk_forward.1} parent=1 // pred_check_branch
      %114 = sbr.rel (0) target = $region49
    $region48: #{blk_forward.1} parent=1 // pred_region
      %s116 = ssub.s32 16, 16
      %117 = vsyncadd [#allocation11], %s116
      %s119 = sshll.u32 [#allocation12], 4
      %s120 = int_to_ptr.vmem [resolvable:$true] %s119
      %122 = dma.hbm_to_vmem [thread:$0]  %s11, 16, %s120, [#allocation11]
    $region49: #{blk_forward.1} parent=1 // pred_fallthru
      _
    // Predicated region
    $region50: #{blk_forward.1} parent=1 // pred_check
      _
    $region51: #{blk_forward.1} parent=1 // pred_check_branch
      %124 = sbr.rel (0) target = $region53
    $region52: #{blk_forward.1} parent=1 // pred_region
      %s126 = ssub.s32 16, 16
      %127 = vsyncadd [#allocation14], %s126
      %s129 = sshll.u32 [#allocation13], 4
      %s130 = int_to_ptr.vmem [resolvable:$true] %s129
      %132 = dma.hbm_to_vmem [thread:$0]  %s12, 16, %s130, [#allocation14]
    $region53: #{blk_forward.1} parent=1 // pred_fallthru
      _
    // Predicated region
    $region54: #{blk_forward.1} parent=1 // pred_check
      _
    $region55: #{blk_forward.1} parent=1 // pred_check_branch
      %134 = sbr.rel (0) target = $region57
    $region56: #{blk_forward.1} parent=1 // pred_region
      _
    $region57: #{blk_forward.1} parent=1 // pred_fallthru
      _
    // Predicated region
    $region58: #{blk_forward.1} parent=1 // pred_check
      _
    $region59: #{blk_forward.1} parent=1 // pred_check_branch
      %136 = sbr.rel (0) target = $region61
    $region60: #{blk_forward.1} parent=1 // pred_region
      _
    $region61: #{blk_forward.1} parent=1 // pred_fallthru
      _
    // Predicated region
    $region62: #{blk_forward.1} parent=1 // pred_check
      _
    $region63: #{blk_forward.1} parent=1 // pred_check_branch
      %138 = sbr.rel (0) target = $region65
    $region64: #{blk_forward.1} parent=1 // pred_region
      _
    $region65: #{blk_forward.1} parent=1 // pred_fallthru
      _
    // Predicated region
    $region66: #{blk_forward.1} parent=1 // pred_check
      _
    $region67: #{blk_forward.1} parent=1 // pred_check_branch
      %140 = sbr.rel (0) target = $region69
    $region68: #{blk_forward.1} parent=1 // pred_region
      _
    $region69: #{blk_forward.1} parent=1 // pred_fallthru
      _
    // Predicated region
    $region70: #{blk_forward.1} parent=1 // pred_check
      _
    $region71: #{blk_forward.1} parent=1 // pred_check_branch
      %142 = sbr.rel (0) target = $region73
    $region72: #{blk_forward.1} parent=1 // pred_region
      _
    $region73: #{blk_forward.1} parent=1 // pred_fallthru
      _
    // Predicated region
    $region74: #{blk_forward.1} parent=1 // pred_check
      _
    $region75: #{blk_forward.1} parent=1 // pred_check_branch
      %144 = sbr.rel (0) target = $region77
    $region76: #{blk_forward.1} parent=1 // pred_region
      _
    $region77: #{blk_forward.1} parent=1 // pred_fallthru
      _
    // Predicated region
    $region78: #{blk_forward.1} parent=1 // pred_check
      _
    $region79: #{blk_forward.1} parent=1 // pred_check_branch
      %146 = sbr.rel (0) target = $region81
    $region80: #{blk_forward.1} parent=1 // pred_region
      _
    $region81: #{blk_forward.1} parent=1 // pred_fallthru
      _
    // Predicated region
    $region82: #{blk_forward.1} parent=1 // pred_check
      _
    $region83: #{blk_forward.1} parent=1 // pred_check_branch
      %148 = sbr.rel (0) target = $region85
    $region84: #{blk_forward.1} parent=1 // pred_region
      _
    $region85: #{blk_forward.1} parent=1 // pred_fallthru
      _
    // Predicated region
    $region86: #{blk_forward.1} parent=1 // pred_check
      _
    $region87: #{blk_forward.1} parent=1 // pred_check_branch
      %150 = sbr.rel (0) target = $region89
    $region88: #{blk_forward.1} parent=1 // pred_region
      _
    $region89: #{blk_forward.1} parent=1 // pred_fallthru
      _
    // Predicated region
    $region90: #{blk_forward.1} parent=1 // pred_check
      _
    $region91: #{blk_forward.1} parent=1 // pred_check_branch
      %152 = sbr.rel (0) target = $region93
    $region92: #{blk_forward.1} parent=1 // pred_region
      %s154 = ssub.s32 768, 768
      %155 = vsyncadd [#allocation14], %s154
      %s156 = sshll.u32 [#allocation15], 4
      %s157 = int_to_ptr.vmem [resolvable:$true] %s156
      %162 = dma.hbm_to_vmem [thread:$0]  %s22, 768, %s157, [#allocation14], 128, 128, 8
    $region93: #{blk_forward.1} parent=1 // pred_fallthru
      _
    // Predicated region
    $region94: #{blk_forward.1} parent=1 // pred_check
      _
    $region95: #{blk_forward.1} parent=1 // pred_check_branch
      %164 = sbr.rel (0) target = $region97
    $region96: #{blk_forward.1} parent=1 // pred_region
      %165 = dma.done [#allocation3], 3072
    $region97: #{blk_forward.1} parent=1 // pred_fallthru
      _
    // Predicated region
    $region98: #{blk_forward.1} parent=1 // pred_check
      _
    $region99: #{blk_forward.1} parent=1 // pred_check_branch
      %167 = sbr.rel (0) target = $region101
    $region100: #{blk_forward.1} parent=1 // pred_region
      %168 = dma.done [#allocation5], 4608
    $region101: #{blk_forward.1} parent=1 // pred_fallthru
      _
    // Predicated region
    $region102: #{blk_forward.1} parent=1 // pred_check
      _
    $region103: #{blk_forward.1} parent=1 // pred_check_branch
      %170 = sbr.rel (0) target = $region105
    $region104: #{blk_forward.1} parent=1 // pred_region
      %171 = dma.done [#allocation5], 512
    $region105: #{blk_forward.1} parent=1 // pred_fallthru
      _
    // Predicated region
    $region106: #{blk_forward.1} parent=1 // pred_check
      _
    $region107: #{blk_forward.1} parent=1 // pred_check_branch
      %173 = sbr.rel (0) target = $region109
    $region108: #{blk_forward.1} parent=1 // pred_region
      %174 = dma.done [#allocation8], 16
    $region109: #{blk_forward.1} parent=1 // pred_fallthru
      _
    // Predicated region
    $region110: #{blk_forward.1} parent=1 // pred_check
      _
    $region111: #{blk_forward.1} parent=1 // pred_check_branch
      %176 = sbr.rel (0) target = $region113
    $region112: #{blk_forward.1} parent=1 // pred_region
      %177 = dma.done [#allocation8], 4608
    $region113: #{blk_forward.1} parent=1 // pred_fallthru
      _
    // Predicated region
    $region114: #{blk_forward.1} parent=1 // pred_check
      _
    $region115: #{blk_forward.1} parent=1 // pred_check_branch
      %179 = sbr.rel (0) target = $region117
    $region116: #{blk_forward.1} parent=1 // pred_region
      %180 = dma.done [#allocation11], 256
    $region117: #{blk_forward.1} parent=1 // pred_fallthru
      _
    // Predicated region
    $region118: #{blk_forward.1} parent=1 // pred_check
      _
    $region119: #{blk_forward.1} parent=1 // pred_check_branch
      %182 = sbr.rel (0) target = $region121
    $region120: #{blk_forward.1} parent=1 // pred_region
      %183 = dma.done [#allocation11], 16
    $region121: #{blk_forward.1} parent=1 // pred_fallthru
      _
    // Predicated region
    $region122: #{blk_forward.1} parent=1 // pred_check
      _
    $region123: #{blk_forward.1} parent=1 // pred_check_branch
      %185 = sbr.rel (0) target = $region125
    $region124: #{blk_forward.1} parent=1 // pred_region
      %186 = dma.done [#allocation14], 16
    $region125: #{blk_forward.1} parent=1 // pred_fallthru
      _
    // Predicated region
    $region126: #{blk_forward.1} parent=1 // pred_check
      _
    $region127: #{blk_forward.1} parent=1 // pred_check_branch
      %188 = sbr.rel (0) target = $region129
    $region128: #{blk_forward.1} parent=1 // pred_region
      %189 = dma.done [#allocation14], 768
    $region129: #{blk_forward.1} parent=1 // pred_fallthru
      _
    %v190 = vld [vmem:[#allocation2] sm:$0xff]
    %v191 = vld [vmem:[#allocation2 + $0x8] sm:$0xff]
    %v192 = vld [vmem:[#allocation2 + $0x10] sm:$0xff]
    %v193 = vld [vmem:[#allocation2 + $0x18] sm:$0xff]
    %v194 = vld [vmem:[#allocation2 + $0x20] sm:$0xff]
    %v195 = vld [vmem:[#allocation2 + $0x28] sm:$0xff]
    %v196 = vld [vmem:[#allocation2 + $0x30] sm:$0xff]
    %v197 = vld [vmem:[#allocation2 + $0x38] sm:$0xff]
    %v198 = vld [vmem:[#allocation2 + $0x40] sm:$0xff]
    %v199 = vld [vmem:[#allocation2 + $0x48] sm:$0xff]
    %v200 = vld [vmem:[#allocation2 + $0x50] sm:$0xff]
    %v201 = vld [vmem:[#allocation2 + $0x58] sm:$0xff]
    %s202 = scalar_lea.vmem [#allocation2], 96
    %v203 = vld [vmem:[%s202] sm:$0xff]
    %v204 = vld [vmem:[%s202 + $0x8] sm:$0xff]
    %v205 = vld [vmem:[%s202 + $0x10] sm:$0xff]
    %v206 = vld [vmem:[%s202 + $0x18] sm:$0xff]
    %v207 = vld [vmem:[%s202 + $0x20] sm:$0xff]
    %v208 = vld [vmem:[%s202 + $0x28] sm:$0xff]
    %v209 = vld [vmem:[%s202 + $0x30] sm:$0xff]
    %v210 = vld [vmem:[%s202 + $0x38] sm:$0xff]
    %v211 = vld [vmem:[%s202 + $0x40] sm:$0xff]
    %v212 = vld [vmem:[%s202 + $0x48] sm:$0xff]
    %v213 = vld [vmem:[%s202 + $0x50] sm:$0xff]
    %v214 = vld [vmem:[%s202 + $0x58] sm:$0xff]
    %227 = vrot.lane.b32.xlu0 %v203, 32
    %v228 = vpop.permute.xlu0 %227
    %229 = vrot.lane.b32.xlu0 %v204, 32
    %v230 = vpop.permute.xlu0 %229
    %231 = vrot.lane.b32.xlu0 %v205, 32
    %v232 = vpop.permute.xlu0 %231
    %233 = vrot.lane.b32.xlu0 %v206, 32
    %v234 = vpop.permute.xlu0 %233
    %235 = vrot.lane.b32.xlu0 %v207, 32
    %v236 = vpop.permute.xlu0 %235
    %237 = vrot.lane.b32.xlu0 %v208, 32
    %v238 = vpop.permute.xlu0 %237
    %239 = vrot.lane.b32.xlu0 %v209, 32
    %v240 = vpop.permute.xlu0 %239
    %241 = vrot.lane.b32.xlu0 %v210, 32
    %v242 = vpop.permute.xlu0 %241
    %243 = vrot.lane.b32.xlu0 %v211, 32
    %v244 = vpop.permute.xlu0 %243
    %245 = vrot.lane.b32.xlu0 %v212, 32
    %v246 = vpop.permute.xlu0 %245
    %247 = vrot.lane.b32.xlu0 %v213, 32
    %v248 = vpop.permute.xlu0 %247
    %249 = vrot.lane.b32.xlu0 %v214, 32
    %v250 = vpop.permute.xlu0 %249
    %vm263 = vcmask 261120
    %v264 = vsel %vm263, %v190, %v228
    %v265 = vsel %vm263, %v191, %v230
    %v266 = vsel %vm263, %v192, %v232
    %v267 = vsel %vm263, %v193, %v234
    %v268 = vsel %vm263, %v194, %v236
    %v269 = vsel %vm263, %v195, %v238
    %v270 = vsel %vm263, %v196, %v240
    %v271 = vsel %vm263, %v197, %v242
    %v272 = vsel %vm263, %v198, %v244
    %v273 = vsel %vm263, %v199, %v246
    %v274 = vsel %vm263, %v200, %v248
    %v275 = vsel %vm263, %v201, %v250
    %v276 = vld [vmem:[%s2] sm:$0xff]
    %v277 = vld [vmem:[%s2 + $0x8] sm:$0xff]
    %v278 = vld [vmem:[%s2 + $0x10] sm:$0xff]
    %v279 = vld [vmem:[%s2 + $0x18] sm:$0xff]
    %v280 = vld [vmem:[%s2 + $0x20] sm:$0xff]
    %v281 = vld [vmem:[%s2 + $0x28] sm:$0xff]
    %v282 = vld [vmem:[%s2 + $0x30] sm:$0xff]
    %v283 = vld [vmem:[%s2 + $0x38] sm:$0xff]
    %vm284 = vcmask 523264
    %v286 = vsel %vm284, %v264, 0
    %v289 = vsel %vm284, %v265, 0
    %v292 = vsel %vm284, %v266, 0
    %v295 = vsel %vm284, %v267, 0
    %v298 = vsel %vm284, %v268, 0
    %v301 = vsel %vm284, %v269, 0
    %v304 = vsel %vm284, %v270, 0
    %v307 = vsel %vm284, %v271, 0
    %v310 = vsel %vm284, %v272, 0
    %v313 = vsel %vm284, %v273, 0
    %v316 = vsel %vm284, %v274, 0
    %v319 = vsel %vm284, %v275, 0
    %321 = vmatprep.subr.mxu0 0.0
    %322 = vmatpush1.msra.mxu0 %v276
    %323 = vmatprep.subr.mxu0 0.0
    %324 = vmatpush1.msra.mxu0 %v277
    %325 = vmatprep.subr.mxu0 0.0
    %326 = vmatpush1.msra.mxu0 %v278
    %327 = vmatprep.subr.mxu0 0.0
    %328 = vmatpush1.msra.mxu0 %v279
    %329 = vmatprep.subr.mxu0 0.0
    %330 = vmatpush1.msra.mxu0 %v280
    %331 = vmatprep.subr.mxu0 0.0
    %332 = vmatpush1.msra.mxu0 %v281
    %333 = vmatprep.subr.mxu0 0.0
    %334 = vmatpush1.msra.mxu0 %v282
    %335 = vmatprep.subr.mxu0 0.0
    %336 = vmatpush1.msra.mxu0 %v283
    %337 = vmatprep.subr.mxu0 0.0
    %338 = vmatpush1.msra.mxu0 0.0
    %339 = vmatprep.subr.mxu0 0.0
    %340 = vmatpush1.msra.mxu0 0.0
    %341 = vmatprep.subr.mxu0 0.0
    %342 = vmatpush1.msra.mxu0 0.0
    %343 = vmatprep.subr.mxu0 0.0
    %344 = vmatpush1.msra.mxu0 0.0
    %345 = vmatprep.subr.mxu0 0.0
    %346 = vmatpush1.msra.mxu0 0.0
    %347 = vmatprep.subr.mxu0 0.0
    %348 = vmatpush1.msra.mxu0 0.0
    %349 = vmatprep.subr.mxu0 0.0
    %350 = vmatpush1.msra.mxu0 0.0
    %351 = vmatprep.subr.mxu0 0.0
    %352 = vmatpush1.msra.mxu0 0.0
    %353 = vmatprep.subr.mxu0 0.0
    %354 = vmatpush1.msra.mxu0 0.0
    %355 = vmatprep.subr.mxu0 0.0
    %356 = vmatpush1.msra.mxu0 0.0
    %357 = vmatprep.subr.mxu0 0.0
    %358 = vmatpush1.msra.mxu0 0.0
    %359 = vmatprep.subr.mxu0 0.0
    %360 = vmatpush1.msra.mxu0 0.0
    %361 = vmatprep.subr.mxu0 0.0
    %362 = vmatpush1.msra.mxu0 0.0
    %363 = vmatprep.subr.mxu0 0.0
    %364 = vmatpush1.msra.mxu0 0.0
    %365 = vmatprep.subr.mxu0 0.0
    %366 = vmatpush1.msra.mxu0 0.0
    %367 = vmatprep.subr.mxu0 0.0
    %368 = vmatpush1.msra.mxu0 0.0
    %369 = vmatprep.subr.mxu0 0.0
    %370 = vmatpush1.msra.mxu0 0.0
    %371 = vmatprep.subr.mxu0 0.0
    %372 = vmatpush1.msra.mxu0 0.0
    %373 = vmatprep.subr.mxu0 0.0
    %374 = vmatpush1.msra.mxu0 0.0
    %375 = vmatprep.subr.mxu0 0.0
    %376 = vmatpush1.msra.mxu0 0.0
    %377 = vmatprep.subr.mxu0 0.0
    %378 = vmatpush1.msra.mxu0 0.0
    %379 = vmatprep.subr.mxu0 0.0
    %380 = vmatpush1.msra.mxu0 0.0
    %381 = vmatprep.subr.mxu0 0.0
    %382 = vmatpush1.msra.mxu0 0.0
    %383 = vmatprep.subr.mxu0 0.0
    %384 = vmatpush1.msra.mxu0 0.0
    %385 = vmatprep.mubr.f32.mxu0 0.0
    %386 = vmatmul.mubr.f32.gmra.mrb[0].mxu0 %v286
    %v387 = vpop.f32.mrb[0].mxu0
    %v388 = vadd.f32 0.0, %v387
    %v389 = vpop.f32.mrb[0].mxu0
    %390 = vmatprep.mubr.f32.mxu0 0.0
    %391 = vmatmul.mubr.f32.gmra.mrb[0].mxu0 %v289
    %v392 = vpop.f32.mrb[0].mxu0
    %v393 = vadd.f32 0.0, %v392
    %v394 = vpop.f32.mrb[0].mxu0
    %395 = vmatprep.mubr.f32.mxu0 0.0
    %396 = vmatmul.mubr.f32.gmra.mrb[0].mxu0 %v292
    %v397 = vpop.f32.mrb[0].mxu0
    %v398 = vadd.f32 0.0, %v397
    %v399 = vpop.f32.mrb[0].mxu0
    %400 = vmatprep.mubr.f32.mxu0 0.0
    %401 = vmatmul.mubr.f32.gmra.mrb[0].mxu0 %v295
    %v402 = vpop.f32.mrb[0].mxu0
    %v403 = vadd.f32 0.0, %v402
    %v404 = vpop.f32.mrb[0].mxu0
    %405 = vmatprep.mubr.f32.mxu0 0.0
    %406 = vmatmul.mubr.f32.gmra.mrb[0].mxu0 %v298
    %v407 = vpop.f32.mrb[0].mxu0
    %v408 = vadd.f32 0.0, %v407
    %v409 = vpop.f32.mrb[0].mxu0
    %410 = vmatprep.mubr.f32.mxu0 0.0
    %411 = vmatmul.mubr.f32.gmra.mrb[0].mxu0 %v301
    %v412 = vpop.f32.mrb[0].mxu0
    %v413 = vadd.f32 0.0, %v412
    %v414 = vpop.f32.mrb[0].mxu0
    %415 = vmatprep.mubr.f32.mxu0 0.0
    %416 = vmatmul.mubr.f32.gmra.mrb[0].mxu0 %v304
    %v417 = vpop.f32.mrb[0].mxu0
    %v418 = vadd.f32 0.0, %v417
    %v419 = vpop.f32.mrb[0].mxu0
    %420 = vmatprep.mubr.f32.mxu0 0.0
    %421 = vmatmul.mubr.f32.gmra.mrb[0].mxu0 %v307
    %v422 = vpop.f32.mrb[0].mxu0
    %v423 = vadd.f32 0.0, %v422
    %v424 = vpop.f32.mrb[0].mxu0
    %425 = vmatprep.mubr.f32.mxu0 0.0
    %426 = vmatmul.mubr.f32.gmra.mrb[0].mxu0 %v310
    %v427 = vpop.f32.mrb[0].mxu0
    %v428 = vadd.f32 0.0, %v427
    %v429 = vpop.f32.mrb[0].mxu0
    %430 = vmatprep.mubr.f32.mxu0 0.0
    %431 = vmatmul.mubr.f32.gmra.mrb[0].mxu0 %v313
    %v432 = vpop.f32.mrb[0].mxu0
    %v433 = vadd.f32 0.0, %v432
    %v434 = vpop.f32.mrb[0].mxu0
    %435 = vmatprep.mubr.f32.mxu0 0.0
    %436 = vmatmul.mubr.f32.gmra.mrb[0].mxu0 %v316
    %v437 = vpop.f32.mrb[0].mxu0
    %v438 = vadd.f32 0.0, %v437
    %v439 = vpop.f32.mrb[0].mxu0
    %440 = vmatprep.mubr.f32.mxu0 0.0
    %441 = vmatmul.mubr.f32.gmra.mrb[0].mxu0 %v319
    %v442 = vpop.f32.mrb[0].mxu0
    %v443 = vadd.f32 0.0, %v442
    %v444 = vpop.f32.mrb[0].mxu0
    %445 = vdwg.mxu0
    %s446 = scalar_lea.vmem %s2, 64
    %v447 = vld [vmem:[%s446] sm:$0xff]
    %v448 = vld [vmem:[%s446 + $0x8] sm:$0xff]
    %v449 = vld [vmem:[%s446 + $0x10] sm:$0xff]
    %v450 = vld [vmem:[%s446 + $0x18] sm:$0xff]
    %v451 = vld [vmem:[%s446 + $0x20] sm:$0xff]
    %v452 = vld [vmem:[%s446 + $0x28] sm:$0xff]
    %v453 = vld [vmem:[%s446 + $0x30] sm:$0xff]
    %v454 = vld [vmem:[%s446 + $0x38] sm:$0xff]
    %455 = vmatprep.subr.mxu0 0.0
    %456 = vmatpush1.msra.mxu0 %v447
    %457 = vmatprep.subr.mxu0 0.0
    %458 = vmatpush1.msra.mxu0 %v448
    %459 = vmatprep.subr.mxu0 0.0
    %460 = vmatpush1.msra.mxu0 %v449
    %461 = vmatprep.subr.mxu0 0.0
    %462 = vmatpush1.msra.mxu0 %v450
    %463 = vmatprep.subr.mxu0 0.0
    %464 = vmatpush1.msra.mxu0 %v451
    %465 = vmatprep.subr.mxu0 0.0
    %466 = vmatpush1.msra.mxu0 %v452
    %467 = vmatprep.subr.mxu0 0.0
    %468 = vmatpush1.msra.mxu0 %v453
    %469 = vmatprep.subr.mxu0 0.0
    %470 = vmatpush1.msra.mxu0 %v454
    %471 = vmatprep.subr.mxu0 0.0
    %472 = vmatpush1.msra.mxu0 0.0
    %473 = vmatprep.subr.mxu0 0.0
    %474 = vmatpush1.msra.mxu0 0.0
    %475 = vmatprep.subr.mxu0 0.0
    %476 = vmatpush1.msra.mxu0 0.0
    %477 = vmatprep.subr.mxu0 0.0
    %478 = vmatpush1.msra.mxu0 0.0
    %479 = vmatprep.subr.mxu0 0.0
    %480 = vmatpush1.msra.mxu0 0.0
    %481 = vmatprep.subr.mxu0 0.0
    %482 = vmatpush1.msra.mxu0 0.0
    %483 = vmatprep.subr.mxu0 0.0
    %484 = vmatpush1.msra.mxu0 0.0
    %485 = vmatprep.subr.mxu0 0.0
    %486 = vmatpush1.msra.mxu0 0.0
    %487 = vmatprep.subr.mxu0 0.0
    %488 = vmatpush1.msra.mxu0 0.0
    %489 = vmatprep.subr.mxu0 0.0
    %490 = vmatpush1.msra.mxu0 0.0
    %491 = vmatprep.subr.mxu0 0.0
    %492 = vmatpush1.msra.mxu0 0.0
    %493 = vmatprep.subr.mxu0 0.0
    %494 = vmatpush1.msra.mxu0 0.0
    %495 = vmatprep.subr.mxu0 0.0
    %496 = vmatpush1.msra.mxu0 0.0
    %497 = vmatprep.subr.mxu0 0.0
    %498 = vmatpush1.msra.mxu0 0.0
    %499 = vmatprep.subr.mxu0 0.0
    %500 = vmatpush1.msra.mxu0 0.0
    %501 = vmatprep.subr.mxu0 0.0
    %502 = vmatpush1.msra.mxu0 0.0
    %503 = vmatprep.subr.mxu0 0.0
    %504 = vmatpush1.msra.mxu0 0.0
    %505 = vmatprep.subr.mxu0 0.0
    %506 = vmatpush1.msra.mxu0 0.0
    %507 = vmatprep.subr.mxu0 0.0
    %508 = vmatpush1.msra.mxu0 0.0
    %509 = vmatprep.subr.mxu0 0.0
    %510 = vmatpush1.msra.mxu0 0.0
    %511 = vmatprep.subr.mxu0 0.0
    %512 = vmatpush1.msra.mxu0 0.0
    %513 = vmatprep.subr.mxu0 0.0
    %514 = vmatpush1.msra.mxu0 0.0
    %515 = vmatprep.subr.mxu0 0.0
    %516 = vmatpush1.msra.mxu0 0.0
    %517 = vmatprep.subr.mxu0 0.0
    %518 = vmatpush1.msra.mxu0 0.0
    %519 = vmatprep.mubr.f32.mxu0 0.0
    %520 = vmatmul.mubr.f32.gmra.mrb[0].mxu0 %v286
    %v521 = vpop.f32.mrb[0].mxu0
    %v522 = vadd.f32 0.0, %v521
    %v523 = vpop.f32.mrb[0].mxu0
    %524 = vmatprep.mubr.f32.mxu0 0.0
    %525 = vmatmul.mubr.f32.gmra.mrb[0].mxu0 %v289
    %v526 = vpop.f32.mrb[0].mxu0
    %v527 = vadd.f32 0.0, %v526
    %v528 = vpop.f32.mrb[0].mxu0
    %529 = vmatprep.mubr.f32.mxu0 0.0
    %530 = vmatmul.mubr.f32.gmra.mrb[0].mxu0 %v292
    %v531 = vpop.f32.mrb[0].mxu0
    %v532 = vadd.f32 0.0, %v531
    %v533 = vpop.f32.mrb[0].mxu0
    %534 = vmatprep.mubr.f32.mxu0 0.0
    %535 = vmatmul.mubr.f32.gmra.mrb[0].mxu0 %v295
    %v536 = vpop.f32.mrb[0].mxu0
    %v537 = vadd.f32 0.0, %v536
    %v538 = vpop.f32.mrb[0].mxu0
    %539 = vmatprep.mubr.f32.mxu0 0.0
    %540 = vmatmul.mubr.f32.gmra.mrb[0].mxu0 %v298
    %v541 = vpop.f32.mrb[0].mxu0
    %v542 = vadd.f32 0.0, %v541
    %v543 = vpop.f32.mrb[0].mxu0
    %544 = vmatprep.mubr.f32.mxu0 0.0
    %545 = vmatmul.mubr.f32.gmra.mrb[0].mxu0 %v301
    %v546 = vpop.f32.mrb[0].mxu0
    %v547 = vadd.f32 0.0, %v546
    %v548 = vpop.f32.mrb[0].mxu0
    %549 = vmatprep.mubr.f32.mxu0 0.0
    %550 = vmatmul.mubr.f32.gmra.mrb[0].mxu0 %v304
    %v551 = vpop.f32.mrb[0].mxu0
    %v552 = vadd.f32 0.0, %v551
    %v553 = vpop.f32.mrb[0].mxu0
    %554 = vmatprep.mubr.f32.mxu0 0.0
    %555 = vmatmul.mubr.f32.gmra.mrb[0].mxu0 %v307
    %v556 = vpop.f32.mrb[0].mxu0
    %v557 = vadd.f32 0.0, %v556
    %v558 = vpop.f32.mrb[0].mxu0
    %559 = vmatprep.mubr.f32.mxu0 0.0
    %560 = vmatmul.mubr.f32.gmra.mrb[0].mxu0 %v310
    %v561 = vpop.f32.mrb[0].mxu0
    %v562 = vadd.f32 0.0, %v561
    %v563 = vpop.f32.mrb[0].mxu0
    %564 = vmatprep.mubr.f32.mxu0 0.0
    %565 = vmatmul.mubr.f32.gmra.mrb[0].mxu0 %v313
    %v566 = vpop.f32.mrb[0].mxu0
    %v567 = vadd.f32 0.0, %v566
    %v568 = vpop.f32.mrb[0].mxu0
    %569 = vmatprep.mubr.f32.mxu0 0.0
    %570 = vmatmul.mubr.f32.gmra.mrb[0].mxu0 %v316
    %v571 = vpop.f32.mrb[0].mxu0
    %v572 = vadd.f32 0.0, %v571
    %v573 = vpop.f32.mrb[0].mxu0
    %574 = vmatprep.mubr.f32.mxu0 0.0
    %575 = vmatmul.mubr.f32.gmra.mrb[0].mxu0 %v319
    %v576 = vpop.f32.mrb[0].mxu0
    %v577 = vadd.f32 0.0, %v576
    %v578 = vpop.f32.mrb[0].mxu0
    %579 = vdwg.mxu0
    %s580 = scalar_lea.vmem %s2, 128
    %v581 = vld [vmem:[%s580] sm:$0xff]
    %v582 = vld [vmem:[%s580 + $0x8] sm:$0xff]
    %v583 = vld [vmem:[%s580 + $0x10] sm:$0xff]
    %v584 = vld [vmem:[%s580 + $0x18] sm:$0xff]
    %v585 = vld [vmem:[%s580 + $0x20] sm:$0xff]
    %v586 = vld [vmem:[%s580 + $0x28] sm:$0xff]
    %v587 = vld [vmem:[%s580 + $0x30] sm:$0xff]
    %v588 = vld [vmem:[%s580 + $0x38] sm:$0xff]
    %589 = vmatprep.subr.mxu0 0.0
    %590 = vmatpush1.msra.mxu0 %v581
    %591 = vmatprep.subr.mxu0 0.0
    %592 = vmatpush1.msra.mxu0 %v582
    %593 = vmatprep.subr.mxu0 0.0
    %594 = vmatpush1.msra.mxu0 %v583
    %595 = vmatprep.subr.mxu0 0.0
    %596 = vmatpush1.msra.mxu0 %v584
    %597 = vmatprep.subr.mxu0 0.0
    %598 = vmatpush1.msra.mxu0 %v585
    %599 = vmatprep.subr.mxu0 0.0
    %600 = vmatpush1.msra.mxu0 %v586
    %601 = vmatprep.subr.mxu0 0.0
    %602 = vmatpush1.msra.mxu0 %v587
    %603 = vmatprep.subr.mxu0 0.0
    %604 = vmatpush1.msra.mxu0 %v588
    %605 = vmatprep.subr.mxu0 0.0
    %606 = vmatpush1.msra.mxu0 0.0
    %607 = vmatprep.subr.mxu0 0.0
    %608 = vmatpush1.msra.mxu0 0.0
    %609 = vmatprep.subr.mxu0 0.0
    %610 = vmatpush1.msra.mxu0 0.0
    %611 = vmatprep.subr.mxu0 0.0
    %612 = vmatpush1.msra.mxu0 0.0
    %613 = vmatprep.subr.mxu0 0.0
    %614 = vmatpush1.msra.mxu0 0.0
    %615 = vmatprep.subr.mxu0 0.0
    %616 = vmatpush1.msra.mxu0 0.0
    %617 = vmatprep.subr.mxu0 0.0
    %618 = vmatpush1.msra.mxu0 0.0
    %619 = vmatprep.subr.mxu0 0.0
    %620 = vmatpush1.msra.mxu0 0.0
    %621 = vmatprep.subr.mxu0 0.0
    %622 = vmatpush1.msra.mxu0 0.0
    %623 = vmatprep.subr.mxu0 0.0
    %624 = vmatpush1.msra.mxu0 0.0
    %625 = vmatprep.subr.mxu0 0.0
    %626 = vmatpush1.msra.mxu0 0.0
    %627 = vmatprep.subr.mxu0 0.0
    %628 = vmatpush1.msra.mxu0 0.0
    %629 = vmatprep.subr.mxu0 0.0
    %630 = vmatpush1.msra.mxu0 0.0
    %631 = vmatprep.subr.mxu0 0.0
    %632 = vmatpush1.msra.mxu0 0.0
    %633 = vmatprep.subr.mxu0 0.0
    %634 = vmatpush1.msra.mxu0 0.0
    %635 = vmatprep.subr.mxu0 0.0
    %636 = vmatpush1.msra.mxu0 0.0
    %637 = vmatprep.subr.mxu0 0.0
    %638 = vmatpush1.msra.mxu0 0.0
    %639 = vmatprep.subr.mxu0 0.0
    %640 = vmatpush1.msra.mxu0 0.0
    %641 = vmatprep.subr.mxu0 0.0
    %642 = vmatpush1.msra.mxu0 0.0
    %643 = vmatprep.subr.mxu0 0.0
    %644 = vmatpush1.msra.mxu0 0.0
    %645 = vmatprep.subr.mxu0 0.0
    %646 = vmatpush1.msra.mxu0 0.0
    %647 = vmatprep.subr.mxu0 0.0
    %648 = vmatpush1.msra.mxu0 0.0
    %649 = vmatprep.subr.mxu0 0.0
    %650 = vmatpush1.msra.mxu0 0.0
    %651 = vmatprep.subr.mxu0 0.0
    %652 = vmatpush1.msra.mxu0 0.0
    %653 = vmatprep.mubr.f32.mxu0 0.0
    %654 = vmatmul.mubr.f32.gmra.mrb[0].mxu0 %v286
    %v655 = vpop.f32.mrb[0].mxu0
    %v656 = vadd.f32 0.0, %v655
    %v657 = vpop.f32.mrb[0].mxu0
    %658 = vmatprep.mubr.f32.mxu0 0.0
    %659 = vmatmul.mubr.f32.gmra.mrb[0].mxu0 %v289
    %v660 = vpop.f32.mrb[0].mxu0
    %v661 = vadd.f32 0.0, %v660
    %v662 = vpop.f32.mrb[0].mxu0
    %663 = vmatprep.mubr.f32.mxu0 0.0
    %664 = vmatmul.mubr.f32.gmra.mrb[0].mxu0 %v292
    %v665 = vpop.f32.mrb[0].mxu0
    %v666 = vadd.f32 0.0, %v665
    %v667 = vpop.f32.mrb[0].mxu0
    %668 = vmatprep.mubr.f32.mxu0 0.0
    %669 = vmatmul.mubr.f32.gmra.mrb[0].mxu0 %v295
    %v670 = vpop.f32.mrb[0].mxu0
    %v671 = vadd.f32 0.0, %v670
    %v672 = vpop.f32.mrb[0].mxu0
    %673 = vmatprep.mubr.f32.mxu0 0.0
    %674 = vmatmul.mubr.f32.gmra.mrb[0].mxu0 %v298
    %v675 = vpop.f32.mrb[0].mxu0
    %v676 = vadd.f32 0.0, %v675
    %v677 = vpop.f32.mrb[0].mxu0
    %678 = vmatprep.mubr.f32.mxu0 0.0
    %679 = vmatmul.mubr.f32.gmra.mrb[0].mxu0 %v301
    %v680 = vpop.f32.mrb[0].mxu0
    %v681 = vadd.f32 0.0, %v680
    %v682 = vpop.f32.mrb[0].mxu0
    %683 = vmatprep.mubr.f32.mxu0 0.0
    %684 = vmatmul.mubr.f32.gmra.mrb[0].mxu0 %v304
    %v685 = vpop.f32.mrb[0].mxu0
    %v686 = vadd.f32 0.0, %v685
    %v687 = vpop.f32.mrb[0].mxu0
    %688 = vmatprep.mubr.f32.mxu0 0.0
    %689 = vmatmul.mubr.f32.gmra.mrb[0].mxu0 %v307
    %v690 = vpop.f32.mrb[0].mxu0
    %v691 = vadd.f32 0.0, %v690
    %v692 = vpop.f32.mrb[0].mxu0
    %693 = vmatprep.mubr.f32.mxu0 0.0
    %694 = vmatmul.mubr.f32.gmra.mrb[0].mxu0 %v310
    %v695 = vpop.f32.mrb[0].mxu0
    %v696 = vadd.f32 0.0, %v695
    %v697 = vpop.f32.mrb[0].mxu0
    %698 = vmatprep.mubr.f32.mxu0 0.0
    %699 = vmatmul.mubr.f32.gmra.mrb[0].mxu0 %v313
    %v700 = vpop.f32.mrb[0].mxu0
    %v701 = vadd.f32 0.0, %v700
    %v702 = vpop.f32.mrb[0].mxu0
    %703 = vmatprep.mubr.f32.mxu0 0.0
    %704 = vmatmul.mubr.f32.gmra.mrb[0].mxu0 %v316
    %v705 = vpop.f32.mrb[0].mxu0
    %v706 = vadd.f32 0.0, %v705
    %v707 = vpop.f32.mrb[0].mxu0
    %708 = vmatprep.mubr.f32.mxu0 0.0
    %709 = vmatmul.mubr.f32.gmra.mrb[0].mxu0 %v319
    %v710 = vpop.f32.mrb[0].mxu0
    %v711 = vadd.f32 0.0, %v710
    %v712 = vpop.f32.mrb[0].mxu0
    %713 = vdwg.mxu0
    %s714 = scalar_lea.vmem %s2, 192
    %v715 = vld [vmem:[%s714] sm:$0xff]
    %v716 = vld [vmem:[%s714 + $0x8] sm:$0xff]
    %v717 = vld [vmem:[%s714 + $0x10] sm:$0xff]
    %v718 = vld [vmem:[%s714 + $0x18] sm:$0xff]
    %v719 = vld [vmem:[%s714 + $0x20] sm:$0xff]
    %v720 = vld [vmem:[%s714 + $0x28] sm:$0xff]
    %v721 = vld [vmem:[%s714 + $0x30] sm:$0xff]
    %v722 = vld [vmem:[%s714 + $0x38] sm:$0xff]
    %723 = vmatprep.subr.mxu0 0.0
    %724 = vmatpush1.msra.mxu0 %v715
    %725 = vmatprep.subr.mxu0 0.0
    %726 = vmatpush1.msra.mxu0 %v716
    %727 = vmatprep.subr.mxu0 0.0
    %728 = vmatpush1.msra.mxu0 %v717
    %729 = vmatprep.subr.mxu0 0.0
    %730 = vmatpush1.msra.mxu0 %v718
    %731 = vmatprep.subr.mxu0 0.0
    %732 = vmatpush1.msra.mxu0 %v719
    %733 = vmatprep.subr.mxu0 0.0
    %734 = vmatpush1.msra.mxu0 %v720
    %735 = vmatprep.subr.mxu0 0.0
    %736 = vmatpush1.msra.mxu0 %v721
    %737 = vmatprep.subr.mxu0 0.0
    %738 = vmatpush1.msra.mxu0 %v722
    %739 = vmatprep.subr.mxu0 0.0
    %740 = vmatpush1.msra.mxu0 0.0
    %741 = vmatprep.subr.mxu0 0.0
    %742 = vmatpush1.msra.mxu0 0.0
    %743 = vmatprep.subr.mxu0 0.0
    %744 = vmatpush1.msra.mxu0 0.0
    %745 = vmatprep.subr.mxu0 0.0
    %746 = vmatpush1.msra.mxu0 0.0
    %747 = vmatprep.subr.mxu0 0.0
    %748 = vmatpush1.msra.mxu0 0.0
    %749 = vmatprep.subr.mxu0 0.0
    %750 = vmatpush1.msra.mxu0 0.0
    %751 = vmatprep.subr.mxu0 0.0
    %752 = vmatpush1.msra.mxu0 0.0
    %753 = vmatprep.subr.mxu0 0.0
    %754 = vmatpush1.msra.mxu0 0.0
    %755 = vmatprep.subr.mxu0 0.0
    %756 = vmatpush1.msra.mxu0 0.0
    %757 = vmatprep.subr.mxu0 0.0
    %758 = vmatpush1.msra.mxu0 0.0
    %759 = vmatprep.subr.mxu0 0.0
    %760 = vmatpush1.msra.mxu0 0.0
    %761 = vmatprep.subr.mxu0 0.0
    %762 = vmatpush1.msra.mxu0 0.0
    %763 = vmatprep.subr.mxu0 0.0
    %764 = vmatpush1.msra.mxu0 0.0
    %765 = vmatprep.subr.mxu0 0.0
    %766 = vmatpush1.msra.mxu0 0.0
    %767 = vmatprep.subr.mxu0 0.0
    %768 = vmatpush1.msra.mxu0 0.0
    %769 = vmatprep.subr.mxu0 0.0
    %770 = vmatpush1.msra.mxu0 0.0
    %771 = vmatprep.subr.mxu0 0.0
    %772 = vmatpush1.msra.mxu0 0.0
    %773 = vmatprep.subr.mxu0 0.0
    %774 = vmatpush1.msra.mxu0 0.0
    %775 = vmatprep.subr.mxu0 0.0
    %776 = vmatpush1.msra.mxu0 0.0
    %777 = vmatprep.subr.mxu0 0.0
    %778 = vmatpush1.msra.mxu0 0.0
    %779 = vmatprep.subr.mxu0 0.0
    %780 = vmatpush1.msra.mxu0 0.0
    %781 = vmatprep.subr.mxu0 0.0
    %782 = vmatpush1.msra.mxu0 0.0
    %783 = vmatprep.subr.mxu0 0.0
    %784 = vmatpush1.msra.mxu0 0.0
    %785 = vmatprep.subr.mxu0 0.0
    %786 = vmatpush1.msra.mxu0 0.0
    %787 = vmatprep.mubr.f32.mxu0 0.0
    %788 = vmatmul.mubr.f32.gmra.mrb[0].mxu0 %v286
    %v789 = vpop.f32.mrb[0].mxu0
    %v790 = vadd.f32 0.0, %v789
    %v791 = vpop.f32.mrb[0].mxu0
    %792 = vmatprep.mubr.f32.mxu0 0.0
    %793 = vmatmul.mubr.f32.gmra.mrb[0].mxu0 %v289
    %v794 = vpop.f32.mrb[0].mxu0
    %v795 = vadd.f32 0.0, %v794
    %v796 = vpop.f32.mrb[0].mxu0
    %797 = vmatprep.mubr.f32.mxu0 0.0
    %798 = vmatmul.mubr.f32.gmra.mrb[0].mxu0 %v292
    %v799 = vpop.f32.mrb[0].mxu0
    %v800 = vadd.f32 0.0, %v799
    %v801 = vpop.f32.mrb[0].mxu0
    %802 = vmatprep.mubr.f32.mxu0 0.0
    %803 = vmatmul.mubr.f32.gmra.mrb[0].mxu0 %v295
    %v804 = vpop.f32.mrb[0].mxu0
    %v805 = vadd.f32 0.0, %v804
    %v806 = vpop.f32.mrb[0].mxu0
    %807 = vmatprep.mubr.f32.mxu0 0.0
    %808 = vmatmul.mubr.f32.gmra.mrb[0].mxu0 %v298
    %v809 = vpop.f32.mrb[0].mxu0
    %v810 = vadd.f32 0.0, %v809
    %v811 = vpop.f32.mrb[0].mxu0
    %812 = vmatprep.mubr.f32.mxu0 0.0
    %813 = vmatmul.mubr.f32.gmra.mrb[0].mxu0 %v301
    %v814 = vpop.f32.mrb[0].mxu0
    %v815 = vadd.f32 0.0, %v814
    %v816 = vpop.f32.mrb[0].mxu0
    %817 = vmatprep.mubr.f32.mxu0 0.0
    %818 = vmatmul.mubr.f32.gmra.mrb[0].mxu0 %v304
    %v819 = vpop.f32.mrb[0].mxu0
    %v820 = vadd.f32 0.0, %v819
    %v821 = vpop.f32.mrb[0].mxu0
    %822 = vmatprep.mubr.f32.mxu0 0.0
    %823 = vmatmul.mubr.f32.gmra.mrb[0].mxu0 %v307
    %v824 = vpop.f32.mrb[0].mxu0
    %v825 = vadd.f32 0.0, %v824
    %v826 = vpop.f32.mrb[0].mxu0
    %827 = vmatprep.mubr.f32.mxu0 0.0
    %828 = vmatmul.mubr.f32.gmra.mrb[0].mxu0 %v310
    %v829 = vpop.f32.mrb[0].mxu0
    %v830 = vadd.f32 0.0, %v829
    %v831 = vpop.f32.mrb[0].mxu0
    %832 = vmatprep.mubr.f32.mxu0 0.0
    %833 = vmatmul.mubr.f32.gmra.mrb[0].mxu0 %v313
    %v834 = vpop.f32.mrb[0].mxu0
    %v835 = vadd.f32 0.0, %v834
    %v836 = vpop.f32.mrb[0].mxu0
    %837 = vmatprep.mubr.f32.mxu0 0.0
    %838 = vmatmul.mubr.f32.gmra.mrb[0].mxu0 %v316
    %v839 = vpop.f32.mrb[0].mxu0
    %v840 = vadd.f32 0.0, %v839
    %v841 = vpop.f32.mrb[0].mxu0
    %842 = vmatprep.mubr.f32.mxu0 0.0
    %843 = vmatmul.mubr.f32.gmra.mrb[0].mxu0 %v319
    %v844 = vpop.f32.mrb[0].mxu0
    %v845 = vadd.f32 0.0, %v844
    %v846 = vpop.f32.mrb[0].mxu0
    %847 = vdwg.mxu0
    %v848 = vld [vmem:[#allocation4] sm:$0xff]
    %v849 = vld [vmem:[#allocation4 + $0x8] sm:$0xff]
    %v850 = vld [vmem:[#allocation4 + $0x10] sm:$0xff]
    %v851 = vld [vmem:[#allocation4 + $0x18] sm:$0xff]
    %v852 = vld [vmem:[#allocation4 + $0x20] sm:$0xff]
    %v853 = vld [vmem:[#allocation4 + $0x28] sm:$0xff]
    %v854 = vld [vmem:[#allocation4 + $0x30] sm:$0xff]
    %v855 = vld [vmem:[#allocation4 + $0x38] sm:$0xff]
    %v856 = vld [vmem:[#allocation4 + $0x40] sm:$0xff]
    %v857 = vld [vmem:[#allocation4 + $0x48] sm:$0xff]
    %v858 = vld [vmem:[#allocation4 + $0x50] sm:$0xff]
    %v859 = vld [vmem:[#allocation4 + $0x58] sm:$0xff]
    %v860 = vld [vmem:[#allocation4 + $0x60] sm:$0xff]
    %v861 = vld [vmem:[#allocation4 + $0x68] sm:$0xff]
    %v862 = vld [vmem:[#allocation4 + $0x70] sm:$0xff]
    %v863 = vld [vmem:[#allocation4 + $0x78] sm:$0xff]
    %v864 = vld [vmem:[#allocation4 + $0x80] sm:$0xff]
    %v865 = vld [vmem:[#allocation4 + $0x88] sm:$0xff]
    %v866 = vld [vmem:[#allocation4 + $0x90] sm:$0xff]
    %v867 = vld [vmem:[#allocation4 + $0x98] sm:$0xff]
    %v868 = vld [vmem:[#allocation4 + $0xa0] sm:$0xff]
    %v869 = vld [vmem:[#allocation4 + $0xa8] sm:$0xff]
    %v870 = vld [vmem:[#allocation4 + $0xb0] sm:$0xff]
    %v871 = vld [vmem:[#allocation4 + $0xb8] sm:$0xff]
    %v872 = vld [vmem:[#allocation4 + $0xc0] sm:$0xff]
    %v873 = vld [vmem:[#allocation4 + $0xc8] sm:$0xff]
    %v874 = vld [vmem:[#allocation4 + $0xd0] sm:$0xff]
    %v875 = vld [vmem:[#allocation4 + $0xd8] sm:$0xff]
    %v876 = vld [vmem:[#allocation4 + $0xe0] sm:$0xff]
    %v877 = vld [vmem:[#allocation4 + $0xe8] sm:$0xff]
    %v878 = vld [vmem:[#allocation4 + $0xf0] sm:$0xff]
    %v879 = vld [vmem:[#allocation4 + $0xf8] sm:$0xff]
    %v880 = vld [vmem:[#allocation4 + $0x100] sm:$0xff]
    %v881 = vld [vmem:[#allocation4 + $0x108] sm:$0xff]
    %v882 = vld [vmem:[#allocation4 + $0x110] sm:$0xff]
    %v883 = vld [vmem:[#allocation4 + $0x118] sm:$0xff]
    %v884 = vld [vmem:[%s3] sm:$0xff]
    %v885 = vld [vmem:[%s3 + $0x8] sm:$0xff]
    %v886 = vld [vmem:[%s3 + $0x10] sm:$0xff]
    %v887 = vld [vmem:[%s3 + $0x18] sm:$0xff]
    %v888 = vld [vmem:[%s3 + $0x20] sm:$0xff]
    %v889 = vld [vmem:[%s3 + $0x28] sm:$0xff]
    %v890 = vld [vmem:[%s3 + $0x30] sm:$0xff]
    %v891 = vld [vmem:[%s3 + $0x38] sm:$0xff]
    %v892 = vld [vmem:[%s3 + $0x40] sm:$0xff]
    %v893 = vld [vmem:[%s3 + $0x48] sm:$0xff]
    %v894 = vld [vmem:[%s3 + $0x50] sm:$0xff]
    %v895 = vld [vmem:[%s3 + $0x58] sm:$0xff]
    %897 = vset.pattern.permute.xlu0 0
    %898 = vperm.xlu0 %897, %v884
    %v899 = vpop.permute.xlu0 %898
    %902 = vset.pattern.permute.xlu0 0
    %903 = vperm.xlu0 %902, %v885
    %v904 = vpop.permute.xlu0 %903
    %907 = vset.pattern.permute.xlu0 0
    %908 = vperm.xlu0 %907, %v886
    %v909 = vpop.permute.xlu0 %908
    %912 = vset.pattern.permute.xlu0 0
    %913 = vperm.xlu0 %912, %v887
    %v914 = vpop.permute.xlu0 %913
    %917 = vset.pattern.permute.xlu0 0
    %918 = vperm.xlu0 %917, %v888
    %v919 = vpop.permute.xlu0 %918
    %922 = vset.pattern.permute.xlu0 0
    %923 = vperm.xlu0 %922, %v889
    %v924 = vpop.permute.xlu0 %923
    %927 = vset.pattern.permute.xlu0 0
    %928 = vperm.xlu0 %927, %v890
    %v929 = vpop.permute.xlu0 %928
    %932 = vset.pattern.permute.xlu0 0
    %933 = vperm.xlu0 %932, %v891
    %v934 = vpop.permute.xlu0 %933
    %937 = vset.pattern.permute.xlu0 0
    %938 = vperm.xlu0 %937, %v892
    %v939 = vpop.permute.xlu0 %938
    %942 = vset.pattern.permute.xlu0 0
    %943 = vperm.xlu0 %942, %v893
    %v944 = vpop.permute.xlu0 %943
    %947 = vset.pattern.permute.xlu0 0
    %948 = vperm.xlu0 %947, %v894
    %v949 = vpop.permute.xlu0 %948
    %952 = vset.pattern.permute.xlu0 0
    %953 = vperm.xlu0 %952, %v895
    %v954 = vpop.permute.xlu0 %953
    %956 = vmatprep.subr.mxu0 0.0
    %957 = vmatpush1.msra.mxu0 %v388
    %958 = vmatprep.subr.mxu0 0.0
    %959 = vmatpush1.msra.mxu0 %v393
    %960 = vmatprep.subr.mxu0 0.0
    %961 = vmatpush1.msra.mxu0 %v398
    %962 = vmatprep.subr.mxu0 0.0
    %963 = vmatpush1.msra.mxu0 %v403
    %964 = vmatprep.subr.mxu0 0.0
    %965 = vmatpush1.msra.mxu0 %v408
    %966 = vmatprep.subr.mxu0 0.0
    %967 = vmatpush1.msra.mxu0 %v413
    %968 = vmatprep.subr.mxu0 0.0
    %969 = vmatpush1.msra.mxu0 %v418
    %970 = vmatprep.subr.mxu0 0.0
    %971 = vmatpush1.msra.mxu0 %v423
    %972 = vmatprep.subr.mxu0 0.0
    %973 = vmatpush1.msra.mxu0 %v428
    %974 = vmatprep.subr.mxu0 0.0
    %975 = vmatpush1.msra.mxu0 %v433
    %976 = vmatprep.subr.mxu0 0.0
    %977 = vmatpush1.msra.mxu0 %v438
    %978 = vmatprep.subr.mxu0 0.0
    %979 = vmatpush1.msra.mxu0 %v443
    %980 = vmatprep.subr.mxu0 0.0
    %981 = vmatpush1.msra.mxu0 %v522
    %982 = vmatprep.subr.mxu0 0.0
    %983 = vmatpush1.msra.mxu0 %v527
    %984 = vmatprep.subr.mxu0 0.0
    %985 = vmatpush1.msra.mxu0 %v532
    %986 = vmatprep.subr.mxu0 0.0
    %987 = vmatpush1.msra.mxu0 %v537
    %988 = vmatprep.subr.mxu0 0.0
    %989 = vmatpush1.msra.mxu0 %v542
    %990 = vmatprep.subr.mxu0 0.0
    %991 = vmatpush1.msra.mxu0 %v547
    %992 = vmatprep.subr.mxu0 0.0
    %993 = vmatpush1.msra.mxu0 %v552
    %994 = vmatprep.subr.mxu0 0.0
    %995 = vmatpush1.msra.mxu0 %v557
    %996 = vmatprep.subr.mxu0 0.0
    %997 = vmatpush1.msra.mxu0 %v562
    %998 = vmatprep.subr.mxu0 0.0
    %999 = vmatpush1.msra.mxu0 %v567
    %1000 = vmatprep.subr.mxu0 0.0
    %1001 = vmatpush1.msra.mxu0 %v572
    %1002 = vmatprep.subr.mxu0 0.0
    %1003 = vmatpush1.msra.mxu0 %v577
    %1004 = vmatprep.subr.mxu0 0.0
    %1005 = vmatpush1.msra.mxu0 %v656
    %1006 = vmatprep.subr.mxu0 0.0
    %1007 = vmatpush1.msra.mxu0 %v661
    %1008 = vmatprep.subr.mxu0 0.0
    %1009 = vmatpush1.msra.mxu0 %v666
    %1010 = vmatprep.subr.mxu0 0.0
    %1011 = vmatpush1.msra.mxu0 %v671
    %1012 = vmatprep.subr.mxu0 0.0
    %1013 = vmatpush1.msra.mxu0 %v676
    %1014 = vmatprep.subr.mxu0 0.0
    %1015 = vmatpush1.msra.mxu0 %v681
    %1016 = vmatprep.subr.mxu0 0.0
    %1017 = vmatpush1.msra.mxu0 %v686
    %1018 = vmatprep.subr.mxu0 0.0
    %1019 = vmatpush1.msra.mxu0 %v691
    %1020 = vmatprep.mubr.f32.mxu0 %v849
    %1021 = vmatmul.mubr.f32.gmra.mrb[0].mxu0 %v848
    %v1022 = vpop.f32.mrb[0].mxu0
    %v1023 = vadd.f32 %v899, %v1022
    %v1024 = vpop.f32.mrb[0].mxu0
    %1025 = vmatprep.mubr.f32.mxu0 %v852
    %1026 = vmatmul.mubr.f32.gmra.mrb[0].mxu0 %v851
    %v1027 = vpop.f32.mrb[0].mxu0
    %v1028 = vadd.f32 %v904, %v1027
    %v1029 = vpop.f32.mrb[0].mxu0
    %1030 = vmatprep.mubr.f32.mxu0 %v855
    %1031 = vmatmul.mubr.f32.gmra.mrb[0].mxu0 %v854
    %v1032 = vpop.f32.mrb[0].mxu0
    %v1033 = vadd.f32 %v909, %v1032
    %v1034 = vpop.f32.mrb[0].mxu0
    %1035 = vmatprep.mubr.f32.mxu0 %v858
    %1036 = vmatmul.mubr.f32.gmra.mrb[0].mxu0 %v857
    %v1037 = vpop.f32.mrb[0].mxu0
    %v1038 = vadd.f32 %v914, %v1037
    %v1039 = vpop.f32.mrb[0].mxu0
    %1040 = vmatprep.mubr.f32.mxu0 %v861
    %1041 = vmatmul.mubr.f32.gmra.mrb[0].mxu0 %v860
    %v1042 = vpop.f32.mrb[0].mxu0
    %v1043 = vadd.f32 %v919, %v1042
    %v1044 = vpop.f32.mrb[0].mxu0
    %1045 = vmatprep.mubr.f32.mxu0 %v864
    %1046 = vmatmul.mubr.f32.gmra.mrb[0].mxu0 %v863
    %v1047 = vpop.f32.mrb[0].mxu0
    %v1048 = vadd.f32 %v924, %v1047
    %v1049 = vpop.f32.mrb[0].mxu0
    %1050 = vmatprep.mubr.f32.mxu0 %v867
    %1051 = vmatmul.mubr.f32.gmra.mrb[0].mxu0 %v866
    %v1052 = vpop.f32.mrb[0].mxu0
    %v1053 = vadd.f32 %v929, %v1052
    %v1054 = vpop.f32.mrb[0].mxu0
    %1055 = vmatprep.mubr.f32.mxu0 %v870
    %1056 = vmatmul.mubr.f32.gmra.mrb[0].mxu0 %v869
    %v1057 = vpop.f32.mrb[0].mxu0
    %v1058 = vadd.f32 %v934, %v1057
    %v1059 = vpop.f32.mrb[0].mxu0
    %1060 = vmatprep.mubr.f32.mxu0 %v873
    %1061 = vmatmul.mubr.f32.gmra.mrb[0].mxu0 %v872
    %v1062 = vpop.f32.mrb[0].mxu0
    %v1063 = vadd.f32 %v939, %v1062
    %v1064 = vpop.f32.mrb[0].mxu0
    %1065 = vmatprep.mubr.f32.mxu0 %v876
    %1066 = vmatmul.mubr.f32.gmra.mrb[0].mxu0 %v875
    %v1067 = vpop.f32.mrb[0].mxu0
    %v1068 = vadd.f32 %v944, %v1067
    %v1069 = vpop.f32.mrb[0].mxu0
    %1070 = vmatprep.mubr.f32.mxu0 %v879
    %1071 = vmatmul.mubr.f32.gmra.mrb[0].mxu0 %v878
    %v1072 = vpop.f32.mrb[0].mxu0
    %v1073 = vadd.f32 %v949, %v1072
    %v1074 = vpop.f32.mrb[0].mxu0
    %1075 = vmatprep.mubr.f32.mxu0 %v882
    %1076 = vmatmul.mubr.f32.gmra.mrb[0].mxu0 %v881
    %v1077 = vpop.f32.mrb[0].mxu0
    %v1078 = vadd.f32 %v954, %v1077
    %v1079 = vpop.f32.mrb[0].mxu0
    %1080 = vdwg.mxu0
    %1081 = vmatprep.subr.mxu0 0.0
    %1082 = vmatpush1.msra.mxu0 %v696
    %1083 = vmatprep.subr.mxu0 0.0
    %1084 = vmatpush1.msra.mxu0 %v701
    %1085 = vmatprep.subr.mxu0 0.0
    %1086 = vmatpush1.msra.mxu0 %v706
    %1087 = vmatprep.subr.mxu0 0.0
    %1088 = vmatpush1.msra.mxu0 %v711
    %1089 = vmatprep.subr.mxu0 0.0
    %1090 = vmatpush1.msra.mxu0 %v790
    %1091 = vmatprep.subr.mxu0 0.0
    %1092 = vmatpush1.msra.mxu0 %v795
    %1093 = vmatprep.subr.mxu0 0.0
    %1094 = vmatpush1.msra.mxu0 %v800
    %1095 = vmatprep.subr.mxu0 0.0
    %1096 = vmatpush1.msra.mxu0 %v805
    %1097 = vmatprep.subr.mxu0 0.0
    %1098 = vmatpush1.msra.mxu0 %v810
    %1099 = vmatprep.subr.mxu0 0.0
    %1100 = vmatpush1.msra.mxu0 %v815
    %1101 = vmatprep.subr.mxu0 0.0
    %1102 = vmatpush1.msra.mxu0 %v820
    %1103 = vmatprep.subr.mxu0 0.0
    %1104 = vmatpush1.msra.mxu0 %v825
    %1105 = vmatprep.subr.mxu0 0.0
    %1106 = vmatpush1.msra.mxu0 %v830
    %1107 = vmatprep.subr.mxu0 0.0
    %1108 = vmatpush1.msra.mxu0 %v835
    %1109 = vmatprep.subr.mxu0 0.0
    %1110 = vmatpush1.msra.mxu0 %v840
    %1111 = vmatprep.subr.mxu0 0.0
    %1112 = vmatpush1.msra.mxu0 %v845
    %1113 = vmatprep.subr.mxu0 0.0
    %1114 = vmatpush1.msra.mxu0 0.0
    %1115 = vmatprep.subr.mxu0 0.0
    %1116 = vmatpush1.msra.mxu0 0.0
    %1117 = vmatprep.subr.mxu0 0.0
    %1118 = vmatpush1.msra.mxu0 0.0
    %1119 = vmatprep.subr.mxu0 0.0
    %1120 = vmatpush1.msra.mxu0 0.0
    %1121 = vmatprep.subr.mxu0 0.0
    %1122 = vmatpush1.msra.mxu0 0.0
    %1123 = vmatprep.subr.mxu0 0.0
    %1124 = vmatpush1.msra.mxu0 0.0
    %1125 = vmatprep.subr.mxu0 0.0
    %1126 = vmatpush1.msra.mxu0 0.0
    %1127 = vmatprep.subr.mxu0 0.0
    %1128 = vmatpush1.msra.mxu0 0.0
    %1129 = vmatprep.subr.mxu0 0.0
    %1130 = vmatpush1.msra.mxu0 0.0
    %1131 = vmatprep.subr.mxu0 0.0
    %1132 = vmatpush1.msra.mxu0 0.0
    %1133 = vmatprep.subr.mxu0 0.0
    %1134 = vmatpush1.msra.mxu0 0.0
    %1135 = vmatprep.subr.mxu0 0.0
    %1136 = vmatpush1.msra.mxu0 0.0
    %1137 = vmatprep.subr.mxu0 0.0
    %1138 = vmatpush1.msra.mxu0 0.0
    %1139 = vmatprep.subr.mxu0 0.0
    %1140 = vmatpush1.msra.mxu0 0.0
    %1141 = vmatprep.subr.mxu0 0.0
    %1142 = vmatpush1.msra.mxu0 0.0
    %1143 = vmatprep.subr.mxu0 0.0
    %1144 = vmatpush1.msra.mxu0 0.0
    %1145 = vmatprep.mubr.f32.mxu0 0.0
    %1146 = vmatmul.mubr.f32.gmra.mrb[0].mxu0 %v850
    %v1147 = vpop.f32.mrb[0].mxu0
    %v1148 = vadd.f32 %v1023, %v1147
    %v1149 = vpop.f32.mrb[0].mxu0
    %1150 = vmatprep.mubr.f32.mxu0 0.0
    %1151 = vmatmul.mubr.f32.gmra.mrb[0].mxu0 %v853
    %v1152 = vpop.f32.mrb[0].mxu0
    %v1153 = vadd.f32 %v1028, %v1152
    %v1154 = vpop.f32.mrb[0].mxu0
    %1155 = vmatprep.mubr.f32.mxu0 0.0
    %1156 = vmatmul.mubr.f32.gmra.mrb[0].mxu0 %v856
    %v1157 = vpop.f32.mrb[0].mxu0
    %v1158 = vadd.f32 %v1033, %v1157
    %v1159 = vpop.f32.mrb[0].mxu0
    %1160 = vmatprep.mubr.f32.mxu0 0.0
    %1161 = vmatmul.mubr.f32.gmra.mrb[0].mxu0 %v859
    %v1162 = vpop.f32.mrb[0].mxu0
    %v1163 = vadd.f32 %v1038, %v1162
    %v1164 = vpop.f32.mrb[0].mxu0
    %1165 = vmatprep.mubr.f32.mxu0 0.0
    %1166 = vmatmul.mubr.f32.gmra.mrb[0].mxu0 %v862
    %v1167 = vpop.f32.mrb[0].mxu0
    %v1168 = vadd.f32 %v1043, %v1167
    %v1169 = vpop.f32.mrb[0].mxu0
    %1170 = vmatprep.mubr.f32.mxu0 0.0
    %1171 = vmatmul.mubr.f32.gmra.mrb[0].mxu0 %v865
    %v1172 = vpop.f32.mrb[0].mxu0
    %v1173 = vadd.f32 %v1048, %v1172
    %v1174 = vpop.f32.mrb[0].mxu0
    %1175 = vmatprep.mubr.f32.mxu0 0.0
    %1176 = vmatmul.mubr.f32.gmra.mrb[0].mxu0 %v868
    %v1177 = vpop.f32.mrb[0].mxu0
    %v1178 = vadd.f32 %v1053, %v1177
    %v1179 = vpop.f32.mrb[0].mxu0
    %1180 = vmatprep.mubr.f32.mxu0 0.0
    %1181 = vmatmul.mubr.f32.gmra.mrb[0].mxu0 %v871
    %v1182 = vpop.f32.mrb[0].mxu0
    %v1183 = vadd.f32 %v1058, %v1182
    %v1184 = vpop.f32.mrb[0].mxu0
    %1185 = vmatprep.mubr.f32.mxu0 0.0
    %1186 = vmatmul.mubr.f32.gmra.mrb[0].mxu0 %v874
    %v1187 = vpop.f32.mrb[0].mxu0
    %v1188 = vadd.f32 %v1063, %v1187
    %v1189 = vpop.f32.mrb[0].mxu0
    %1190 = vmatprep.mubr.f32.mxu0 0.0
    %1191 = vmatmul.mubr.f32.gmra.mrb[0].mxu0 %v877
    %v1192 = vpop.f32.mrb[0].mxu0
    %v1193 = vadd.f32 %v1068, %v1192
    %v1194 = vpop.f32.mrb[0].mxu0
    %1195 = vmatprep.mubr.f32.mxu0 0.0
    %1196 = vmatmul.mubr.f32.gmra.mrb[0].mxu0 %v880
    %v1197 = vpop.f32.mrb[0].mxu0
    %v1198 = vadd.f32 %v1073, %v1197
    %v1199 = vpop.f32.mrb[0].mxu0
    %1200 = vmatprep.mubr.f32.mxu0 0.0
    %1201 = vmatmul.mubr.f32.gmra.mrb[0].mxu0 %v883
    %v1202 = vpop.f32.mrb[0].mxu0
    %v1203 = vadd.f32 %v1078, %v1202
    %v1204 = vpop.f32.mrb[0].mxu0
    %1205 = vdwg.mxu0
    %v1206 = vld [vmem:[#allocation6] sm:$0xff]
    %v1207 = vld [vmem:[#allocation6 + $0x8] sm:$0xff]
    %v1208 = vld [vmem:[#allocation6 + $0x10] sm:$0xff]
    %v1209 = vld [vmem:[#allocation6 + $0x18] sm:$0xff]
    %v1211 = vsel %vm263, %v1148, 0
    %v1214 = vsel %vm263, %v1153, 0
    %v1217 = vsel %vm263, %v1158, 0
    %v1220 = vsel %vm263, %v1163, 0
    %v1223 = vsel %vm263, %v1168, 0
    %v1226 = vsel %vm263, %v1173, 0
    %v1229 = vsel %vm263, %v1178, 0
    %v1232 = vsel %vm263, %v1183, 0
    %v1235 = vsel %vm263, %v1188, 0
    %v1238 = vsel %vm263, %v1193, 0
    %v1241 = vsel %vm263, %v1198, 0
    %v1244 = vsel %vm263, %v1203, 0
    %1246 = vmatprep.subr.mxu0 0.0
    %1247 = vmatpush1.msra.mxu0 %v1206
    %1248 = vmatprep.subr.mxu0 0.0
    %1249 = vmatpush1.msra.mxu0 %v1207
    %1250 = vmatprep.subr.mxu0 0.0
    %1251 = vmatpush1.msra.mxu0 %v1208
    %1252 = vmatprep.subr.mxu0 0.0
    %1253 = vmatpush1.msra.mxu0 %v1209
    %1254 = vmatprep.subr.mxu0 0.0
    %1255 = vmatpush1.msra.mxu0 0.0
    %1256 = vmatprep.subr.mxu0 0.0
    %1257 = vmatpush1.msra.mxu0 0.0
    %1258 = vmatprep.subr.mxu0 0.0
    %1259 = vmatpush1.msra.mxu0 0.0
    %1260 = vmatprep.subr.mxu0 0.0
    %1261 = vmatpush1.msra.mxu0 0.0
    %1262 = vmatprep.subr.mxu0 0.0
    %1263 = vmatpush1.msra.mxu0 0.0
    %1264 = vmatprep.subr.mxu0 0.0
    %1265 = vmatpush1.msra.mxu0 0.0
    %1266 = vmatprep.subr.mxu0 0.0
    %1267 = vmatpush1.msra.mxu0 0.0
    %1268 = vmatprep.subr.mxu0 0.0
    %1269 = vmatpush1.msra.mxu0 0.0
    %1270 = vmatprep.subr.mxu0 0.0
    %1271 = vmatpush1.msra.mxu0 0.0
    %1272 = vmatprep.subr.mxu0 0.0
    %1273 = vmatpush1.msra.mxu0 0.0
    %1274 = vmatprep.subr.mxu0 0.0
    %1275 = vmatpush1.msra.mxu0 0.0
    %1276 = vmatprep.subr.mxu0 0.0
    %1277 = vmatpush1.msra.mxu0 0.0
    %1278 = vmatprep.subr.mxu0 0.0
    %1279 = vmatpush1.msra.mxu0 0.0
    %1280 = vmatprep.subr.mxu0 0.0
    %1281 = vmatpush1.msra.mxu0 0.0
    %1282 = vmatprep.subr.mxu0 0.0
    %1283 = vmatpush1.msra.mxu0 0.0
    %1284 = vmatprep.subr.mxu0 0.0
    %1285 = vmatpush1.msra.mxu0 0.0
    %1286 = vmatprep.subr.mxu0 0.0
    %1287 = vmatpush1.msra.mxu0 0.0
    %1288 = vmatprep.subr.mxu0 0.0
    %1289 = vmatpush1.msra.mxu0 0.0
    %1290 = vmatprep.subr.mxu0 0.0
    %1291 = vmatpush1.msra.mxu0 0.0
    %1292 = vmatprep.subr.mxu0 0.0
    %1293 = vmatpush1.msra.mxu0 0.0
    %1294 = vmatprep.subr.mxu0 0.0
    %1295 = vmatpush1.msra.mxu0 0.0
    %1296 = vmatprep.subr.mxu0 0.0
    %1297 = vmatpush1.msra.mxu0 0.0
    %1298 = vmatprep.subr.mxu0 0.0
    %1299 = vmatpush1.msra.mxu0 0.0
    %1300 = vmatprep.subr.mxu0 0.0
    %1301 = vmatpush1.msra.mxu0 0.0
    %1302 = vmatprep.subr.mxu0 0.0
    %1303 = vmatpush1.msra.mxu0 0.0
    %1304 = vmatprep.subr.mxu0 0.0
    %1305 = vmatpush1.msra.mxu0 0.0
    %1306 = vmatprep.subr.mxu0 0.0
    %1307 = vmatpush1.msra.mxu0 0.0
    %1308 = vmatprep.subr.mxu0 0.0
    %1309 = vmatpush1.msra.mxu0 0.0
    %1310 = vmatprep.mubr.f32.mxu0 0.0
    %1311 = vmatmul.mubr.f32.gmra.mrb[0].mxu0 %v1211
    %v1312 = vpop.f32.mrb[0].mxu0
    %v1313 = vadd.f32 0.0, %v1312
    %v1314 = vpop.f32.mrb[0].mxu0
    %1315 = vmatprep.mubr.f32.mxu0 0.0
    %1316 = vmatmul.mubr.f32.gmra.mrb[0].mxu0 %v1214
    %v1317 = vpop.f32.mrb[0].mxu0
    %v1318 = vadd.f32 0.0, %v1317
    %v1319 = vpop.f32.mrb[0].mxu0
    %1320 = vmatprep.mubr.f32.mxu0 0.0
    %1321 = vmatmul.mubr.f32.gmra.mrb[0].mxu0 %v1217
    %v1322 = vpop.f32.mrb[0].mxu0
    %v1323 = vadd.f32 0.0, %v1322
    %v1324 = vpop.f32.mrb[0].mxu0
    %1325 = vmatprep.mubr.f32.mxu0 0.0
    %1326 = vmatmul.mubr.f32.gmra.mrb[0].mxu0 %v1220
    %v1327 = vpop.f32.mrb[0].mxu0
    %v1328 = vadd.f32 0.0, %v1327
    %v1329 = vpop.f32.mrb[0].mxu0
    %1330 = vmatprep.mubr.f32.mxu0 0.0
    %1331 = vmatmul.mubr.f32.gmra.mrb[0].mxu0 %v1223
    %v1332 = vpop.f32.mrb[0].mxu0
    %v1333 = vadd.f32 0.0, %v1332
    %v1334 = vpop.f32.mrb[0].mxu0
    %1335 = vmatprep.mubr.f32.mxu0 0.0
    %1336 = vmatmul.mubr.f32.gmra.mrb[0].mxu0 %v1226
    %v1337 = vpop.f32.mrb[0].mxu0
    %v1338 = vadd.f32 0.0, %v1337
    %v1339 = vpop.f32.mrb[0].mxu0
    %1340 = vmatprep.mubr.f32.mxu0 0.0
    %1341 = vmatmul.mubr.f32.gmra.mrb[0].mxu0 %v1229
    %v1342 = vpop.f32.mrb[0].mxu0
    %v1343 = vadd.f32 0.0, %v1342
    %v1344 = vpop.f32.mrb[0].mxu0
    %1345 = vmatprep.mubr.f32.mxu0 0.0
    %1346 = vmatmul.mubr.f32.gmra.mrb[0].mxu0 %v1232
    %v1347 = vpop.f32.mrb[0].mxu0
    %v1348 = vadd.f32 0.0, %v1347
    %v1349 = vpop.f32.mrb[0].mxu0
    %1350 = vmatprep.mubr.f32.mxu0 0.0
    %1351 = vmatmul.mubr.f32.gmra.mrb[0].mxu0 %v1235
    %v1352 = vpop.f32.mrb[0].mxu0
    %v1353 = vadd.f32 0.0, %v1352
    %v1354 = vpop.f32.mrb[0].mxu0
    %1355 = vmatprep.mubr.f32.mxu0 0.0
    %1356 = vmatmul.mubr.f32.gmra.mrb[0].mxu0 %v1238
    %v1357 = vpop.f32.mrb[0].mxu0
    %v1358 = vadd.f32 0.0, %v1357
    %v1359 = vpop.f32.mrb[0].mxu0
    %1360 = vmatprep.mubr.f32.mxu0 0.0
    %1361 = vmatmul.mubr.f32.gmra.mrb[0].mxu0 %v1241
    %v1362 = vpop.f32.mrb[0].mxu0
    %v1363 = vadd.f32 0.0, %v1362
    %v1364 = vpop.f32.mrb[0].mxu0
    %1365 = vmatprep.mubr.f32.mxu0 0.0
    %1366 = vmatmul.mubr.f32.gmra.mrb[0].mxu0 %v1244
    %v1367 = vpop.f32.mrb[0].mxu0
    %v1368 = vadd.f32 0.0, %v1367
    %v1369 = vpop.f32.mrb[0].mxu0
    %1370 = vdwg.mxu0
    %v1371 = vsub.f32 %v1148, %v1313
    %v1372 = vsub.f32 %v1153, %v1318
    %v1373 = vsub.f32 %v1158, %v1323
    %v1374 = vsub.f32 %v1163, %v1328
    %v1375 = vsub.f32 %v1168, %v1333
    %v1376 = vsub.f32 %v1173, %v1338
    %v1377 = vsub.f32 %v1178, %v1343
    %v1378 = vsub.f32 %v1183, %v1348
    %v1379 = vsub.f32 %v1188, %v1353
    %v1380 = vsub.f32 %v1193, %v1358
    %v1381 = vsub.f32 %v1198, %v1363
    %v1382 = vsub.f32 %v1203, %v1368
    %v1383 = vmul.f32 %v1371, %v1371
    %v1384 = vmul.f32 %v1372, %v1372
    %v1385 = vmul.f32 %v1373, %v1373
    %v1386 = vmul.f32 %v1374, %v1374
    %v1387 = vmul.f32 %v1375, %v1375
    %v1388 = vmul.f32 %v1376, %v1376
    %v1389 = vmul.f32 %v1377, %v1377
    %v1390 = vmul.f32 %v1378, %v1378
    %v1391 = vmul.f32 %v1379, %v1379
    %v1392 = vmul.f32 %v1380, %v1380
    %v1393 = vmul.f32 %v1381, %v1381
    %v1394 = vmul.f32 %v1382, %v1382
    %v1396 = vsel %vm263, %v1383, 0
    %v1399 = vsel %vm263, %v1384, 0
    %v1402 = vsel %vm263, %v1385, 0
    %v1405 = vsel %vm263, %v1386, 0
    %v1408 = vsel %vm263, %v1387, 0
    %v1411 = vsel %vm263, %v1388, 0
    %v1414 = vsel %vm263, %v1389, 0
    %v1417 = vsel %vm263, %v1390, 0
    %v1420 = vsel %vm263, %v1391, 0
    %v1423 = vsel %vm263, %v1392, 0
    %v1426 = vsel %vm263, %v1393, 0
    %v1429 = vsel %vm263, %v1394, 0
    %1431 = vmatprep.subr.mxu0 0.0
    %1432 = vmatpush1.msra.mxu0 %v1206
    %1433 = vmatprep.subr.mxu0 0.0
    %1434 = vmatpush1.msra.mxu0 %v1207
    %1435 = vmatprep.subr.mxu0 0.0
    %1436 = vmatpush1.msra.mxu0 %v1208
    %1437 = vmatprep.subr.mxu0 0.0
    %1438 = vmatpush1.msra.mxu0 %v1209
    %1439 = vmatprep.subr.mxu0 0.0
    %1440 = vmatpush1.msra.mxu0 0.0
    %1441 = vmatprep.subr.mxu0 0.0
    %1442 = vmatpush1.msra.mxu0 0.0
    %1443 = vmatprep.subr.mxu0 0.0
    %1444 = vmatpush1.msra.mxu0 0.0
    %1445 = vmatprep.subr.mxu0 0.0
    %1446 = vmatpush1.msra.mxu0 0.0
    %1447 = vmatprep.subr.mxu0 0.0
    %1448 = vmatpush1.msra.mxu0 0.0
    %1449 = vmatprep.subr.mxu0 0.0
    %1450 = vmatpush1.msra.mxu0 0.0
    %1451 = vmatprep.subr.mxu0 0.0
    %1452 = vmatpush1.msra.mxu0 0.0
    %1453 = vmatprep.subr.mxu0 0.0
    %1454 = vmatpush1.msra.mxu0 0.0
    %1455 = vmatprep.subr.mxu0 0.0
    %1456 = vmatpush1.msra.mxu0 0.0
    %1457 = vmatprep.subr.mxu0 0.0
    %1458 = vmatpush1.msra.mxu0 0.0
    %1459 = vmatprep.subr.mxu0 0.0
    %1460 = vmatpush1.msra.mxu0 0.0
    %1461 = vmatprep.subr.mxu0 0.0
    %1462 = vmatpush1.msra.mxu0 0.0
    %1463 = vmatprep.subr.mxu0 0.0
    %1464 = vmatpush1.msra.mxu0 0.0
    %1465 = vmatprep.subr.mxu0 0.0
    %1466 = vmatpush1.msra.mxu0 0.0
    %1467 = vmatprep.subr.mxu0 0.0
    %1468 = vmatpush1.msra.mxu0 0.0
    %1469 = vmatprep.subr.mxu0 0.0
    %1470 = vmatpush1.msra.mxu0 0.0
    %1471 = vmatprep.subr.mxu0 0.0
    %1472 = vmatpush1.msra.mxu0 0.0
    %1473 = vmatprep.subr.mxu0 0.0
    %1474 = vmatpush1.msra.mxu0 0.0
    %1475 = vmatprep.subr.mxu0 0.0
    %1476 = vmatpush1.msra.mxu0 0.0
    %1477 = vmatprep.subr.mxu0 0.0
    %1478 = vmatpush1.msra.mxu0 0.0
    %1479 = vmatprep.subr.mxu0 0.0
    %1480 = vmatpush1.msra.mxu0 0.0
    %1481 = vmatprep.subr.mxu0 0.0
    %1482 = vmatpush1.msra.mxu0 0.0
    %1483 = vmatprep.subr.mxu0 0.0
    %1484 = vmatpush1.msra.mxu0 0.0
    %1485 = vmatprep.subr.mxu0 0.0
    %1486 = vmatpush1.msra.mxu0 0.0
    %1487 = vmatprep.subr.mxu0 0.0
    %1488 = vmatpush1.msra.mxu0 0.0
    %1489 = vmatprep.subr.mxu0 0.0
    %1490 = vmatpush1.msra.mxu0 0.0
    %1491 = vmatprep.subr.mxu0 0.0
    %1492 = vmatpush1.msra.mxu0 0.0
    %1493 = vmatprep.subr.mxu0 0.0
    %1494 = vmatpush1.msra.mxu0 0.0
    %1495 = vmatprep.mubr.f32.mxu0 0.0
    %1496 = vmatmul.mubr.f32.gmra.mrb[0].mxu0 %v1396
    %v1497 = vpop.f32.mrb[0].mxu0
    %v1498 = vadd.f32 1e-05, %v1497
    %v1499 = vpop.f32.mrb[0].mxu0
    %1500 = vmatprep.mubr.f32.mxu0 0.0
    %1501 = vmatmul.mubr.f32.gmra.mrb[0].mxu0 %v1399
    %v1502 = vpop.f32.mrb[0].mxu0
    %v1503 = vadd.f32 1e-05, %v1502
    %v1504 = vpop.f32.mrb[0].mxu0
    %1505 = vmatprep.mubr.f32.mxu0 0.0
    %1506 = vmatmul.mubr.f32.gmra.mrb[0].mxu0 %v1402
    %v1507 = vpop.f32.mrb[0].mxu0
    %v1508 = vadd.f32 1e-05, %v1507
    %v1509 = vpop.f32.mrb[0].mxu0
    %1510 = vmatprep.mubr.f32.mxu0 0.0
    %1511 = vmatmul.mubr.f32.gmra.mrb[0].mxu0 %v1405
    %v1512 = vpop.f32.mrb[0].mxu0
    %v1513 = vadd.f32 1e-05, %v1512
    %v1514 = vpop.f32.mrb[0].mxu0
    %1515 = vmatprep.mubr.f32.mxu0 0.0
    %1516 = vmatmul.mubr.f32.gmra.mrb[0].mxu0 %v1408
    %v1517 = vpop.f32.mrb[0].mxu0
    %v1518 = vadd.f32 1e-05, %v1517
    %v1519 = vpop.f32.mrb[0].mxu0
    %1520 = vmatprep.mubr.f32.mxu0 0.0
    %1521 = vmatmul.mubr.f32.gmra.mrb[0].mxu0 %v1411
    %v1522 = vpop.f32.mrb[0].mxu0
    %v1523 = vadd.f32 1e-05, %v1522
    %v1524 = vpop.f32.mrb[0].mxu0
    %1525 = vmatprep.mubr.f32.mxu0 0.0
    %1526 = vmatmul.mubr.f32.gmra.mrb[0].mxu0 %v1414
    %v1527 = vpop.f32.mrb[0].mxu0
    %v1528 = vadd.f32 1e-05, %v1527
    %v1529 = vpop.f32.mrb[0].mxu0
    %1530 = vmatprep.mubr.f32.mxu0 0.0
    %1531 = vmatmul.mubr.f32.gmra.mrb[0].mxu0 %v1417
    %v1532 = vpop.f32.mrb[0].mxu0
    %v1533 = vadd.f32 1e-05, %v1532
    %v1534 = vpop.f32.mrb[0].mxu0
    %1535 = vmatprep.mubr.f32.mxu0 0.0
    %1536 = vmatmul.mubr.f32.gmra.mrb[0].mxu0 %v1420
    %v1537 = vpop.f32.mrb[0].mxu0
    %v1538 = vadd.f32 1e-05, %v1537
    %v1539 = vpop.f32.mrb[0].mxu0
    %1540 = vmatprep.mubr.f32.mxu0 0.0
    %1541 = vmatmul.mubr.f32.gmra.mrb[0].mxu0 %v1423
    %v1542 = vpop.f32.mrb[0].mxu0
    %v1543 = vadd.f32 1e-05, %v1542
    %v1544 = vpop.f32.mrb[0].mxu0
    %1545 = vmatprep.mubr.f32.mxu0 0.0
    %1546 = vmatmul.mubr.f32.gmra.mrb[0].mxu0 %v1426
    %v1547 = vpop.f32.mrb[0].mxu0
    %v1548 = vadd.f32 1e-05, %v1547
    %v1549 = vpop.f32.mrb[0].mxu0
    %1550 = vmatprep.mubr.f32.mxu0 0.0
    %1551 = vmatmul.mubr.f32.gmra.mrb[0].mxu0 %v1429
    %v1552 = vpop.f32.mrb[0].mxu0
    %v1553 = vadd.f32 1e-05, %v1552
    %v1554 = vpop.f32.mrb[0].mxu0
    %1555 = vdwg.mxu0
    %v1556 = vrsqrt.pop %v1498
    %v1557 = vrsqrt.pop %v1503
    %v1558 = vrsqrt.pop %v1508
    %v1559 = vrsqrt.pop %v1513
    %v1560 = vrsqrt.pop %v1518
    %v1561 = vrsqrt.pop %v1523
    %v1562 = vrsqrt.pop %v1528
    %v1563 = vrsqrt.pop %v1533
    %v1564 = vrsqrt.pop %v1538
    %v1565 = vrsqrt.pop %v1543
    %v1566 = vrsqrt.pop %v1548
    %v1567 = vrsqrt.pop %v1553
    %v1568 = vmul.f32 %v1371, %v1556
    %v1569 = vmul.f32 %v1372, %v1557
    %v1570 = vmul.f32 %v1373, %v1558
    %v1571 = vmul.f32 %v1374, %v1559
    %v1572 = vmul.f32 %v1375, %v1560
    %v1573 = vmul.f32 %v1376, %v1561
    %v1574 = vmul.f32 %v1377, %v1562
    %v1575 = vmul.f32 %v1378, %v1563
    %v1576 = vmul.f32 %v1379, %v1564
    %v1577 = vmul.f32 %v1380, %v1565
    %v1578 = vmul.f32 %v1381, %v1566
    %v1579 = vmul.f32 %v1382, %v1567
    %v1580 = vld [vmem:[%s5] sm:$0x1]
    %v1582 = vlaneseq
    %v1583 = vshrl.u32 %v1582, 7
    %v1584 = vsub.s32 0, %v1583
    %v1585 = vrot.slane %v1580, %v1584
    %v1587 = vmul.f32 %v1568, %v1585
    %v1588 = vmul.f32 %v1569, %v1585
    %v1589 = vmul.f32 %v1570, %v1585
    %v1590 = vmul.f32 %v1571, %v1585
    %v1591 = vmul.f32 %v1572, %v1585
    %v1592 = vmul.f32 %v1573, %v1585
    %v1593 = vmul.f32 %v1574, %v1585
    %v1594 = vmul.f32 %v1575, %v1585
    %v1595 = vmul.f32 %v1576, %v1585
    %v1596 = vmul.f32 %v1577, %v1585
    %v1597 = vmul.f32 %v1578, %v1585
    %v1598 = vmul.f32 %v1579, %v1585
    %v1599 = vld [vmem:[#allocation7] sm:$0x1]
    %v1601 = vlaneseq
    %v1602 = vshrl.u32 %v1601, 7
    %v1603 = vsub.s32 0, %v1602
    %v1604 = vrot.slane %v1599, %v1603
    %v1606 = vadd.f32 %v1587, %v1604
    %v1607 = vadd.f32 %v1588, %v1604
    %v1608 = vadd.f32 %v1589, %v1604
    %v1609 = vadd.f32 %v1590, %v1604
    %v1610 = vadd.f32 %v1591, %v1604
    %v1611 = vadd.f32 %v1592, %v1604
    %v1612 = vadd.f32 %v1593, %v1604
    %v1613 = vadd.f32 %v1594, %v1604
    %v1614 = vadd.f32 %v1595, %v1604
    %v1615 = vadd.f32 %v1596, %v1604
    %v1616 = vadd.f32 %v1597, %v1604
    %v1617 = vadd.f32 %v1598, %v1604
    %v1618 = vld [vmem:[%s8] sm:$0xff]
    %v1619 = vld [vmem:[%s8 + $0x8] sm:$0xff]
    %v1620 = vld [vmem:[%s8 + $0x10] sm:$0xff]
    %v1621 = vld [vmem:[%s8 + $0x18] sm:$0xff]
    %v1623 = vsel %vm263, %v1606, 0
    %v1626 = vsel %vm263, %v1607, 0
    %v1629 = vsel %vm263, %v1608, 0
    %v1632 = vsel %vm263, %v1609, 0
    %v1635 = vsel %vm263, %v1610, 0
    %v1638 = vsel %vm263, %v1611, 0
    %v1641 = vsel %vm263, %v1612, 0
    %v1644 = vsel %vm263, %v1613, 0
    %v1647 = vsel %vm263, %v1614, 0
    %v1650 = vsel %vm263, %v1615, 0
    %v1653 = vsel %vm263, %v1616, 0
    %v1656 = vsel %vm263, %v1617, 0
    %1658 = vmatprep.subr.mxu0 0.0
    %1659 = vmatpush1.msra.mxu0 %v1618
    %1660 = vmatprep.subr.mxu0 0.0
    %1661 = vmatpush1.msra.mxu0 %v1619
    %1662 = vmatprep.subr.mxu0 0.0
    %1663 = vmatpush1.msra.mxu0 %v1620
    %1664 = vmatprep.subr.mxu0 0.0
    %1665 = vmatpush1.msra.mxu0 %v1621
    %1666 = vmatprep.subr.mxu0 0.0
    %1667 = vmatpush1.msra.mxu0 0.0
    %1668 = vmatprep.subr.mxu0 0.0
    %1669 = vmatpush1.msra.mxu0 0.0
    %1670 = vmatprep.subr.mxu0 0.0
    %1671 = vmatpush1.msra.mxu0 0.0
    %1672 = vmatprep.subr.mxu0 0.0
    %1673 = vmatpush1.msra.mxu0 0.0
    %1674 = vmatprep.subr.mxu0 0.0
    %1675 = vmatpush1.msra.mxu0 0.0
    %1676 = vmatprep.subr.mxu0 0.0
    %1677 = vmatpush1.msra.mxu0 0.0
    %1678 = vmatprep.subr.mxu0 0.0
    %1679 = vmatpush1.msra.mxu0 0.0
    %1680 = vmatprep.subr.mxu0 0.0
    %1681 = vmatpush1.msra.mxu0 0.0
    %1682 = vmatprep.subr.mxu0 0.0
    %1683 = vmatpush1.msra.mxu0 0.0
    %1684 = vmatprep.subr.mxu0 0.0
    %1685 = vmatpush1.msra.mxu0 0.0
    %1686 = vmatprep.subr.mxu0 0.0
    %1687 = vmatpush1.msra.mxu0 0.0
    %1688 = vmatprep.subr.mxu0 0.0
    %1689 = vmatpush1.msra.mxu0 0.0
    %1690 = vmatprep.subr.mxu0 0.0
    %1691 = vmatpush1.msra.mxu0 0.0
    %1692 = vmatprep.subr.mxu0 0.0
    %1693 = vmatpush1.msra.mxu0 0.0
    %1694 = vmatprep.subr.mxu0 0.0
    %1695 = vmatpush1.msra.mxu0 0.0
    %1696 = vmatprep.subr.mxu0 0.0
    %1697 = vmatpush1.msra.mxu0 0.0
    %1698 = vmatprep.subr.mxu0 0.0
    %1699 = vmatpush1.msra.mxu0 0.0
    %1700 = vmatprep.subr.mxu0 0.0
    %1701 = vmatpush1.msra.mxu0 0.0
    %1702 = vmatprep.subr.mxu0 0.0
    %1703 = vmatpush1.msra.mxu0 0.0
    %1704 = vmatprep.subr.mxu0 0.0
    %1705 = vmatpush1.msra.mxu0 0.0
    %1706 = vmatprep.subr.mxu0 0.0
    %1707 = vmatpush1.msra.mxu0 0.0
    %1708 = vmatprep.subr.mxu0 0.0
    %1709 = vmatpush1.msra.mxu0 0.0
    %1710 = vmatprep.subr.mxu0 0.0
    %1711 = vmatpush1.msra.mxu0 0.0
    %1712 = vmatprep.subr.mxu0 0.0
    %1713 = vmatpush1.msra.mxu0 0.0
    %1714 = vmatprep.subr.mxu0 0.0
    %1715 = vmatpush1.msra.mxu0 0.0
    %1716 = vmatprep.subr.mxu0 0.0
    %1717 = vmatpush1.msra.mxu0 0.0
    %1718 = vmatprep.subr.mxu0 0.0
    %1719 = vmatpush1.msra.mxu0 0.0
    %1720 = vmatprep.subr.mxu0 0.0
    %1721 = vmatpush1.msra.mxu0 0.0
    %1722 = vmatprep.mubr.f32.mxu0 0.0
    %1723 = vmatmul.mubr.f32.gmra.mrb[0].mxu0 %v1623
    %v1724 = vpop.f32.mrb[0].mxu0
    %v1725 = vadd.f32 0.0, %v1724
    %v1726 = vpop.f32.mrb[0].mxu0
    %1727 = vmatprep.mubr.f32.mxu0 0.0
    %1728 = vmatmul.mubr.f32.gmra.mrb[0].mxu0 %v1626
    %v1729 = vpop.f32.mrb[0].mxu0
    %v1730 = vadd.f32 0.0, %v1729
    %v1731 = vpop.f32.mrb[0].mxu0
    %1732 = vmatprep.mubr.f32.mxu0 0.0
    %1733 = vmatmul.mubr.f32.gmra.mrb[0].mxu0 %v1629
    %v1734 = vpop.f32.mrb[0].mxu0
    %v1735 = vadd.f32 0.0, %v1734
    %v1736 = vpop.f32.mrb[0].mxu0
    %1737 = vmatprep.mubr.f32.mxu0 0.0
    %1738 = vmatmul.mubr.f32.gmra.mrb[0].mxu0 %v1632
    %v1739 = vpop.f32.mrb[0].mxu0
    %v1740 = vadd.f32 0.0, %v1739
    %v1741 = vpop.f32.mrb[0].mxu0
    %1742 = vmatprep.mubr.f32.mxu0 0.0
    %1743 = vmatmul.mubr.f32.gmra.mrb[0].mxu0 %v1635
    %v1744 = vpop.f32.mrb[0].mxu0
    %v1745 = vadd.f32 0.0, %v1744
    %v1746 = vpop.f32.mrb[0].mxu0
    %1747 = vmatprep.mubr.f32.mxu0 0.0
    %1748 = vmatmul.mubr.f32.gmra.mrb[0].mxu0 %v1638
    %v1749 = vpop.f32.mrb[0].mxu0
    %v1750 = vadd.f32 0.0, %v1749
    %v1751 = vpop.f32.mrb[0].mxu0
    %1752 = vmatprep.mubr.f32.mxu0 0.0
    %1753 = vmatmul.mubr.f32.gmra.mrb[0].mxu0 %v1641
    %v1754 = vpop.f32.mrb[0].mxu0
    %v1755 = vadd.f32 0.0, %v1754
    %v1756 = vpop.f32.mrb[0].mxu0
    %1757 = vmatprep.mubr.f32.mxu0 0.0
    %1758 = vmatmul.mubr.f32.gmra.mrb[0].mxu0 %v1644
    %v1759 = vpop.f32.mrb[0].mxu0
    %v1760 = vadd.f32 0.0, %v1759
    %v1761 = vpop.f32.mrb[0].mxu0
    %1762 = vmatprep.mubr.f32.mxu0 0.0
    %1763 = vmatmul.mubr.f32.gmra.mrb[0].mxu0 %v1647
    %v1764 = vpop.f32.mrb[0].mxu0
    %v1765 = vadd.f32 0.0, %v1764
    %v1766 = vpop.f32.mrb[0].mxu0
    %1767 = vmatprep.mubr.f32.mxu0 0.0
    %1768 = vmatmul.mubr.f32.gmra.mrb[0].mxu0 %v1650
    %v1769 = vpop.f32.mrb[0].mxu0
    %v1770 = vadd.f32 0.0, %v1769
    %v1771 = vpop.f32.mrb[0].mxu0
    %1772 = vmatprep.mubr.f32.mxu0 0.0
    %1773 = vmatmul.mubr.f32.gmra.mrb[0].mxu0 %v1653
    %v1774 = vpop.f32.mrb[0].mxu0
    %v1775 = vadd.f32 0.0, %v1774
    %v1776 = vpop.f32.mrb[0].mxu0
    %1777 = vmatprep.mubr.f32.mxu0 0.0
    %1778 = vmatmul.mubr.f32.gmra.mrb[0].mxu0 %v1656
    %v1779 = vpop.f32.mrb[0].mxu0
    %v1780 = vadd.f32 0.0, %v1779
    %v1781 = vpop.f32.mrb[0].mxu0
    %1782 = vdwg.mxu0
    %s1783 = scalar_lea.vmem %s8, 32
    %v1784 = vld [vmem:[%s1783] sm:$0xff]
    %v1785 = vld [vmem:[%s1783 + $0x8] sm:$0xff]
    %v1786 = vld [vmem:[%s1783 + $0x10] sm:$0xff]
    %v1787 = vld [vmem:[%s1783 + $0x18] sm:$0xff]
    %1788 = vmatprep.subr.mxu0 0.0
    %1789 = vmatpush1.msra.mxu0 %v1784
    %1790 = vmatprep.subr.mxu0 0.0
    %1791 = vmatpush1.msra.mxu0 %v1785
    %1792 = vmatprep.subr.mxu0 0.0
    %1793 = vmatpush1.msra.mxu0 %v1786
    %1794 = vmatprep.subr.mxu0 0.0
    %1795 = vmatpush1.msra.mxu0 %v1787
    %1796 = vmatprep.subr.mxu0 0.0
    %1797 = vmatpush1.msra.mxu0 0.0
    %1798 = vmatprep.subr.mxu0 0.0
    %1799 = vmatpush1.msra.mxu0 0.0
    %1800 = vmatprep.subr.mxu0 0.0
    %1801 = vmatpush1.msra.mxu0 0.0
    %1802 = vmatprep.subr.mxu0 0.0
    %1803 = vmatpush1.msra.mxu0 0.0
    %1804 = vmatprep.subr.mxu0 0.0
    %1805 = vmatpush1.msra.mxu0 0.0
    %1806 = vmatprep.subr.mxu0 0.0
    %1807 = vmatpush1.msra.mxu0 0.0
    %1808 = vmatprep.subr.mxu0 0.0
    %1809 = vmatpush1.msra.mxu0 0.0
    %1810 = vmatprep.subr.mxu0 0.0
    %1811 = vmatpush1.msra.mxu0 0.0
    %1812 = vmatprep.subr.mxu0 0.0
    %1813 = vmatpush1.msra.mxu0 0.0
    %1814 = vmatprep.subr.mxu0 0.0
    %1815 = vmatpush1.msra.mxu0 0.0
    %1816 = vmatprep.subr.mxu0 0.0
    %1817 = vmatpush1.msra.mxu0 0.0
    %1818 = vmatprep.subr.mxu0 0.0
    %1819 = vmatpush1.msra.mxu0 0.0
    %1820 = vmatprep.subr.mxu0 0.0
    %1821 = vmatpush1.msra.mxu0 0.0
    %1822 = vmatprep.subr.mxu0 0.0
    %1823 = vmatpush1.msra.mxu0 0.0
    %1824 = vmatprep.subr.mxu0 0.0
    %1825 = vmatpush1.msra.mxu0 0.0
    %1826 = vmatprep.subr.mxu0 0.0
    %1827 = vmatpush1.msra.mxu0 0.0
    %1828 = vmatprep.subr.mxu0 0.0
    %1829 = vmatpush1.msra.mxu0 0.0
    %1830 = vmatprep.subr.mxu0 0.0
    %1831 = vmatpush1.msra.mxu0 0.0
    %1832 = vmatprep.subr.mxu0 0.0
    %1833 = vmatpush1.msra.mxu0 0.0
    %1834 = vmatprep.subr.mxu0 0.0
    %1835 = vmatpush1.msra.mxu0 0.0
    %1836 = vmatprep.subr.mxu0 0.0
    %1837 = vmatpush1.msra.mxu0 0.0
    %1838 = vmatprep.subr.mxu0 0.0
    %1839 = vmatpush1.msra.mxu0 0.0
    %1840 = vmatprep.subr.mxu0 0.0
    %1841 = vmatpush1.msra.mxu0 0.0
    %1842 = vmatprep.subr.mxu0 0.0
    %1843 = vmatpush1.msra.mxu0 0.0
    %1844 = vmatprep.subr.mxu0 0.0
    %1845 = vmatpush1.msra.mxu0 0.0
    %1846 = vmatprep.subr.mxu0 0.0
    %1847 = vmatpush1.msra.mxu0 0.0
    %1848 = vmatprep.subr.mxu0 0.0
    %1849 = vmatpush1.msra.mxu0 0.0
    %1850 = vmatprep.subr.mxu0 0.0
    %1851 = vmatpush1.msra.mxu0 0.0
    %1852 = vmatprep.mubr.f32.mxu0 0.0
    %1853 = vmatmul.mubr.f32.gmra.mrb[0].mxu0 %v1623
    %v1854 = vpop.f32.mrb[0].mxu0
    %v1855 = vadd.f32 0.0, %v1854
    %v1856 = vpop.f32.mrb[0].mxu0
    %1857 = vmatprep.mubr.f32.mxu0 0.0
    %1858 = vmatmul.mubr.f32.gmra.mrb[0].mxu0 %v1626
    %v1859 = vpop.f32.mrb[0].mxu0
    %v1860 = vadd.f32 0.0, %v1859
    %v1861 = vpop.f32.mrb[0].mxu0
    %1862 = vmatprep.mubr.f32.mxu0 0.0
    %1863 = vmatmul.mubr.f32.gmra.mrb[0].mxu0 %v1629
    %v1864 = vpop.f32.mrb[0].mxu0
    %v1865 = vadd.f32 0.0, %v1864
    %v1866 = vpop.f32.mrb[0].mxu0
    %1867 = vmatprep.mubr.f32.mxu0 0.0
    %1868 = vmatmul.mubr.f32.gmra.mrb[0].mxu0 %v1632
    %v1869 = vpop.f32.mrb[0].mxu0
    %v1870 = vadd.f32 0.0, %v1869
    %v1871 = vpop.f32.mrb[0].mxu0
    %1872 = vmatprep.mubr.f32.mxu0 0.0
    %1873 = vmatmul.mubr.f32.gmra.mrb[0].mxu0 %v1635
    %v1874 = vpop.f32.mrb[0].mxu0
    %v1875 = vadd.f32 0.0, %v1874
    %v1876 = vpop.f32.mrb[0].mxu0
    %1877 = vmatprep.mubr.f32.mxu0 0.0
    %1878 = vmatmul.mubr.f32.gmra.mrb[0].mxu0 %v1638
    %v1879 = vpop.f32.mrb[0].mxu0
    %v1880 = vadd.f32 0.0, %v1879
    %v1881 = vpop.f32.mrb[0].mxu0
    %1882 = vmatprep.mubr.f32.mxu0 0.0
    %1883 = vmatmul.mubr.f32.gmra.mrb[0].mxu0 %v1641
    %v1884 = vpop.f32.mrb[0].mxu0
    %v1885 = vadd.f32 0.0, %v1884
    %v1886 = vpop.f32.mrb[0].mxu0
    %1887 = vmatprep.mubr.f32.mxu0 0.0
    %1888 = vmatmul.mubr.f32.gmra.mrb[0].mxu0 %v1644
    %v1889 = vpop.f32.mrb[0].mxu0
    %v1890 = vadd.f32 0.0, %v1889
    %v1891 = vpop.f32.mrb[0].mxu0
    %1892 = vmatprep.mubr.f32.mxu0 0.0
    %1893 = vmatmul.mubr.f32.gmra.mrb[0].mxu0 %v1647
    %v1894 = vpop.f32.mrb[0].mxu0
    %v1895 = vadd.f32 0.0, %v1894
    %v1896 = vpop.f32.mrb[0].mxu0
    %1897 = vmatprep.mubr.f32.mxu0 0.0
    %1898 = vmatmul.mubr.f32.gmra.mrb[0].mxu0 %v1650
    %v1899 = vpop.f32.mrb[0].mxu0
    %v1900 = vadd.f32 0.0, %v1899
    %v1901 = vpop.f32.mrb[0].mxu0
    %1902 = vmatprep.mubr.f32.mxu0 0.0
    %1903 = vmatmul.mubr.f32.gmra.mrb[0].mxu0 %v1653
    %v1904 = vpop.f32.mrb[0].mxu0
    %v1905 = vadd.f32 0.0, %v1904
    %v1906 = vpop.f32.mrb[0].mxu0
    %1907 = vmatprep.mubr.f32.mxu0 0.0
    %1908 = vmatmul.mubr.f32.gmra.mrb[0].mxu0 %v1656
    %v1909 = vpop.f32.mrb[0].mxu0
    %v1910 = vadd.f32 0.0, %v1909
    %v1911 = vpop.f32.mrb[0].mxu0
    %1912 = vdwg.mxu0
    %s1913 = scalar_lea.vmem %s8, 64
    %v1914 = vld [vmem:[%s1913] sm:$0xff]
    %v1915 = vld [vmem:[%s1913 + $0x8] sm:$0xff]
    %v1916 = vld [vmem:[%s1913 + $0x10] sm:$0xff]
    %v1917 = vld [vmem:[%s1913 + $0x18] sm:$0xff]
    %1918 = vmatprep.subr.mxu0 0.0
    %1919 = vmatpush1.msra.mxu0 %v1914
    %1920 = vmatprep.subr.mxu0 0.0
    %1921 = vmatpush1.msra.mxu0 %v1915
    %1922 = vmatprep.subr.mxu0 0.0
    %1923 = vmatpush1.msra.mxu0 %v1916
    %1924 = vmatprep.subr.mxu0 0.0
    %1925 = vmatpush1.msra.mxu0 %v1917
    %1926 = vmatprep.subr.mxu0 0.0
    %1927 = vmatpush1.msra.mxu0 0.0
    %1928 = vmatprep.subr.mxu0 0.0
    %1929 = vmatpush1.msra.mxu0 0.0
    %1930 = vmatprep.subr.mxu0 0.0
    %1931 = vmatpush1.msra.mxu0 0.0
    %1932 = vmatprep.subr.mxu0 0.0
    %1933 = vmatpush1.msra.mxu0 0.0
    %1934 = vmatprep.subr.mxu0 0.0
    %1935 = vmatpush1.msra.mxu0 0.0
    %1936 = vmatprep.subr.mxu0 0.0
    %1937 = vmatpush1.msra.mxu0 0.0
    %1938 = vmatprep.subr.mxu0 0.0
    %1939 = vmatpush1.msra.mxu0 0.0
    %1940 = vmatprep.subr.mxu0 0.0
    %1941 = vmatpush1.msra.mxu0 0.0
    %1942 = vmatprep.subr.mxu0 0.0
    %1943 = vmatpush1.msra.mxu0 0.0
    %1944 = vmatprep.subr.mxu0 0.0
    %1945 = vmatpush1.msra.mxu0 0.0
    %1946 = vmatprep.subr.mxu0 0.0
    %1947 = vmatpush1.msra.mxu0 0.0
    %1948 = vmatprep.subr.mxu0 0.0
    %1949 = vmatpush1.msra.mxu0 0.0
    %1950 = vmatprep.subr.mxu0 0.0
    %1951 = vmatpush1.msra.mxu0 0.0
    %1952 = vmatprep.subr.mxu0 0.0
    %1953 = vmatpush1.msra.mxu0 0.0
    %1954 = vmatprep.subr.mxu0 0.0
    %1955 = vmatpush1.msra.mxu0 0.0
    %1956 = vmatprep.subr.mxu0 0.0
    %1957 = vmatpush1.msra.mxu0 0.0
    %1958 = vmatprep.subr.mxu0 0.0
    %1959 = vmatpush1.msra.mxu0 0.0
    %1960 = vmatprep.subr.mxu0 0.0
    %1961 = vmatpush1.msra.mxu0 0.0
    %1962 = vmatprep.subr.mxu0 0.0
    %1963 = vmatpush1.msra.mxu0 0.0
    %1964 = vmatprep.subr.mxu0 0.0
    %1965 = vmatpush1.msra.mxu0 0.0
    %1966 = vmatprep.subr.mxu0 0.0
    %1967 = vmatpush1.msra.mxu0 0.0
    %1968 = vmatprep.subr.mxu0 0.0
    %1969 = vmatpush1.msra.mxu0 0.0
    %1970 = vmatprep.subr.mxu0 0.0
    %1971 = vmatpush1.msra.mxu0 0.0
    %1972 = vmatprep.subr.mxu0 0.0
    %1973 = vmatpush1.msra.mxu0 0.0
    %1974 = vmatprep.subr.mxu0 0.0
    %1975 = vmatpush1.msra.mxu0 0.0
    %1976 = vmatprep.subr.mxu0 0.0
    %1977 = vmatpush1.msra.mxu0 0.0
    %1978 = vmatprep.subr.mxu0 0.0
    %1979 = vmatpush1.msra.mxu0 0.0
    %1980 = vmatprep.subr.mxu0 0.0
    %1981 = vmatpush1.msra.mxu0 0.0
    %1982 = vmatprep.mubr.f32.mxu0 0.0
    %1983 = vmatmul.mubr.f32.gmra.mrb[0].mxu0 %v1623
    %v1984 = vpop.f32.mrb[0].mxu0
    %v1985 = vadd.f32 0.0, %v1984
    %v1986 = vpop.f32.mrb[0].mxu0
    %1987 = vmatprep.mubr.f32.mxu0 0.0
    %1988 = vmatmul.mubr.f32.gmra.mrb[0].mxu0 %v1626
    %v1989 = vpop.f32.mrb[0].mxu0
    %v1990 = vadd.f32 0.0, %v1989
    %v1991 = vpop.f32.mrb[0].mxu0
    %1992 = vmatprep.mubr.f32.mxu0 0.0
    %1993 = vmatmul.mubr.f32.gmra.mrb[0].mxu0 %v1629
    %v1994 = vpop.f32.mrb[0].mxu0
    %v1995 = vadd.f32 0.0, %v1994
    %v1996 = vpop.f32.mrb[0].mxu0
    %1997 = vmatprep.mubr.f32.mxu0 0.0
    %1998 = vmatmul.mubr.f32.gmra.mrb[0].mxu0 %v1632
    %v1999 = vpop.f32.mrb[0].mxu0
    %v2000 = vadd.f32 0.0, %v1999
    %v2001 = vpop.f32.mrb[0].mxu0
    %2002 = vmatprep.mubr.f32.mxu0 0.0
    %2003 = vmatmul.mubr.f32.gmra.mrb[0].mxu0 %v1635
    %v2004 = vpop.f32.mrb[0].mxu0
    %v2005 = vadd.f32 0.0, %v2004
    %v2006 = vpop.f32.mrb[0].mxu0
    %2007 = vmatprep.mubr.f32.mxu0 0.0
    %2008 = vmatmul.mubr.f32.gmra.mrb[0].mxu0 %v1638
    %v2009 = vpop.f32.mrb[0].mxu0
    %v2010 = vadd.f32 0.0, %v2009
    %v2011 = vpop.f32.mrb[0].mxu0
    %2012 = vmatprep.mubr.f32.mxu0 0.0
    %2013 = vmatmul.mubr.f32.gmra.mrb[0].mxu0 %v1641
    %v2014 = vpop.f32.mrb[0].mxu0
    %v2015 = vadd.f32 0.0, %v2014
    %v2016 = vpop.f32.mrb[0].mxu0
    %2017 = vmatprep.mubr.f32.mxu0 0.0
    %2018 = vmatmul.mubr.f32.gmra.mrb[0].mxu0 %v1644
    %v2019 = vpop.f32.mrb[0].mxu0
    %v2020 = vadd.f32 0.0, %v2019
    %v2021 = vpop.f32.mrb[0].mxu0
    %2022 = vmatprep.mubr.f32.mxu0 0.0
    %2023 = vmatmul.mubr.f32.gmra.mrb[0].mxu0 %v1647
    %v2024 = vpop.f32.mrb[0].mxu0
    %v2025 = vadd.f32 0.0, %v2024
    %v2026 = vpop.f32.mrb[0].mxu0
    %2027 = vmatprep.mubr.f32.mxu0 0.0
    %2028 = vmatmul.mubr.f32.gmra.mrb[0].mxu0 %v1650
    %v2029 = vpop.f32.mrb[0].mxu0
    %v2030 = vadd.f32 0.0, %v2029
    %v2031 = vpop.f32.mrb[0].mxu0
    %2032 = vmatprep.mubr.f32.mxu0 0.0
    %2033 = vmatmul.mubr.f32.gmra.mrb[0].mxu0 %v1653
    %v2034 = vpop.f32.mrb[0].mxu0
    %v2035 = vadd.f32 0.0, %v2034
    %v2036 = vpop.f32.mrb[0].mxu0
    %2037 = vmatprep.mubr.f32.mxu0 0.0
    %2038 = vmatmul.mubr.f32.gmra.mrb[0].mxu0 %v1656
    %v2039 = vpop.f32.mrb[0].mxu0
    %v2040 = vadd.f32 0.0, %v2039
    %v2041 = vpop.f32.mrb[0].mxu0
    %2042 = vdwg.mxu0
    %s2043 = scalar_lea.vmem %s8, 96
    %v2044 = vld [vmem:[%s2043] sm:$0xff]
    %v2045 = vld [vmem:[%s2043 + $0x8] sm:$0xff]
    %v2046 = vld [vmem:[%s2043 + $0x10] sm:$0xff]
    %v2047 = vld [vmem:[%s2043 + $0x18] sm:$0xff]
    %2048 = vmatprep.subr.mxu0 0.0
    %2049 = vmatpush1.msra.mxu0 %v2044
    %2050 = vmatprep.subr.mxu0 0.0
    %2051 = vmatpush1.msra.mxu0 %v2045
    %2052 = vmatprep.subr.mxu0 0.0
    %2053 = vmatpush1.msra.mxu0 %v2046
    %2054 = vmatprep.subr.mxu0 0.0
    %2055 = vmatpush1.msra.mxu0 %v2047
    %2056 = vmatprep.subr.mxu0 0.0
    %2057 = vmatpush1.msra.mxu0 0.0
    %2058 = vmatprep.subr.mxu0 0.0
    %2059 = vmatpush1.msra.mxu0 0.0
    %2060 = vmatprep.subr.mxu0 0.0
    %2061 = vmatpush1.msra.mxu0 0.0
    %2062 = vmatprep.subr.mxu0 0.0
    %2063 = vmatpush1.msra.mxu0 0.0
    %2064 = vmatprep.subr.mxu0 0.0
    %2065 = vmatpush1.msra.mxu0 0.0
    %2066 = vmatprep.subr.mxu0 0.0
    %2067 = vmatpush1.msra.mxu0 0.0
    %2068 = vmatprep.subr.mxu0 0.0
    %2069 = vmatpush1.msra.mxu0 0.0
    %2070 = vmatprep.subr.mxu0 0.0
    %2071 = vmatpush1.msra.mxu0 0.0
    %2072 = vmatprep.subr.mxu0 0.0
    %2073 = vmatpush1.msra.mxu0 0.0
    %2074 = vmatprep.subr.mxu0 0.0
    %2075 = vmatpush1.msra.mxu0 0.0
    %2076 = vmatprep.subr.mxu0 0.0
    %2077 = vmatpush1.msra.mxu0 0.0
    %2078 = vmatprep.subr.mxu0 0.0
    %2079 = vmatpush1.msra.mxu0 0.0
    %2080 = vmatprep.subr.mxu0 0.0
    %2081 = vmatpush1.msra.mxu0 0.0
    %2082 = vmatprep.subr.mxu0 0.0
    %2083 = vmatpush1.msra.mxu0 0.0
    %2084 = vmatprep.subr.mxu0 0.0
    %2085 = vmatpush1.msra.mxu0 0.0
    %2086 = vmatprep.subr.mxu0 0.0
    %2087 = vmatpush1.msra.mxu0 0.0
    %2088 = vmatprep.subr.mxu0 0.0
    %2089 = vmatpush1.msra.mxu0 0.0
    %2090 = vmatprep.subr.mxu0 0.0
    %2091 = vmatpush1.msra.mxu0 0.0
    %2092 = vmatprep.subr.mxu0 0.0
    %2093 = vmatpush1.msra.mxu0 0.0
    %2094 = vmatprep.subr.mxu0 0.0
    %2095 = vmatpush1.msra.mxu0 0.0
    %2096 = vmatprep.subr.mxu0 0.0
    %2097 = vmatpush1.msra.mxu0 0.0
    %2098 = vmatprep.subr.mxu0 0.0
    %2099 = vmatpush1.msra.mxu0 0.0
    %2100 = vmatprep.subr.mxu0 0.0
    %2101 = vmatpush1.msra.mxu0 0.0
    %2102 = vmatprep.subr.mxu0 0.0
    %2103 = vmatpush1.msra.mxu0 0.0
    %2104 = vmatprep.subr.mxu0 0.0
    %2105 = vmatpush1.msra.mxu0 0.0
    %2106 = vmatprep.subr.mxu0 0.0
    %2107 = vmatpush1.msra.mxu0 0.0
    %2108 = vmatprep.subr.mxu0 0.0
    %2109 = vmatpush1.msra.mxu0 0.0
    %2110 = vmatprep.subr.mxu0 0.0
    %2111 = vmatpush1.msra.mxu0 0.0
    %2112 = vmatprep.mubr.f32.mxu0 0.0
    %2113 = vmatmul.mubr.f32.gmra.mrb[0].mxu0 %v1623
    %v2114 = vpop.f32.mrb[0].mxu0
    %v2115 = vadd.f32 0.0, %v2114
    %v2116 = vpop.f32.mrb[0].mxu0
    %2117 = vmatprep.mubr.f32.mxu0 0.0
    %2118 = vmatmul.mubr.f32.gmra.mrb[0].mxu0 %v1626
    %v2119 = vpop.f32.mrb[0].mxu0
    %v2120 = vadd.f32 0.0, %v2119
    %v2121 = vpop.f32.mrb[0].mxu0
    %2122 = vmatprep.mubr.f32.mxu0 0.0
    %2123 = vmatmul.mubr.f32.gmra.mrb[0].mxu0 %v1629
    %v2124 = vpop.f32.mrb[0].mxu0
    %v2125 = vadd.f32 0.0, %v2124
    %v2126 = vpop.f32.mrb[0].mxu0
    %2127 = vmatprep.mubr.f32.mxu0 0.0
    %2128 = vmatmul.mubr.f32.gmra.mrb[0].mxu0 %v1632
    %v2129 = vpop.f32.mrb[0].mxu0
    %v2130 = vadd.f32 0.0, %v2129
    %v2131 = vpop.f32.mrb[0].mxu0
    %2132 = vmatprep.mubr.f32.mxu0 0.0
    %2133 = vmatmul.mubr.f32.gmra.mrb[0].mxu0 %v1635
    %v2134 = vpop.f32.mrb[0].mxu0
    %v2135 = vadd.f32 0.0, %v2134
    %v2136 = vpop.f32.mrb[0].mxu0
    %2137 = vmatprep.mubr.f32.mxu0 0.0
    %2138 = vmatmul.mubr.f32.gmra.mrb[0].mxu0 %v1638
    %v2139 = vpop.f32.mrb[0].mxu0
    %v2140 = vadd.f32 0.0, %v2139
    %v2141 = vpop.f32.mrb[0].mxu0
    %2142 = vmatprep.mubr.f32.mxu0 0.0
    %2143 = vmatmul.mubr.f32.gmra.mrb[0].mxu0 %v1641
    %v2144 = vpop.f32.mrb[0].mxu0
    %v2145 = vadd.f32 0.0, %v2144
    %v2146 = vpop.f32.mrb[0].mxu0
    %2147 = vmatprep.mubr.f32.mxu0 0.0
    %2148 = vmatmul.mubr.f32.gmra.mrb[0].mxu0 %v1644
    %v2149 = vpop.f32.mrb[0].mxu0
    %v2150 = vadd.f32 0.0, %v2149
    %v2151 = vpop.f32.mrb[0].mxu0
    %2152 = vmatprep.mubr.f32.mxu0 0.0
    %2153 = vmatmul.mubr.f32.gmra.mrb[0].mxu0 %v1647
    %v2154 = vpop.f32.mrb[0].mxu0
    %v2155 = vadd.f32 0.0, %v2154
    %v2156 = vpop.f32.mrb[0].mxu0
    %2157 = vmatprep.mubr.f32.mxu0 0.0
    %2158 = vmatmul.mubr.f32.gmra.mrb[0].mxu0 %v1650
    %v2159 = vpop.f32.mrb[0].mxu0
    %v2160 = vadd.f32 0.0, %v2159
    %v2161 = vpop.f32.mrb[0].mxu0
    %2162 = vmatprep.mubr.f32.mxu0 0.0
    %2163 = vmatmul.mubr.f32.gmra.mrb[0].mxu0 %v1653
    %v2164 = vpop.f32.mrb[0].mxu0
    %v2165 = vadd.f32 0.0, %v2164
    %v2166 = vpop.f32.mrb[0].mxu0
    %2167 = vmatprep.mubr.f32.mxu0 0.0
    %2168 = vmatmul.mubr.f32.gmra.mrb[0].mxu0 %v1656
    %v2169 = vpop.f32.mrb[0].mxu0
    %v2170 = vadd.f32 0.0, %v2169
    %v2171 = vpop.f32.mrb[0].mxu0
    %2172 = vdwg.mxu0
    %v2173 = vld [vmem:[#allocation9] sm:$0xff]
    %v2174 = vld [vmem:[#allocation9 + $0x8] sm:$0xff]
    %v2175 = vld [vmem:[#allocation9 + $0x10] sm:$0xff]
    %v2176 = vld [vmem:[#allocation9 + $0x18] sm:$0xff]
    %v2177 = vld [vmem:[#allocation9 + $0x20] sm:$0xff]
    %v2178 = vld [vmem:[#allocation9 + $0x28] sm:$0xff]
    %v2179 = vld [vmem:[#allocation9 + $0x30] sm:$0xff]
    %v2180 = vld [vmem:[#allocation9 + $0x38] sm:$0xff]
    %v2181 = vld [vmem:[#allocation9 + $0x40] sm:$0xff]
    %v2182 = vld [vmem:[#allocation9 + $0x48] sm:$0xff]
    %v2183 = vld [vmem:[#allocation9 + $0x50] sm:$0xff]
    %v2184 = vld [vmem:[#allocation9 + $0x58] sm:$0xff]
    %v2185 = vld [vmem:[#allocation9 + $0x60] sm:$0xff]
    %v2186 = vld [vmem:[#allocation9 + $0x68] sm:$0xff]
    %v2187 = vld [vmem:[#allocation9 + $0x70] sm:$0xff]
    %v2188 = vld [vmem:[#allocation9 + $0x78] sm:$0xff]
    %v2189 = vld [vmem:[#allocation9 + $0x80] sm:$0xff]
    %v2190 = vld [vmem:[#allocation9 + $0x88] sm:$0xff]
    %v2191 = vld [vmem:[#allocation9 + $0x90] sm:$0xff]
    %v2192 = vld [vmem:[#allocation9 + $0x98] sm:$0xff]
    %v2193 = vld [vmem:[#allocation9 + $0xa0] sm:$0xff]
    %v2194 = vld [vmem:[#allocation9 + $0xa8] sm:$0xff]
    %v2195 = vld [vmem:[#allocation9 + $0xb0] sm:$0xff]
    %v2196 = vld [vmem:[#allocation9 + $0xb8] sm:$0xff]
    %v2197 = vld [vmem:[#allocation9 + $0xc0] sm:$0xff]
    %v2198 = vld [vmem:[#allocation9 + $0xc8] sm:$0xff]
    %v2199 = vld [vmem:[#allocation9 + $0xd0] sm:$0xff]
    %v2200 = vld [vmem:[#allocation9 + $0xd8] sm:$0xff]
    %v2201 = vld [vmem:[#allocation9 + $0xe0] sm:$0xff]
    %v2202 = vld [vmem:[#allocation9 + $0xe8] sm:$0xff]
    %v2203 = vld [vmem:[#allocation9 + $0xf0] sm:$0xff]
    %v2204 = vld [vmem:[#allocation9 + $0xf8] sm:$0xff]
    %v2205 = vld [vmem:[#allocation9 + $0x100] sm:$0xff]
    %v2206 = vld [vmem:[#allocation9 + $0x108] sm:$0xff]
    %v2207 = vld [vmem:[#allocation9 + $0x110] sm:$0xff]
    %v2208 = vld [vmem:[#allocation9 + $0x118] sm:$0xff]
    %v2209 = vld [vmem:[%s9] sm:$0xff]
    %v2210 = vld [vmem:[%s9 + $0x8] sm:$0xff]
    %v2211 = vld [vmem:[%s9 + $0x10] sm:$0xff]
    %v2212 = vld [vmem:[%s9 + $0x18] sm:$0xff]
    %v2213 = vld [vmem:[%s9 + $0x20] sm:$0xff]
    %v2214 = vld [vmem:[%s9 + $0x28] sm:$0xff]
    %v2215 = vld [vmem:[%s9 + $0x30] sm:$0xff]
    %v2216 = vld [vmem:[%s9 + $0x38] sm:$0xff]
    %v2217 = vld [vmem:[%s9 + $0x40] sm:$0xff]
    %v2218 = vld [vmem:[%s9 + $0x48] sm:$0xff]
    %v2219 = vld [vmem:[%s9 + $0x50] sm:$0xff]
    %v2220 = vld [vmem:[%s9 + $0x58] sm:$0xff]
    %2222 = vset.pattern.permute.xlu0 0
    %2223 = vperm.xlu0 %2222, %v2209
    %v2224 = vpop.permute.xlu0 %2223
    %2227 = vset.pattern.permute.xlu0 0
    %2228 = vperm.xlu0 %2227, %v2210
    %v2229 = vpop.permute.xlu0 %2228
    %2232 = vset.pattern.permute.xlu0 0
    %2233 = vperm.xlu0 %2232, %v2211
    %v2234 = vpop.permute.xlu0 %2233
    %2237 = vset.pattern.permute.xlu0 0
    %2238 = vperm.xlu0 %2237, %v2212
    %v2239 = vpop.permute.xlu0 %2238
    %2242 = vset.pattern.permute.xlu0 0
    %2243 = vperm.xlu0 %2242, %v2213
    %v2244 = vpop.permute.xlu0 %2243
    %2247 = vset.pattern.permute.xlu0 0
    %2248 = vperm.xlu0 %2247, %v2214
    %v2249 = vpop.permute.xlu0 %2248
    %2252 = vset.pattern.permute.xlu0 0
    %2253 = vperm.xlu0 %2252, %v2215
    %v2254 = vpop.permute.xlu0 %2253
    %2257 = vset.pattern.permute.xlu0 0
    %2258 = vperm.xlu0 %2257, %v2216
    %v2259 = vpop.permute.xlu0 %2258
    %2262 = vset.pattern.permute.xlu0 0
    %2263 = vperm.xlu0 %2262, %v2217
    %v2264 = vpop.permute.xlu0 %2263
    %2267 = vset.pattern.permute.xlu0 0
    %2268 = vperm.xlu0 %2267, %v2218
    %v2269 = vpop.permute.xlu0 %2268
    %2272 = vset.pattern.permute.xlu0 0
    %2273 = vperm.xlu0 %2272, %v2219
    %v2274 = vpop.permute.xlu0 %2273
    %2277 = vset.pattern.permute.xlu0 0
    %2278 = vperm.xlu0 %2277, %v2220
    %v2279 = vpop.permute.xlu0 %2278
    %2281 = vmatprep.subr.mxu0 0.0
    %2282 = vmatpush1.msra.mxu0 %v1725
    %2283 = vmatprep.subr.mxu0 0.0
    %2284 = vmatpush1.msra.mxu0 %v1730
    %2285 = vmatprep.subr.mxu0 0.0
    %2286 = vmatpush1.msra.mxu0 %v1735
    %2287 = vmatprep.subr.mxu0 0.0
    %2288 = vmatpush1.msra.mxu0 %v1740
    %2289 = vmatprep.subr.mxu0 0.0
    %2290 = vmatpush1.msra.mxu0 %v1745
    %2291 = vmatprep.subr.mxu0 0.0
    %2292 = vmatpush1.msra.mxu0 %v1750
    %2293 = vmatprep.subr.mxu0 0.0
    %2294 = vmatpush1.msra.mxu0 %v1755
    %2295 = vmatprep.subr.mxu0 0.0
    %2296 = vmatpush1.msra.mxu0 %v1760
    %2297 = vmatprep.subr.mxu0 0.0
    %2298 = vmatpush1.msra.mxu0 %v1765
    %2299 = vmatprep.subr.mxu0 0.0
    %2300 = vmatpush1.msra.mxu0 %v1770
    %2301 = vmatprep.subr.mxu0 0.0
    %2302 = vmatpush1.msra.mxu0 %v1775
    %2303 = vmatprep.subr.mxu0 0.0
    %2304 = vmatpush1.msra.mxu0 %v1780
    %2305 = vmatprep.subr.mxu0 0.0
    %2306 = vmatpush1.msra.mxu0 %v1855
    %2307 = vmatprep.subr.mxu0 0.0
    %2308 = vmatpush1.msra.mxu0 %v1860
    %2309 = vmatprep.subr.mxu0 0.0
    %2310 = vmatpush1.msra.mxu0 %v1865
    %2311 = vmatprep.subr.mxu0 0.0
    %2312 = vmatpush1.msra.mxu0 %v1870
    %2313 = vmatprep.subr.mxu0 0.0
    %2314 = vmatpush1.msra.mxu0 %v1875
    %2315 = vmatprep.subr.mxu0 0.0
    %2316 = vmatpush1.msra.mxu0 %v1880
    %2317 = vmatprep.subr.mxu0 0.0
    %2318 = vmatpush1.msra.mxu0 %v1885
    %2319 = vmatprep.subr.mxu0 0.0
    %2320 = vmatpush1.msra.mxu0 %v1890
    %2321 = vmatprep.subr.mxu0 0.0
    %2322 = vmatpush1.msra.mxu0 %v1895
    %2323 = vmatprep.subr.mxu0 0.0
    %2324 = vmatpush1.msra.mxu0 %v1900
    %2325 = vmatprep.subr.mxu0 0.0
    %2326 = vmatpush1.msra.mxu0 %v1905
    %2327 = vmatprep.subr.mxu0 0.0
    %2328 = vmatpush1.msra.mxu0 %v1910
    %2329 = vmatprep.subr.mxu0 0.0
    %2330 = vmatpush1.msra.mxu0 %v1985
    %2331 = vmatprep.subr.mxu0 0.0
    %2332 = vmatpush1.msra.mxu0 %v1990
    %2333 = vmatprep.subr.mxu0 0.0
    %2334 = vmatpush1.msra.mxu0 %v1995
    %2335 = vmatprep.subr.mxu0 0.0
    %2336 = vmatpush1.msra.mxu0 %v2000
    %2337 = vmatprep.subr.mxu0 0.0
    %2338 = vmatpush1.msra.mxu0 %v2005
    %2339 = vmatprep.subr.mxu0 0.0
    %2340 = vmatpush1.msra.mxu0 %v2010
    %2341 = vmatprep.subr.mxu0 0.0
    %2342 = vmatpush1.msra.mxu0 %v2015
    %2343 = vmatprep.subr.mxu0 0.0
    %2344 = vmatpush1.msra.mxu0 %v2020
    %2345 = vmatprep.mubr.f32.mxu0 %v2174
    %2346 = vmatmul.mubr.f32.gmra.mrb[0].mxu0 %v2173
    %v2347 = vpop.f32.mrb[0].mxu0
    %v2348 = vadd.f32 %v2224, %v2347
    %v2349 = vpop.f32.mrb[0].mxu0
    %2350 = vmatprep.mubr.f32.mxu0 %v2177
    %2351 = vmatmul.mubr.f32.gmra.mrb[0].mxu0 %v2176
    %v2352 = vpop.f32.mrb[0].mxu0
    %v2353 = vadd.f32 %v2229, %v2352
    %v2354 = vpop.f32.mrb[0].mxu0
    %2355 = vmatprep.mubr.f32.mxu0 %v2180
    %2356 = vmatmul.mubr.f32.gmra.mrb[0].mxu0 %v2179
    %v2357 = vpop.f32.mrb[0].mxu0
    %v2358 = vadd.f32 %v2234, %v2357
    %v2359 = vpop.f32.mrb[0].mxu0
    %2360 = vmatprep.mubr.f32.mxu0 %v2183
    %2361 = vmatmul.mubr.f32.gmra.mrb[0].mxu0 %v2182
    %v2362 = vpop.f32.mrb[0].mxu0
    %v2363 = vadd.f32 %v2239, %v2362
    %v2364 = vpop.f32.mrb[0].mxu0
    %2365 = vmatprep.mubr.f32.mxu0 %v2186
    %2366 = vmatmul.mubr.f32.gmra.mrb[0].mxu0 %v2185
    %v2367 = vpop.f32.mrb[0].mxu0
    %v2368 = vadd.f32 %v2244, %v2367
    %v2369 = vpop.f32.mrb[0].mxu0
    %2370 = vmatprep.mubr.f32.mxu0 %v2189
    %2371 = vmatmul.mubr.f32.gmra.mrb[0].mxu0 %v2188
    %v2372 = vpop.f32.mrb[0].mxu0
    %v2373 = vadd.f32 %v2249, %v2372
    %v2374 = vpop.f32.mrb[0].mxu0
    %2375 = vmatprep.mubr.f32.mxu0 %v2192
    %2376 = vmatmul.mubr.f32.gmra.mrb[0].mxu0 %v2191
    %v2377 = vpop.f32.mrb[0].mxu0
    %v2378 = vadd.f32 %v2254, %v2377
    %v2379 = vpop.f32.mrb[0].mxu0
    %2380 = vmatprep.mubr.f32.mxu0 %v2195
    %2381 = vmatmul.mubr.f32.gmra.mrb[0].mxu0 %v2194
    %v2382 = vpop.f32.mrb[0].mxu0
    %v2383 = vadd.f32 %v2259, %v2382
    %v2384 = vpop.f32.mrb[0].mxu0
    %2385 = vmatprep.mubr.f32.mxu0 %v2198
    %2386 = vmatmul.mubr.f32.gmra.mrb[0].mxu0 %v2197
    %v2387 = vpop.f32.mrb[0].mxu0
    %v2388 = vadd.f32 %v2264, %v2387
    %v2389 = vpop.f32.mrb[0].mxu0
    %2390 = vmatprep.mubr.f32.mxu0 %v2201
    %2391 = vmatmul.mubr.f32.gmra.mrb[0].mxu0 %v2200
    %v2392 = vpop.f32.mrb[0].mxu0
    %v2393 = vadd.f32 %v2269, %v2392
    %v2394 = vpop.f32.mrb[0].mxu0
    %2395 = vmatprep.mubr.f32.mxu0 %v2204
    %2396 = vmatmul.mubr.f32.gmra.mrb[0].mxu0 %v2203
    %v2397 = vpop.f32.mrb[0].mxu0
    %v2398 = vadd.f32 %v2274, %v2397
    %v2399 = vpop.f32.mrb[0].mxu0
    %2400 = vmatprep.mubr.f32.mxu0 %v2207
    %2401 = vmatmul.mubr.f32.gmra.mrb[0].mxu0 %v2206
    %v2402 = vpop.f32.mrb[0].mxu0
    %v2403 = vadd.f32 %v2279, %v2402
    %v2404 = vpop.f32.mrb[0].mxu0
    %2405 = vdwg.mxu0
    %2406 = vmatprep.subr.mxu0 0.0
    %2407 = vmatpush1.msra.mxu0 %v2025
    %2408 = vmatprep.subr.mxu0 0.0
    %2409 = vmatpush1.msra.mxu0 %v2030
    %2410 = vmatprep.subr.mxu0 0.0
    %2411 = vmatpush1.msra.mxu0 %v2035
    %2412 = vmatprep.subr.mxu0 0.0
    %2413 = vmatpush1.msra.mxu0 %v2040
    %2414 = vmatprep.subr.mxu0 0.0
    %2415 = vmatpush1.msra.mxu0 %v2115
    %2416 = vmatprep.subr.mxu0 0.0
    %2417 = vmatpush1.msra.mxu0 %v2120
    %2418 = vmatprep.subr.mxu0 0.0
    %2419 = vmatpush1.msra.mxu0 %v2125
    %2420 = vmatprep.subr.mxu0 0.0
    %2421 = vmatpush1.msra.mxu0 %v2130
    %2422 = vmatprep.subr.mxu0 0.0
    %2423 = vmatpush1.msra.mxu0 %v2135
    %2424 = vmatprep.subr.mxu0 0.0
    %2425 = vmatpush1.msra.mxu0 %v2140
    %2426 = vmatprep.subr.mxu0 0.0
    %2427 = vmatpush1.msra.mxu0 %v2145
    %2428 = vmatprep.subr.mxu0 0.0
    %2429 = vmatpush1.msra.mxu0 %v2150
    %2430 = vmatprep.subr.mxu0 0.0
    %2431 = vmatpush1.msra.mxu0 %v2155
    %2432 = vmatprep.subr.mxu0 0.0
    %2433 = vmatpush1.msra.mxu0 %v2160
    %2434 = vmatprep.subr.mxu0 0.0
    %2435 = vmatpush1.msra.mxu0 %v2165
    %2436 = vmatprep.subr.mxu0 0.0
    %2437 = vmatpush1.msra.mxu0 %v2170
    %2438 = vmatprep.subr.mxu0 0.0
    %2439 = vmatpush1.msra.mxu0 0.0
    %2440 = vmatprep.subr.mxu0 0.0
    %2441 = vmatpush1.msra.mxu0 0.0
    %2442 = vmatprep.subr.mxu0 0.0
    %2443 = vmatpush1.msra.mxu0 0.0
    %2444 = vmatprep.subr.mxu0 0.0
    %2445 = vmatpush1.msra.mxu0 0.0
    %2446 = vmatprep.subr.mxu0 0.0
    %2447 = vmatpush1.msra.mxu0 0.0
    %2448 = vmatprep.subr.mxu0 0.0
    %2449 = vmatpush1.msra.mxu0 0.0
    %2450 = vmatprep.subr.mxu0 0.0
    %2451 = vmatpush1.msra.mxu0 0.0
    %2452 = vmatprep.subr.mxu0 0.0
    %2453 = vmatpush1.msra.mxu0 0.0
    %2454 = vmatprep.subr.mxu0 0.0
    %2455 = vmatpush1.msra.mxu0 0.0
    %2456 = vmatprep.subr.mxu0 0.0
    %2457 = vmatpush1.msra.mxu0 0.0
    %2458 = vmatprep.subr.mxu0 0.0
    %2459 = vmatpush1.msra.mxu0 0.0
    %2460 = vmatprep.subr.mxu0 0.0
    %2461 = vmatpush1.msra.mxu0 0.0
    %2462 = vmatprep.subr.mxu0 0.0
    %2463 = vmatpush1.msra.mxu0 0.0
    %2464 = vmatprep.subr.mxu0 0.0
    %2465 = vmatpush1.msra.mxu0 0.0
    %2466 = vmatprep.subr.mxu0 0.0
    %2467 = vmatpush1.msra.mxu0 0.0
    %2468 = vmatprep.subr.mxu0 0.0
    %2469 = vmatpush1.msra.mxu0 0.0
    %2470 = vmatprep.mubr.f32.mxu0 0.0
    %2471 = vmatmul.mubr.f32.gmra.mrb[0].mxu0 %v2175
    %v2472 = vpop.f32.mrb[0].mxu0
    %v2473 = vadd.f32 %v2348, %v2472
    %v2474 = vpop.f32.mrb[0].mxu0
    %2475 = vmatprep.mubr.f32.mxu0 0.0
    %2476 = vmatmul.mubr.f32.gmra.mrb[0].mxu0 %v2178
    %v2477 = vpop.f32.mrb[0].mxu0
    %v2478 = vadd.f32 %v2353, %v2477
    %v2479 = vpop.f32.mrb[0].mxu0
    %2480 = vmatprep.mubr.f32.mxu0 0.0
    %2481 = vmatmul.mubr.f32.gmra.mrb[0].mxu0 %v2181
    %v2482 = vpop.f32.mrb[0].mxu0
    %v2483 = vadd.f32 %v2358, %v2482
    %v2484 = vpop.f32.mrb[0].mxu0
    %2485 = vmatprep.mubr.f32.mxu0 0.0
    %2486 = vmatmul.mubr.f32.gmra.mrb[0].mxu0 %v2184
    %v2487 = vpop.f32.mrb[0].mxu0
    %v2488 = vadd.f32 %v2363, %v2487
    %v2489 = vpop.f32.mrb[0].mxu0
    %2490 = vmatprep.mubr.f32.mxu0 0.0
    %2491 = vmatmul.mubr.f32.gmra.mrb[0].mxu0 %v2187
    %v2492 = vpop.f32.mrb[0].mxu0
    %v2493 = vadd.f32 %v2368, %v2492
    %v2494 = vpop.f32.mrb[0].mxu0
    %2495 = vmatprep.mubr.f32.mxu0 0.0
    %2496 = vmatmul.mubr.f32.gmra.mrb[0].mxu0 %v2190
    %v2497 = vpop.f32.mrb[0].mxu0
    %v2498 = vadd.f32 %v2373, %v2497
    %v2499 = vpop.f32.mrb[0].mxu0
    %2500 = vmatprep.mubr.f32.mxu0 0.0
    %2501 = vmatmul.mubr.f32.gmra.mrb[0].mxu0 %v2193
    %v2502 = vpop.f32.mrb[0].mxu0
    %v2503 = vadd.f32 %v2378, %v2502
    %v2504 = vpop.f32.mrb[0].mxu0
    %2505 = vmatprep.mubr.f32.mxu0 0.0
    %2506 = vmatmul.mubr.f32.gmra.mrb[0].mxu0 %v2196
    %v2507 = vpop.f32.mrb[0].mxu0
    %v2508 = vadd.f32 %v2383, %v2507
    %v2509 = vpop.f32.mrb[0].mxu0
    %2510 = vmatprep.mubr.f32.mxu0 0.0
    %2511 = vmatmul.mubr.f32.gmra.mrb[0].mxu0 %v2199
    %v2512 = vpop.f32.mrb[0].mxu0
    %v2513 = vadd.f32 %v2388, %v2512
    %v2514 = vpop.f32.mrb[0].mxu0
    %2515 = vmatprep.mubr.f32.mxu0 0.0
    %2516 = vmatmul.mubr.f32.gmra.mrb[0].mxu0 %v2202
    %v2517 = vpop.f32.mrb[0].mxu0
    %v2518 = vadd.f32 %v2393, %v2517
    %v2519 = vpop.f32.mrb[0].mxu0
    %2520 = vmatprep.mubr.f32.mxu0 0.0
    %2521 = vmatmul.mubr.f32.gmra.mrb[0].mxu0 %v2205
    %v2522 = vpop.f32.mrb[0].mxu0
    %v2523 = vadd.f32 %v2398, %v2522
    %v2524 = vpop.f32.mrb[0].mxu0
    %2525 = vmatprep.mubr.f32.mxu0 0.0
    %2526 = vmatmul.mubr.f32.gmra.mrb[0].mxu0 %v2208
    %v2527 = vpop.f32.mrb[0].mxu0
    %v2528 = vadd.f32 %v2403, %v2527
    %v2529 = vpop.f32.mrb[0].mxu0
    %2530 = vdwg.mxu0
    %v2531 = vld [vmem:[#allocation10] sm:$0xff]
    %v2532 = vld [vmem:[#allocation10 + $0x8] sm:$0xff]
    %vm2533 = vcmask 130048
    %v2535 = vsel %vm2533, %v2473, 0
    %v2538 = vsel %vm2533, %v2478, 0
    %v2541 = vsel %vm2533, %v2483, 0
    %v2544 = vsel %vm2533, %v2488, 0
    %v2547 = vsel %vm2533, %v2493, 0
    %v2550 = vsel %vm2533, %v2498, 0
    %v2553 = vsel %vm2533, %v2503, 0
    %v2556 = vsel %vm2533, %v2508, 0
    %v2559 = vsel %vm2533, %v2513, 0
    %v2562 = vsel %vm2533, %v2518, 0
    %v2565 = vsel %vm2533, %v2523, 0
    %v2568 = vsel %vm2533, %v2528, 0
    %2570 = vmatprep.subr.mxu0 0.0
    %2571 = vmatpush1.msra.mxu0 %v2531
    %2572 = vmatprep.subr.mxu0 0.0
    %2573 = vmatpush1.msra.mxu0 %v2532
    %2574 = vmatprep.subr.mxu0 0.0
    %2575 = vmatpush1.msra.mxu0 0.0
    %2576 = vmatprep.subr.mxu0 0.0
    %2577 = vmatpush1.msra.mxu0 0.0
    %2578 = vmatprep.subr.mxu0 0.0
    %2579 = vmatpush1.msra.mxu0 0.0
    %2580 = vmatprep.subr.mxu0 0.0
    %2581 = vmatpush1.msra.mxu0 0.0
    %2582 = vmatprep.subr.mxu0 0.0
    %2583 = vmatpush1.msra.mxu0 0.0
    %2584 = vmatprep.subr.mxu0 0.0
    %2585 = vmatpush1.msra.mxu0 0.0
    %2586 = vmatprep.subr.mxu0 0.0
    %2587 = vmatpush1.msra.mxu0 0.0
    %2588 = vmatprep.subr.mxu0 0.0
    %2589 = vmatpush1.msra.mxu0 0.0
    %2590 = vmatprep.subr.mxu0 0.0
    %2591 = vmatpush1.msra.mxu0 0.0
    %2592 = vmatprep.subr.mxu0 0.0
    %2593 = vmatpush1.msra.mxu0 0.0
    %2594 = vmatprep.subr.mxu0 0.0
    %2595 = vmatpush1.msra.mxu0 0.0
    %2596 = vmatprep.subr.mxu0 0.0
    %2597 = vmatpush1.msra.mxu0 0.0
    %2598 = vmatprep.subr.mxu0 0.0
    %2599 = vmatpush1.msra.mxu0 0.0
    %2600 = vmatprep.subr.mxu0 0.0
    %2601 = vmatpush1.msra.mxu0 0.0
    %2602 = vmatprep.subr.mxu0 0.0
    %2603 = vmatpush1.msra.mxu0 0.0
    %2604 = vmatprep.subr.mxu0 0.0
    %2605 = vmatpush1.msra.mxu0 0.0
    %2606 = vmatprep.subr.mxu0 0.0
    %2607 = vmatpush1.msra.mxu0 0.0
    %2608 = vmatprep.subr.mxu0 0.0
    %2609 = vmatpush1.msra.mxu0 0.0
    %2610 = vmatprep.subr.mxu0 0.0
    %2611 = vmatpush1.msra.mxu0 0.0
    %2612 = vmatprep.subr.mxu0 0.0
    %2613 = vmatpush1.msra.mxu0 0.0
    %2614 = vmatprep.subr.mxu0 0.0
    %2615 = vmatpush1.msra.mxu0 0.0
    %2616 = vmatprep.subr.mxu0 0.0
    %2617 = vmatpush1.msra.mxu0 0.0
    %2618 = vmatprep.subr.mxu0 0.0
    %2619 = vmatpush1.msra.mxu0 0.0
    %2620 = vmatprep.subr.mxu0 0.0
    %2621 = vmatpush1.msra.mxu0 0.0
    %2622 = vmatprep.subr.mxu0 0.0
    %2623 = vmatpush1.msra.mxu0 0.0
    %2624 = vmatprep.subr.mxu0 0.0
    %2625 = vmatpush1.msra.mxu0 0.0
    %2626 = vmatprep.subr.mxu0 0.0
    %2627 = vmatpush1.msra.mxu0 0.0
    %2628 = vmatprep.subr.mxu0 0.0
    %2629 = vmatpush1.msra.mxu0 0.0
    %2630 = vmatprep.subr.mxu0 0.0
    %2631 = vmatpush1.msra.mxu0 0.0
    %2632 = vmatprep.subr.mxu0 0.0
    %2633 = vmatpush1.msra.mxu0 0.0
    %2634 = vmatprep.mubr.f32.mxu0 0.0
    %2635 = vmatmul.mubr.f32.gmra.mrb[0].mxu0 %v2535
    %v2636 = vpop.f32.mrb[0].mxu0
    %v2637 = vadd.f32 0.0, %v2636
    %v2638 = vpop.f32.mrb[0].mxu0
    %2639 = vmatprep.mubr.f32.mxu0 0.0
    %2640 = vmatmul.mubr.f32.gmra.mrb[0].mxu0 %v2538
    %v2641 = vpop.f32.mrb[0].mxu0
    %v2642 = vadd.f32 0.0, %v2641
    %v2643 = vpop.f32.mrb[0].mxu0
    %2644 = vmatprep.mubr.f32.mxu0 0.0
    %2645 = vmatmul.mubr.f32.gmra.mrb[0].mxu0 %v2541
    %v2646 = vpop.f32.mrb[0].mxu0
    %v2647 = vadd.f32 0.0, %v2646
    %v2648 = vpop.f32.mrb[0].mxu0
    %2649 = vmatprep.mubr.f32.mxu0 0.0
    %2650 = vmatmul.mubr.f32.gmra.mrb[0].mxu0 %v2544
    %v2651 = vpop.f32.mrb[0].mxu0
    %v2652 = vadd.f32 0.0, %v2651
    %v2653 = vpop.f32.mrb[0].mxu0
    %2654 = vmatprep.mubr.f32.mxu0 0.0
    %2655 = vmatmul.mubr.f32.gmra.mrb[0].mxu0 %v2547
    %v2656 = vpop.f32.mrb[0].mxu0
    %v2657 = vadd.f32 0.0, %v2656
    %v2658 = vpop.f32.mrb[0].mxu0
    %2659 = vmatprep.mubr.f32.mxu0 0.0
    %2660 = vmatmul.mubr.f32.gmra.mrb[0].mxu0 %v2550
    %v2661 = vpop.f32.mrb[0].mxu0
    %v2662 = vadd.f32 0.0, %v2661
    %v2663 = vpop.f32.mrb[0].mxu0
    %2664 = vmatprep.mubr.f32.mxu0 0.0
    %2665 = vmatmul.mubr.f32.gmra.mrb[0].mxu0 %v2553
    %v2666 = vpop.f32.mrb[0].mxu0
    %v2667 = vadd.f32 0.0, %v2666
    %v2668 = vpop.f32.mrb[0].mxu0
    %2669 = vmatprep.mubr.f32.mxu0 0.0
    %2670 = vmatmul.mubr.f32.gmra.mrb[0].mxu0 %v2556
    %v2671 = vpop.f32.mrb[0].mxu0
    %v2672 = vadd.f32 0.0, %v2671
    %v2673 = vpop.f32.mrb[0].mxu0
    %2674 = vmatprep.mubr.f32.mxu0 0.0
    %2675 = vmatmul.mubr.f32.gmra.mrb[0].mxu0 %v2559
    %v2676 = vpop.f32.mrb[0].mxu0
    %v2677 = vadd.f32 0.0, %v2676
    %v2678 = vpop.f32.mrb[0].mxu0
    %2679 = vmatprep.mubr.f32.mxu0 0.0
    %2680 = vmatmul.mubr.f32.gmra.mrb[0].mxu0 %v2562
    %v2681 = vpop.f32.mrb[0].mxu0
    %v2682 = vadd.f32 0.0, %v2681
    %v2683 = vpop.f32.mrb[0].mxu0
    %2684 = vmatprep.mubr.f32.mxu0 0.0
    %2685 = vmatmul.mubr.f32.gmra.mrb[0].mxu0 %v2565
    %v2686 = vpop.f32.mrb[0].mxu0
    %v2687 = vadd.f32 0.0, %v2686
    %v2688 = vpop.f32.mrb[0].mxu0
    %2689 = vmatprep.mubr.f32.mxu0 0.0
    %2690 = vmatmul.mubr.f32.gmra.mrb[0].mxu0 %v2568
    %v2691 = vpop.f32.mrb[0].mxu0
    %v2692 = vadd.f32 0.0, %v2691
    %v2693 = vpop.f32.mrb[0].mxu0
    %2694 = vdwg.mxu0
    %v2695 = vsub.f32 %v2473, %v2637
    %v2696 = vsub.f32 %v2478, %v2642
    %v2697 = vsub.f32 %v2483, %v2647
    %v2698 = vsub.f32 %v2488, %v2652
    %v2699 = vsub.f32 %v2493, %v2657
    %v2700 = vsub.f32 %v2498, %v2662
    %v2701 = vsub.f32 %v2503, %v2667
    %v2702 = vsub.f32 %v2508, %v2672
    %v2703 = vsub.f32 %v2513, %v2677
    %v2704 = vsub.f32 %v2518, %v2682
    %v2705 = vsub.f32 %v2523, %v2687
    %v2706 = vsub.f32 %v2528, %v2692
    %v2707 = vmul.f32 %v2695, %v2695
    %v2708 = vmul.f32 %v2696, %v2696
    %v2709 = vmul.f32 %v2697, %v2697
    %v2710 = vmul.f32 %v2698, %v2698
    %v2711 = vmul.f32 %v2699, %v2699
    %v2712 = vmul.f32 %v2700, %v2700
    %v2713 = vmul.f32 %v2701, %v2701
    %v2714 = vmul.f32 %v2702, %v2702
    %v2715 = vmul.f32 %v2703, %v2703
    %v2716 = vmul.f32 %v2704, %v2704
    %v2717 = vmul.f32 %v2705, %v2705
    %v2718 = vmul.f32 %v2706, %v2706
    %v2720 = vsel %vm2533, %v2707, 0
    %v2723 = vsel %vm2533, %v2708, 0
    %v2726 = vsel %vm2533, %v2709, 0
    %v2729 = vsel %vm2533, %v2710, 0
    %v2732 = vsel %vm2533, %v2711, 0
    %v2735 = vsel %vm2533, %v2712, 0
    %v2738 = vsel %vm2533, %v2713, 0
    %v2741 = vsel %vm2533, %v2714, 0
    %v2744 = vsel %vm2533, %v2715, 0
    %v2747 = vsel %vm2533, %v2716, 0
    %v2750 = vsel %vm2533, %v2717, 0
    %v2753 = vsel %vm2533, %v2718, 0
    %2755 = vmatprep.subr.mxu0 0.0
    %2756 = vmatpush1.msra.mxu0 %v2531
    %2757 = vmatprep.subr.mxu0 0.0
    %2758 = vmatpush1.msra.mxu0 %v2532
    %2759 = vmatprep.subr.mxu0 0.0
    %2760 = vmatpush1.msra.mxu0 0.0
    %2761 = vmatprep.subr.mxu0 0.0
    %2762 = vmatpush1.msra.mxu0 0.0
    %2763 = vmatprep.subr.mxu0 0.0
    %2764 = vmatpush1.msra.mxu0 0.0
    %2765 = vmatprep.subr.mxu0 0.0
    %2766 = vmatpush1.msra.mxu0 0.0
    %2767 = vmatprep.subr.mxu0 0.0
    %2768 = vmatpush1.msra.mxu0 0.0
    %2769 = vmatprep.subr.mxu0 0.0
    %2770 = vmatpush1.msra.mxu0 0.0
    %2771 = vmatprep.subr.mxu0 0.0
    %2772 = vmatpush1.msra.mxu0 0.0
    %2773 = vmatprep.subr.mxu0 0.0
    %2774 = vmatpush1.msra.mxu0 0.0
    %2775 = vmatprep.subr.mxu0 0.0
    %2776 = vmatpush1.msra.mxu0 0.0
    %2777 = vmatprep.subr.mxu0 0.0
    %2778 = vmatpush1.msra.mxu0 0.0
    %2779 = vmatprep.subr.mxu0 0.0
    %2780 = vmatpush1.msra.mxu0 0.0
    %2781 = vmatprep.subr.mxu0 0.0
    %2782 = vmatpush1.msra.mxu0 0.0
    %2783 = vmatprep.subr.mxu0 0.0
    %2784 = vmatpush1.msra.mxu0 0.0
    %2785 = vmatprep.subr.mxu0 0.0
    %2786 = vmatpush1.msra.mxu0 0.0
    %2787 = vmatprep.subr.mxu0 0.0
    %2788 = vmatpush1.msra.mxu0 0.0
    %2789 = vmatprep.subr.mxu0 0.0
    %2790 = vmatpush1.msra.mxu0 0.0
    %2791 = vmatprep.subr.mxu0 0.0
    %2792 = vmatpush1.msra.mxu0 0.0
    %2793 = vmatprep.subr.mxu0 0.0
    %2794 = vmatpush1.msra.mxu0 0.0
    %2795 = vmatprep.subr.mxu0 0.0
    %2796 = vmatpush1.msra.mxu0 0.0
    %2797 = vmatprep.subr.mxu0 0.0
    %2798 = vmatpush1.msra.mxu0 0.0
    %2799 = vmatprep.subr.mxu0 0.0
    %2800 = vmatpush1.msra.mxu0 0.0
    %2801 = vmatprep.subr.mxu0 0.0
    %2802 = vmatpush1.msra.mxu0 0.0
    %2803 = vmatprep.subr.mxu0 0.0
    %2804 = vmatpush1.msra.mxu0 0.0
    %2805 = vmatprep.subr.mxu0 0.0
    %2806 = vmatpush1.msra.mxu0 0.0
    %2807 = vmatprep.subr.mxu0 0.0
    %2808 = vmatpush1.msra.mxu0 0.0
    %2809 = vmatprep.subr.mxu0 0.0
    %2810 = vmatpush1.msra.mxu0 0.0
    %2811 = vmatprep.subr.mxu0 0.0
    %2812 = vmatpush1.msra.mxu0 0.0
    %2813 = vmatprep.subr.mxu0 0.0
    %2814 = vmatpush1.msra.mxu0 0.0
    %2815 = vmatprep.subr.mxu0 0.0
    %2816 = vmatpush1.msra.mxu0 0.0
    %2817 = vmatprep.subr.mxu0 0.0
    %2818 = vmatpush1.msra.mxu0 0.0
    %2819 = vmatprep.mubr.f32.mxu0 0.0
    %2820 = vmatmul.mubr.f32.gmra.mrb[0].mxu0 %v2720
    %v2821 = vpop.f32.mrb[0].mxu0
    %v2822 = vadd.f32 1e-05, %v2821
    %v2823 = vpop.f32.mrb[0].mxu0
    %2824 = vmatprep.mubr.f32.mxu0 0.0
    %2825 = vmatmul.mubr.f32.gmra.mrb[0].mxu0 %v2723
    %v2826 = vpop.f32.mrb[0].mxu0
    %v2827 = vadd.f32 1e-05, %v2826
    %v2828 = vpop.f32.mrb[0].mxu0
    %2829 = vmatprep.mubr.f32.mxu0 0.0
    %2830 = vmatmul.mubr.f32.gmra.mrb[0].mxu0 %v2726
    %v2831 = vpop.f32.mrb[0].mxu0
    %v2832 = vadd.f32 1e-05, %v2831
    %v2833 = vpop.f32.mrb[0].mxu0
    %2834 = vmatprep.mubr.f32.mxu0 0.0
    %2835 = vmatmul.mubr.f32.gmra.mrb[0].mxu0 %v2729
    %v2836 = vpop.f32.mrb[0].mxu0
    %v2837 = vadd.f32 1e-05, %v2836
    %v2838 = vpop.f32.mrb[0].mxu0
    %2839 = vmatprep.mubr.f32.mxu0 0.0
    %2840 = vmatmul.mubr.f32.gmra.mrb[0].mxu0 %v2732
    %v2841 = vpop.f32.mrb[0].mxu0
    %v2842 = vadd.f32 1e-05, %v2841
    %v2843 = vpop.f32.mrb[0].mxu0
    %2844 = vmatprep.mubr.f32.mxu0 0.0
    %2845 = vmatmul.mubr.f32.gmra.mrb[0].mxu0 %v2735
    %v2846 = vpop.f32.mrb[0].mxu0
    %v2847 = vadd.f32 1e-05, %v2846
    %v2848 = vpop.f32.mrb[0].mxu0
    %2849 = vmatprep.mubr.f32.mxu0 0.0
    %2850 = vmatmul.mubr.f32.gmra.mrb[0].mxu0 %v2738
    %v2851 = vpop.f32.mrb[0].mxu0
    %v2852 = vadd.f32 1e-05, %v2851
    %v2853 = vpop.f32.mrb[0].mxu0
    %2854 = vmatprep.mubr.f32.mxu0 0.0
    %2855 = vmatmul.mubr.f32.gmra.mrb[0].mxu0 %v2741
    %v2856 = vpop.f32.mrb[0].mxu0
    %v2857 = vadd.f32 1e-05, %v2856
    %v2858 = vpop.f32.mrb[0].mxu0
    %2859 = vmatprep.mubr.f32.mxu0 0.0
    %2860 = vmatmul.mubr.f32.gmra.mrb[0].mxu0 %v2744
    %v2861 = vpop.f32.mrb[0].mxu0
    %v2862 = vadd.f32 1e-05, %v2861
    %v2863 = vpop.f32.mrb[0].mxu0
    %2864 = vmatprep.mubr.f32.mxu0 0.0
    %2865 = vmatmul.mubr.f32.gmra.mrb[0].mxu0 %v2747
    %v2866 = vpop.f32.mrb[0].mxu0
    %v2867 = vadd.f32 1e-05, %v2866
    %v2868 = vpop.f32.mrb[0].mxu0
    %2869 = vmatprep.mubr.f32.mxu0 0.0
    %2870 = vmatmul.mubr.f32.gmra.mrb[0].mxu0 %v2750
    %v2871 = vpop.f32.mrb[0].mxu0
    %v2872 = vadd.f32 1e-05, %v2871
    %v2873 = vpop.f32.mrb[0].mxu0
    %2874 = vmatprep.mubr.f32.mxu0 0.0
    %2875 = vmatmul.mubr.f32.gmra.mrb[0].mxu0 %v2753
    %v2876 = vpop.f32.mrb[0].mxu0
    %v2877 = vadd.f32 1e-05, %v2876
    %v2878 = vpop.f32.mrb[0].mxu0
    %2879 = vdwg.mxu0
    %v2880 = vrsqrt.pop %v2822
    %v2881 = vrsqrt.pop %v2827
    %v2882 = vrsqrt.pop %v2832
    %v2883 = vrsqrt.pop %v2837
    %v2884 = vrsqrt.pop %v2842
    %v2885 = vrsqrt.pop %v2847
    %v2886 = vrsqrt.pop %v2852
    %v2887 = vrsqrt.pop %v2857
    %v2888 = vrsqrt.pop %v2862
    %v2889 = vrsqrt.pop %v2867
    %v2890 = vrsqrt.pop %v2872
    %v2891 = vrsqrt.pop %v2877
    %v2892 = vmul.f32 %v2695, %v2880
    %v2893 = vmul.f32 %v2696, %v2881
    %v2894 = vmul.f32 %v2697, %v2882
    %v2895 = vmul.f32 %v2698, %v2883
    %v2896 = vmul.f32 %v2699, %v2884
    %v2897 = vmul.f32 %v2700, %v2885
    %v2898 = vmul.f32 %v2701, %v2886
    %v2899 = vmul.f32 %v2702, %v2887
    %v2900 = vmul.f32 %v2703, %v2888
    %v2901 = vmul.f32 %v2704, %v2889
    %v2902 = vmul.f32 %v2705, %v2890
    %v2903 = vmul.f32 %v2706, %v2891
    %v2904 = vld [vmem:[#allocation12] sm:$0x1]
    %v2906 = vlaneseq
    %v2907 = vshrl.u32 %v2906, 7
    %v2908 = vsub.s32 0, %v2907
    %v2909 = vrot.slane %v2904, %v2908
    %v2911 = vmul.f32 %v2892, %v2909
    %v2912 = vmul.f32 %v2893, %v2909
    %v2913 = vmul.f32 %v2894, %v2909
    %v2914 = vmul.f32 %v2895, %v2909
    %v2915 = vmul.f32 %v2896, %v2909
    %v2916 = vmul.f32 %v2897, %v2909
    %v2917 = vmul.f32 %v2898, %v2909
    %v2918 = vmul.f32 %v2899, %v2909
    %v2919 = vmul.f32 %v2900, %v2909
    %v2920 = vmul.f32 %v2901, %v2909
    %v2921 = vmul.f32 %v2902, %v2909
    %v2922 = vmul.f32 %v2903, %v2909
    %v2923 = vld [vmem:[#allocation13] sm:$0x1]
    %v2925 = vlaneseq
    %v2926 = vshrl.u32 %v2925, 7
    %v2927 = vsub.s32 0, %v2926
    %v2928 = vrot.slane %v2923, %v2927
    %v2930 = vadd.f32 %v2911, %v2928
    %v2931 = vadd.f32 %v2912, %v2928
    %v2932 = vadd.f32 %v2913, %v2928
    %v2933 = vadd.f32 %v2914, %v2928
    %v2934 = vadd.f32 %v2915, %v2928
    %v2935 = vadd.f32 %v2916, %v2928
    %v2936 = vadd.f32 %v2917, %v2928
    %v2937 = vadd.f32 %v2918, %v2928
    %v2938 = vadd.f32 %v2919, %v2928
    %v2939 = vadd.f32 %v2920, %v2928
    %v2940 = vadd.f32 %v2921, %v2928
    %v2941 = vadd.f32 %v2922, %v2928
    %v2942 = vld [vmem:[%s14] sm:$0xff]
    %v2943 = vld [vmem:[%s14 + $0x8] sm:$0xff]
    %v2944 = vld [vmem:[%s14 + $0x10] sm:$0xff]
    %v2945 = vld [vmem:[%s14 + $0x18] sm:$0xff]
    %v2946 = vld [vmem:[%s14 + $0x20] sm:$0xff]
    %v2947 = vld [vmem:[%s14 + $0x28] sm:$0xff]
    %v2948 = vld [vmem:[%s14 + $0x30] sm:$0xff]
    %v2949 = vld [vmem:[%s14 + $0x38] sm:$0xff]
    %2950 = vmatprep.subr.mxu0 0.0
    %2951 = vmatpush1.msra.mxu0 %v2942
    %2952 = vmatprep.subr.mxu0 0.0
    %2953 = vmatpush1.msra.mxu0 %v2943
    %2954 = vmatprep.subr.mxu0 0.0
    %2955 = vmatpush1.msra.mxu0 %v2944
    %2956 = vmatprep.subr.mxu0 0.0
    %2957 = vmatpush1.msra.mxu0 %v2945
    %2958 = vmatprep.subr.mxu0 0.0
    %2959 = vmatpush1.msra.mxu0 %v2946
    %2960 = vmatprep.subr.mxu0 0.0
    %2961 = vmatpush1.msra.mxu0 %v2947
    %2962 = vmatprep.subr.mxu0 0.0
    %2963 = vmatpush1.msra.mxu0 %v2948
    %2964 = vmatprep.subr.mxu0 0.0
    %2965 = vmatpush1.msra.mxu0 %v2949
    %2966 = vmatprep.subr.mxu0 0.0
    %2967 = vmatpush1.msra.mxu0 0.0
    %2968 = vmatprep.subr.mxu0 0.0
    %2969 = vmatpush1.msra.mxu0 0.0
    %2970 = vmatprep.subr.mxu0 0.0
    %2971 = vmatpush1.msra.mxu0 0.0
    %2972 = vmatprep.subr.mxu0 0.0
    %2973 = vmatpush1.msra.mxu0 0.0
    %2974 = vmatprep.subr.mxu0 0.0
    %2975 = vmatpush1.msra.mxu0 0.0
    %2976 = vmatprep.subr.mxu0 0.0
    %2977 = vmatpush1.msra.mxu0 0.0
    %2978 = vmatprep.subr.mxu0 0.0
    %2979 = vmatpush1.msra.mxu0 0.0
    %2980 = vmatprep.subr.mxu0 0.0
    %2981 = vmatpush1.msra.mxu0 0.0
    %2982 = vmatprep.subr.mxu0 0.0
    %2983 = vmatpush1.msra.mxu0 0.0
    %2984 = vmatprep.subr.mxu0 0.0
    %2985 = vmatpush1.msra.mxu0 0.0
    %2986 = vmatprep.subr.mxu0 0.0
    %2987 = vmatpush1.msra.mxu0 0.0
    %2988 = vmatprep.subr.mxu0 0.0
    %2989 = vmatpush1.msra.mxu0 0.0
    %2990 = vmatprep.subr.mxu0 0.0
    %2991 = vmatpush1.msra.mxu0 0.0
    %2992 = vmatprep.subr.mxu0 0.0
    %2993 = vmatpush1.msra.mxu0 0.0
    %2994 = vmatprep.subr.mxu0 0.0
    %2995 = vmatpush1.msra.mxu0 0.0
    %2996 = vmatprep.subr.mxu0 0.0
    %2997 = vmatpush1.msra.mxu0 0.0
    %2998 = vmatprep.subr.mxu0 0.0
    %2999 = vmatpush1.msra.mxu0 0.0
    %3000 = vmatprep.subr.mxu0 0.0
    %3001 = vmatpush1.msra.mxu0 0.0
    %3002 = vmatprep.subr.mxu0 0.0
    %3003 = vmatpush1.msra.mxu0 0.0
    %3004 = vmatprep.subr.mxu0 0.0
    %3005 = vmatpush1.msra.mxu0 0.0
    %3006 = vmatprep.subr.mxu0 0.0
    %3007 = vmatpush1.msra.mxu0 0.0
    %3008 = vmatprep.subr.mxu0 0.0
    %3009 = vmatpush1.msra.mxu0 0.0
    %3010 = vmatprep.subr.mxu0 0.0
    %3011 = vmatpush1.msra.mxu0 0.0
    %3012 = vmatprep.subr.mxu0 0.0
    %3013 = vmatpush1.msra.mxu0 0.0
    %3014 = vmatprep.mubr.f32.mxu0 0.0
    %3015 = vmatmul.mubr.f32.gmra.mrb[0].mxu0 %v286
    %v3016 = vpop.f32.mrb[0].mxu0
    %v3017 = vadd.f32 0.0, %v3016
    %v3018 = vpop.f32.mrb[0].mxu0
    %3019 = vmatprep.mubr.f32.mxu0 0.0
    %3020 = vmatmul.mubr.f32.gmra.mrb[0].mxu0 %v289
    %v3021 = vpop.f32.mrb[0].mxu0
    %v3022 = vadd.f32 0.0, %v3021
    %v3023 = vpop.f32.mrb[0].mxu0
    %3024 = vmatprep.mubr.f32.mxu0 0.0
    %3025 = vmatmul.mubr.f32.gmra.mrb[0].mxu0 %v292
    %v3026 = vpop.f32.mrb[0].mxu0
    %v3027 = vadd.f32 0.0, %v3026
    %v3028 = vpop.f32.mrb[0].mxu0
    %3029 = vmatprep.mubr.f32.mxu0 0.0
    %3030 = vmatmul.mubr.f32.gmra.mrb[0].mxu0 %v295
    %v3031 = vpop.f32.mrb[0].mxu0
    %v3032 = vadd.f32 0.0, %v3031
    %v3033 = vpop.f32.mrb[0].mxu0
    %3034 = vmatprep.mubr.f32.mxu0 0.0
    %3035 = vmatmul.mubr.f32.gmra.mrb[0].mxu0 %v298
    %v3036 = vpop.f32.mrb[0].mxu0
    %v3037 = vadd.f32 0.0, %v3036
    %v3038 = vpop.f32.mrb[0].mxu0
    %3039 = vmatprep.mubr.f32.mxu0 0.0
    %3040 = vmatmul.mubr.f32.gmra.mrb[0].mxu0 %v301
    %v3041 = vpop.f32.mrb[0].mxu0
    %v3042 = vadd.f32 0.0, %v3041
    %v3043 = vpop.f32.mrb[0].mxu0
    %3044 = vmatprep.mubr.f32.mxu0 0.0
    %3045 = vmatmul.mubr.f32.gmra.mrb[0].mxu0 %v304
    %v3046 = vpop.f32.mrb[0].mxu0
    %v3047 = vadd.f32 0.0, %v3046
    %v3048 = vpop.f32.mrb[0].mxu0
    %3049 = vmatprep.mubr.f32.mxu0 0.0
    %3050 = vmatmul.mubr.f32.gmra.mrb[0].mxu0 %v307
    %v3051 = vpop.f32.mrb[0].mxu0
    %v3052 = vadd.f32 0.0, %v3051
    %v3053 = vpop.f32.mrb[0].mxu0
    %3054 = vmatprep.mubr.f32.mxu0 0.0
    %3055 = vmatmul.mubr.f32.gmra.mrb[0].mxu0 %v310
    %v3056 = vpop.f32.mrb[0].mxu0
    %v3057 = vadd.f32 0.0, %v3056
    %v3058 = vpop.f32.mrb[0].mxu0
    %3059 = vmatprep.mubr.f32.mxu0 0.0
    %3060 = vmatmul.mubr.f32.gmra.mrb[0].mxu0 %v313
    %v3061 = vpop.f32.mrb[0].mxu0
    %v3062 = vadd.f32 0.0, %v3061
    %v3063 = vpop.f32.mrb[0].mxu0
    %3064 = vmatprep.mubr.f32.mxu0 0.0
    %3065 = vmatmul.mubr.f32.gmra.mrb[0].mxu0 %v316
    %v3066 = vpop.f32.mrb[0].mxu0
    %v3067 = vadd.f32 0.0, %v3066
    %v3068 = vpop.f32.mrb[0].mxu0
    %3069 = vmatprep.mubr.f32.mxu0 0.0
    %3070 = vmatmul.mubr.f32.gmra.mrb[0].mxu0 %v319
    %v3071 = vpop.f32.mrb[0].mxu0
    %v3072 = vadd.f32 0.0, %v3071
    %v3073 = vpop.f32.mrb[0].mxu0
    %3074 = vdwg.mxu0
    %s3075 = scalar_lea.vmem %s14, 64
    %v3076 = vld [vmem:[%s3075] sm:$0xff]
    %v3077 = vld [vmem:[%s3075 + $0x8] sm:$0xff]
    %v3078 = vld [vmem:[%s3075 + $0x10] sm:$0xff]
    %v3079 = vld [vmem:[%s3075 + $0x18] sm:$0xff]
    %v3080 = vld [vmem:[%s3075 + $0x20] sm:$0xff]
    %v3081 = vld [vmem:[%s3075 + $0x28] sm:$0xff]
    %v3082 = vld [vmem:[%s3075 + $0x30] sm:$0xff]
    %v3083 = vld [vmem:[%s3075 + $0x38] sm:$0xff]
    %3084 = vmatprep.subr.mxu0 0.0
    %3085 = vmatpush1.msra.mxu0 %v3076
    %3086 = vmatprep.subr.mxu0 0.0
    %3087 = vmatpush1.msra.mxu0 %v3077
    %3088 = vmatprep.subr.mxu0 0.0
    %3089 = vmatpush1.msra.mxu0 %v3078
    %3090 = vmatprep.subr.mxu0 0.0
    %3091 = vmatpush1.msra.mxu0 %v3079
    %3092 = vmatprep.subr.mxu0 0.0
    %3093 = vmatpush1.msra.mxu0 %v3080
    %3094 = vmatprep.subr.mxu0 0.0
    %3095 = vmatpush1.msra.mxu0 %v3081
    %3096 = vmatprep.subr.mxu0 0.0
    %3097 = vmatpush1.msra.mxu0 %v3082
    %3098 = vmatprep.subr.mxu0 0.0
    %3099 = vmatpush1.msra.mxu0 %v3083
    %3100 = vmatprep.subr.mxu0 0.0
    %3101 = vmatpush1.msra.mxu0 0.0
    %3102 = vmatprep.subr.mxu0 0.0
    %3103 = vmatpush1.msra.mxu0 0.0
    %3104 = vmatprep.subr.mxu0 0.0
    %3105 = vmatpush1.msra.mxu0 0.0
    %3106 = vmatprep.subr.mxu0 0.0
    %3107 = vmatpush1.msra.mxu0 0.0
    %3108 = vmatprep.subr.mxu0 0.0
    %3109 = vmatpush1.msra.mxu0 0.0
    %3110 = vmatprep.subr.mxu0 0.0
    %3111 = vmatpush1.msra.mxu0 0.0
    %3112 = vmatprep.subr.mxu0 0.0
    %3113 = vmatpush1.msra.mxu0 0.0
    %3114 = vmatprep.subr.mxu0 0.0
    %3115 = vmatpush1.msra.mxu0 0.0
    %3116 = vmatprep.subr.mxu0 0.0
    %3117 = vmatpush1.msra.mxu0 0.0
    %3118 = vmatprep.subr.mxu0 0.0
    %3119 = vmatpush1.msra.mxu0 0.0
    %3120 = vmatprep.subr.mxu0 0.0
    %3121 = vmatpush1.msra.mxu0 0.0
    %3122 = vmatprep.subr.mxu0 0.0
    %3123 = vmatpush1.msra.mxu0 0.0
    %3124 = vmatprep.subr.mxu0 0.0
    %3125 = vmatpush1.msra.mxu0 0.0
    %3126 = vmatprep.subr.mxu0 0.0
    %3127 = vmatpush1.msra.mxu0 0.0
    %3128 = vmatprep.subr.mxu0 0.0
    %3129 = vmatpush1.msra.mxu0 0.0
    %3130 = vmatprep.subr.mxu0 0.0
    %3131 = vmatpush1.msra.mxu0 0.0
    %3132 = vmatprep.subr.mxu0 0.0
    %3133 = vmatpush1.msra.mxu0 0.0
    %3134 = vmatprep.subr.mxu0 0.0
    %3135 = vmatpush1.msra.mxu0 0.0
    %3136 = vmatprep.subr.mxu0 0.0
    %3137 = vmatpush1.msra.mxu0 0.0
    %3138 = vmatprep.subr.mxu0 0.0
    %3139 = vmatpush1.msra.mxu0 0.0
    %3140 = vmatprep.subr.mxu0 0.0
    %3141 = vmatpush1.msra.mxu0 0.0
    %3142 = vmatprep.subr.mxu0 0.0
    %3143 = vmatpush1.msra.mxu0 0.0
    %3144 = vmatprep.subr.mxu0 0.0
    %3145 = vmatpush1.msra.mxu0 0.0
    %3146 = vmatprep.subr.mxu0 0.0
    %3147 = vmatpush1.msra.mxu0 0.0
    %3148 = vmatprep.mubr.f32.mxu0 0.0
    %3149 = vmatmul.mubr.f32.gmra.mrb[0].mxu0 %v286
    %v3150 = vpop.f32.mrb[0].mxu0
    %v3151 = vadd.f32 0.0, %v3150
    %v3152 = vpop.f32.mrb[0].mxu0
    %3153 = vmatprep.mubr.f32.mxu0 0.0
    %3154 = vmatmul.mubr.f32.gmra.mrb[0].mxu0 %v289
    %v3155 = vpop.f32.mrb[0].mxu0
    %v3156 = vadd.f32 0.0, %v3155
    %v3157 = vpop.f32.mrb[0].mxu0
    %3158 = vmatprep.mubr.f32.mxu0 0.0
    %3159 = vmatmul.mubr.f32.gmra.mrb[0].mxu0 %v292
    %v3160 = vpop.f32.mrb[0].mxu0
    %v3161 = vadd.f32 0.0, %v3160
    %v3162 = vpop.f32.mrb[0].mxu0
    %3163 = vmatprep.mubr.f32.mxu0 0.0
    %3164 = vmatmul.mubr.f32.gmra.mrb[0].mxu0 %v295
    %v3165 = vpop.f32.mrb[0].mxu0
    %v3166 = vadd.f32 0.0, %v3165
    %v3167 = vpop.f32.mrb[0].mxu0
    %3168 = vmatprep.mubr.f32.mxu0 0.0
    %3169 = vmatmul.mubr.f32.gmra.mrb[0].mxu0 %v298
    %v3170 = vpop.f32.mrb[0].mxu0
    %v3171 = vadd.f32 0.0, %v3170
    %v3172 = vpop.f32.mrb[0].mxu0
    %3173 = vmatprep.mubr.f32.mxu0 0.0
    %3174 = vmatmul.mubr.f32.gmra.mrb[0].mxu0 %v301
    %v3175 = vpop.f32.mrb[0].mxu0
    %v3176 = vadd.f32 0.0, %v3175
    %v3177 = vpop.f32.mrb[0].mxu0
    %3178 = vmatprep.mubr.f32.mxu0 0.0
    %3179 = vmatmul.mubr.f32.gmra.mrb[0].mxu0 %v304
    %v3180 = vpop.f32.mrb[0].mxu0
    %v3181 = vadd.f32 0.0, %v3180
    %v3182 = vpop.f32.mrb[0].mxu0
    %3183 = vmatprep.mubr.f32.mxu0 0.0
    %3184 = vmatmul.mubr.f32.gmra.mrb[0].mxu0 %v307
    %v3185 = vpop.f32.mrb[0].mxu0
    %v3186 = vadd.f32 0.0, %v3185
    %v3187 = vpop.f32.mrb[0].mxu0
    %3188 = vmatprep.mubr.f32.mxu0 0.0
    %3189 = vmatmul.mubr.f32.gmra.mrb[0].mxu0 %v310
    %v3190 = vpop.f32.mrb[0].mxu0
    %v3191 = vadd.f32 0.0, %v3190
    %v3192 = vpop.f32.mrb[0].mxu0
    %3193 = vmatprep.mubr.f32.mxu0 0.0
    %3194 = vmatmul.mubr.f32.gmra.mrb[0].mxu0 %v313
    %v3195 = vpop.f32.mrb[0].mxu0
    %v3196 = vadd.f32 0.0, %v3195
    %v3197 = vpop.f32.mrb[0].mxu0
    %3198 = vmatprep.mubr.f32.mxu0 0.0
    %3199 = vmatmul.mubr.f32.gmra.mrb[0].mxu0 %v316
    %v3200 = vpop.f32.mrb[0].mxu0
    %v3201 = vadd.f32 0.0, %v3200
    %v3202 = vpop.f32.mrb[0].mxu0
    %3203 = vmatprep.mubr.f32.mxu0 0.0
    %3204 = vmatmul.mubr.f32.gmra.mrb[0].mxu0 %v319
    %v3205 = vpop.f32.mrb[0].mxu0
    %v3206 = vadd.f32 0.0, %v3205
    %v3207 = vpop.f32.mrb[0].mxu0
    %3208 = vdwg.mxu0
    %s3209 = scalar_lea.vmem %s14, 128
    %v3210 = vld [vmem:[%s3209] sm:$0xff]
    %v3211 = vld [vmem:[%s3209 + $0x8] sm:$0xff]
    %v3212 = vld [vmem:[%s3209 + $0x10] sm:$0xff]
    %v3213 = vld [vmem:[%s3209 + $0x18] sm:$0xff]
    %v3214 = vld [vmem:[%s3209 + $0x20] sm:$0xff]
    %v3215 = vld [vmem:[%s3209 + $0x28] sm:$0xff]
    %v3216 = vld [vmem:[%s3209 + $0x30] sm:$0xff]
    %v3217 = vld [vmem:[%s3209 + $0x38] sm:$0xff]
    %3218 = vmatprep.subr.mxu0 0.0
    %3219 = vmatpush1.msra.mxu0 %v3210
    %3220 = vmatprep.subr.mxu0 0.0
    %3221 = vmatpush1.msra.mxu0 %v3211
    %3222 = vmatprep.subr.mxu0 0.0
    %3223 = vmatpush1.msra.mxu0 %v3212
    %3224 = vmatprep.subr.mxu0 0.0
    %3225 = vmatpush1.msra.mxu0 %v3213
    %3226 = vmatprep.subr.mxu0 0.0
    %3227 = vmatpush1.msra.mxu0 %v3214
    %3228 = vmatprep.subr.mxu0 0.0
    %3229 = vmatpush1.msra.mxu0 %v3215
    %3230 = vmatprep.subr.mxu0 0.0
    %3231 = vmatpush1.msra.mxu0 %v3216
    %3232 = vmatprep.subr.mxu0 0.0
    %3233 = vmatpush1.msra.mxu0 %v3217
    %3234 = vmatprep.subr.mxu0 0.0
    %3235 = vmatpush1.msra.mxu0 0.0
    %3236 = vmatprep.subr.mxu0 0.0
    %3237 = vmatpush1.msra.mxu0 0.0
    %3238 = vmatprep.subr.mxu0 0.0
    %3239 = vmatpush1.msra.mxu0 0.0
    %3240 = vmatprep.subr.mxu0 0.0
    %3241 = vmatpush1.msra.mxu0 0.0
    %3242 = vmatprep.subr.mxu0 0.0
    %3243 = vmatpush1.msra.mxu0 0.0
    %3244 = vmatprep.subr.mxu0 0.0
    %3245 = vmatpush1.msra.mxu0 0.0
    %3246 = vmatprep.subr.mxu0 0.0
    %3247 = vmatpush1.msra.mxu0 0.0
    %3248 = vmatprep.subr.mxu0 0.0
    %3249 = vmatpush1.msra.mxu0 0.0
    %3250 = vmatprep.subr.mxu0 0.0
    %3251 = vmatpush1.msra.mxu0 0.0
    %3252 = vmatprep.subr.mxu0 0.0
    %3253 = vmatpush1.msra.mxu0 0.0
    %3254 = vmatprep.subr.mxu0 0.0
    %3255 = vmatpush1.msra.mxu0 0.0
    %3256 = vmatprep.subr.mxu0 0.0
    %3257 = vmatpush1.msra.mxu0 0.0
    %3258 = vmatprep.subr.mxu0 0.0
    %3259 = vmatpush1.msra.mxu0 0.0
    %3260 = vmatprep.subr.mxu0 0.0
    %3261 = vmatpush1.msra.mxu0 0.0
    %3262 = vmatprep.subr.mxu0 0.0
    %3263 = vmatpush1.msra.mxu0 0.0
    %3264 = vmatprep.subr.mxu0 0.0
    %3265 = vmatpush1.msra.mxu0 0.0
    %3266 = vmatprep.subr.mxu0 0.0
    %3267 = vmatpush1.msra.mxu0 0.0
    %3268 = vmatprep.subr.mxu0 0.0
    %3269 = vmatpush1.msra.mxu0 0.0
    %3270 = vmatprep.subr.mxu0 0.0
    %3271 = vmatpush1.msra.mxu0 0.0
    %3272 = vmatprep.subr.mxu0 0.0
    %3273 = vmatpush1.msra.mxu0 0.0
    %3274 = vmatprep.subr.mxu0 0.0
    %3275 = vmatpush1.msra.mxu0 0.0
    %3276 = vmatprep.subr.mxu0 0.0
    %3277 = vmatpush1.msra.mxu0 0.0
    %3278 = vmatprep.subr.mxu0 0.0
    %3279 = vmatpush1.msra.mxu0 0.0
    %3280 = vmatprep.subr.mxu0 0.0
    %3281 = vmatpush1.msra.mxu0 0.0
    %3282 = vmatprep.mubr.f32.mxu0 0.0
    %3283 = vmatmul.mubr.f32.gmra.mrb[0].mxu0 %v286
    %v3284 = vpop.f32.mrb[0].mxu0
    %v3285 = vadd.f32 0.0, %v3284
    %v3286 = vpop.f32.mrb[0].mxu0
    %3287 = vmatprep.mubr.f32.mxu0 0.0
    %3288 = vmatmul.mubr.f32.gmra.mrb[0].mxu0 %v289
    %v3289 = vpop.f32.mrb[0].mxu0
    %v3290 = vadd.f32 0.0, %v3289
    %v3291 = vpop.f32.mrb[0].mxu0
    %3292 = vmatprep.mubr.f32.mxu0 0.0
    %3293 = vmatmul.mubr.f32.gmra.mrb[0].mxu0 %v292
    %v3294 = vpop.f32.mrb[0].mxu0
    %v3295 = vadd.f32 0.0, %v3294
    %v3296 = vpop.f32.mrb[0].mxu0
    %3297 = vmatprep.mubr.f32.mxu0 0.0
    %3298 = vmatmul.mubr.f32.gmra.mrb[0].mxu0 %v295
    %v3299 = vpop.f32.mrb[0].mxu0
    %v3300 = vadd.f32 0.0, %v3299
    %v3301 = vpop.f32.mrb[0].mxu0
    %3302 = vmatprep.mubr.f32.mxu0 0.0
    %3303 = vmatmul.mubr.f32.gmra.mrb[0].mxu0 %v298
    %v3304 = vpop.f32.mrb[0].mxu0
    %v3305 = vadd.f32 0.0, %v3304
    %v3306 = vpop.f32.mrb[0].mxu0
    %3307 = vmatprep.mubr.f32.mxu0 0.0
    %3308 = vmatmul.mubr.f32.gmra.mrb[0].mxu0 %v301
    %v3309 = vpop.f32.mrb[0].mxu0
    %v3310 = vadd.f32 0.0, %v3309
    %v3311 = vpop.f32.mrb[0].mxu0
    %3312 = vmatprep.mubr.f32.mxu0 0.0
    %3313 = vmatmul.mubr.f32.gmra.mrb[0].mxu0 %v304
    %v3314 = vpop.f32.mrb[0].mxu0
    %v3315 = vadd.f32 0.0, %v3314
    %v3316 = vpop.f32.mrb[0].mxu0
    %3317 = vmatprep.mubr.f32.mxu0 0.0
    %3318 = vmatmul.mubr.f32.gmra.mrb[0].mxu0 %v307
    %v3319 = vpop.f32.mrb[0].mxu0
    %v3320 = vadd.f32 0.0, %v3319
    %v3321 = vpop.f32.mrb[0].mxu0
    %3322 = vmatprep.mubr.f32.mxu0 0.0
    %3323 = vmatmul.mubr.f32.gmra.mrb[0].mxu0 %v310
    %v3324 = vpop.f32.mrb[0].mxu0
    %v3325 = vadd.f32 0.0, %v3324
    %v3326 = vpop.f32.mrb[0].mxu0
    %3327 = vmatprep.mubr.f32.mxu0 0.0
    %3328 = vmatmul.mubr.f32.gmra.mrb[0].mxu0 %v313
    %v3329 = vpop.f32.mrb[0].mxu0
    %v3330 = vadd.f32 0.0, %v3329
    %v3331 = vpop.f32.mrb[0].mxu0
    %3332 = vmatprep.mubr.f32.mxu0 0.0
    %3333 = vmatmul.mubr.f32.gmra.mrb[0].mxu0 %v316
    %v3334 = vpop.f32.mrb[0].mxu0
    %v3335 = vadd.f32 0.0, %v3334
    %v3336 = vpop.f32.mrb[0].mxu0
    %3337 = vmatprep.mubr.f32.mxu0 0.0
    %3338 = vmatmul.mubr.f32.gmra.mrb[0].mxu0 %v319
    %v3339 = vpop.f32.mrb[0].mxu0
    %v3340 = vadd.f32 0.0, %v3339
    %v3341 = vpop.f32.mrb[0].mxu0
    %3342 = vdwg.mxu0
    %s3343 = scalar_lea.vmem %s14, 192
    %v3344 = vld [vmem:[%s3343] sm:$0xff]
    %v3345 = vld [vmem:[%s3343 + $0x8] sm:$0xff]
    %v3346 = vld [vmem:[%s3343 + $0x10] sm:$0xff]
    %v3347 = vld [vmem:[%s3343 + $0x18] sm:$0xff]
    %v3348 = vld [vmem:[%s3343 + $0x20] sm:$0xff]
    %v3349 = vld [vmem:[%s3343 + $0x28] sm:$0xff]
    %v3350 = vld [vmem:[%s3343 + $0x30] sm:$0xff]
    %v3351 = vld [vmem:[%s3343 + $0x38] sm:$0xff]
    %3352 = vmatprep.subr.mxu0 0.0
    %3353 = vmatpush1.msra.mxu0 %v3344
    %3354 = vmatprep.subr.mxu0 0.0
    %3355 = vmatpush1.msra.mxu0 %v3345
    %3356 = vmatprep.subr.mxu0 0.0
    %3357 = vmatpush1.msra.mxu0 %v3346
    %3358 = vmatprep.subr.mxu0 0.0
    %3359 = vmatpush1.msra.mxu0 %v3347
    %3360 = vmatprep.subr.mxu0 0.0
    %3361 = vmatpush1.msra.mxu0 %v3348
    %3362 = vmatprep.subr.mxu0 0.0
    %3363 = vmatpush1.msra.mxu0 %v3349
    %3364 = vmatprep.subr.mxu0 0.0
    %3365 = vmatpush1.msra.mxu0 %v3350
    %3366 = vmatprep.subr.mxu0 0.0
    %3367 = vmatpush1.msra.mxu0 %v3351
    %3368 = vmatprep.subr.mxu0 0.0
    %3369 = vmatpush1.msra.mxu0 0.0
    %3370 = vmatprep.subr.mxu0 0.0
    %3371 = vmatpush1.msra.mxu0 0.0
    %3372 = vmatprep.subr.mxu0 0.0
    %3373 = vmatpush1.msra.mxu0 0.0
    %3374 = vmatprep.subr.mxu0 0.0
    %3375 = vmatpush1.msra.mxu0 0.0
    %3376 = vmatprep.subr.mxu0 0.0
    %3377 = vmatpush1.msra.mxu0 0.0
    %3378 = vmatprep.subr.mxu0 0.0
    %3379 = vmatpush1.msra.mxu0 0.0
    %3380 = vmatprep.subr.mxu0 0.0
    %3381 = vmatpush1.msra.mxu0 0.0
    %3382 = vmatprep.subr.mxu0 0.0
    %3383 = vmatpush1.msra.mxu0 0.0
    %3384 = vmatprep.subr.mxu0 0.0
    %3385 = vmatpush1.msra.mxu0 0.0
    %3386 = vmatprep.subr.mxu0 0.0
    %3387 = vmatpush1.msra.mxu0 0.0
    %3388 = vmatprep.subr.mxu0 0.0
    %3389 = vmatpush1.msra.mxu0 0.0
    %3390 = vmatprep.subr.mxu0 0.0
    %3391 = vmatpush1.msra.mxu0 0.0
    %3392 = vmatprep.subr.mxu0 0.0
    %3393 = vmatpush1.msra.mxu0 0.0
    %3394 = vmatprep.subr.mxu0 0.0
    %3395 = vmatpush1.msra.mxu0 0.0
    %3396 = vmatprep.subr.mxu0 0.0
    %3397 = vmatpush1.msra.mxu0 0.0
    %3398 = vmatprep.subr.mxu0 0.0
    %3399 = vmatpush1.msra.mxu0 0.0
    %3400 = vmatprep.subr.mxu0 0.0
    %3401 = vmatpush1.msra.mxu0 0.0
    %3402 = vmatprep.subr.mxu0 0.0
    %3403 = vmatpush1.msra.mxu0 0.0
    %3404 = vmatprep.subr.mxu0 0.0
    %3405 = vmatpush1.msra.mxu0 0.0
    %3406 = vmatprep.subr.mxu0 0.0
    %3407 = vmatpush1.msra.mxu0 0.0
    %3408 = vmatprep.subr.mxu0 0.0
    %3409 = vmatpush1.msra.mxu0 0.0
    %3410 = vmatprep.subr.mxu0 0.0
    %3411 = vmatpush1.msra.mxu0 0.0
    %3412 = vmatprep.subr.mxu0 0.0
    %3413 = vmatpush1.msra.mxu0 0.0
    %3414 = vmatprep.subr.mxu0 0.0
    %3415 = vmatpush1.msra.mxu0 0.0
    %3416 = vmatprep.mubr.f32.mxu0 0.0
    %3417 = vmatmul.mubr.f32.gmra.mrb[0].mxu0 %v286
    %v3418 = vpop.f32.mrb[0].mxu0
    %v3419 = vadd.f32 0.0, %v3418
    %v3420 = vpop.f32.mrb[0].mxu0
    %3421 = vmatprep.mubr.f32.mxu0 0.0
    %3422 = vmatmul.mubr.f32.gmra.mrb[0].mxu0 %v289
    %v3423 = vpop.f32.mrb[0].mxu0
    %v3424 = vadd.f32 0.0, %v3423
    %v3425 = vpop.f32.mrb[0].mxu0
    %3426 = vmatprep.mubr.f32.mxu0 0.0
    %3427 = vmatmul.mubr.f32.gmra.mrb[0].mxu0 %v292
    %v3428 = vpop.f32.mrb[0].mxu0
    %v3429 = vadd.f32 0.0, %v3428
    %v3430 = vpop.f32.mrb[0].mxu0
    %3431 = vmatprep.mubr.f32.mxu0 0.0
    %3432 = vmatmul.mubr.f32.gmra.mrb[0].mxu0 %v295
    %v3433 = vpop.f32.mrb[0].mxu0
    %v3434 = vadd.f32 0.0, %v3433
    %v3435 = vpop.f32.mrb[0].mxu0
    %3436 = vmatprep.mubr.f32.mxu0 0.0
    %3437 = vmatmul.mubr.f32.gmra.mrb[0].mxu0 %v298
    %v3438 = vpop.f32.mrb[0].mxu0
    %v3439 = vadd.f32 0.0, %v3438
    %v3440 = vpop.f32.mrb[0].mxu0
    %3441 = vmatprep.mubr.f32.mxu0 0.0
    %3442 = vmatmul.mubr.f32.gmra.mrb[0].mxu0 %v301
    %v3443 = vpop.f32.mrb[0].mxu0
    %v3444 = vadd.f32 0.0, %v3443
    %v3445 = vpop.f32.mrb[0].mxu0
    %3446 = vmatprep.mubr.f32.mxu0 0.0
    %3447 = vmatmul.mubr.f32.gmra.mrb[0].mxu0 %v304
    %v3448 = vpop.f32.mrb[0].mxu0
    %v3449 = vadd.f32 0.0, %v3448
    %v3450 = vpop.f32.mrb[0].mxu0
    %3451 = vmatprep.mubr.f32.mxu0 0.0
    %3452 = vmatmul.mubr.f32.gmra.mrb[0].mxu0 %v307
    %v3453 = vpop.f32.mrb[0].mxu0
    %v3454 = vadd.f32 0.0, %v3453
    %v3455 = vpop.f32.mrb[0].mxu0
    %3456 = vmatprep.mubr.f32.mxu0 0.0
    %3457 = vmatmul.mubr.f32.gmra.mrb[0].mxu0 %v310
    %v3458 = vpop.f32.mrb[0].mxu0
    %v3459 = vadd.f32 0.0, %v3458
    %v3460 = vpop.f32.mrb[0].mxu0
    %3461 = vmatprep.mubr.f32.mxu0 0.0
    %3462 = vmatmul.mubr.f32.gmra.mrb[0].mxu0 %v313
    %v3463 = vpop.f32.mrb[0].mxu0
    %v3464 = vadd.f32 0.0, %v3463
    %v3465 = vpop.f32.mrb[0].mxu0
    %3466 = vmatprep.mubr.f32.mxu0 0.0
    %3467 = vmatmul.mubr.f32.gmra.mrb[0].mxu0 %v316
    %v3468 = vpop.f32.mrb[0].mxu0
    %v3469 = vadd.f32 0.0, %v3468
    %v3470 = vpop.f32.mrb[0].mxu0
    %3471 = vmatprep.mubr.f32.mxu0 0.0
    %3472 = vmatmul.mubr.f32.gmra.mrb[0].mxu0 %v319
    %v3473 = vpop.f32.mrb[0].mxu0
    %v3474 = vadd.f32 0.0, %v3473
    %v3475 = vpop.f32.mrb[0].mxu0
    %3476 = vdwg.mxu0
    %v3477 = vld [vmem:[%s13] sm:$0xff]
    %v3478 = vld [vmem:[%s13 + $0x8] sm:$0xff]
    %v3479 = vld [vmem:[%s13 + $0x10] sm:$0xff]
    %v3480 = vld [vmem:[%s13 + $0x18] sm:$0xff]
    %v3481 = vld [vmem:[%s13 + $0x20] sm:$0xff]
    %v3482 = vld [vmem:[%s13 + $0x28] sm:$0xff]
    %v3483 = vld [vmem:[%s13 + $0x30] sm:$0xff]
    %v3484 = vld [vmem:[%s13 + $0x38] sm:$0xff]
    %v3485 = vld [vmem:[%s13 + $0x40] sm:$0xff]
    %v3486 = vld [vmem:[%s13 + $0x48] sm:$0xff]
    %v3487 = vld [vmem:[%s13 + $0x50] sm:$0xff]
    %v3488 = vld [vmem:[%s13 + $0x58] sm:$0xff]
    %v3489 = vld [vmem:[%s13 + $0x60] sm:$0xff]
    %v3490 = vld [vmem:[%s13 + $0x68] sm:$0xff]
    %v3491 = vld [vmem:[%s13 + $0x70] sm:$0xff]
    %v3492 = vld [vmem:[%s13 + $0x78] sm:$0xff]
    %v3493 = vld [vmem:[%s13 + $0x80] sm:$0xff]
    %v3494 = vld [vmem:[%s13 + $0x88] sm:$0xff]
    %v3495 = vld [vmem:[%s13 + $0x90] sm:$0xff]
    %v3496 = vld [vmem:[%s13 + $0x98] sm:$0xff]
    %v3497 = vld [vmem:[%s13 + $0xa0] sm:$0xff]
    %v3498 = vld [vmem:[%s13 + $0xa8] sm:$0xff]
    %v3499 = vld [vmem:[%s13 + $0xb0] sm:$0xff]
    %v3500 = vld [vmem:[%s13 + $0xb8] sm:$0xff]
    %v3501 = vld [vmem:[%s13 + $0xc0] sm:$0xff]
    %v3502 = vld [vmem:[%s13 + $0xc8] sm:$0xff]
    %v3503 = vld [vmem:[%s13 + $0xd0] sm:$0xff]
    %v3504 = vld [vmem:[%s13 + $0xd8] sm:$0xff]
    %v3505 = vld [vmem:[%s13 + $0xe0] sm:$0xff]
    %v3506 = vld [vmem:[%s13 + $0xe8] sm:$0xff]
    %v3507 = vld [vmem:[%s13 + $0xf0] sm:$0xff]
    %v3508 = vld [vmem:[%s13 + $0xf8] sm:$0xff]
    %v3509 = vld [vmem:[%s13 + $0x100] sm:$0xff]
    %v3510 = vld [vmem:[%s13 + $0x108] sm:$0xff]
    %v3511 = vld [vmem:[%s13 + $0x110] sm:$0xff]
    %v3512 = vld [vmem:[%s13 + $0x118] sm:$0xff]
    %v3513 = vld [vmem:[%s13 + $0x120] sm:$0xff]
    %v3514 = vld [vmem:[%s13 + $0x128] sm:$0xff]
    %v3515 = vld [vmem:[%s13 + $0x130] sm:$0xff]
    %v3516 = vld [vmem:[%s13 + $0x138] sm:$0xff]
    %v3517 = vld [vmem:[%s13 + $0x140] sm:$0xff]
    %v3518 = vld [vmem:[%s13 + $0x148] sm:$0xff]
    %v3519 = vld [vmem:[%s13 + $0x150] sm:$0xff]
    %v3520 = vld [vmem:[%s13 + $0x158] sm:$0xff]
    %v3521 = vld [vmem:[%s13 + $0x160] sm:$0xff]
    %v3522 = vld [vmem:[%s13 + $0x168] sm:$0xff]
    %v3523 = vld [vmem:[%s13 + $0x170] sm:$0xff]
    %v3524 = vld [vmem:[%s13 + $0x178] sm:$0xff]
    %v3525 = vld [vmem:[%s13 + $0x180] sm:$0xff]
    %v3526 = vld [vmem:[%s13 + $0x188] sm:$0xff]
    %v3527 = vld [vmem:[%s13 + $0x190] sm:$0xff]
    %v3528 = vld [vmem:[%s13 + $0x198] sm:$0xff]
    %v3529 = vld [vmem:[%s13 + $0x1a0] sm:$0xff]
    %v3530 = vld [vmem:[%s13 + $0x1a8] sm:$0xff]
    %v3531 = vld [vmem:[%s13 + $0x1b0] sm:$0xff]
    %v3532 = vld [vmem:[%s13 + $0x1b8] sm:$0xff]
    %v3533 = vld [vmem:[%s13 + $0x1c0] sm:$0xff]
    %v3534 = vld [vmem:[%s13 + $0x1c8] sm:$0xff]
    %v3535 = vld [vmem:[%s13 + $0x1d0] sm:$0xff]
    %v3536 = vld [vmem:[%s13 + $0x1d8] sm:$0xff]
    %v3537 = vld [vmem:[%s13 + $0x1e0] sm:$0xff]
    %v3538 = vld [vmem:[%s13 + $0x1e8] sm:$0xff]
    %v3539 = vld [vmem:[%s13 + $0x1f0] sm:$0xff]
    %v3540 = vld [vmem:[%s13 + $0x1f8] sm:$0xff]
    %v3541 = vld [vmem:[%s13 + $0x200] sm:$0xff]
    %v3542 = vld [vmem:[%s13 + $0x208] sm:$0xff]
    %v3543 = vld [vmem:[%s13 + $0x210] sm:$0xff]
    %v3544 = vld [vmem:[%s13 + $0x218] sm:$0xff]
    %v3545 = vld [vmem:[%s13 + $0x220] sm:$0xff]
    %v3546 = vld [vmem:[%s13 + $0x228] sm:$0xff]
    %v3547 = vld [vmem:[%s13 + $0x230] sm:$0xff]
    %v3548 = vld [vmem:[%s13 + $0x238] sm:$0xff]
    %v3549 = vld [vmem:[%s13 + $0x240] sm:$0xff]
    %v3550 = vld [vmem:[%s13 + $0x248] sm:$0xff]
    %v3551 = vld [vmem:[%s13 + $0x250] sm:$0xff]
    %v3552 = vld [vmem:[%s13 + $0x258] sm:$0xff]
    %v3553 = vld [vmem:[%s13 + $0x260] sm:$0xff]
    %v3554 = vld [vmem:[%s13 + $0x268] sm:$0xff]
    %v3555 = vld [vmem:[%s13 + $0x270] sm:$0xff]
    %v3556 = vld [vmem:[%s13 + $0x278] sm:$0xff]
    %v3557 = vld [vmem:[%s13 + $0x280] sm:$0xff]
    %v3558 = vld [vmem:[%s13 + $0x288] sm:$0xff]
    %v3559 = vld [vmem:[%s13 + $0x290] sm:$0xff]
    %v3560 = vld [vmem:[%s13 + $0x298] sm:$0xff]
    %v3561 = vld [vmem:[%s13 + $0x2a0] sm:$0xff]
    %v3562 = vld [vmem:[%s13 + $0x2a8] sm:$0xff]
    %v3563 = vld [vmem:[%s13 + $0x2b0] sm:$0xff]
    %v3564 = vld [vmem:[%s13 + $0x2b8] sm:$0xff]
    %v3565 = vld [vmem:[%s13 + $0x2c0] sm:$0xff]
    %v3566 = vld [vmem:[%s13 + $0x2c8] sm:$0xff]
    %v3567 = vld [vmem:[%s13 + $0x2d0] sm:$0xff]
    %v3568 = vld [vmem:[%s13 + $0x2d8] sm:$0xff]
    %v3569 = vld [vmem:[%s13 + $0x2e0] sm:$0xff]
    %v3570 = vld [vmem:[%s13 + $0x2e8] sm:$0xff]
    %v3571 = vld [vmem:[%s13 + $0x2f0] sm:$0xff]
    %v3572 = vld [vmem:[%s13 + $0x2f8] sm:$0xff]
    %v3573 = vld [vmem:[%s13 + $0x300] sm:$0xff]
    %v3574 = vld [vmem:[%s13 + $0x308] sm:$0xff]
    %v3575 = vld [vmem:[%s13 + $0x310] sm:$0xff]
    %v3576 = vld [vmem:[%s13 + $0x318] sm:$0xff]
    %v3577 = vld [vmem:[%s13 + $0x320] sm:$0xff]
    %v3578 = vld [vmem:[%s13 + $0x328] sm:$0xff]
    %v3579 = vld [vmem:[%s13 + $0x330] sm:$0xff]
    %v3580 = vld [vmem:[%s13 + $0x338] sm:$0xff]
    %v3581 = vld [vmem:[%s13 + $0x340] sm:$0xff]
    %v3582 = vld [vmem:[%s13 + $0x348] sm:$0xff]
    %v3583 = vld [vmem:[%s13 + $0x350] sm:$0xff]
    %v3584 = vld [vmem:[%s13 + $0x358] sm:$0xff]
    %v3585 = vld [vmem:[%s13 + $0x360] sm:$0xff]
    %v3586 = vld [vmem:[%s13 + $0x368] sm:$0xff]
    %v3587 = vld [vmem:[%s13 + $0x370] sm:$0xff]
    %v3588 = vld [vmem:[%s13 + $0x378] sm:$0xff]
    %v3589 = vld [vmem:[%s13 + $0x380] sm:$0xff]
    %v3590 = vld [vmem:[%s13 + $0x388] sm:$0xff]
    %v3591 = vld [vmem:[%s13 + $0x390] sm:$0xff]
    %v3592 = vld [vmem:[%s13 + $0x398] sm:$0xff]
    %v3593 = vld [vmem:[%s13 + $0x3a0] sm:$0xff]
    %v3594 = vld [vmem:[%s13 + $0x3a8] sm:$0xff]
    %v3595 = vld [vmem:[%s13 + $0x3b0] sm:$0xff]
    %v3596 = vld [vmem:[%s13 + $0x3b8] sm:$0xff]
    %v3597 = vld [vmem:[%s13 + $0x3c0] sm:$0xff]
    %v3598 = vld [vmem:[%s13 + $0x3c8] sm:$0xff]
    %v3599 = vld [vmem:[%s13 + $0x3d0] sm:$0xff]
    %v3600 = vld [vmem:[%s13 + $0x3d8] sm:$0xff]
    %v3601 = vld [vmem:[%s13 + $0x3e0] sm:$0xff]
    %v3602 = vld [vmem:[%s13 + $0x3e8] sm:$0xff]
    %v3603 = vld [vmem:[%s13 + $0x3f0] sm:$0xff]
    %v3604 = vld [vmem:[%s13 + $0x3f8] sm:$0xff]
    %v3605 = vld [vmem:[%s13 + $0x400] sm:$0xff]
    %v3606 = vld [vmem:[%s13 + $0x408] sm:$0xff]
    %v3607 = vld [vmem:[%s13 + $0x410] sm:$0xff]
    %v3608 = vld [vmem:[%s13 + $0x418] sm:$0xff]
    %v3609 = vld [vmem:[%s13 + $0x420] sm:$0xff]
    %v3610 = vld [vmem:[%s13 + $0x428] sm:$0xff]
    %v3611 = vld [vmem:[%s13 + $0x430] sm:$0xff]
    %v3612 = vld [vmem:[%s13 + $0x438] sm:$0xff]
    %v3613 = vld [vmem:[%s13 + $0x440] sm:$0xff]
    %v3614 = vld [vmem:[%s13 + $0x448] sm:$0xff]
    %v3615 = vld [vmem:[%s13 + $0x450] sm:$0xff]
    %v3616 = vld [vmem:[%s13 + $0x458] sm:$0xff]
    %v3617 = vld [vmem:[%s13 + $0x460] sm:$0xff]
    %v3618 = vld [vmem:[%s13 + $0x468] sm:$0xff]
    %v3619 = vld [vmem:[%s13 + $0x470] sm:$0xff]
    %v3620 = vld [vmem:[%s13 + $0x478] sm:$0xff]
    %v3621 = vld [vmem:[%s15] sm:$0xff]
    %v3622 = vld [vmem:[%s15 + $0x8] sm:$0xff]
    %v3623 = vld [vmem:[%s15 + $0x10] sm:$0xff]
    %v3624 = vld [vmem:[%s15 + $0x18] sm:$0xff]
    %v3625 = vld [vmem:[%s15 + $0x20] sm:$0xff]
    %v3626 = vld [vmem:[%s15 + $0x28] sm:$0xff]
    %v3627 = vld [vmem:[%s15 + $0x30] sm:$0xff]
    %v3628 = vld [vmem:[%s15 + $0x38] sm:$0xff]
    %v3629 = vld [vmem:[%s15 + $0x40] sm:$0xff]
    %v3630 = vld [vmem:[%s15 + $0x48] sm:$0xff]
    %v3631 = vld [vmem:[%s15 + $0x50] sm:$0xff]
    %v3632 = vld [vmem:[%s15 + $0x58] sm:$0xff]
    %v3633 = vld [vmem:[%s15 + $0x60] sm:$0xff]
    %v3634 = vld [vmem:[%s15 + $0x68] sm:$0xff]
    %v3635 = vld [vmem:[%s15 + $0x70] sm:$0xff]
    %v3636 = vld [vmem:[%s15 + $0x78] sm:$0xff]
    %v3637 = vld [vmem:[%s15 + $0x80] sm:$0xff]
    %v3638 = vld [vmem:[%s15 + $0x88] sm:$0xff]
    %v3639 = vld [vmem:[%s15 + $0x90] sm:$0xff]
    %v3640 = vld [vmem:[%s15 + $0x98] sm:$0xff]
    %v3641 = vld [vmem:[%s15 + $0xa0] sm:$0xff]
    %v3642 = vld [vmem:[%s15 + $0xa8] sm:$0xff]
    %v3643 = vld [vmem:[%s15 + $0xb0] sm:$0xff]
    %v3644 = vld [vmem:[%s15 + $0xb8] sm:$0xff]
    %v3645 = vld [vmem:[%s15 + $0xc0] sm:$0xff]
    %v3646 = vld [vmem:[%s15 + $0xc8] sm:$0xff]
    %v3647 = vld [vmem:[%s15 + $0xd0] sm:$0xff]
    %v3648 = vld [vmem:[%s15 + $0xd8] sm:$0xff]
    %v3649 = vld [vmem:[%s15 + $0xe0] sm:$0xff]
    %v3650 = vld [vmem:[%s15 + $0xe8] sm:$0xff]
    %v3651 = vld [vmem:[%s15 + $0xf0] sm:$0xff]
    %v3652 = vld [vmem:[%s15 + $0xf8] sm:$0xff]
    %v3653 = vld [vmem:[%s15 + $0x100] sm:$0xff]
    %v3654 = vld [vmem:[%s15 + $0x108] sm:$0xff]
    %v3655 = vld [vmem:[%s15 + $0x110] sm:$0xff]
    %v3656 = vld [vmem:[%s15 + $0x118] sm:$0xff]
    %v3657 = vld [vmem:[%s15 + $0x120] sm:$0xff]
    %v3658 = vld [vmem:[%s15 + $0x128] sm:$0xff]
    %v3659 = vld [vmem:[%s15 + $0x130] sm:$0xff]
    %v3660 = vld [vmem:[%s15 + $0x138] sm:$0xff]
    %v3661 = vld [vmem:[%s15 + $0x140] sm:$0xff]
    %v3662 = vld [vmem:[%s15 + $0x148] sm:$0xff]
    %v3663 = vld [vmem:[%s15 + $0x150] sm:$0xff]
    %v3664 = vld [vmem:[%s15 + $0x158] sm:$0xff]
    %v3665 = vld [vmem:[%s15 + $0x160] sm:$0xff]
    %v3666 = vld [vmem:[%s15 + $0x168] sm:$0xff]
    %v3667 = vld [vmem:[%s15 + $0x170] sm:$0xff]
    %v3668 = vld [vmem:[%s15 + $0x178] sm:$0xff]
    %3670 = vset.pattern.permute.xlu0 0
    %3671 = vperm.xlu0 %3670, %v3621
    %v3672 = vpop.permute.xlu0 %3671
    %3675 = vset.pattern.permute.xlu0 0
    %3676 = vperm.xlu0 %3675, %v3622
    %v3677 = vpop.permute.xlu0 %3676
    %3680 = vset.pattern.permute.xlu0 0
    %3681 = vperm.xlu0 %3680, %v3623
    %v3682 = vpop.permute.xlu0 %3681
    %3685 = vset.pattern.permute.xlu0 0
    %3686 = vperm.xlu0 %3685, %v3624
    %v3687 = vpop.permute.xlu0 %3686
    %3690 = vset.pattern.permute.xlu0 0
    %3691 = vperm.xlu0 %3690, %v3625
    %v3692 = vpop.permute.xlu0 %3691
    %3695 = vset.pattern.permute.xlu0 0
    %3696 = vperm.xlu0 %3695, %v3626
    %v3697 = vpop.permute.xlu0 %3696
    %3700 = vset.pattern.permute.xlu0 0
    %3701 = vperm.xlu0 %3700, %v3627
    %v3702 = vpop.permute.xlu0 %3701
    %3705 = vset.pattern.permute.xlu0 0
    %3706 = vperm.xlu0 %3705, %v3628
    %v3707 = vpop.permute.xlu0 %3706
    %3710 = vset.pattern.permute.xlu0 0
    %3711 = vperm.xlu0 %3710, %v3629
    %v3712 = vpop.permute.xlu0 %3711
    %3715 = vset.pattern.permute.xlu0 0
    %3716 = vperm.xlu0 %3715, %v3630
    %v3717 = vpop.permute.xlu0 %3716
    %3720 = vset.pattern.permute.xlu0 0
    %3721 = vperm.xlu0 %3720, %v3631
    %v3722 = vpop.permute.xlu0 %3721
    %3725 = vset.pattern.permute.xlu0 0
    %3726 = vperm.xlu0 %3725, %v3632
    %v3727 = vpop.permute.xlu0 %3726
    %3730 = vset.pattern.permute.xlu0 0
    %3731 = vperm.xlu0 %3730, %v3633
    %v3732 = vpop.permute.xlu0 %3731
    %3735 = vset.pattern.permute.xlu0 0
    %3736 = vperm.xlu0 %3735, %v3634
    %v3737 = vpop.permute.xlu0 %3736
    %3740 = vset.pattern.permute.xlu0 0
    %3741 = vperm.xlu0 %3740, %v3635
    %v3742 = vpop.permute.xlu0 %3741
    %3745 = vset.pattern.permute.xlu0 0
    %3746 = vperm.xlu0 %3745, %v3636
    %v3747 = vpop.permute.xlu0 %3746
    %3750 = vset.pattern.permute.xlu0 0
    %3751 = vperm.xlu0 %3750, %v3637
    %v3752 = vpop.permute.xlu0 %3751
    %3755 = vset.pattern.permute.xlu0 0
    %3756 = vperm.xlu0 %3755, %v3638
    %v3757 = vpop.permute.xlu0 %3756
    %3760 = vset.pattern.permute.xlu0 0
    %3761 = vperm.xlu0 %3760, %v3639
    %v3762 = vpop.permute.xlu0 %3761
    %3765 = vset.pattern.permute.xlu0 0
    %3766 = vperm.xlu0 %3765, %v3640
    %v3767 = vpop.permute.xlu0 %3766
    %3770 = vset.pattern.permute.xlu0 0
    %3771 = vperm.xlu0 %3770, %v3641
    %v3772 = vpop.permute.xlu0 %3771
    %3775 = vset.pattern.permute.xlu0 0
    %3776 = vperm.xlu0 %3775, %v3642
    %v3777 = vpop.permute.xlu0 %3776
    %3780 = vset.pattern.permute.xlu0 0
    %3781 = vperm.xlu0 %3780, %v3643
    %v3782 = vpop.permute.xlu0 %3781
    %3785 = vset.pattern.permute.xlu0 0
    %3786 = vperm.xlu0 %3785, %v3644
    %v3787 = vpop.permute.xlu0 %3786
    %3790 = vset.pattern.permute.xlu0 0
    %3791 = vperm.xlu0 %3790, %v3645
    %v3792 = vpop.permute.xlu0 %3791
    %3795 = vset.pattern.permute.xlu0 0
    %3796 = vperm.xlu0 %3795, %v3646
    %v3797 = vpop.permute.xlu0 %3796
    %3800 = vset.pattern.permute.xlu0 0
    %3801 = vperm.xlu0 %3800, %v3647
    %v3802 = vpop.permute.xlu0 %3801
    %3805 = vset.pattern.permute.xlu0 0
    %3806 = vperm.xlu0 %3805, %v3648
    %v3807 = vpop.permute.xlu0 %3806
    %3810 = vset.pattern.permute.xlu0 0
    %3811 = vperm.xlu0 %3810, %v3649
    %v3812 = vpop.permute.xlu0 %3811
    %3815 = vset.pattern.permute.xlu0 0
    %3816 = vperm.xlu0 %3815, %v3650
    %v3817 = vpop.permute.xlu0 %3816
    %3820 = vset.pattern.permute.xlu0 0
    %3821 = vperm.xlu0 %3820, %v3651
    %v3822 = vpop.permute.xlu0 %3821
    %3825 = vset.pattern.permute.xlu0 0
    %3826 = vperm.xlu0 %3825, %v3652
    %v3827 = vpop.permute.xlu0 %3826
    %3830 = vset.pattern.permute.xlu0 0
    %3831 = vperm.xlu0 %3830, %v3653
    %v3832 = vpop.permute.xlu0 %3831
    %3835 = vset.pattern.permute.xlu0 0
    %3836 = vperm.xlu0 %3835, %v3654
    %v3837 = vpop.permute.xlu0 %3836
    %3840 = vset.pattern.permute.xlu0 0
    %3841 = vperm.xlu0 %3840, %v3655
    %v3842 = vpop.permute.xlu0 %3841
    %3845 = vset.pattern.permute.xlu0 0
    %3846 = vperm.xlu0 %3845, %v3656
    %v3847 = vpop.permute.xlu0 %3846
    %3850 = vset.pattern.permute.xlu0 0
    %3851 = vperm.xlu0 %3850, %v3657
    %v3852 = vpop.permute.xlu0 %3851
    %3855 = vset.pattern.permute.xlu0 0
    %3856 = vperm.xlu0 %3855, %v3658
    %v3857 = vpop.permute.xlu0 %3856
    %3860 = vset.pattern.permute.xlu0 0
    %3861 = vperm.xlu0 %3860, %v3659
    %v3862 = vpop.permute.xlu0 %3861
    %3865 = vset.pattern.permute.xlu0 0
    %3866 = vperm.xlu0 %3865, %v3660
    %v3867 = vpop.permute.xlu0 %3866
    %3870 = vset.pattern.permute.xlu0 0
    %3871 = vperm.xlu0 %3870, %v3661
    %v3872 = vpop.permute.xlu0 %3871
    %3875 = vset.pattern.permute.xlu0 0
    %3876 = vperm.xlu0 %3875, %v3662
    %v3877 = vpop.permute.xlu0 %3876
    %3880 = vset.pattern.permute.xlu0 0
    %3881 = vperm.xlu0 %3880, %v3663
    %v3882 = vpop.permute.xlu0 %3881
    %3885 = vset.pattern.permute.xlu0 0
    %3886 = vperm.xlu0 %3885, %v3664
    %v3887 = vpop.permute.xlu0 %3886
    %3890 = vset.pattern.permute.xlu0 0
    %3891 = vperm.xlu0 %3890, %v3665
    %v3892 = vpop.permute.xlu0 %3891
    %3895 = vset.pattern.permute.xlu0 0
    %3896 = vperm.xlu0 %3895, %v3666
    %v3897 = vpop.permute.xlu0 %3896
    %3900 = vset.pattern.permute.xlu0 0
    %3901 = vperm.xlu0 %3900, %v3667
    %v3902 = vpop.permute.xlu0 %3901
    %3905 = vset.pattern.permute.xlu0 0
    %3906 = vperm.xlu0 %3905, %v3668
    %v3907 = vpop.permute.xlu0 %3906
    %3909 = vmatprep.subr.mxu0 0.0
    %3910 = vmatpush1.msra.mxu0 %v3017
    %3911 = vmatprep.subr.mxu0 0.0
    %3912 = vmatpush1.msra.mxu0 %v3022
    %3913 = vmatprep.subr.mxu0 0.0
    %3914 = vmatpush1.msra.mxu0 %v3027
    %3915 = vmatprep.subr.mxu0 0.0
    %3916 = vmatpush1.msra.mxu0 %v3032
    %3917 = vmatprep.subr.mxu0 0.0
    %3918 = vmatpush1.msra.mxu0 %v3037
    %3919 = vmatprep.subr.mxu0 0.0
    %3920 = vmatpush1.msra.mxu0 %v3042
    %3921 = vmatprep.subr.mxu0 0.0
    %3922 = vmatpush1.msra.mxu0 %v3047
    %3923 = vmatprep.subr.mxu0 0.0
    %3924 = vmatpush1.msra.mxu0 %v3052
    %3925 = vmatprep.subr.mxu0 0.0
    %3926 = vmatpush1.msra.mxu0 %v3057
    %3927 = vmatprep.subr.mxu0 0.0
    %3928 = vmatpush1.msra.mxu0 %v3062
    %3929 = vmatprep.subr.mxu0 0.0
    %3930 = vmatpush1.msra.mxu0 %v3067
    %3931 = vmatprep.subr.mxu0 0.0
    %3932 = vmatpush1.msra.mxu0 %v3072
    %3933 = vmatprep.subr.mxu0 0.0
    %3934 = vmatpush1.msra.mxu0 %v3151
    %3935 = vmatprep.subr.mxu0 0.0
    %3936 = vmatpush1.msra.mxu0 %v3156
    %3937 = vmatprep.subr.mxu0 0.0
    %3938 = vmatpush1.msra.mxu0 %v3161
    %3939 = vmatprep.subr.mxu0 0.0
    %3940 = vmatpush1.msra.mxu0 %v3166
    %3941 = vmatprep.subr.mxu0 0.0
    %3942 = vmatpush1.msra.mxu0 %v3171
    %3943 = vmatprep.subr.mxu0 0.0
    %3944 = vmatpush1.msra.mxu0 %v3176
    %3945 = vmatprep.subr.mxu0 0.0
    %3946 = vmatpush1.msra.mxu0 %v3181
    %3947 = vmatprep.subr.mxu0 0.0
    %3948 = vmatpush1.msra.mxu0 %v3186
    %3949 = vmatprep.subr.mxu0 0.0
    %3950 = vmatpush1.msra.mxu0 %v3191
    %3951 = vmatprep.subr.mxu0 0.0
    %3952 = vmatpush1.msra.mxu0 %v3196
    %3953 = vmatprep.subr.mxu0 0.0
    %3954 = vmatpush1.msra.mxu0 %v3201
    %3955 = vmatprep.subr.mxu0 0.0
    %3956 = vmatpush1.msra.mxu0 %v3206
    %3957 = vmatprep.subr.mxu0 0.0
    %3958 = vmatpush1.msra.mxu0 %v3285
    %3959 = vmatprep.subr.mxu0 0.0
    %3960 = vmatpush1.msra.mxu0 %v3290
    %3961 = vmatprep.subr.mxu0 0.0
    %3962 = vmatpush1.msra.mxu0 %v3295
    %3963 = vmatprep.subr.mxu0 0.0
    %3964 = vmatpush1.msra.mxu0 %v3300
    %3965 = vmatprep.subr.mxu0 0.0
    %3966 = vmatpush1.msra.mxu0 %v3305
    %3967 = vmatprep.subr.mxu0 0.0
    %3968 = vmatpush1.msra.mxu0 %v3310
    %3969 = vmatprep.subr.mxu0 0.0
    %3970 = vmatpush1.msra.mxu0 %v3315
    %3971 = vmatprep.subr.mxu0 0.0
    %3972 = vmatpush1.msra.mxu0 %v3320
    %3973 = vmatprep.mubr.f32.mxu0 %v3478
    %3974 = vmatmul.mubr.f32.gmra.mrb[0].mxu0 %v3477
    %v3975 = vpop.f32.mrb[0].mxu0
    %v3976 = vadd.f32 %v3672, %v3975
    %v3977 = vpop.f32.mrb[0].mxu0
    %3978 = vmatprep.mubr.f32.mxu0 %v3481
    %3979 = vmatmul.mubr.f32.gmra.mrb[0].mxu0 %v3480
    %v3980 = vpop.f32.mrb[0].mxu0
    %v3981 = vadd.f32 %v3677, %v3980
    %v3982 = vpop.f32.mrb[0].mxu0
    %3983 = vmatprep.mubr.f32.mxu0 %v3484
    %3984 = vmatmul.mubr.f32.gmra.mrb[0].mxu0 %v3483
    %v3985 = vpop.f32.mrb[0].mxu0
    %v3986 = vadd.f32 %v3682, %v3985
    %v3987 = vpop.f32.mrb[0].mxu0
    %3988 = vmatprep.mubr.f32.mxu0 %v3487
    %3989 = vmatmul.mubr.f32.gmra.mrb[0].mxu0 %v3486
    %v3990 = vpop.f32.mrb[0].mxu0
    %v3991 = vadd.f32 %v3687, %v3990
    %v3992 = vpop.f32.mrb[0].mxu0
    %3993 = vmatprep.mubr.f32.mxu0 %v3490
    %3994 = vmatmul.mubr.f32.gmra.mrb[0].mxu0 %v3489
    %v3995 = vpop.f32.mrb[0].mxu0
    %v3996 = vadd.f32 %v3692, %v3995
    %v3997 = vpop.f32.mrb[0].mxu0
    %3998 = vmatprep.mubr.f32.mxu0 %v3493
    %3999 = vmatmul.mubr.f32.gmra.mrb[0].mxu0 %v3492
    %v4000 = vpop.f32.mrb[0].mxu0
    %v4001 = vadd.f32 %v3697, %v4000
    %v4002 = vpop.f32.mrb[0].mxu0
    %4003 = vmatprep.mubr.f32.mxu0 %v3496
    %4004 = vmatmul.mubr.f32.gmra.mrb[0].mxu0 %v3495
    %v4005 = vpop.f32.mrb[0].mxu0
    %v4006 = vadd.f32 %v3702, %v4005
    %v4007 = vpop.f32.mrb[0].mxu0
    %4008 = vmatprep.mubr.f32.mxu0 %v3499
    %4009 = vmatmul.mubr.f32.gmra.mrb[0].mxu0 %v3498
    %v4010 = vpop.f32.mrb[0].mxu0
    %v4011 = vadd.f32 %v3707, %v4010
    %v4012 = vpop.f32.mrb[0].mxu0
    %4013 = vmatprep.mubr.f32.mxu0 %v3502
    %4014 = vmatmul.mubr.f32.gmra.mrb[0].mxu0 %v3501
    %v4015 = vpop.f32.mrb[0].mxu0
    %v4016 = vadd.f32 %v3712, %v4015
    %v4017 = vpop.f32.mrb[0].mxu0
    %4018 = vmatprep.mubr.f32.mxu0 %v3505
    %4019 = vmatmul.mubr.f32.gmra.mrb[0].mxu0 %v3504
    %v4020 = vpop.f32.mrb[0].mxu0
    %v4021 = vadd.f32 %v3717, %v4020
    %v4022 = vpop.f32.mrb[0].mxu0
    %4023 = vmatprep.mubr.f32.mxu0 %v3508
    %4024 = vmatmul.mubr.f32.gmra.mrb[0].mxu0 %v3507
    %v4025 = vpop.f32.mrb[0].mxu0
    %v4026 = vadd.f32 %v3722, %v4025
    %v4027 = vpop.f32.mrb[0].mxu0
    %4028 = vmatprep.mubr.f32.mxu0 %v3511
    %4029 = vmatmul.mubr.f32.gmra.mrb[0].mxu0 %v3510
    %v4030 = vpop.f32.mrb[0].mxu0
    %v4031 = vadd.f32 %v3727, %v4030
    %v4032 = vpop.f32.mrb[0].mxu0
    %4033 = vmatprep.mubr.f32.mxu0 %v3514
    %4034 = vmatmul.mubr.f32.gmra.mrb[0].mxu0 %v3513
    %v4035 = vpop.f32.mrb[0].mxu0
    %v4036 = vadd.f32 %v3732, %v4035
    %v4037 = vpop.f32.mrb[0].mxu0
    %4038 = vmatprep.mubr.f32.mxu0 %v3517
    %4039 = vmatmul.mubr.f32.gmra.mrb[0].mxu0 %v3516
    %v4040 = vpop.f32.mrb[0].mxu0
    %v4041 = vadd.f32 %v3737, %v4040
    %v4042 = vpop.f32.mrb[0].mxu0
    %4043 = vmatprep.mubr.f32.mxu0 %v3520
    %4044 = vmatmul.mubr.f32.gmra.mrb[0].mxu0 %v3519
    %v4045 = vpop.f32.mrb[0].mxu0
    %v4046 = vadd.f32 %v3742, %v4045
    %v4047 = vpop.f32.mrb[0].mxu0
    %4048 = vmatprep.mubr.f32.mxu0 %v3523
    %4049 = vmatmul.mubr.f32.gmra.mrb[0].mxu0 %v3522
    %v4050 = vpop.f32.mrb[0].mxu0
    %v4051 = vadd.f32 %v3747, %v4050
    %v4052 = vpop.f32.mrb[0].mxu0
    %4053 = vmatprep.mubr.f32.mxu0 %v3526
    %4054 = vmatmul.mubr.f32.gmra.mrb[0].mxu0 %v3525
    %v4055 = vpop.f32.mrb[0].mxu0
    %v4056 = vadd.f32 %v3752, %v4055
    %v4057 = vpop.f32.mrb[0].mxu0
    %4058 = vmatprep.mubr.f32.mxu0 %v3529
    %4059 = vmatmul.mubr.f32.gmra.mrb[0].mxu0 %v3528
    %v4060 = vpop.f32.mrb[0].mxu0
    %v4061 = vadd.f32 %v3757, %v4060
    %v4062 = vpop.f32.mrb[0].mxu0
    %4063 = vmatprep.mubr.f32.mxu0 %v3532
    %4064 = vmatmul.mubr.f32.gmra.mrb[0].mxu0 %v3531
    %v4065 = vpop.f32.mrb[0].mxu0
    %v4066 = vadd.f32 %v3762, %v4065
    %v4067 = vpop.f32.mrb[0].mxu0
    %4068 = vmatprep.mubr.f32.mxu0 %v3535
    %4069 = vmatmul.mubr.f32.gmra.mrb[0].mxu0 %v3534
    %v4070 = vpop.f32.mrb[0].mxu0
    %v4071 = vadd.f32 %v3767, %v4070
    %v4072 = vpop.f32.mrb[0].mxu0
    %4073 = vmatprep.mubr.f32.mxu0 %v3538
    %4074 = vmatmul.mubr.f32.gmra.mrb[0].mxu0 %v3537
    %v4075 = vpop.f32.mrb[0].mxu0
    %v4076 = vadd.f32 %v3772, %v4075
    %v4077 = vpop.f32.mrb[0].mxu0
    %4078 = vmatprep.mubr.f32.mxu0 %v3541
    %4079 = vmatmul.mubr.f32.gmra.mrb[0].mxu0 %v3540
    %v4080 = vpop.f32.mrb[0].mxu0
    %v4081 = vadd.f32 %v3777, %v4080
    %v4082 = vpop.f32.mrb[0].mxu0
    %4083 = vmatprep.mubr.f32.mxu0 %v3544
    %4084 = vmatmul.mubr.f32.gmra.mrb[0].mxu0 %v3543
    %v4085 = vpop.f32.mrb[0].mxu0
    %v4086 = vadd.f32 %v3782, %v4085
    %v4087 = vpop.f32.mrb[0].mxu0
    %4088 = vmatprep.mubr.f32.mxu0 %v3547
    %4089 = vmatmul.mubr.f32.gmra.mrb[0].mxu0 %v3546
    %v4090 = vpop.f32.mrb[0].mxu0
    %v4091 = vadd.f32 %v3787, %v4090
    %v4092 = vpop.f32.mrb[0].mxu0
    %4093 = vmatprep.mubr.f32.mxu0 %v3550
    %4094 = vmatmul.mubr.f32.gmra.mrb[0].mxu0 %v3549
    %v4095 = vpop.f32.mrb[0].mxu0
    %v4096 = vadd.f32 %v3792, %v4095
    %v4097 = vpop.f32.mrb[0].mxu0
    %4098 = vmatprep.mubr.f32.mxu0 %v3553
    %4099 = vmatmul.mubr.f32.gmra.mrb[0].mxu0 %v3552
    %v4100 = vpop.f32.mrb[0].mxu0
    %v4101 = vadd.f32 %v3797, %v4100
    %v4102 = vpop.f32.mrb[0].mxu0
    %4103 = vmatprep.mubr.f32.mxu0 %v3556
    %4104 = vmatmul.mubr.f32.gmra.mrb[0].mxu0 %v3555
    %v4105 = vpop.f32.mrb[0].mxu0
    %v4106 = vadd.f32 %v3802, %v4105
    %v4107 = vpop.f32.mrb[0].mxu0
    %4108 = vmatprep.mubr.f32.mxu0 %v3559
    %4109 = vmatmul.mubr.f32.gmra.mrb[0].mxu0 %v3558
    %v4110 = vpop.f32.mrb[0].mxu0
    %v4111 = vadd.f32 %v3807, %v4110
    %v4112 = vpop.f32.mrb[0].mxu0
    %4113 = vmatprep.mubr.f32.mxu0 %v3562
    %4114 = vmatmul.mubr.f32.gmra.mrb[0].mxu0 %v3561
    %v4115 = vpop.f32.mrb[0].mxu0
    %v4116 = vadd.f32 %v3812, %v4115
    %v4117 = vpop.f32.mrb[0].mxu0
    %4118 = vmatprep.mubr.f32.mxu0 %v3565
    %4119 = vmatmul.mubr.f32.gmra.mrb[0].mxu0 %v3564
    %v4120 = vpop.f32.mrb[0].mxu0
    %v4121 = vadd.f32 %v3817, %v4120
    %v4122 = vpop.f32.mrb[0].mxu0
    %4123 = vmatprep.mubr.f32.mxu0 %v3568
    %4124 = vmatmul.mubr.f32.gmra.mrb[0].mxu0 %v3567
    %v4125 = vpop.f32.mrb[0].mxu0
    %v4126 = vadd.f32 %v3822, %v4125
    %v4127 = vpop.f32.mrb[0].mxu0
    %4128 = vmatprep.mubr.f32.mxu0 %v3571
    %4129 = vmatmul.mubr.f32.gmra.mrb[0].mxu0 %v3570
    %v4130 = vpop.f32.mrb[0].mxu0
    %v4131 = vadd.f32 %v3827, %v4130
    %v4132 = vpop.f32.mrb[0].mxu0
    %4133 = vmatprep.mubr.f32.mxu0 %v3574
    %4134 = vmatmul.mubr.f32.gmra.mrb[0].mxu0 %v3573
    %v4135 = vpop.f32.mrb[0].mxu0
    %v4136 = vadd.f32 %v3832, %v4135
    %v4137 = vpop.f32.mrb[0].mxu0
    %4138 = vmatprep.mubr.f32.mxu0 %v3577
    %4139 = vmatmul.mubr.f32.gmra.mrb[0].mxu0 %v3576
    %v4140 = vpop.f32.mrb[0].mxu0
    %v4141 = vadd.f32 %v3837, %v4140
    %v4142 = vpop.f32.mrb[0].mxu0
    %4143 = vmatprep.mubr.f32.mxu0 %v3580
    %4144 = vmatmul.mubr.f32.gmra.mrb[0].mxu0 %v3579
    %v4145 = vpop.f32.mrb[0].mxu0
    %v4146 = vadd.f32 %v3842, %v4145
    %v4147 = vpop.f32.mrb[0].mxu0
    %4148 = vmatprep.mubr.f32.mxu0 %v3583
    %4149 = vmatmul.mubr.f32.gmra.mrb[0].mxu0 %v3582
    %v4150 = vpop.f32.mrb[0].mxu0
    %v4151 = vadd.f32 %v3847, %v4150
    %v4152 = vpop.f32.mrb[0].mxu0
    %4153 = vmatprep.mubr.f32.mxu0 %v3586
    %4154 = vmatmul.mubr.f32.gmra.mrb[0].mxu0 %v3585
    %v4155 = vpop.f32.mrb[0].mxu0
    %v4156 = vadd.f32 %v3852, %v4155
    %v4157 = vpop.f32.mrb[0].mxu0
    %4158 = vmatprep.mubr.f32.mxu0 %v3589
    %4159 = vmatmul.mubr.f32.gmra.mrb[0].mxu0 %v3588
    %v4160 = vpop.f32.mrb[0].mxu0
    %v4161 = vadd.f32 %v3857, %v4160
    %v4162 = vpop.f32.mrb[0].mxu0
    %4163 = vmatprep.mubr.f32.mxu0 %v3592
    %4164 = vmatmul.mubr.f32.gmra.mrb[0].mxu0 %v3591
    %v4165 = vpop.f32.mrb[0].mxu0
    %v4166 = vadd.f32 %v3862, %v4165
    %v4167 = vpop.f32.mrb[0].mxu0
    %4168 = vmatprep.mubr.f32.mxu0 %v3595
    %4169 = vmatmul.mubr.f32.gmra.mrb[0].mxu0 %v3594
    %v4170 = vpop.f32.mrb[0].mxu0
    %v4171 = vadd.f32 %v3867, %v4170
    %v4172 = vpop.f32.mrb[0].mxu0
    %4173 = vmatprep.mubr.f32.mxu0 %v3598
    %4174 = vmatmul.mubr.f32.gmra.mrb[0].mxu0 %v3597
    %v4175 = vpop.f32.mrb[0].mxu0
    %v4176 = vadd.f32 %v3872, %v4175
    %v4177 = vpop.f32.mrb[0].mxu0
    %4178 = vmatprep.mubr.f32.mxu0 %v3601
    %4179 = vmatmul.mubr.f32.gmra.mrb[0].mxu0 %v3600
    %v4180 = vpop.f32.mrb[0].mxu0
    %v4181 = vadd.f32 %v3877, %v4180
    %v4182 = vpop.f32.mrb[0].mxu0
    %4183 = vmatprep.mubr.f32.mxu0 %v3604
    %4184 = vmatmul.mubr.f32.gmra.mrb[0].mxu0 %v3603
    %v4185 = vpop.f32.mrb[0].mxu0
    %v4186 = vadd.f32 %v3882, %v4185
    %v4187 = vpop.f32.mrb[0].mxu0
    %4188 = vmatprep.mubr.f32.mxu0 %v3607
    %4189 = vmatmul.mubr.f32.gmra.mrb[0].mxu0 %v3606
    %v4190 = vpop.f32.mrb[0].mxu0
    %v4191 = vadd.f32 %v3887, %v4190
    %v4192 = vpop.f32.mrb[0].mxu0
    %4193 = vmatprep.mubr.f32.mxu0 %v3610
    %4194 = vmatmul.mubr.f32.gmra.mrb[0].mxu0 %v3609
    %v4195 = vpop.f32.mrb[0].mxu0
    %v4196 = vadd.f32 %v3892, %v4195
    %v4197 = vpop.f32.mrb[0].mxu0
    %4198 = vmatprep.mubr.f32.mxu0 %v3613
    %4199 = vmatmul.mubr.f32.gmra.mrb[0].mxu0 %v3612
    %v4200 = vpop.f32.mrb[0].mxu0
    %v4201 = vadd.f32 %v3897, %v4200
    %v4202 = vpop.f32.mrb[0].mxu0
    %4203 = vmatprep.mubr.f32.mxu0 %v3616
    %4204 = vmatmul.mubr.f32.gmra.mrb[0].mxu0 %v3615
    %v4205 = vpop.f32.mrb[0].mxu0
    %v4206 = vadd.f32 %v3902, %v4205
    %v4207 = vpop.f32.mrb[0].mxu0
    %4208 = vmatprep.mubr.f32.mxu0 %v3619
    %4209 = vmatmul.mubr.f32.gmra.mrb[0].mxu0 %v3618
    %v4210 = vpop.f32.mrb[0].mxu0
    %v4211 = vadd.f32 %v3907, %v4210
    %v4212 = vpop.f32.mrb[0].mxu0
    %4213 = vdwg.mxu0
    %4214 = vmatprep.subr.mxu0 0.0
    %4215 = vmatpush1.msra.mxu0 %v3325
    %4216 = vmatprep.subr.mxu0 0.0
    %4217 = vmatpush1.msra.mxu0 %v3330
    %4218 = vmatprep.subr.mxu0 0.0
    %4219 = vmatpush1.msra.mxu0 %v3335
    %4220 = vmatprep.subr.mxu0 0.0
    %4221 = vmatpush1.msra.mxu0 %v3340
    %4222 = vmatprep.subr.mxu0 0.0
    %4223 = vmatpush1.msra.mxu0 %v3419
    %4224 = vmatprep.subr.mxu0 0.0
    %4225 = vmatpush1.msra.mxu0 %v3424
    %4226 = vmatprep.subr.mxu0 0.0
    %4227 = vmatpush1.msra.mxu0 %v3429
    %4228 = vmatprep.subr.mxu0 0.0
    %4229 = vmatpush1.msra.mxu0 %v3434
    %4230 = vmatprep.subr.mxu0 0.0
    %4231 = vmatpush1.msra.mxu0 %v3439
    %4232 = vmatprep.subr.mxu0 0.0
    %4233 = vmatpush1.msra.mxu0 %v3444
    %4234 = vmatprep.subr.mxu0 0.0
    %4235 = vmatpush1.msra.mxu0 %v3449
    %4236 = vmatprep.subr.mxu0 0.0
    %4237 = vmatpush1.msra.mxu0 %v3454
    %4238 = vmatprep.subr.mxu0 0.0
    %4239 = vmatpush1.msra.mxu0 %v3459
    %4240 = vmatprep.subr.mxu0 0.0
    %4241 = vmatpush1.msra.mxu0 %v3464
    %4242 = vmatprep.subr.mxu0 0.0
    %4243 = vmatpush1.msra.mxu0 %v3469
    %4244 = vmatprep.subr.mxu0 0.0
    %4245 = vmatpush1.msra.mxu0 %v3474
    %4246 = vmatprep.subr.mxu0 0.0
    %4247 = vmatpush1.msra.mxu0 0.0
    %4248 = vmatprep.subr.mxu0 0.0
    %4249 = vmatpush1.msra.mxu0 0.0
    %4250 = vmatprep.subr.mxu0 0.0
    %4251 = vmatpush1.msra.mxu0 0.0
    %4252 = vmatprep.subr.mxu0 0.0
    %4253 = vmatpush1.msra.mxu0 0.0
    %4254 = vmatprep.subr.mxu0 0.0
    %4255 = vmatpush1.msra.mxu0 0.0
    %4256 = vmatprep.subr.mxu0 0.0
    %4257 = vmatpush1.msra.mxu0 0.0
    %4258 = vmatprep.subr.mxu0 0.0
    %4259 = vmatpush1.msra.mxu0 0.0
    %4260 = vmatprep.subr.mxu0 0.0
    %4261 = vmatpush1.msra.mxu0 0.0
    %4262 = vmatprep.subr.mxu0 0.0
    %4263 = vmatpush1.msra.mxu0 0.0
    %4264 = vmatprep.subr.mxu0 0.0
    %4265 = vmatpush1.msra.mxu0 0.0
    %4266 = vmatprep.subr.mxu0 0.0
    %4267 = vmatpush1.msra.mxu0 0.0
    %4268 = vmatprep.subr.mxu0 0.0
    %4269 = vmatpush1.msra.mxu0 0.0
    %4270 = vmatprep.subr.mxu0 0.0
    %4271 = vmatpush1.msra.mxu0 0.0
    %4272 = vmatprep.subr.mxu0 0.0
    %4273 = vmatpush1.msra.mxu0 0.0
    %4274 = vmatprep.subr.mxu0 0.0
    %4275 = vmatpush1.msra.mxu0 0.0
    %4276 = vmatprep.subr.mxu0 0.0
    %4277 = vmatpush1.msra.mxu0 0.0
    %4278 = vmatprep.mubr.f32.mxu0 0.0
    %4279 = vmatmul.mubr.f32.gmra.mrb[0].mxu0 %v3479
    %v4280 = vpop.f32.mrb[0].mxu0
    %v4281 = vadd.f32 %v3976, %v4280
    %v4282 = vpop.f32.mrb[0].mxu0
    %4283 = vmatprep.mubr.f32.mxu0 0.0
    %4284 = vmatmul.mubr.f32.gmra.mrb[0].mxu0 %v3482
    %v4285 = vpop.f32.mrb[0].mxu0
    %v4286 = vadd.f32 %v3981, %v4285
    %v4287 = vpop.f32.mrb[0].mxu0
    %4288 = vmatprep.mubr.f32.mxu0 0.0
    %4289 = vmatmul.mubr.f32.gmra.mrb[0].mxu0 %v3485
    %v4290 = vpop.f32.mrb[0].mxu0
    %v4291 = vadd.f32 %v3986, %v4290
    %v4292 = vpop.f32.mrb[0].mxu0
    %4293 = vmatprep.mubr.f32.mxu0 0.0
    %4294 = vmatmul.mubr.f32.gmra.mrb[0].mxu0 %v3488
    %v4295 = vpop.f32.mrb[0].mxu0
    %v4296 = vadd.f32 %v3991, %v4295
    %v4297 = vpop.f32.mrb[0].mxu0
    %4298 = vmatprep.mubr.f32.mxu0 0.0
    %4299 = vmatmul.mubr.f32.gmra.mrb[0].mxu0 %v3491
    %v4300 = vpop.f32.mrb[0].mxu0
    %v4301 = vadd.f32 %v3996, %v4300
    %v4302 = vpop.f32.mrb[0].mxu0
    %4303 = vmatprep.mubr.f32.mxu0 0.0
    %4304 = vmatmul.mubr.f32.gmra.mrb[0].mxu0 %v3494
    %v4305 = vpop.f32.mrb[0].mxu0
    %v4306 = vadd.f32 %v4001, %v4305
    %v4307 = vpop.f32.mrb[0].mxu0
    %4308 = vmatprep.mubr.f32.mxu0 0.0
    %4309 = vmatmul.mubr.f32.gmra.mrb[0].mxu0 %v3497
    %v4310 = vpop.f32.mrb[0].mxu0
    %v4311 = vadd.f32 %v4006, %v4310
    %v4312 = vpop.f32.mrb[0].mxu0
    %4313 = vmatprep.mubr.f32.mxu0 0.0
    %4314 = vmatmul.mubr.f32.gmra.mrb[0].mxu0 %v3500
    %v4315 = vpop.f32.mrb[0].mxu0
    %v4316 = vadd.f32 %v4011, %v4315
    %v4317 = vpop.f32.mrb[0].mxu0
    %4318 = vmatprep.mubr.f32.mxu0 0.0
    %4319 = vmatmul.mubr.f32.gmra.mrb[0].mxu0 %v3503
    %v4320 = vpop.f32.mrb[0].mxu0
    %v4321 = vadd.f32 %v4016, %v4320
    %v4322 = vpop.f32.mrb[0].mxu0
    %4323 = vmatprep.mubr.f32.mxu0 0.0
    %4324 = vmatmul.mubr.f32.gmra.mrb[0].mxu0 %v3506
    %v4325 = vpop.f32.mrb[0].mxu0
    %v4326 = vadd.f32 %v4021, %v4325
    %v4327 = vpop.f32.mrb[0].mxu0
    %4328 = vmatprep.mubr.f32.mxu0 0.0
    %4329 = vmatmul.mubr.f32.gmra.mrb[0].mxu0 %v3509
    %v4330 = vpop.f32.mrb[0].mxu0
    %v4331 = vadd.f32 %v4026, %v4330
    %v4332 = vpop.f32.mrb[0].mxu0
    %4333 = vmatprep.mubr.f32.mxu0 0.0
    %4334 = vmatmul.mubr.f32.gmra.mrb[0].mxu0 %v3512
    %v4335 = vpop.f32.mrb[0].mxu0
    %v4336 = vadd.f32 %v4031, %v4335
    %v4337 = vpop.f32.mrb[0].mxu0
    %4338 = vmatprep.mubr.f32.mxu0 0.0
    %4339 = vmatmul.mubr.f32.gmra.mrb[0].mxu0 %v3515
    %v4340 = vpop.f32.mrb[0].mxu0
    %v4341 = vadd.f32 %v4036, %v4340
    %v4342 = vpop.f32.mrb[0].mxu0
    %4343 = vmatprep.mubr.f32.mxu0 0.0
    %4344 = vmatmul.mubr.f32.gmra.mrb[0].mxu0 %v3518
    %v4345 = vpop.f32.mrb[0].mxu0
    %v4346 = vadd.f32 %v4041, %v4345
    %v4347 = vpop.f32.mrb[0].mxu0
    %4348 = vmatprep.mubr.f32.mxu0 0.0
    %4349 = vmatmul.mubr.f32.gmra.mrb[0].mxu0 %v3521
    %v4350 = vpop.f32.mrb[0].mxu0
    %v4351 = vadd.f32 %v4046, %v4350
    %v4352 = vpop.f32.mrb[0].mxu0
    %4353 = vmatprep.mubr.f32.mxu0 0.0
    %4354 = vmatmul.mubr.f32.gmra.mrb[0].mxu0 %v3524
    %v4355 = vpop.f32.mrb[0].mxu0
    %v4356 = vadd.f32 %v4051, %v4355
    %v4357 = vpop.f32.mrb[0].mxu0
    %4358 = vmatprep.mubr.f32.mxu0 0.0
    %4359 = vmatmul.mubr.f32.gmra.mrb[0].mxu0 %v3527
    %v4360 = vpop.f32.mrb[0].mxu0
    %v4361 = vadd.f32 %v4056, %v4360
    %v4362 = vpop.f32.mrb[0].mxu0
    %4363 = vmatprep.mubr.f32.mxu0 0.0
    %4364 = vmatmul.mubr.f32.gmra.mrb[0].mxu0 %v3530
    %v4365 = vpop.f32.mrb[0].mxu0
    %v4366 = vadd.f32 %v4061, %v4365
    %v4367 = vpop.f32.mrb[0].mxu0
    %4368 = vmatprep.mubr.f32.mxu0 0.0
    %4369 = vmatmul.mubr.f32.gmra.mrb[0].mxu0 %v3533
    %v4370 = vpop.f32.mrb[0].mxu0
    %v4371 = vadd.f32 %v4066, %v4370
    %v4372 = vpop.f32.mrb[0].mxu0
    %4373 = vmatprep.mubr.f32.mxu0 0.0
    %4374 = vmatmul.mubr.f32.gmra.mrb[0].mxu0 %v3536
    %v4375 = vpop.f32.mrb[0].mxu0
    %v4376 = vadd.f32 %v4071, %v4375
    %v4377 = vpop.f32.mrb[0].mxu0
    %4378 = vmatprep.mubr.f32.mxu0 0.0
    %4379 = vmatmul.mubr.f32.gmra.mrb[0].mxu0 %v3539
    %v4380 = vpop.f32.mrb[0].mxu0
    %v4381 = vadd.f32 %v4076, %v4380
    %v4382 = vpop.f32.mrb[0].mxu0
    %4383 = vmatprep.mubr.f32.mxu0 0.0
    %4384 = vmatmul.mubr.f32.gmra.mrb[0].mxu0 %v3542
    %v4385 = vpop.f32.mrb[0].mxu0
    %v4386 = vadd.f32 %v4081, %v4385
    %v4387 = vpop.f32.mrb[0].mxu0
    %4388 = vmatprep.mubr.f32.mxu0 0.0
    %4389 = vmatmul.mubr.f32.gmra.mrb[0].mxu0 %v3545
    %v4390 = vpop.f32.mrb[0].mxu0
    %v4391 = vadd.f32 %v4086, %v4390
    %v4392 = vpop.f32.mrb[0].mxu0
    %4393 = vmatprep.mubr.f32.mxu0 0.0
    %4394 = vmatmul.mubr.f32.gmra.mrb[0].mxu0 %v3548
    %v4395 = vpop.f32.mrb[0].mxu0
    %v4396 = vadd.f32 %v4091, %v4395
    %v4397 = vpop.f32.mrb[0].mxu0
    %4398 = vmatprep.mubr.f32.mxu0 0.0
    %4399 = vmatmul.mubr.f32.gmra.mrb[0].mxu0 %v3551
    %v4400 = vpop.f32.mrb[0].mxu0
    %v4401 = vadd.f32 %v4096, %v4400
    %v4402 = vpop.f32.mrb[0].mxu0
    %4403 = vmatprep.mubr.f32.mxu0 0.0
    %4404 = vmatmul.mubr.f32.gmra.mrb[0].mxu0 %v3554
    %v4405 = vpop.f32.mrb[0].mxu0
    %v4406 = vadd.f32 %v4101, %v4405
    %v4407 = vpop.f32.mrb[0].mxu0
    %4408 = vmatprep.mubr.f32.mxu0 0.0
    %4409 = vmatmul.mubr.f32.gmra.mrb[0].mxu0 %v3557
    %v4410 = vpop.f32.mrb[0].mxu0
    %v4411 = vadd.f32 %v4106, %v4410
    %v4412 = vpop.f32.mrb[0].mxu0
    %4413 = vmatprep.mubr.f32.mxu0 0.0
    %4414 = vmatmul.mubr.f32.gmra.mrb[0].mxu0 %v3560
    %v4415 = vpop.f32.mrb[0].mxu0
    %v4416 = vadd.f32 %v4111, %v4415
    %v4417 = vpop.f32.mrb[0].mxu0
    %4418 = vmatprep.mubr.f32.mxu0 0.0
    %4419 = vmatmul.mubr.f32.gmra.mrb[0].mxu0 %v3563
    %v4420 = vpop.f32.mrb[0].mxu0
    %v4421 = vadd.f32 %v4116, %v4420
    %v4422 = vpop.f32.mrb[0].mxu0
    %4423 = vmatprep.mubr.f32.mxu0 0.0
    %4424 = vmatmul.mubr.f32.gmra.mrb[0].mxu0 %v3566
    %v4425 = vpop.f32.mrb[0].mxu0
    %v4426 = vadd.f32 %v4121, %v4425
    %v4427 = vpop.f32.mrb[0].mxu0
    %4428 = vmatprep.mubr.f32.mxu0 0.0
    %4429 = vmatmul.mubr.f32.gmra.mrb[0].mxu0 %v3569
    %v4430 = vpop.f32.mrb[0].mxu0
    %v4431 = vadd.f32 %v4126, %v4430
    %v4432 = vpop.f32.mrb[0].mxu0
    %4433 = vmatprep.mubr.f32.mxu0 0.0
    %4434 = vmatmul.mubr.f32.gmra.mrb[0].mxu0 %v3572
    %v4435 = vpop.f32.mrb[0].mxu0
    %v4436 = vadd.f32 %v4131, %v4435
    %v4437 = vpop.f32.mrb[0].mxu0
    %4438 = vmatprep.mubr.f32.mxu0 0.0
    %4439 = vmatmul.mubr.f32.gmra.mrb[0].mxu0 %v3575
    %v4440 = vpop.f32.mrb[0].mxu0
    %v4441 = vadd.f32 %v4136, %v4440
    %v4442 = vpop.f32.mrb[0].mxu0
    %4443 = vmatprep.mubr.f32.mxu0 0.0
    %4444 = vmatmul.mubr.f32.gmra.mrb[0].mxu0 %v3578
    %v4445 = vpop.f32.mrb[0].mxu0
    %v4446 = vadd.f32 %v4141, %v4445
    %v4447 = vpop.f32.mrb[0].mxu0
    %4448 = vmatprep.mubr.f32.mxu0 0.0
    %4449 = vmatmul.mubr.f32.gmra.mrb[0].mxu0 %v3581
    %v4450 = vpop.f32.mrb[0].mxu0
    %v4451 = vadd.f32 %v4146, %v4450
    %v4452 = vpop.f32.mrb[0].mxu0
    %4453 = vmatprep.mubr.f32.mxu0 0.0
    %4454 = vmatmul.mubr.f32.gmra.mrb[0].mxu0 %v3584
    %v4455 = vpop.f32.mrb[0].mxu0
    %v4456 = vadd.f32 %v4151, %v4455
    %v4457 = vpop.f32.mrb[0].mxu0
    %4458 = vmatprep.mubr.f32.mxu0 0.0
    %4459 = vmatmul.mubr.f32.gmra.mrb[0].mxu0 %v3587
    %v4460 = vpop.f32.mrb[0].mxu0
    %v4461 = vadd.f32 %v4156, %v4460
    %v4462 = vpop.f32.mrb[0].mxu0
    %4463 = vmatprep.mubr.f32.mxu0 0.0
    %4464 = vmatmul.mubr.f32.gmra.mrb[0].mxu0 %v3590
    %v4465 = vpop.f32.mrb[0].mxu0
    %v4466 = vadd.f32 %v4161, %v4465
    %v4467 = vpop.f32.mrb[0].mxu0
    %4468 = vmatprep.mubr.f32.mxu0 0.0
    %4469 = vmatmul.mubr.f32.gmra.mrb[0].mxu0 %v3593
    %v4470 = vpop.f32.mrb[0].mxu0
    %v4471 = vadd.f32 %v4166, %v4470
    %v4472 = vpop.f32.mrb[0].mxu0
    %4473 = vmatprep.mubr.f32.mxu0 0.0
    %4474 = vmatmul.mubr.f32.gmra.mrb[0].mxu0 %v3596
    %v4475 = vpop.f32.mrb[0].mxu0
    %v4476 = vadd.f32 %v4171, %v4475
    %v4477 = vpop.f32.mrb[0].mxu0
    %4478 = vmatprep.mubr.f32.mxu0 0.0
    %4479 = vmatmul.mubr.f32.gmra.mrb[0].mxu0 %v3599
    %v4480 = vpop.f32.mrb[0].mxu0
    %v4481 = vadd.f32 %v4176, %v4480
    %v4482 = vpop.f32.mrb[0].mxu0
    %4483 = vmatprep.mubr.f32.mxu0 0.0
    %4484 = vmatmul.mubr.f32.gmra.mrb[0].mxu0 %v3602
    %v4485 = vpop.f32.mrb[0].mxu0
    %v4486 = vadd.f32 %v4181, %v4485
    %v4487 = vpop.f32.mrb[0].mxu0
    %4488 = vmatprep.mubr.f32.mxu0 0.0
    %4489 = vmatmul.mubr.f32.gmra.mrb[0].mxu0 %v3605
    %v4490 = vpop.f32.mrb[0].mxu0
    %v4491 = vadd.f32 %v4186, %v4490
    %v4492 = vpop.f32.mrb[0].mxu0
    %4493 = vmatprep.mubr.f32.mxu0 0.0
    %4494 = vmatmul.mubr.f32.gmra.mrb[0].mxu0 %v3608
    %v4495 = vpop.f32.mrb[0].mxu0
    %v4496 = vadd.f32 %v4191, %v4495
    %v4497 = vpop.f32.mrb[0].mxu0
    %4498 = vmatprep.mubr.f32.mxu0 0.0
    %4499 = vmatmul.mubr.f32.gmra.mrb[0].mxu0 %v3611
    %v4500 = vpop.f32.mrb[0].mxu0
    %v4501 = vadd.f32 %v4196, %v4500
    %v4502 = vpop.f32.mrb[0].mxu0
    %4503 = vmatprep.mubr.f32.mxu0 0.0
    %4504 = vmatmul.mubr.f32.gmra.mrb[0].mxu0 %v3614
    %v4505 = vpop.f32.mrb[0].mxu0
    %v4506 = vadd.f32 %v4201, %v4505
    %v4507 = vpop.f32.mrb[0].mxu0
    %4508 = vmatprep.mubr.f32.mxu0 0.0
    %4509 = vmatmul.mubr.f32.gmra.mrb[0].mxu0 %v3617
    %v4510 = vpop.f32.mrb[0].mxu0
    %v4511 = vadd.f32 %v4206, %v4510
    %v4512 = vpop.f32.mrb[0].mxu0
    %4513 = vmatprep.mubr.f32.mxu0 0.0
    %4514 = vmatmul.mubr.f32.gmra.mrb[0].mxu0 %v3620
    %v4515 = vpop.f32.mrb[0].mxu0
    %v4516 = vadd.f32 %v4211, %v4515
    %v4517 = vpop.f32.mrb[0].mxu0
    %4518 = vdwg.mxu0
    %v4519 = vld [vmem:[%s17] sm:$0xff]
    %v4520 = vld [vmem:[%s17 + $0x8] sm:$0xff]
    %v4521 = vld [vmem:[%s17 + $0x10] sm:$0xff]
    %v4522 = vld [vmem:[%s17 + $0x18] sm:$0xff]
    %4523 = vmatprep.subr.mxu0 0.0
    %4524 = vmatpush1.msra.mxu0 %v4519
    %4525 = vmatprep.subr.mxu0 0.0
    %4526 = vmatpush1.msra.mxu0 %v4520
    %4527 = vmatprep.subr.mxu0 0.0
    %4528 = vmatpush1.msra.mxu0 %v4521
    %4529 = vmatprep.subr.mxu0 0.0
    %4530 = vmatpush1.msra.mxu0 %v4522
    %4531 = vmatprep.subr.mxu0 0.0
    %4532 = vmatpush1.msra.mxu0 0.0
    %4533 = vmatprep.subr.mxu0 0.0
    %4534 = vmatpush1.msra.mxu0 0.0
    %4535 = vmatprep.subr.mxu0 0.0
    %4536 = vmatpush1.msra.mxu0 0.0
    %4537 = vmatprep.subr.mxu0 0.0
    %4538 = vmatpush1.msra.mxu0 0.0
    %4539 = vmatprep.subr.mxu0 0.0
    %4540 = vmatpush1.msra.mxu0 0.0
    %4541 = vmatprep.subr.mxu0 0.0
    %4542 = vmatpush1.msra.mxu0 0.0
    %4543 = vmatprep.subr.mxu0 0.0
    %4544 = vmatpush1.msra.mxu0 0.0
    %4545 = vmatprep.subr.mxu0 0.0
    %4546 = vmatpush1.msra.mxu0 0.0
    %4547 = vmatprep.subr.mxu0 0.0
    %4548 = vmatpush1.msra.mxu0 0.0
    %4549 = vmatprep.subr.mxu0 0.0
    %4550 = vmatpush1.msra.mxu0 0.0
    %4551 = vmatprep.subr.mxu0 0.0
    %4552 = vmatpush1.msra.mxu0 0.0
    %4553 = vmatprep.subr.mxu0 0.0
    %4554 = vmatpush1.msra.mxu0 0.0
    %4555 = vmatprep.subr.mxu0 0.0
    %4556 = vmatpush1.msra.mxu0 0.0
    %4557 = vmatprep.subr.mxu0 0.0
    %4558 = vmatpush1.msra.mxu0 0.0
    %4559 = vmatprep.subr.mxu0 0.0
    %4560 = vmatpush1.msra.mxu0 0.0
    %4561 = vmatprep.subr.mxu0 0.0
    %4562 = vmatpush1.msra.mxu0 0.0
    %4563 = vmatprep.subr.mxu0 0.0
    %4564 = vmatpush1.msra.mxu0 0.0
    %4565 = vmatprep.subr.mxu0 0.0
    %4566 = vmatpush1.msra.mxu0 0.0
    %4567 = vmatprep.subr.mxu0 0.0
    %4568 = vmatpush1.msra.mxu0 0.0
    %4569 = vmatprep.subr.mxu0 0.0
    %4570 = vmatpush1.msra.mxu0 0.0
    %4571 = vmatprep.subr.mxu0 0.0
    %4572 = vmatpush1.msra.mxu0 0.0
    %4573 = vmatprep.subr.mxu0 0.0
    %4574 = vmatpush1.msra.mxu0 0.0
    %4575 = vmatprep.subr.mxu0 0.0
    %4576 = vmatpush1.msra.mxu0 0.0
    %4577 = vmatprep.subr.mxu0 0.0
    %4578 = vmatpush1.msra.mxu0 0.0
    %4579 = vmatprep.subr.mxu0 0.0
    %4580 = vmatpush1.msra.mxu0 0.0
    %4581 = vmatprep.subr.mxu0 0.0
    %4582 = vmatpush1.msra.mxu0 0.0
    %4583 = vmatprep.subr.mxu0 0.0
    %4584 = vmatpush1.msra.mxu0 0.0
    %4585 = vmatprep.subr.mxu0 0.0
    %4586 = vmatpush1.msra.mxu0 0.0
    %4587 = vmatprep.mubr.f32.mxu0 0.0
    %4588 = vmatmul.mubr.f32.gmra.mrb[0].mxu0 %v1623
    %v4589 = vpop.f32.mrb[0].mxu0
    %v4590 = vadd.f32 0.0, %v4589
    %v4591 = vpop.f32.mrb[0].mxu0
    %4592 = vmatprep.mubr.f32.mxu0 0.0
    %4593 = vmatmul.mubr.f32.gmra.mrb[0].mxu0 %v1626
    %v4594 = vpop.f32.mrb[0].mxu0
    %v4595 = vadd.f32 0.0, %v4594
    %v4596 = vpop.f32.mrb[0].mxu0
    %4597 = vmatprep.mubr.f32.mxu0 0.0
    %4598 = vmatmul.mubr.f32.gmra.mrb[0].mxu0 %v1629
    %v4599 = vpop.f32.mrb[0].mxu0
    %v4600 = vadd.f32 0.0, %v4599
    %v4601 = vpop.f32.mrb[0].mxu0
    %4602 = vmatprep.mubr.f32.mxu0 0.0
    %4603 = vmatmul.mubr.f32.gmra.mrb[0].mxu0 %v1632
    %v4604 = vpop.f32.mrb[0].mxu0
    %v4605 = vadd.f32 0.0, %v4604
    %v4606 = vpop.f32.mrb[0].mxu0
    %4607 = vmatprep.mubr.f32.mxu0 0.0
    %4608 = vmatmul.mubr.f32.gmra.mrb[0].mxu0 %v1635
    %v4609 = vpop.f32.mrb[0].mxu0
    %v4610 = vadd.f32 0.0, %v4609
    %v4611 = vpop.f32.mrb[0].mxu0
    %4612 = vmatprep.mubr.f32.mxu0 0.0
    %4613 = vmatmul.mubr.f32.gmra.mrb[0].mxu0 %v1638
    %v4614 = vpop.f32.mrb[0].mxu0
    %v4615 = vadd.f32 0.0, %v4614
    %v4616 = vpop.f32.mrb[0].mxu0
    %4617 = vmatprep.mubr.f32.mxu0 0.0
    %4618 = vmatmul.mubr.f32.gmra.mrb[0].mxu0 %v1641
    %v4619 = vpop.f32.mrb[0].mxu0
    %v4620 = vadd.f32 0.0, %v4619
    %v4621 = vpop.f32.mrb[0].mxu0
    %4622 = vmatprep.mubr.f32.mxu0 0.0
    %4623 = vmatmul.mubr.f32.gmra.mrb[0].mxu0 %v1644
    %v4624 = vpop.f32.mrb[0].mxu0
    %v4625 = vadd.f32 0.0, %v4624
    %v4626 = vpop.f32.mrb[0].mxu0
    %4627 = vmatprep.mubr.f32.mxu0 0.0
    %4628 = vmatmul.mubr.f32.gmra.mrb[0].mxu0 %v1647
    %v4629 = vpop.f32.mrb[0].mxu0
    %v4630 = vadd.f32 0.0, %v4629
    %v4631 = vpop.f32.mrb[0].mxu0
    %4632 = vmatprep.mubr.f32.mxu0 0.0
    %4633 = vmatmul.mubr.f32.gmra.mrb[0].mxu0 %v1650
    %v4634 = vpop.f32.mrb[0].mxu0
    %v4635 = vadd.f32 0.0, %v4634
    %v4636 = vpop.f32.mrb[0].mxu0
    %4637 = vmatprep.mubr.f32.mxu0 0.0
    %4638 = vmatmul.mubr.f32.gmra.mrb[0].mxu0 %v1653
    %v4639 = vpop.f32.mrb[0].mxu0
    %v4640 = vadd.f32 0.0, %v4639
    %v4641 = vpop.f32.mrb[0].mxu0
    %4642 = vmatprep.mubr.f32.mxu0 0.0
    %4643 = vmatmul.mubr.f32.gmra.mrb[0].mxu0 %v1656
    %v4644 = vpop.f32.mrb[0].mxu0
    %v4645 = vadd.f32 0.0, %v4644
    %v4646 = vpop.f32.mrb[0].mxu0
    %4647 = vdwg.mxu0
    %s4648 = scalar_lea.vmem %s17, 32
    %v4649 = vld [vmem:[%s4648] sm:$0xff]
    %v4650 = vld [vmem:[%s4648 + $0x8] sm:$0xff]
    %v4651 = vld [vmem:[%s4648 + $0x10] sm:$0xff]
    %v4652 = vld [vmem:[%s4648 + $0x18] sm:$0xff]
    %4653 = vmatprep.subr.mxu0 0.0
    %4654 = vmatpush1.msra.mxu0 %v4649
    %4655 = vmatprep.subr.mxu0 0.0
    %4656 = vmatpush1.msra.mxu0 %v4650
    %4657 = vmatprep.subr.mxu0 0.0
    %4658 = vmatpush1.msra.mxu0 %v4651
    %4659 = vmatprep.subr.mxu0 0.0
    %4660 = vmatpush1.msra.mxu0 %v4652
    %4661 = vmatprep.subr.mxu0 0.0
    %4662 = vmatpush1.msra.mxu0 0.0
    %4663 = vmatprep.subr.mxu0 0.0
    %4664 = vmatpush1.msra.mxu0 0.0
    %4665 = vmatprep.subr.mxu0 0.0
    %4666 = vmatpush1.msra.mxu0 0.0
    %4667 = vmatprep.subr.mxu0 0.0
    %4668 = vmatpush1.msra.mxu0 0.0
    %4669 = vmatprep.subr.mxu0 0.0
    %4670 = vmatpush1.msra.mxu0 0.0
    %4671 = vmatprep.subr.mxu0 0.0
    %4672 = vmatpush1.msra.mxu0 0.0
    %4673 = vmatprep.subr.mxu0 0.0
    %4674 = vmatpush1.msra.mxu0 0.0
    %4675 = vmatprep.subr.mxu0 0.0
    %4676 = vmatpush1.msra.mxu0 0.0
    %4677 = vmatprep.subr.mxu0 0.0
    %4678 = vmatpush1.msra.mxu0 0.0
    %4679 = vmatprep.subr.mxu0 0.0
    %4680 = vmatpush1.msra.mxu0 0.0
    %4681 = vmatprep.subr.mxu0 0.0
    %4682 = vmatpush1.msra.mxu0 0.0
    %4683 = vmatprep.subr.mxu0 0.0
    %4684 = vmatpush1.msra.mxu0 0.0
    %4685 = vmatprep.subr.mxu0 0.0
    %4686 = vmatpush1.msra.mxu0 0.0
    %4687 = vmatprep.subr.mxu0 0.0
    %4688 = vmatpush1.msra.mxu0 0.0
    %4689 = vmatprep.subr.mxu0 0.0
    %4690 = vmatpush1.msra.mxu0 0.0
    %4691 = vmatprep.subr.mxu0 0.0
    %4692 = vmatpush1.msra.mxu0 0.0
    %4693 = vmatprep.subr.mxu0 0.0
    %4694 = vmatpush1.msra.mxu0 0.0
    %4695 = vmatprep.subr.mxu0 0.0
    %4696 = vmatpush1.msra.mxu0 0.0
    %4697 = vmatprep.subr.mxu0 0.0
    %4698 = vmatpush1.msra.mxu0 0.0
    %4699 = vmatprep.subr.mxu0 0.0
    %4700 = vmatpush1.msra.mxu0 0.0
    %4701 = vmatprep.subr.mxu0 0.0
    %4702 = vmatpush1.msra.mxu0 0.0
    %4703 = vmatprep.subr.mxu0 0.0
    %4704 = vmatpush1.msra.mxu0 0.0
    %4705 = vmatprep.subr.mxu0 0.0
    %4706 = vmatpush1.msra.mxu0 0.0
    %4707 = vmatprep.subr.mxu0 0.0
    %4708 = vmatpush1.msra.mxu0 0.0
    %4709 = vmatprep.subr.mxu0 0.0
    %4710 = vmatpush1.msra.mxu0 0.0
    %4711 = vmatprep.subr.mxu0 0.0
    %4712 = vmatpush1.msra.mxu0 0.0
    %4713 = vmatprep.subr.mxu0 0.0
    %4714 = vmatpush1.msra.mxu0 0.0
    %4715 = vmatprep.subr.mxu0 0.0
    %4716 = vmatpush1.msra.mxu0 0.0
    %4717 = vmatprep.mubr.f32.mxu0 0.0
    %4718 = vmatmul.mubr.f32.gmra.mrb[0].mxu0 %v1623
    %v4719 = vpop.f32.mrb[0].mxu0
    %v4720 = vadd.f32 0.0, %v4719
    %v4721 = vpop.f32.mrb[0].mxu0
    %4722 = vmatprep.mubr.f32.mxu0 0.0
    %4723 = vmatmul.mubr.f32.gmra.mrb[0].mxu0 %v1626
    %v4724 = vpop.f32.mrb[0].mxu0
    %v4725 = vadd.f32 0.0, %v4724
    %v4726 = vpop.f32.mrb[0].mxu0
    %4727 = vmatprep.mubr.f32.mxu0 0.0
    %4728 = vmatmul.mubr.f32.gmra.mrb[0].mxu0 %v1629
    %v4729 = vpop.f32.mrb[0].mxu0
    %v4730 = vadd.f32 0.0, %v4729
    %v4731 = vpop.f32.mrb[0].mxu0
    %4732 = vmatprep.mubr.f32.mxu0 0.0
    %4733 = vmatmul.mubr.f32.gmra.mrb[0].mxu0 %v1632
    %v4734 = vpop.f32.mrb[0].mxu0
    %v4735 = vadd.f32 0.0, %v4734
    %v4736 = vpop.f32.mrb[0].mxu0
    %4737 = vmatprep.mubr.f32.mxu0 0.0
    %4738 = vmatmul.mubr.f32.gmra.mrb[0].mxu0 %v1635
    %v4739 = vpop.f32.mrb[0].mxu0
    %v4740 = vadd.f32 0.0, %v4739
    %v4741 = vpop.f32.mrb[0].mxu0
    %4742 = vmatprep.mubr.f32.mxu0 0.0
    %4743 = vmatmul.mubr.f32.gmra.mrb[0].mxu0 %v1638
    %v4744 = vpop.f32.mrb[0].mxu0
    %v4745 = vadd.f32 0.0, %v4744
    %v4746 = vpop.f32.mrb[0].mxu0
    %4747 = vmatprep.mubr.f32.mxu0 0.0
    %4748 = vmatmul.mubr.f32.gmra.mrb[0].mxu0 %v1641
    %v4749 = vpop.f32.mrb[0].mxu0
    %v4750 = vadd.f32 0.0, %v4749
    %v4751 = vpop.f32.mrb[0].mxu0
    %4752 = vmatprep.mubr.f32.mxu0 0.0
    %4753 = vmatmul.mubr.f32.gmra.mrb[0].mxu0 %v1644
    %v4754 = vpop.f32.mrb[0].mxu0
    %v4755 = vadd.f32 0.0, %v4754
    %v4756 = vpop.f32.mrb[0].mxu0
    %4757 = vmatprep.mubr.f32.mxu0 0.0
    %4758 = vmatmul.mubr.f32.gmra.mrb[0].mxu0 %v1647
    %v4759 = vpop.f32.mrb[0].mxu0
    %v4760 = vadd.f32 0.0, %v4759
    %v4761 = vpop.f32.mrb[0].mxu0
    %4762 = vmatprep.mubr.f32.mxu0 0.0
    %4763 = vmatmul.mubr.f32.gmra.mrb[0].mxu0 %v1650
    %v4764 = vpop.f32.mrb[0].mxu0
    %v4765 = vadd.f32 0.0, %v4764
    %v4766 = vpop.f32.mrb[0].mxu0
    %4767 = vmatprep.mubr.f32.mxu0 0.0
    %4768 = vmatmul.mubr.f32.gmra.mrb[0].mxu0 %v1653
    %v4769 = vpop.f32.mrb[0].mxu0
    %v4770 = vadd.f32 0.0, %v4769
    %v4771 = vpop.f32.mrb[0].mxu0
    %4772 = vmatprep.mubr.f32.mxu0 0.0
    %4773 = vmatmul.mubr.f32.gmra.mrb[0].mxu0 %v1656
    %v4774 = vpop.f32.mrb[0].mxu0
    %v4775 = vadd.f32 0.0, %v4774
    %v4776 = vpop.f32.mrb[0].mxu0
    %4777 = vdwg.mxu0
    %s4778 = scalar_lea.vmem %s17, 64
    %v4779 = vld [vmem:[%s4778] sm:$0xff]
    %v4780 = vld [vmem:[%s4778 + $0x8] sm:$0xff]
    %v4781 = vld [vmem:[%s4778 + $0x10] sm:$0xff]
    %v4782 = vld [vmem:[%s4778 + $0x18] sm:$0xff]
    %4783 = vmatprep.subr.mxu0 0.0
    %4784 = vmatpush1.msra.mxu0 %v4779
    %4785 = vmatprep.subr.mxu0 0.0
    %4786 = vmatpush1.msra.mxu0 %v4780
    %4787 = vmatprep.subr.mxu0 0.0
    %4788 = vmatpush1.msra.mxu0 %v4781
    %4789 = vmatprep.subr.mxu0 0.0
    %4790 = vmatpush1.msra.mxu0 %v4782
    %4791 = vmatprep.subr.mxu0 0.0
    %4792 = vmatpush1.msra.mxu0 0.0
    %4793 = vmatprep.subr.mxu0 0.0
    %4794 = vmatpush1.msra.mxu0 0.0
    %4795 = vmatprep.subr.mxu0 0.0
    %4796 = vmatpush1.msra.mxu0 0.0
    %4797 = vmatprep.subr.mxu0 0.0
    %4798 = vmatpush1.msra.mxu0 0.0
    %4799 = vmatprep.subr.mxu0 0.0
    %4800 = vmatpush1.msra.mxu0 0.0
    %4801 = vmatprep.subr.mxu0 0.0
    %4802 = vmatpush1.msra.mxu0 0.0
    %4803 = vmatprep.subr.mxu0 0.0
    %4804 = vmatpush1.msra.mxu0 0.0
    %4805 = vmatprep.subr.mxu0 0.0
    %4806 = vmatpush1.msra.mxu0 0.0
    %4807 = vmatprep.subr.mxu0 0.0
    %4808 = vmatpush1.msra.mxu0 0.0
    %4809 = vmatprep.subr.mxu0 0.0
    %4810 = vmatpush1.msra.mxu0 0.0
    %4811 = vmatprep.subr.mxu0 0.0
    %4812 = vmatpush1.msra.mxu0 0.0
    %4813 = vmatprep.subr.mxu0 0.0
    %4814 = vmatpush1.msra.mxu0 0.0
    %4815 = vmatprep.subr.mxu0 0.0
    %4816 = vmatpush1.msra.mxu0 0.0
    %4817 = vmatprep.subr.mxu0 0.0
    %4818 = vmatpush1.msra.mxu0 0.0
    %4819 = vmatprep.subr.mxu0 0.0
    %4820 = vmatpush1.msra.mxu0 0.0
    %4821 = vmatprep.subr.mxu0 0.0
    %4822 = vmatpush1.msra.mxu0 0.0
    %4823 = vmatprep.subr.mxu0 0.0
    %4824 = vmatpush1.msra.mxu0 0.0
    %4825 = vmatprep.subr.mxu0 0.0
    %4826 = vmatpush1.msra.mxu0 0.0
    %4827 = vmatprep.subr.mxu0 0.0
    %4828 = vmatpush1.msra.mxu0 0.0
    %4829 = vmatprep.subr.mxu0 0.0
    %4830 = vmatpush1.msra.mxu0 0.0
    %4831 = vmatprep.subr.mxu0 0.0
    %4832 = vmatpush1.msra.mxu0 0.0
    %4833 = vmatprep.subr.mxu0 0.0
    %4834 = vmatpush1.msra.mxu0 0.0
    %4835 = vmatprep.subr.mxu0 0.0
    %4836 = vmatpush1.msra.mxu0 0.0
    %4837 = vmatprep.subr.mxu0 0.0
    %4838 = vmatpush1.msra.mxu0 0.0
    %4839 = vmatprep.subr.mxu0 0.0
    %4840 = vmatpush1.msra.mxu0 0.0
    %4841 = vmatprep.subr.mxu0 0.0
    %4842 = vmatpush1.msra.mxu0 0.0
    %4843 = vmatprep.subr.mxu0 0.0
    %4844 = vmatpush1.msra.mxu0 0.0
    %4845 = vmatprep.subr.mxu0 0.0
    %4846 = vmatpush1.msra.mxu0 0.0
    %4847 = vmatprep.mubr.f32.mxu0 0.0
    %4848 = vmatmul.mubr.f32.gmra.mrb[0].mxu0 %v1623
    %v4849 = vpop.f32.mrb[0].mxu0
    %v4850 = vadd.f32 0.0, %v4849
    %v4851 = vpop.f32.mrb[0].mxu0
    %4852 = vmatprep.mubr.f32.mxu0 0.0
    %4853 = vmatmul.mubr.f32.gmra.mrb[0].mxu0 %v1626
    %v4854 = vpop.f32.mrb[0].mxu0
    %v4855 = vadd.f32 0.0, %v4854
    %v4856 = vpop.f32.mrb[0].mxu0
    %4857 = vmatprep.mubr.f32.mxu0 0.0
    %4858 = vmatmul.mubr.f32.gmra.mrb[0].mxu0 %v1629
    %v4859 = vpop.f32.mrb[0].mxu0
    %v4860 = vadd.f32 0.0, %v4859
    %v4861 = vpop.f32.mrb[0].mxu0
    %4862 = vmatprep.mubr.f32.mxu0 0.0
    %4863 = vmatmul.mubr.f32.gmra.mrb[0].mxu0 %v1632
    %v4864 = vpop.f32.mrb[0].mxu0
    %v4865 = vadd.f32 0.0, %v4864
    %v4866 = vpop.f32.mrb[0].mxu0
    %4867 = vmatprep.mubr.f32.mxu0 0.0
    %4868 = vmatmul.mubr.f32.gmra.mrb[0].mxu0 %v1635
    %v4869 = vpop.f32.mrb[0].mxu0
    %v4870 = vadd.f32 0.0, %v4869
    %v4871 = vpop.f32.mrb[0].mxu0
    %4872 = vmatprep.mubr.f32.mxu0 0.0
    %4873 = vmatmul.mubr.f32.gmra.mrb[0].mxu0 %v1638
    %v4874 = vpop.f32.mrb[0].mxu0
    %v4875 = vadd.f32 0.0, %v4874
    %v4876 = vpop.f32.mrb[0].mxu0
    %4877 = vmatprep.mubr.f32.mxu0 0.0
    %4878 = vmatmul.mubr.f32.gmra.mrb[0].mxu0 %v1641
    %v4879 = vpop.f32.mrb[0].mxu0
    %v4880 = vadd.f32 0.0, %v4879
    %v4881 = vpop.f32.mrb[0].mxu0
    %4882 = vmatprep.mubr.f32.mxu0 0.0
    %4883 = vmatmul.mubr.f32.gmra.mrb[0].mxu0 %v1644
    %v4884 = vpop.f32.mrb[0].mxu0
    %v4885 = vadd.f32 0.0, %v4884
    %v4886 = vpop.f32.mrb[0].mxu0
    %4887 = vmatprep.mubr.f32.mxu0 0.0
    %4888 = vmatmul.mubr.f32.gmra.mrb[0].mxu0 %v1647
    %v4889 = vpop.f32.mrb[0].mxu0
    %v4890 = vadd.f32 0.0, %v4889
    %v4891 = vpop.f32.mrb[0].mxu0
    %4892 = vmatprep.mubr.f32.mxu0 0.0
    %4893 = vmatmul.mubr.f32.gmra.mrb[0].mxu0 %v1650
    %v4894 = vpop.f32.mrb[0].mxu0
    %v4895 = vadd.f32 0.0, %v4894
    %v4896 = vpop.f32.mrb[0].mxu0
    %4897 = vmatprep.mubr.f32.mxu0 0.0
    %4898 = vmatmul.mubr.f32.gmra.mrb[0].mxu0 %v1653
    %v4899 = vpop.f32.mrb[0].mxu0
    %v4900 = vadd.f32 0.0, %v4899
    %v4901 = vpop.f32.mrb[0].mxu0
    %4902 = vmatprep.mubr.f32.mxu0 0.0
    %4903 = vmatmul.mubr.f32.gmra.mrb[0].mxu0 %v1656
    %v4904 = vpop.f32.mrb[0].mxu0
    %v4905 = vadd.f32 0.0, %v4904
    %v4906 = vpop.f32.mrb[0].mxu0
    %4907 = vdwg.mxu0
    %s4908 = scalar_lea.vmem %s17, 96
    %v4909 = vld [vmem:[%s4908] sm:$0xff]
    %v4910 = vld [vmem:[%s4908 + $0x8] sm:$0xff]
    %v4911 = vld [vmem:[%s4908 + $0x10] sm:$0xff]
    %v4912 = vld [vmem:[%s4908 + $0x18] sm:$0xff]
    %4913 = vmatprep.subr.mxu0 0.0
    %4914 = vmatpush1.msra.mxu0 %v4909
    %4915 = vmatprep.subr.mxu0 0.0
    %4916 = vmatpush1.msra.mxu0 %v4910
    %4917 = vmatprep.subr.mxu0 0.0
    %4918 = vmatpush1.msra.mxu0 %v4911
    %4919 = vmatprep.subr.mxu0 0.0
    %4920 = vmatpush1.msra.mxu0 %v4912
    %4921 = vmatprep.subr.mxu0 0.0
    %4922 = vmatpush1.msra.mxu0 0.0
    %4923 = vmatprep.subr.mxu0 0.0
    %4924 = vmatpush1.msra.mxu0 0.0
    %4925 = vmatprep.subr.mxu0 0.0
    %4926 = vmatpush1.msra.mxu0 0.0
    %4927 = vmatprep.subr.mxu0 0.0
    %4928 = vmatpush1.msra.mxu0 0.0
    %4929 = vmatprep.subr.mxu0 0.0
    %4930 = vmatpush1.msra.mxu0 0.0
    %4931 = vmatprep.subr.mxu0 0.0
    %4932 = vmatpush1.msra.mxu0 0.0
    %4933 = vmatprep.subr.mxu0 0.0
    %4934 = vmatpush1.msra.mxu0 0.0
    %4935 = vmatprep.subr.mxu0 0.0
    %4936 = vmatpush1.msra.mxu0 0.0
    %4937 = vmatprep.subr.mxu0 0.0
    %4938 = vmatpush1.msra.mxu0 0.0
    %4939 = vmatprep.subr.mxu0 0.0
    %4940 = vmatpush1.msra.mxu0 0.0
    %4941 = vmatprep.subr.mxu0 0.0
    %4942 = vmatpush1.msra.mxu0 0.0
    %4943 = vmatprep.subr.mxu0 0.0
    %4944 = vmatpush1.msra.mxu0 0.0
    %4945 = vmatprep.subr.mxu0 0.0
    %4946 = vmatpush1.msra.mxu0 0.0
    %4947 = vmatprep.subr.mxu0 0.0
    %4948 = vmatpush1.msra.mxu0 0.0
    %4949 = vmatprep.subr.mxu0 0.0
    %4950 = vmatpush1.msra.mxu0 0.0
    %4951 = vmatprep.subr.mxu0 0.0
    %4952 = vmatpush1.msra.mxu0 0.0
    %4953 = vmatprep.subr.mxu0 0.0
    %4954 = vmatpush1.msra.mxu0 0.0
    %4955 = vmatprep.subr.mxu0 0.0
    %4956 = vmatpush1.msra.mxu0 0.0
    %4957 = vmatprep.subr.mxu0 0.0
    %4958 = vmatpush1.msra.mxu0 0.0
    %4959 = vmatprep.subr.mxu0 0.0
    %4960 = vmatpush1.msra.mxu0 0.0
    %4961 = vmatprep.subr.mxu0 0.0
    %4962 = vmatpush1.msra.mxu0 0.0
    %4963 = vmatprep.subr.mxu0 0.0
    %4964 = vmatpush1.msra.mxu0 0.0
    %4965 = vmatprep.subr.mxu0 0.0
    %4966 = vmatpush1.msra.mxu0 0.0
    %4967 = vmatprep.subr.mxu0 0.0
    %4968 = vmatpush1.msra.mxu0 0.0
    %4969 = vmatprep.subr.mxu0 0.0
    %4970 = vmatpush1.msra.mxu0 0.0
    %4971 = vmatprep.subr.mxu0 0.0
    %4972 = vmatpush1.msra.mxu0 0.0
    %4973 = vmatprep.subr.mxu0 0.0
    %4974 = vmatpush1.msra.mxu0 0.0
    %4975 = vmatprep.subr.mxu0 0.0
    %4976 = vmatpush1.msra.mxu0 0.0
    %4977 = vmatprep.mubr.f32.mxu0 0.0
    %4978 = vmatmul.mubr.f32.gmra.mrb[0].mxu0 %v1623
    %v4979 = vpop.f32.mrb[0].mxu0
    %v4980 = vadd.f32 0.0, %v4979
    %v4981 = vpop.f32.mrb[0].mxu0
    %4982 = vmatprep.mubr.f32.mxu0 0.0
    %4983 = vmatmul.mubr.f32.gmra.mrb[0].mxu0 %v1626
    %v4984 = vpop.f32.mrb[0].mxu0
    %v4985 = vadd.f32 0.0, %v4984
    %v4986 = vpop.f32.mrb[0].mxu0
    %4987 = vmatprep.mubr.f32.mxu0 0.0
    %4988 = vmatmul.mubr.f32.gmra.mrb[0].mxu0 %v1629
    %v4989 = vpop.f32.mrb[0].mxu0
    %v4990 = vadd.f32 0.0, %v4989
    %v4991 = vpop.f32.mrb[0].mxu0
    %4992 = vmatprep.mubr.f32.mxu0 0.0
    %4993 = vmatmul.mubr.f32.gmra.mrb[0].mxu0 %v1632
    %v4994 = vpop.f32.mrb[0].mxu0
    %v4995 = vadd.f32 0.0, %v4994
    %v4996 = vpop.f32.mrb[0].mxu0
    %4997 = vmatprep.mubr.f32.mxu0 0.0
    %4998 = vmatmul.mubr.f32.gmra.mrb[0].mxu0 %v1635
    %v4999 = vpop.f32.mrb[0].mxu0
    %v5000 = vadd.f32 0.0, %v4999
    %v5001 = vpop.f32.mrb[0].mxu0
    %5002 = vmatprep.mubr.f32.mxu0 0.0
    %5003 = vmatmul.mubr.f32.gmra.mrb[0].mxu0 %v1638
    %v5004 = vpop.f32.mrb[0].mxu0
    %v5005 = vadd.f32 0.0, %v5004
    %v5006 = vpop.f32.mrb[0].mxu0
    %5007 = vmatprep.mubr.f32.mxu0 0.0
    %5008 = vmatmul.mubr.f32.gmra.mrb[0].mxu0 %v1641
    %v5009 = vpop.f32.mrb[0].mxu0
    %v5010 = vadd.f32 0.0, %v5009
    %v5011 = vpop.f32.mrb[0].mxu0
    %5012 = vmatprep.mubr.f32.mxu0 0.0
    %5013 = vmatmul.mubr.f32.gmra.mrb[0].mxu0 %v1644
    %v5014 = vpop.f32.mrb[0].mxu0
    %v5015 = vadd.f32 0.0, %v5014
    %v5016 = vpop.f32.mrb[0].mxu0
    %5017 = vmatprep.mubr.f32.mxu0 0.0
    %5018 = vmatmul.mubr.f32.gmra.mrb[0].mxu0 %v1647
    %v5019 = vpop.f32.mrb[0].mxu0
    %v5020 = vadd.f32 0.0, %v5019
    %v5021 = vpop.f32.mrb[0].mxu0
    %5022 = vmatprep.mubr.f32.mxu0 0.0
    %5023 = vmatmul.mubr.f32.gmra.mrb[0].mxu0 %v1650
    %v5024 = vpop.f32.mrb[0].mxu0
    %v5025 = vadd.f32 0.0, %v5024
    %v5026 = vpop.f32.mrb[0].mxu0
    %5027 = vmatprep.mubr.f32.mxu0 0.0
    %5028 = vmatmul.mubr.f32.gmra.mrb[0].mxu0 %v1653
    %v5029 = vpop.f32.mrb[0].mxu0
    %v5030 = vadd.f32 0.0, %v5029
    %v5031 = vpop.f32.mrb[0].mxu0
    %5032 = vmatprep.mubr.f32.mxu0 0.0
    %5033 = vmatmul.mubr.f32.gmra.mrb[0].mxu0 %v1656
    %v5034 = vpop.f32.mrb[0].mxu0
    %v5035 = vadd.f32 0.0, %v5034
    %v5036 = vpop.f32.mrb[0].mxu0
    %5037 = vdwg.mxu0
    %v5038 = vld [vmem:[%s16] sm:$0xff]
    %v5039 = vld [vmem:[%s16 + $0x8] sm:$0xff]
    %v5040 = vld [vmem:[%s16 + $0x10] sm:$0xff]
    %v5041 = vld [vmem:[%s16 + $0x18] sm:$0xff]
    %v5042 = vld [vmem:[%s16 + $0x20] sm:$0xff]
    %v5043 = vld [vmem:[%s16 + $0x28] sm:$0xff]
    %v5044 = vld [vmem:[%s16 + $0x30] sm:$0xff]
    %v5045 = vld [vmem:[%s16 + $0x38] sm:$0xff]
    %v5046 = vld [vmem:[%s16 + $0x40] sm:$0xff]
    %v5047 = vld [vmem:[%s16 + $0x48] sm:$0xff]
    %v5048 = vld [vmem:[%s16 + $0x50] sm:$0xff]
    %v5049 = vld [vmem:[%s16 + $0x58] sm:$0xff]
    %v5050 = vld [vmem:[%s16 + $0x60] sm:$0xff]
    %v5051 = vld [vmem:[%s16 + $0x68] sm:$0xff]
    %v5052 = vld [vmem:[%s16 + $0x70] sm:$0xff]
    %v5053 = vld [vmem:[%s16 + $0x78] sm:$0xff]
    %v5054 = vld [vmem:[%s16 + $0x80] sm:$0xff]
    %v5055 = vld [vmem:[%s16 + $0x88] sm:$0xff]
    %v5056 = vld [vmem:[%s16 + $0x90] sm:$0xff]
    %v5057 = vld [vmem:[%s16 + $0x98] sm:$0xff]
    %v5058 = vld [vmem:[%s16 + $0xa0] sm:$0xff]
    %v5059 = vld [vmem:[%s16 + $0xa8] sm:$0xff]
    %v5060 = vld [vmem:[%s16 + $0xb0] sm:$0xff]
    %v5061 = vld [vmem:[%s16 + $0xb8] sm:$0xff]
    %v5062 = vld [vmem:[%s16 + $0xc0] sm:$0xff]
    %v5063 = vld [vmem:[%s16 + $0xc8] sm:$0xff]
    %v5064 = vld [vmem:[%s16 + $0xd0] sm:$0xff]
    %v5065 = vld [vmem:[%s16 + $0xd8] sm:$0xff]
    %v5066 = vld [vmem:[%s16 + $0xe0] sm:$0xff]
    %v5067 = vld [vmem:[%s16 + $0xe8] sm:$0xff]
    %v5068 = vld [vmem:[%s16 + $0xf0] sm:$0xff]
    %v5069 = vld [vmem:[%s16 + $0xf8] sm:$0xff]
    %v5070 = vld [vmem:[%s16 + $0x100] sm:$0xff]
    %v5071 = vld [vmem:[%s16 + $0x108] sm:$0xff]
    %v5072 = vld [vmem:[%s16 + $0x110] sm:$0xff]
    %v5073 = vld [vmem:[%s16 + $0x118] sm:$0xff]
    %v5074 = vld [vmem:[%s16 + $0x120] sm:$0xff]
    %v5075 = vld [vmem:[%s16 + $0x128] sm:$0xff]
    %v5076 = vld [vmem:[%s16 + $0x130] sm:$0xff]
    %v5077 = vld [vmem:[%s16 + $0x138] sm:$0xff]
    %v5078 = vld [vmem:[%s16 + $0x140] sm:$0xff]
    %v5079 = vld [vmem:[%s16 + $0x148] sm:$0xff]
    %v5080 = vld [vmem:[%s16 + $0x150] sm:$0xff]
    %v5081 = vld [vmem:[%s16 + $0x158] sm:$0xff]
    %v5082 = vld [vmem:[%s16 + $0x160] sm:$0xff]
    %v5083 = vld [vmem:[%s16 + $0x168] sm:$0xff]
    %v5084 = vld [vmem:[%s16 + $0x170] sm:$0xff]
    %v5085 = vld [vmem:[%s16 + $0x178] sm:$0xff]
    %v5086 = vld [vmem:[%s16 + $0x180] sm:$0xff]
    %v5087 = vld [vmem:[%s16 + $0x188] sm:$0xff]
    %v5088 = vld [vmem:[%s16 + $0x190] sm:$0xff]
    %v5089 = vld [vmem:[%s16 + $0x198] sm:$0xff]
    %v5090 = vld [vmem:[%s16 + $0x1a0] sm:$0xff]
    %v5091 = vld [vmem:[%s16 + $0x1a8] sm:$0xff]
    %v5092 = vld [vmem:[%s16 + $0x1b0] sm:$0xff]
    %v5093 = vld [vmem:[%s16 + $0x1b8] sm:$0xff]
    %v5094 = vld [vmem:[%s16 + $0x1c0] sm:$0xff]
    %v5095 = vld [vmem:[%s16 + $0x1c8] sm:$0xff]
    %v5096 = vld [vmem:[%s16 + $0x1d0] sm:$0xff]
    %v5097 = vld [vmem:[%s16 + $0x1d8] sm:$0xff]
    %v5098 = vld [vmem:[%s16 + $0x1e0] sm:$0xff]
    %v5099 = vld [vmem:[%s16 + $0x1e8] sm:$0xff]
    %v5100 = vld [vmem:[%s16 + $0x1f0] sm:$0xff]
    %v5101 = vld [vmem:[%s16 + $0x1f8] sm:$0xff]
    %v5102 = vld [vmem:[%s16 + $0x200] sm:$0xff]
    %v5103 = vld [vmem:[%s16 + $0x208] sm:$0xff]
    %v5104 = vld [vmem:[%s16 + $0x210] sm:$0xff]
    %v5105 = vld [vmem:[%s16 + $0x218] sm:$0xff]
    %v5106 = vld [vmem:[%s16 + $0x220] sm:$0xff]
    %v5107 = vld [vmem:[%s16 + $0x228] sm:$0xff]
    %v5108 = vld [vmem:[%s16 + $0x230] sm:$0xff]
    %v5109 = vld [vmem:[%s16 + $0x238] sm:$0xff]
    %v5110 = vld [vmem:[%s18] sm:$0xff]
    %v5111 = vld [vmem:[%s18 + $0x8] sm:$0xff]
    %v5112 = vld [vmem:[%s18 + $0x10] sm:$0xff]
    %v5113 = vld [vmem:[%s18 + $0x18] sm:$0xff]
    %v5114 = vld [vmem:[%s18 + $0x20] sm:$0xff]
    %v5115 = vld [vmem:[%s18 + $0x28] sm:$0xff]
    %v5116 = vld [vmem:[%s18 + $0x30] sm:$0xff]
    %v5117 = vld [vmem:[%s18 + $0x38] sm:$0xff]
    %v5118 = vld [vmem:[%s18 + $0x40] sm:$0xff]
    %v5119 = vld [vmem:[%s18 + $0x48] sm:$0xff]
    %v5120 = vld [vmem:[%s18 + $0x50] sm:$0xff]
    %v5121 = vld [vmem:[%s18 + $0x58] sm:$0xff]
    %v5122 = vld [vmem:[%s18 + $0x60] sm:$0xff]
    %v5123 = vld [vmem:[%s18 + $0x68] sm:$0xff]
    %v5124 = vld [vmem:[%s18 + $0x70] sm:$0xff]
    %v5125 = vld [vmem:[%s18 + $0x78] sm:$0xff]
    %v5126 = vld [vmem:[%s18 + $0x80] sm:$0xff]
    %v5127 = vld [vmem:[%s18 + $0x88] sm:$0xff]
    %v5128 = vld [vmem:[%s18 + $0x90] sm:$0xff]
    %v5129 = vld [vmem:[%s18 + $0x98] sm:$0xff]
    %v5130 = vld [vmem:[%s18 + $0xa0] sm:$0xff]
    %v5131 = vld [vmem:[%s18 + $0xa8] sm:$0xff]
    %v5132 = vld [vmem:[%s18 + $0xb0] sm:$0xff]
    %v5133 = vld [vmem:[%s18 + $0xb8] sm:$0xff]
    %5135 = vset.pattern.permute.xlu0 0
    %5136 = vperm.xlu0 %5135, %v5110
    %v5137 = vpop.permute.xlu0 %5136
    %5140 = vset.pattern.permute.xlu0 0
    %5141 = vperm.xlu0 %5140, %v5111
    %v5142 = vpop.permute.xlu0 %5141
    %5145 = vset.pattern.permute.xlu0 0
    %5146 = vperm.xlu0 %5145, %v5112
    %v5147 = vpop.permute.xlu0 %5146
    %5150 = vset.pattern.permute.xlu0 0
    %5151 = vperm.xlu0 %5150, %v5113
    %v5152 = vpop.permute.xlu0 %5151
    %5155 = vset.pattern.permute.xlu0 0
    %5156 = vperm.xlu0 %5155, %v5114
    %v5157 = vpop.permute.xlu0 %5156
    %5160 = vset.pattern.permute.xlu0 0
    %5161 = vperm.xlu0 %5160, %v5115
    %v5162 = vpop.permute.xlu0 %5161
    %5165 = vset.pattern.permute.xlu0 0
    %5166 = vperm.xlu0 %5165, %v5116
    %v5167 = vpop.permute.xlu0 %5166
    %5170 = vset.pattern.permute.xlu0 0
    %5171 = vperm.xlu0 %5170, %v5117
    %v5172 = vpop.permute.xlu0 %5171
    %5175 = vset.pattern.permute.xlu0 0
    %5176 = vperm.xlu0 %5175, %v5118
    %v5177 = vpop.permute.xlu0 %5176
    %5180 = vset.pattern.permute.xlu0 0
    %5181 = vperm.xlu0 %5180, %v5119
    %v5182 = vpop.permute.xlu0 %5181
    %5185 = vset.pattern.permute.xlu0 0
    %5186 = vperm.xlu0 %5185, %v5120
    %v5187 = vpop.permute.xlu0 %5186
    %5190 = vset.pattern.permute.xlu0 0
    %5191 = vperm.xlu0 %5190, %v5121
    %v5192 = vpop.permute.xlu0 %5191
    %5195 = vset.pattern.permute.xlu0 0
    %5196 = vperm.xlu0 %5195, %v5122
    %v5197 = vpop.permute.xlu0 %5196
    %5200 = vset.pattern.permute.xlu0 0
    %5201 = vperm.xlu0 %5200, %v5123
    %v5202 = vpop.permute.xlu0 %5201
    %5205 = vset.pattern.permute.xlu0 0
    %5206 = vperm.xlu0 %5205, %v5124
    %v5207 = vpop.permute.xlu0 %5206
    %5210 = vset.pattern.permute.xlu0 0
    %5211 = vperm.xlu0 %5210, %v5125
    %v5212 = vpop.permute.xlu0 %5211
    %5215 = vset.pattern.permute.xlu0 0
    %5216 = vperm.xlu0 %5215, %v5126
    %v5217 = vpop.permute.xlu0 %5216
    %5220 = vset.pattern.permute.xlu0 0
    %5221 = vperm.xlu0 %5220, %v5127
    %v5222 = vpop.permute.xlu0 %5221
    %5225 = vset.pattern.permute.xlu0 0
    %5226 = vperm.xlu0 %5225, %v5128
    %v5227 = vpop.permute.xlu0 %5226
    %5230 = vset.pattern.permute.xlu0 0
    %5231 = vperm.xlu0 %5230, %v5129
    %v5232 = vpop.permute.xlu0 %5231
    %5235 = vset.pattern.permute.xlu0 0
    %5236 = vperm.xlu0 %5235, %v5130
    %v5237 = vpop.permute.xlu0 %5236
    %5240 = vset.pattern.permute.xlu0 0
    %5241 = vperm.xlu0 %5240, %v5131
    %v5242 = vpop.permute.xlu0 %5241
    %5245 = vset.pattern.permute.xlu0 0
    %5246 = vperm.xlu0 %5245, %v5132
    %v5247 = vpop.permute.xlu0 %5246
    %5250 = vset.pattern.permute.xlu0 0
    %5251 = vperm.xlu0 %5250, %v5133
    %v5252 = vpop.permute.xlu0 %5251
    %5254 = vmatprep.subr.mxu0 0.0
    %5255 = vmatpush1.msra.mxu0 %v4590
    %5256 = vmatprep.subr.mxu0 0.0
    %5257 = vmatpush1.msra.mxu0 %v4595
    %5258 = vmatprep.subr.mxu0 0.0
    %5259 = vmatpush1.msra.mxu0 %v4600
    %5260 = vmatprep.subr.mxu0 0.0
    %5261 = vmatpush1.msra.mxu0 %v4605
    %5262 = vmatprep.subr.mxu0 0.0
    %5263 = vmatpush1.msra.mxu0 %v4610
    %5264 = vmatprep.subr.mxu0 0.0
    %5265 = vmatpush1.msra.mxu0 %v4615
    %5266 = vmatprep.subr.mxu0 0.0
    %5267 = vmatpush1.msra.mxu0 %v4620
    %5268 = vmatprep.subr.mxu0 0.0
    %5269 = vmatpush1.msra.mxu0 %v4625
    %5270 = vmatprep.subr.mxu0 0.0
    %5271 = vmatpush1.msra.mxu0 %v4630
    %5272 = vmatprep.subr.mxu0 0.0
    %5273 = vmatpush1.msra.mxu0 %v4635
    %5274 = vmatprep.subr.mxu0 0.0
    %5275 = vmatpush1.msra.mxu0 %v4640
    %5276 = vmatprep.subr.mxu0 0.0
    %5277 = vmatpush1.msra.mxu0 %v4645
    %5278 = vmatprep.subr.mxu0 0.0
    %5279 = vmatpush1.msra.mxu0 %v4720
    %5280 = vmatprep.subr.mxu0 0.0
    %5281 = vmatpush1.msra.mxu0 %v4725
    %5282 = vmatprep.subr.mxu0 0.0
    %5283 = vmatpush1.msra.mxu0 %v4730
    %5284 = vmatprep.subr.mxu0 0.0
    %5285 = vmatpush1.msra.mxu0 %v4735
    %5286 = vmatprep.subr.mxu0 0.0
    %5287 = vmatpush1.msra.mxu0 %v4740
    %5288 = vmatprep.subr.mxu0 0.0
    %5289 = vmatpush1.msra.mxu0 %v4745
    %5290 = vmatprep.subr.mxu0 0.0
    %5291 = vmatpush1.msra.mxu0 %v4750
    %5292 = vmatprep.subr.mxu0 0.0
    %5293 = vmatpush1.msra.mxu0 %v4755
    %5294 = vmatprep.subr.mxu0 0.0
    %5295 = vmatpush1.msra.mxu0 %v4760
    %5296 = vmatprep.subr.mxu0 0.0
    %5297 = vmatpush1.msra.mxu0 %v4765
    %5298 = vmatprep.subr.mxu0 0.0
    %5299 = vmatpush1.msra.mxu0 %v4770
    %5300 = vmatprep.subr.mxu0 0.0
    %5301 = vmatpush1.msra.mxu0 %v4775
    %5302 = vmatprep.subr.mxu0 0.0
    %5303 = vmatpush1.msra.mxu0 %v4850
    %5304 = vmatprep.subr.mxu0 0.0
    %5305 = vmatpush1.msra.mxu0 %v4855
    %5306 = vmatprep.subr.mxu0 0.0
    %5307 = vmatpush1.msra.mxu0 %v4860
    %5308 = vmatprep.subr.mxu0 0.0
    %5309 = vmatpush1.msra.mxu0 %v4865
    %5310 = vmatprep.subr.mxu0 0.0
    %5311 = vmatpush1.msra.mxu0 %v4870
    %5312 = vmatprep.subr.mxu0 0.0
    %5313 = vmatpush1.msra.mxu0 %v4875
    %5314 = vmatprep.subr.mxu0 0.0
    %5315 = vmatpush1.msra.mxu0 %v4880
    %5316 = vmatprep.subr.mxu0 0.0
    %5317 = vmatpush1.msra.mxu0 %v4885
    %5318 = vmatprep.mubr.f32.mxu0 %v5039
    %5319 = vmatmul.mubr.f32.gmra.mrb[0].mxu0 %v5038
    %v5320 = vpop.f32.mrb[0].mxu0
    %v5321 = vadd.f32 %v5137, %v5320
    %v5322 = vpop.f32.mrb[0].mxu0
    %5323 = vmatprep.mubr.f32.mxu0 %v5042
    %5324 = vmatmul.mubr.f32.gmra.mrb[0].mxu0 %v5041
    %v5325 = vpop.f32.mrb[0].mxu0
    %v5326 = vadd.f32 %v5142, %v5325
    %v5327 = vpop.f32.mrb[0].mxu0
    %5328 = vmatprep.mubr.f32.mxu0 %v5045
    %5329 = vmatmul.mubr.f32.gmra.mrb[0].mxu0 %v5044
    %v5330 = vpop.f32.mrb[0].mxu0
    %v5331 = vadd.f32 %v5147, %v5330
    %v5332 = vpop.f32.mrb[0].mxu0
    %5333 = vmatprep.mubr.f32.mxu0 %v5048
    %5334 = vmatmul.mubr.f32.gmra.mrb[0].mxu0 %v5047
    %v5335 = vpop.f32.mrb[0].mxu0
    %v5336 = vadd.f32 %v5152, %v5335
    %v5337 = vpop.f32.mrb[0].mxu0
    %5338 = vmatprep.mubr.f32.mxu0 %v5051
    %5339 = vmatmul.mubr.f32.gmra.mrb[0].mxu0 %v5050
    %v5340 = vpop.f32.mrb[0].mxu0
    %v5341 = vadd.f32 %v5157, %v5340
    %v5342 = vpop.f32.mrb[0].mxu0
    %5343 = vmatprep.mubr.f32.mxu0 %v5054
    %5344 = vmatmul.mubr.f32.gmra.mrb[0].mxu0 %v5053
    %v5345 = vpop.f32.mrb[0].mxu0
    %v5346 = vadd.f32 %v5162, %v5345
    %v5347 = vpop.f32.mrb[0].mxu0
    %5348 = vmatprep.mubr.f32.mxu0 %v5057
    %5349 = vmatmul.mubr.f32.gmra.mrb[0].mxu0 %v5056
    %v5350 = vpop.f32.mrb[0].mxu0
    %v5351 = vadd.f32 %v5167, %v5350
    %v5352 = vpop.f32.mrb[0].mxu0
    %5353 = vmatprep.mubr.f32.mxu0 %v5060
    %5354 = vmatmul.mubr.f32.gmra.mrb[0].mxu0 %v5059
    %v5355 = vpop.f32.mrb[0].mxu0
    %v5356 = vadd.f32 %v5172, %v5355
    %v5357 = vpop.f32.mrb[0].mxu0
    %5358 = vmatprep.mubr.f32.mxu0 %v5063
    %5359 = vmatmul.mubr.f32.gmra.mrb[0].mxu0 %v5062
    %v5360 = vpop.f32.mrb[0].mxu0
    %v5361 = vadd.f32 %v5177, %v5360
    %v5362 = vpop.f32.mrb[0].mxu0
    %5363 = vmatprep.mubr.f32.mxu0 %v5066
    %5364 = vmatmul.mubr.f32.gmra.mrb[0].mxu0 %v5065
    %v5365 = vpop.f32.mrb[0].mxu0
    %v5366 = vadd.f32 %v5182, %v5365
    %v5367 = vpop.f32.mrb[0].mxu0
    %5368 = vmatprep.mubr.f32.mxu0 %v5069
    %5369 = vmatmul.mubr.f32.gmra.mrb[0].mxu0 %v5068
    %v5370 = vpop.f32.mrb[0].mxu0
    %v5371 = vadd.f32 %v5187, %v5370
    %v5372 = vpop.f32.mrb[0].mxu0
    %5373 = vmatprep.mubr.f32.mxu0 %v5072
    %5374 = vmatmul.mubr.f32.gmra.mrb[0].mxu0 %v5071
    %v5375 = vpop.f32.mrb[0].mxu0
    %v5376 = vadd.f32 %v5192, %v5375
    %v5377 = vpop.f32.mrb[0].mxu0
    %5378 = vmatprep.mubr.f32.mxu0 %v5075
    %5379 = vmatmul.mubr.f32.gmra.mrb[0].mxu0 %v5074
    %v5380 = vpop.f32.mrb[0].mxu0
    %v5381 = vadd.f32 %v5197, %v5380
    %v5382 = vpop.f32.mrb[0].mxu0
    %5383 = vmatprep.mubr.f32.mxu0 %v5078
    %5384 = vmatmul.mubr.f32.gmra.mrb[0].mxu0 %v5077
    %v5385 = vpop.f32.mrb[0].mxu0
    %v5386 = vadd.f32 %v5202, %v5385
    %v5387 = vpop.f32.mrb[0].mxu0
    %5388 = vmatprep.mubr.f32.mxu0 %v5081
    %5389 = vmatmul.mubr.f32.gmra.mrb[0].mxu0 %v5080
    %v5390 = vpop.f32.mrb[0].mxu0
    %v5391 = vadd.f32 %v5207, %v5390
    %v5392 = vpop.f32.mrb[0].mxu0
    %5393 = vmatprep.mubr.f32.mxu0 %v5084
    %5394 = vmatmul.mubr.f32.gmra.mrb[0].mxu0 %v5083
    %v5395 = vpop.f32.mrb[0].mxu0
    %v5396 = vadd.f32 %v5212, %v5395
    %v5397 = vpop.f32.mrb[0].mxu0
    %5398 = vmatprep.mubr.f32.mxu0 %v5087
    %5399 = vmatmul.mubr.f32.gmra.mrb[0].mxu0 %v5086
    %v5400 = vpop.f32.mrb[0].mxu0
    %v5401 = vadd.f32 %v5217, %v5400
    %v5402 = vpop.f32.mrb[0].mxu0
    %5403 = vmatprep.mubr.f32.mxu0 %v5090
    %5404 = vmatmul.mubr.f32.gmra.mrb[0].mxu0 %v5089
    %v5405 = vpop.f32.mrb[0].mxu0
    %v5406 = vadd.f32 %v5222, %v5405
    %v5407 = vpop.f32.mrb[0].mxu0
    %5408 = vmatprep.mubr.f32.mxu0 %v5093
    %5409 = vmatmul.mubr.f32.gmra.mrb[0].mxu0 %v5092
    %v5410 = vpop.f32.mrb[0].mxu0
    %v5411 = vadd.f32 %v5227, %v5410
    %v5412 = vpop.f32.mrb[0].mxu0
    %5413 = vmatprep.mubr.f32.mxu0 %v5096
    %5414 = vmatmul.mubr.f32.gmra.mrb[0].mxu0 %v5095
    %v5415 = vpop.f32.mrb[0].mxu0
    %v5416 = vadd.f32 %v5232, %v5415
    %v5417 = vpop.f32.mrb[0].mxu0
    %5418 = vmatprep.mubr.f32.mxu0 %v5099
    %5419 = vmatmul.mubr.f32.gmra.mrb[0].mxu0 %v5098
    %v5420 = vpop.f32.mrb[0].mxu0
    %v5421 = vadd.f32 %v5237, %v5420
    %v5422 = vpop.f32.mrb[0].mxu0
    %5423 = vmatprep.mubr.f32.mxu0 %v5102
    %5424 = vmatmul.mubr.f32.gmra.mrb[0].mxu0 %v5101
    %v5425 = vpop.f32.mrb[0].mxu0
    %v5426 = vadd.f32 %v5242, %v5425
    %v5427 = vpop.f32.mrb[0].mxu0
    %5428 = vmatprep.mubr.f32.mxu0 %v5105
    %5429 = vmatmul.mubr.f32.gmra.mrb[0].mxu0 %v5104
    %v5430 = vpop.f32.mrb[0].mxu0
    %v5431 = vadd.f32 %v5247, %v5430
    %v5432 = vpop.f32.mrb[0].mxu0
    %5433 = vmatprep.mubr.f32.mxu0 %v5108
    %5434 = vmatmul.mubr.f32.gmra.mrb[0].mxu0 %v5107
    %v5435 = vpop.f32.mrb[0].mxu0
    %v5436 = vadd.f32 %v5252, %v5435
    %v5437 = vpop.f32.mrb[0].mxu0
    %5438 = vdwg.mxu0
    %5439 = vmatprep.subr.mxu0 0.0
    %5440 = vmatpush1.msra.mxu0 %v4890
    %5441 = vmatprep.subr.mxu0 0.0
    %5442 = vmatpush1.msra.mxu0 %v4895
    %5443 = vmatprep.subr.mxu0 0.0
    %5444 = vmatpush1.msra.mxu0 %v4900
    %5445 = vmatprep.subr.mxu0 0.0
    %5446 = vmatpush1.msra.mxu0 %v4905
    %5447 = vmatprep.subr.mxu0 0.0
    %5448 = vmatpush1.msra.mxu0 %v4980
    %5449 = vmatprep.subr.mxu0 0.0
    %5450 = vmatpush1.msra.mxu0 %v4985
    %5451 = vmatprep.subr.mxu0 0.0
    %5452 = vmatpush1.msra.mxu0 %v4990
    %5453 = vmatprep.subr.mxu0 0.0
    %5454 = vmatpush1.msra.mxu0 %v4995
    %5455 = vmatprep.subr.mxu0 0.0
    %5456 = vmatpush1.msra.mxu0 %v5000
    %5457 = vmatprep.subr.mxu0 0.0
    %5458 = vmatpush1.msra.mxu0 %v5005
    %5459 = vmatprep.subr.mxu0 0.0
    %5460 = vmatpush1.msra.mxu0 %v5010
    %5461 = vmatprep.subr.mxu0 0.0
    %5462 = vmatpush1.msra.mxu0 %v5015
    %5463 = vmatprep.subr.mxu0 0.0
    %5464 = vmatpush1.msra.mxu0 %v5020
    %5465 = vmatprep.subr.mxu0 0.0
    %5466 = vmatpush1.msra.mxu0 %v5025
    %5467 = vmatprep.subr.mxu0 0.0
    %5468 = vmatpush1.msra.mxu0 %v5030
    %5469 = vmatprep.subr.mxu0 0.0
    %5470 = vmatpush1.msra.mxu0 %v5035
    %5471 = vmatprep.subr.mxu0 0.0
    %5472 = vmatpush1.msra.mxu0 0.0
    %5473 = vmatprep.subr.mxu0 0.0
    %5474 = vmatpush1.msra.mxu0 0.0
    %5475 = vmatprep.subr.mxu0 0.0
    %5476 = vmatpush1.msra.mxu0 0.0
    %5477 = vmatprep.subr.mxu0 0.0
    %5478 = vmatpush1.msra.mxu0 0.0
    %5479 = vmatprep.subr.mxu0 0.0
    %5480 = vmatpush1.msra.mxu0 0.0
    %5481 = vmatprep.subr.mxu0 0.0
    %5482 = vmatpush1.msra.mxu0 0.0
    %5483 = vmatprep.subr.mxu0 0.0
    %5484 = vmatpush1.msra.mxu0 0.0
    %5485 = vmatprep.subr.mxu0 0.0
    %5486 = vmatpush1.msra.mxu0 0.0
    %5487 = vmatprep.subr.mxu0 0.0
    %5488 = vmatpush1.msra.mxu0 0.0
    %5489 = vmatprep.subr.mxu0 0.0
    %5490 = vmatpush1.msra.mxu0 0.0
    %5491 = vmatprep.subr.mxu0 0.0
    %5492 = vmatpush1.msra.mxu0 0.0
    %5493 = vmatprep.subr.mxu0 0.0
    %5494 = vmatpush1.msra.mxu0 0.0
    %5495 = vmatprep.subr.mxu0 0.0
    %5496 = vmatpush1.msra.mxu0 0.0
    %5497 = vmatprep.subr.mxu0 0.0
    %5498 = vmatpush1.msra.mxu0 0.0
    %5499 = vmatprep.subr.mxu0 0.0
    %5500 = vmatpush1.msra.mxu0 0.0
    %5501 = vmatprep.subr.mxu0 0.0
    %5502 = vmatpush1.msra.mxu0 0.0
    %5503 = vmatprep.mubr.f32.mxu0 0.0
    %5504 = vmatmul.mubr.f32.gmra.mrb[0].mxu0 %v5040
    %v5505 = vpop.f32.mrb[0].mxu0
    %v5506 = vadd.f32 %v5321, %v5505
    %v5507 = vpop.f32.mrb[0].mxu0
    %5508 = vmatprep.mubr.f32.mxu0 0.0
    %5509 = vmatmul.mubr.f32.gmra.mrb[0].mxu0 %v5043
    %v5510 = vpop.f32.mrb[0].mxu0
    %v5511 = vadd.f32 %v5326, %v5510
    %v5512 = vpop.f32.mrb[0].mxu0
    %5513 = vmatprep.mubr.f32.mxu0 0.0
    %5514 = vmatmul.mubr.f32.gmra.mrb[0].mxu0 %v5046
    %v5515 = vpop.f32.mrb[0].mxu0
    %v5516 = vadd.f32 %v5331, %v5515
    %v5517 = vpop.f32.mrb[0].mxu0
    %5518 = vmatprep.mubr.f32.mxu0 0.0
    %5519 = vmatmul.mubr.f32.gmra.mrb[0].mxu0 %v5049
    %v5520 = vpop.f32.mrb[0].mxu0
    %v5521 = vadd.f32 %v5336, %v5520
    %v5522 = vpop.f32.mrb[0].mxu0
    %5523 = vmatprep.mubr.f32.mxu0 0.0
    %5524 = vmatmul.mubr.f32.gmra.mrb[0].mxu0 %v5052
    %v5525 = vpop.f32.mrb[0].mxu0
    %v5526 = vadd.f32 %v5341, %v5525
    %v5527 = vpop.f32.mrb[0].mxu0
    %5528 = vmatprep.mubr.f32.mxu0 0.0
    %5529 = vmatmul.mubr.f32.gmra.mrb[0].mxu0 %v5055
    %v5530 = vpop.f32.mrb[0].mxu0
    %v5531 = vadd.f32 %v5346, %v5530
    %v5532 = vpop.f32.mrb[0].mxu0
    %5533 = vmatprep.mubr.f32.mxu0 0.0
    %5534 = vmatmul.mubr.f32.gmra.mrb[0].mxu0 %v5058
    %v5535 = vpop.f32.mrb[0].mxu0
    %v5536 = vadd.f32 %v5351, %v5535
    %v5537 = vpop.f32.mrb[0].mxu0
    %5538 = vmatprep.mubr.f32.mxu0 0.0
    %5539 = vmatmul.mubr.f32.gmra.mrb[0].mxu0 %v5061
    %v5540 = vpop.f32.mrb[0].mxu0
    %v5541 = vadd.f32 %v5356, %v5540
    %v5542 = vpop.f32.mrb[0].mxu0
    %5543 = vmatprep.mubr.f32.mxu0 0.0
    %5544 = vmatmul.mubr.f32.gmra.mrb[0].mxu0 %v5064
    %v5545 = vpop.f32.mrb[0].mxu0
    %v5546 = vadd.f32 %v5361, %v5545
    %v5547 = vpop.f32.mrb[0].mxu0
    %5548 = vmatprep.mubr.f32.mxu0 0.0
    %5549 = vmatmul.mubr.f32.gmra.mrb[0].mxu0 %v5067
    %v5550 = vpop.f32.mrb[0].mxu0
    %v5551 = vadd.f32 %v5366, %v5550
    %v5552 = vpop.f32.mrb[0].mxu0
    %5553 = vmatprep.mubr.f32.mxu0 0.0
    %5554 = vmatmul.mubr.f32.gmra.mrb[0].mxu0 %v5070
    %v5555 = vpop.f32.mrb[0].mxu0
    %v5556 = vadd.f32 %v5371, %v5555
    %v5557 = vpop.f32.mrb[0].mxu0
    %5558 = vmatprep.mubr.f32.mxu0 0.0
    %5559 = vmatmul.mubr.f32.gmra.mrb[0].mxu0 %v5073
    %v5560 = vpop.f32.mrb[0].mxu0
    %v5561 = vadd.f32 %v5376, %v5560
    %v5562 = vpop.f32.mrb[0].mxu0
    %5563 = vmatprep.mubr.f32.mxu0 0.0
    %5564 = vmatmul.mubr.f32.gmra.mrb[0].mxu0 %v5076
    %v5565 = vpop.f32.mrb[0].mxu0
    %v5566 = vadd.f32 %v5381, %v5565
    %v5567 = vpop.f32.mrb[0].mxu0
    %5568 = vmatprep.mubr.f32.mxu0 0.0
    %5569 = vmatmul.mubr.f32.gmra.mrb[0].mxu0 %v5079
    %v5570 = vpop.f32.mrb[0].mxu0
    %v5571 = vadd.f32 %v5386, %v5570
    %v5572 = vpop.f32.mrb[0].mxu0
    %5573 = vmatprep.mubr.f32.mxu0 0.0
    %5574 = vmatmul.mubr.f32.gmra.mrb[0].mxu0 %v5082
    %v5575 = vpop.f32.mrb[0].mxu0
    %v5576 = vadd.f32 %v5391, %v5575
    %v5577 = vpop.f32.mrb[0].mxu0
    %5578 = vmatprep.mubr.f32.mxu0 0.0
    %5579 = vmatmul.mubr.f32.gmra.mrb[0].mxu0 %v5085
    %v5580 = vpop.f32.mrb[0].mxu0
    %v5581 = vadd.f32 %v5396, %v5580
    %v5582 = vpop.f32.mrb[0].mxu0
    %5583 = vmatprep.mubr.f32.mxu0 0.0
    %5584 = vmatmul.mubr.f32.gmra.mrb[0].mxu0 %v5088
    %v5585 = vpop.f32.mrb[0].mxu0
    %v5586 = vadd.f32 %v5401, %v5585
    %v5587 = vpop.f32.mrb[0].mxu0
    %5588 = vmatprep.mubr.f32.mxu0 0.0
    %5589 = vmatmul.mubr.f32.gmra.mrb[0].mxu0 %v5091
    %v5590 = vpop.f32.mrb[0].mxu0
    %v5591 = vadd.f32 %v5406, %v5590
    %v5592 = vpop.f32.mrb[0].mxu0
    %5593 = vmatprep.mubr.f32.mxu0 0.0
    %5594 = vmatmul.mubr.f32.gmra.mrb[0].mxu0 %v5094
    %v5595 = vpop.f32.mrb[0].mxu0
    %v5596 = vadd.f32 %v5411, %v5595
    %v5597 = vpop.f32.mrb[0].mxu0
    %5598 = vmatprep.mubr.f32.mxu0 0.0
    %5599 = vmatmul.mubr.f32.gmra.mrb[0].mxu0 %v5097
    %v5600 = vpop.f32.mrb[0].mxu0
    %v5601 = vadd.f32 %v5416, %v5600
    %v5602 = vpop.f32.mrb[0].mxu0
    %5603 = vmatprep.mubr.f32.mxu0 0.0
    %5604 = vmatmul.mubr.f32.gmra.mrb[0].mxu0 %v5100
    %v5605 = vpop.f32.mrb[0].mxu0
    %v5606 = vadd.f32 %v5421, %v5605
    %v5607 = vpop.f32.mrb[0].mxu0
    %5608 = vmatprep.mubr.f32.mxu0 0.0
    %5609 = vmatmul.mubr.f32.gmra.mrb[0].mxu0 %v5103
    %v5610 = vpop.f32.mrb[0].mxu0
    %v5611 = vadd.f32 %v5426, %v5610
    %v5612 = vpop.f32.mrb[0].mxu0
    %5613 = vmatprep.mubr.f32.mxu0 0.0
    %5614 = vmatmul.mubr.f32.gmra.mrb[0].mxu0 %v5106
    %v5615 = vpop.f32.mrb[0].mxu0
    %v5616 = vadd.f32 %v5431, %v5615
    %v5617 = vpop.f32.mrb[0].mxu0
    %5618 = vmatprep.mubr.f32.mxu0 0.0
    %5619 = vmatmul.mubr.f32.gmra.mrb[0].mxu0 %v5109
    %v5620 = vpop.f32.mrb[0].mxu0
    %v5621 = vadd.f32 %v5436, %v5620
    %v5622 = vpop.f32.mrb[0].mxu0
    %5623 = vdwg.mxu0
    %v5624 = vld [vmem:[%s20] sm:$0xff]
    %v5625 = vld [vmem:[%s20 + $0x8] sm:$0xff]
    %v5627 = vsel %vm2533, %v2930, 0
    %v5630 = vsel %vm2533, %v2931, 0
    %v5633 = vsel %vm2533, %v2932, 0
    %v5636 = vsel %vm2533, %v2933, 0
    %v5639 = vsel %vm2533, %v2934, 0
    %v5642 = vsel %vm2533, %v2935, 0
    %v5645 = vsel %vm2533, %v2936, 0
    %v5648 = vsel %vm2533, %v2937, 0
    %v5651 = vsel %vm2533, %v2938, 0
    %v5654 = vsel %vm2533, %v2939, 0
    %v5657 = vsel %vm2533, %v2940, 0
    %v5660 = vsel %vm2533, %v2941, 0
    %5662 = vmatprep.subr.mxu0 0.0
    %5663 = vmatpush1.msra.mxu0 %v5624
    %5664 = vmatprep.subr.mxu0 0.0
    %5665 = vmatpush1.msra.mxu0 %v5625
    %5666 = vmatprep.subr.mxu0 0.0
    %5667 = vmatpush1.msra.mxu0 0.0
    %5668 = vmatprep.subr.mxu0 0.0
    %5669 = vmatpush1.msra.mxu0 0.0
    %5670 = vmatprep.subr.mxu0 0.0
    %5671 = vmatpush1.msra.mxu0 0.0
    %5672 = vmatprep.subr.mxu0 0.0
    %5673 = vmatpush1.msra.mxu0 0.0
    %5674 = vmatprep.subr.mxu0 0.0
    %5675 = vmatpush1.msra.mxu0 0.0
    %5676 = vmatprep.subr.mxu0 0.0
    %5677 = vmatpush1.msra.mxu0 0.0
    %5678 = vmatprep.subr.mxu0 0.0
    %5679 = vmatpush1.msra.mxu0 0.0
    %5680 = vmatprep.subr.mxu0 0.0
    %5681 = vmatpush1.msra.mxu0 0.0
    %5682 = vmatprep.subr.mxu0 0.0
    %5683 = vmatpush1.msra.mxu0 0.0
    %5684 = vmatprep.subr.mxu0 0.0
    %5685 = vmatpush1.msra.mxu0 0.0
    %5686 = vmatprep.subr.mxu0 0.0
    %5687 = vmatpush1.msra.mxu0 0.0
    %5688 = vmatprep.subr.mxu0 0.0
    %5689 = vmatpush1.msra.mxu0 0.0
    %5690 = vmatprep.subr.mxu0 0.0
    %5691 = vmatpush1.msra.mxu0 0.0
    %5692 = vmatprep.subr.mxu0 0.0
    %5693 = vmatpush1.msra.mxu0 0.0
    %5694 = vmatprep.subr.mxu0 0.0
    %5695 = vmatpush1.msra.mxu0 0.0
    %5696 = vmatprep.subr.mxu0 0.0
    %5697 = vmatpush1.msra.mxu0 0.0
    %5698 = vmatprep.subr.mxu0 0.0
    %5699 = vmatpush1.msra.mxu0 0.0
    %5700 = vmatprep.subr.mxu0 0.0
    %5701 = vmatpush1.msra.mxu0 0.0
    %5702 = vmatprep.subr.mxu0 0.0
    %5703 = vmatpush1.msra.mxu0 0.0
    %5704 = vmatprep.subr.mxu0 0.0
    %5705 = vmatpush1.msra.mxu0 0.0
    %5706 = vmatprep.subr.mxu0 0.0
    %5707 = vmatpush1.msra.mxu0 0.0
    %5708 = vmatprep.subr.mxu0 0.0
    %5709 = vmatpush1.msra.mxu0 0.0
    %5710 = vmatprep.subr.mxu0 0.0
    %5711 = vmatpush1.msra.mxu0 0.0
    %5712 = vmatprep.subr.mxu0 0.0
    %5713 = vmatpush1.msra.mxu0 0.0
    %5714 = vmatprep.subr.mxu0 0.0
    %5715 = vmatpush1.msra.mxu0 0.0
    %5716 = vmatprep.subr.mxu0 0.0
    %5717 = vmatpush1.msra.mxu0 0.0
    %5718 = vmatprep.subr.mxu0 0.0
    %5719 = vmatpush1.msra.mxu0 0.0
    %5720 = vmatprep.subr.mxu0 0.0
    %5721 = vmatpush1.msra.mxu0 0.0
    %5722 = vmatprep.subr.mxu0 0.0
    %5723 = vmatpush1.msra.mxu0 0.0
    %5724 = vmatprep.subr.mxu0 0.0
    %5725 = vmatpush1.msra.mxu0 0.0
    %5726 = vmatprep.mubr.f32.mxu0 0.0
    %5727 = vmatmul.mubr.f32.gmra.mrb[0].mxu0 %v5627
    %v5728 = vpop.f32.mrb[0].mxu0
    %v5729 = vadd.f32 0.0, %v5728
    %v5730 = vpop.f32.mrb[0].mxu0
    %5731 = vmatprep.mubr.f32.mxu0 0.0
    %5732 = vmatmul.mubr.f32.gmra.mrb[0].mxu0 %v5630
    %v5733 = vpop.f32.mrb[0].mxu0
    %v5734 = vadd.f32 0.0, %v5733
    %v5735 = vpop.f32.mrb[0].mxu0
    %5736 = vmatprep.mubr.f32.mxu0 0.0
    %5737 = vmatmul.mubr.f32.gmra.mrb[0].mxu0 %v5633
    %v5738 = vpop.f32.mrb[0].mxu0
    %v5739 = vadd.f32 0.0, %v5738
    %v5740 = vpop.f32.mrb[0].mxu0
    %5741 = vmatprep.mubr.f32.mxu0 0.0
    %5742 = vmatmul.mubr.f32.gmra.mrb[0].mxu0 %v5636
    %v5743 = vpop.f32.mrb[0].mxu0
    %v5744 = vadd.f32 0.0, %v5743
    %v5745 = vpop.f32.mrb[0].mxu0
    %5746 = vmatprep.mubr.f32.mxu0 0.0
    %5747 = vmatmul.mubr.f32.gmra.mrb[0].mxu0 %v5639
    %v5748 = vpop.f32.mrb[0].mxu0
    %v5749 = vadd.f32 0.0, %v5748
    %v5750 = vpop.f32.mrb[0].mxu0
    %5751 = vmatprep.mubr.f32.mxu0 0.0
    %5752 = vmatmul.mubr.f32.gmra.mrb[0].mxu0 %v5642
    %v5753 = vpop.f32.mrb[0].mxu0
    %v5754 = vadd.f32 0.0, %v5753
    %v5755 = vpop.f32.mrb[0].mxu0
    %5756 = vmatprep.mubr.f32.mxu0 0.0
    %5757 = vmatmul.mubr.f32.gmra.mrb[0].mxu0 %v5645
    %v5758 = vpop.f32.mrb[0].mxu0
    %v5759 = vadd.f32 0.0, %v5758
    %v5760 = vpop.f32.mrb[0].mxu0
    %5761 = vmatprep.mubr.f32.mxu0 0.0
    %5762 = vmatmul.mubr.f32.gmra.mrb[0].mxu0 %v5648
    %v5763 = vpop.f32.mrb[0].mxu0
    %v5764 = vadd.f32 0.0, %v5763
    %v5765 = vpop.f32.mrb[0].mxu0
    %5766 = vmatprep.mubr.f32.mxu0 0.0
    %5767 = vmatmul.mubr.f32.gmra.mrb[0].mxu0 %v5651
    %v5768 = vpop.f32.mrb[0].mxu0
    %v5769 = vadd.f32 0.0, %v5768
    %v5770 = vpop.f32.mrb[0].mxu0
    %5771 = vmatprep.mubr.f32.mxu0 0.0
    %5772 = vmatmul.mubr.f32.gmra.mrb[0].mxu0 %v5654
    %v5773 = vpop.f32.mrb[0].mxu0
    %v5774 = vadd.f32 0.0, %v5773
    %v5775 = vpop.f32.mrb[0].mxu0
    %5776 = vmatprep.mubr.f32.mxu0 0.0
    %5777 = vmatmul.mubr.f32.gmra.mrb[0].mxu0 %v5657
    %v5778 = vpop.f32.mrb[0].mxu0
    %v5779 = vadd.f32 0.0, %v5778
    %v5780 = vpop.f32.mrb[0].mxu0
    %5781 = vmatprep.mubr.f32.mxu0 0.0
    %5782 = vmatmul.mubr.f32.gmra.mrb[0].mxu0 %v5660
    %v5783 = vpop.f32.mrb[0].mxu0
    %v5784 = vadd.f32 0.0, %v5783
    %v5785 = vpop.f32.mrb[0].mxu0
    %5786 = vdwg.mxu0
    %s5787 = scalar_lea.vmem %s20, 16
    %v5788 = vld [vmem:[%s5787] sm:$0xff]
    %v5789 = vld [vmem:[%s5787 + $0x8] sm:$0xff]
    %5790 = vmatprep.subr.mxu0 0.0
    %5791 = vmatpush1.msra.mxu0 %v5788
    %5792 = vmatprep.subr.mxu0 0.0
    %5793 = vmatpush1.msra.mxu0 %v5789
    %5794 = vmatprep.subr.mxu0 0.0
    %5795 = vmatpush1.msra.mxu0 0.0
    %5796 = vmatprep.subr.mxu0 0.0
    %5797 = vmatpush1.msra.mxu0 0.0
    %5798 = vmatprep.subr.mxu0 0.0
    %5799 = vmatpush1.msra.mxu0 0.0
    %5800 = vmatprep.subr.mxu0 0.0
    %5801 = vmatpush1.msra.mxu0 0.0
    %5802 = vmatprep.subr.mxu0 0.0
    %5803 = vmatpush1.msra.mxu0 0.0
    %5804 = vmatprep.subr.mxu0 0.0
    %5805 = vmatpush1.msra.mxu0 0.0
    %5806 = vmatprep.subr.mxu0 0.0
    %5807 = vmatpush1.msra.mxu0 0.0
    %5808 = vmatprep.subr.mxu0 0.0
    %5809 = vmatpush1.msra.mxu0 0.0
    %5810 = vmatprep.subr.mxu0 0.0
    %5811 = vmatpush1.msra.mxu0 0.0
    %5812 = vmatprep.subr.mxu0 0.0
    %5813 = vmatpush1.msra.mxu0 0.0
    %5814 = vmatprep.subr.mxu0 0.0
    %5815 = vmatpush1.msra.mxu0 0.0
    %5816 = vmatprep.subr.mxu0 0.0
    %5817 = vmatpush1.msra.mxu0 0.0
    %5818 = vmatprep.subr.mxu0 0.0
    %5819 = vmatpush1.msra.mxu0 0.0
    %5820 = vmatprep.subr.mxu0 0.0
    %5821 = vmatpush1.msra.mxu0 0.0
    %5822 = vmatprep.subr.mxu0 0.0
    %5823 = vmatpush1.msra.mxu0 0.0
    %5824 = vmatprep.subr.mxu0 0.0
    %5825 = vmatpush1.msra.mxu0 0.0
    %5826 = vmatprep.subr.mxu0 0.0
    %5827 = vmatpush1.msra.mxu0 0.0
    %5828 = vmatprep.subr.mxu0 0.0
    %5829 = vmatpush1.msra.mxu0 0.0
    %5830 = vmatprep.subr.mxu0 0.0
    %5831 = vmatpush1.msra.mxu0 0.0
    %5832 = vmatprep.subr.mxu0 0.0
    %5833 = vmatpush1.msra.mxu0 0.0
    %5834 = vmatprep.subr.mxu0 0.0
    %5835 = vmatpush1.msra.mxu0 0.0
    %5836 = vmatprep.subr.mxu0 0.0
    %5837 = vmatpush1.msra.mxu0 0.0
    %5838 = vmatprep.subr.mxu0 0.0
    %5839 = vmatpush1.msra.mxu0 0.0
    %5840 = vmatprep.subr.mxu0 0.0
    %5841 = vmatpush1.msra.mxu0 0.0
    %5842 = vmatprep.subr.mxu0 0.0
    %5843 = vmatpush1.msra.mxu0 0.0
    %5844 = vmatprep.subr.mxu0 0.0
    %5845 = vmatpush1.msra.mxu0 0.0
    %5846 = vmatprep.subr.mxu0 0.0
    %5847 = vmatpush1.msra.mxu0 0.0
    %5848 = vmatprep.subr.mxu0 0.0
    %5849 = vmatpush1.msra.mxu0 0.0
    %5850 = vmatprep.subr.mxu0 0.0
    %5851 = vmatpush1.msra.mxu0 0.0
    %5852 = vmatprep.subr.mxu0 0.0
    %5853 = vmatpush1.msra.mxu0 0.0
    %5854 = vmatprep.mubr.f32.mxu0 0.0
    %5855 = vmatmul.mubr.f32.gmra.mrb[0].mxu0 %v5627
    %v5856 = vpop.f32.mrb[0].mxu0
    %v5857 = vadd.f32 0.0, %v5856
    %v5858 = vpop.f32.mrb[0].mxu0
    %5859 = vmatprep.mubr.f32.mxu0 0.0
    %5860 = vmatmul.mubr.f32.gmra.mrb[0].mxu0 %v5630
    %v5861 = vpop.f32.mrb[0].mxu0
    %v5862 = vadd.f32 0.0, %v5861
    %v5863 = vpop.f32.mrb[0].mxu0
    %5864 = vmatprep.mubr.f32.mxu0 0.0
    %5865 = vmatmul.mubr.f32.gmra.mrb[0].mxu0 %v5633
    %v5866 = vpop.f32.mrb[0].mxu0
    %v5867 = vadd.f32 0.0, %v5866
    %v5868 = vpop.f32.mrb[0].mxu0
    %5869 = vmatprep.mubr.f32.mxu0 0.0
    %5870 = vmatmul.mubr.f32.gmra.mrb[0].mxu0 %v5636
    %v5871 = vpop.f32.mrb[0].mxu0
    %v5872 = vadd.f32 0.0, %v5871
    %v5873 = vpop.f32.mrb[0].mxu0
    %5874 = vmatprep.mubr.f32.mxu0 0.0
    %5875 = vmatmul.mubr.f32.gmra.mrb[0].mxu0 %v5639
    %v5876 = vpop.f32.mrb[0].mxu0
    %v5877 = vadd.f32 0.0, %v5876
    %v5878 = vpop.f32.mrb[0].mxu0
    %5879 = vmatprep.mubr.f32.mxu0 0.0
    %5880 = vmatmul.mubr.f32.gmra.mrb[0].mxu0 %v5642
    %v5881 = vpop.f32.mrb[0].mxu0
    %v5882 = vadd.f32 0.0, %v5881
    %v5883 = vpop.f32.mrb[0].mxu0
    %5884 = vmatprep.mubr.f32.mxu0 0.0
    %5885 = vmatmul.mubr.f32.gmra.mrb[0].mxu0 %v5645
    %v5886 = vpop.f32.mrb[0].mxu0
    %v5887 = vadd.f32 0.0, %v5886
    %v5888 = vpop.f32.mrb[0].mxu0
    %5889 = vmatprep.mubr.f32.mxu0 0.0
    %5890 = vmatmul.mubr.f32.gmra.mrb[0].mxu0 %v5648
    %v5891 = vpop.f32.mrb[0].mxu0
    %v5892 = vadd.f32 0.0, %v5891
    %v5893 = vpop.f32.mrb[0].mxu0
    %5894 = vmatprep.mubr.f32.mxu0 0.0
    %5895 = vmatmul.mubr.f32.gmra.mrb[0].mxu0 %v5651
    %v5896 = vpop.f32.mrb[0].mxu0
    %v5897 = vadd.f32 0.0, %v5896
    %v5898 = vpop.f32.mrb[0].mxu0
    %5899 = vmatprep.mubr.f32.mxu0 0.0
    %5900 = vmatmul.mubr.f32.gmra.mrb[0].mxu0 %v5654
    %v5901 = vpop.f32.mrb[0].mxu0
    %v5902 = vadd.f32 0.0, %v5901
    %v5903 = vpop.f32.mrb[0].mxu0
    %5904 = vmatprep.mubr.f32.mxu0 0.0
    %5905 = vmatmul.mubr.f32.gmra.mrb[0].mxu0 %v5657
    %v5906 = vpop.f32.mrb[0].mxu0
    %v5907 = vadd.f32 0.0, %v5906
    %v5908 = vpop.f32.mrb[0].mxu0
    %5909 = vmatprep.mubr.f32.mxu0 0.0
    %5910 = vmatmul.mubr.f32.gmra.mrb[0].mxu0 %v5660
    %v5911 = vpop.f32.mrb[0].mxu0
    %v5912 = vadd.f32 0.0, %v5911
    %v5913 = vpop.f32.mrb[0].mxu0
    %5914 = vdwg.mxu0
    %v5915 = vld [vmem:[%s19] sm:$0xff]
    %v5916 = vld [vmem:[%s19 + $0x8] sm:$0xff]
    %v5917 = vld [vmem:[%s19 + $0x10] sm:$0xff]
    %v5918 = vld [vmem:[%s19 + $0x18] sm:$0xff]
    %v5919 = vld [vmem:[%s19 + $0x20] sm:$0xff]
    %v5920 = vld [vmem:[%s19 + $0x28] sm:$0xff]
    %v5921 = vld [vmem:[%s19 + $0x30] sm:$0xff]
    %v5922 = vld [vmem:[%s19 + $0x38] sm:$0xff]
    %v5923 = vld [vmem:[%s19 + $0x40] sm:$0xff]
    %v5924 = vld [vmem:[%s19 + $0x48] sm:$0xff]
    %v5925 = vld [vmem:[%s19 + $0x50] sm:$0xff]
    %v5926 = vld [vmem:[%s19 + $0x58] sm:$0xff]
    %v5927 = vld [vmem:[%s19 + $0x60] sm:$0xff]
    %v5928 = vld [vmem:[%s19 + $0x68] sm:$0xff]
    %v5929 = vld [vmem:[%s19 + $0x70] sm:$0xff]
    %v5930 = vld [vmem:[%s19 + $0x78] sm:$0xff]
    %v5931 = vld [vmem:[%s19 + $0x80] sm:$0xff]
    %v5932 = vld [vmem:[%s19 + $0x88] sm:$0xff]
    %v5933 = vld [vmem:[%s19 + $0x90] sm:$0xff]
    %v5934 = vld [vmem:[%s19 + $0x98] sm:$0xff]
    %v5935 = vld [vmem:[%s19 + $0xa0] sm:$0xff]
    %v5936 = vld [vmem:[%s19 + $0xa8] sm:$0xff]
    %v5937 = vld [vmem:[%s19 + $0xb0] sm:$0xff]
    %v5938 = vld [vmem:[%s19 + $0xb8] sm:$0xff]
    %v5939 = vld [vmem:[%s19 + $0xc0] sm:$0xff]
    %v5940 = vld [vmem:[%s19 + $0xc8] sm:$0xff]
    %v5941 = vld [vmem:[%s19 + $0xd0] sm:$0xff]
    %v5942 = vld [vmem:[%s19 + $0xd8] sm:$0xff]
    %v5943 = vld [vmem:[%s19 + $0xe0] sm:$0xff]
    %v5944 = vld [vmem:[%s19 + $0xe8] sm:$0xff]
    %v5945 = vld [vmem:[%s19 + $0xf0] sm:$0xff]
    %v5946 = vld [vmem:[%s19 + $0xf8] sm:$0xff]
    %v5947 = vld [vmem:[%s19 + $0x100] sm:$0xff]
    %v5948 = vld [vmem:[%s19 + $0x108] sm:$0xff]
    %v5949 = vld [vmem:[%s19 + $0x110] sm:$0xff]
    %v5950 = vld [vmem:[%s19 + $0x118] sm:$0xff]
    %v5951 = vld [vmem:[%s19 + $0x120] sm:$0xff]
    %v5952 = vld [vmem:[%s19 + $0x128] sm:$0xff]
    %v5953 = vld [vmem:[%s19 + $0x130] sm:$0xff]
    %v5954 = vld [vmem:[%s19 + $0x138] sm:$0xff]
    %v5955 = vld [vmem:[%s19 + $0x140] sm:$0xff]
    %v5956 = vld [vmem:[%s19 + $0x148] sm:$0xff]
    %v5957 = vld [vmem:[%s19 + $0x150] sm:$0xff]
    %v5958 = vld [vmem:[%s19 + $0x158] sm:$0xff]
    %v5959 = vld [vmem:[%s19 + $0x160] sm:$0xff]
    %v5960 = vld [vmem:[%s19 + $0x168] sm:$0xff]
    %v5961 = vld [vmem:[%s19 + $0x170] sm:$0xff]
    %v5962 = vld [vmem:[%s19 + $0x178] sm:$0xff]
    %v5963 = vld [vmem:[%s21] sm:$0xff]
    %v5964 = vld [vmem:[%s21 + $0x8] sm:$0xff]
    %v5965 = vld [vmem:[%s21 + $0x10] sm:$0xff]
    %v5966 = vld [vmem:[%s21 + $0x18] sm:$0xff]
    %v5967 = vld [vmem:[%s21 + $0x20] sm:$0xff]
    %v5968 = vld [vmem:[%s21 + $0x28] sm:$0xff]
    %v5969 = vld [vmem:[%s21 + $0x30] sm:$0xff]
    %v5970 = vld [vmem:[%s21 + $0x38] sm:$0xff]
    %v5971 = vld [vmem:[%s21 + $0x40] sm:$0xff]
    %v5972 = vld [vmem:[%s21 + $0x48] sm:$0xff]
    %v5973 = vld [vmem:[%s21 + $0x50] sm:$0xff]
    %v5974 = vld [vmem:[%s21 + $0x58] sm:$0xff]
    %v5975 = vld [vmem:[%s21 + $0x60] sm:$0xff]
    %v5976 = vld [vmem:[%s21 + $0x68] sm:$0xff]
    %v5977 = vld [vmem:[%s21 + $0x70] sm:$0xff]
    %v5978 = vld [vmem:[%s21 + $0x78] sm:$0xff]
    %v5979 = vld [vmem:[%s21 + $0x80] sm:$0xff]
    %v5980 = vld [vmem:[%s21 + $0x88] sm:$0xff]
    %v5981 = vld [vmem:[%s21 + $0x90] sm:$0xff]
    %v5982 = vld [vmem:[%s21 + $0x98] sm:$0xff]
    %v5983 = vld [vmem:[%s21 + $0xa0] sm:$0xff]
    %v5984 = vld [vmem:[%s21 + $0xa8] sm:$0xff]
    %v5985 = vld [vmem:[%s21 + $0xb0] sm:$0xff]
    %v5986 = vld [vmem:[%s21 + $0xb8] sm:$0xff]
    %5988 = vset.pattern.permute.xlu0 0
    %5989 = vperm.xlu0 %5988, %v5963
    %v5990 = vpop.permute.xlu0 %5989
    %5993 = vset.pattern.permute.xlu0 0
    %5994 = vperm.xlu0 %5993, %v5964
    %v5995 = vpop.permute.xlu0 %5994
    %5998 = vset.pattern.permute.xlu0 0
    %5999 = vperm.xlu0 %5998, %v5965
    %v6000 = vpop.permute.xlu0 %5999
    %6003 = vset.pattern.permute.xlu0 0
    %6004 = vperm.xlu0 %6003, %v5966
    %v6005 = vpop.permute.xlu0 %6004
    %6008 = vset.pattern.permute.xlu0 0
    %6009 = vperm.xlu0 %6008, %v5967
    %v6010 = vpop.permute.xlu0 %6009
    %6013 = vset.pattern.permute.xlu0 0
    %6014 = vperm.xlu0 %6013, %v5968
    %v6015 = vpop.permute.xlu0 %6014
    %6018 = vset.pattern.permute.xlu0 0
    %6019 = vperm.xlu0 %6018, %v5969
    %v6020 = vpop.permute.xlu0 %6019
    %6023 = vset.pattern.permute.xlu0 0
    %6024 = vperm.xlu0 %6023, %v5970
    %v6025 = vpop.permute.xlu0 %6024
    %6028 = vset.pattern.permute.xlu0 0
    %6029 = vperm.xlu0 %6028, %v5971
    %v6030 = vpop.permute.xlu0 %6029
    %6033 = vset.pattern.permute.xlu0 0
    %6034 = vperm.xlu0 %6033, %v5972
    %v6035 = vpop.permute.xlu0 %6034
    %6038 = vset.pattern.permute.xlu0 0
    %6039 = vperm.xlu0 %6038, %v5973
    %v6040 = vpop.permute.xlu0 %6039
    %6043 = vset.pattern.permute.xlu0 0
    %6044 = vperm.xlu0 %6043, %v5974
    %v6045 = vpop.permute.xlu0 %6044
    %6048 = vset.pattern.permute.xlu0 0
    %6049 = vperm.xlu0 %6048, %v5975
    %v6050 = vpop.permute.xlu0 %6049
    %6053 = vset.pattern.permute.xlu0 0
    %6054 = vperm.xlu0 %6053, %v5976
    %v6055 = vpop.permute.xlu0 %6054
    %6058 = vset.pattern.permute.xlu0 0
    %6059 = vperm.xlu0 %6058, %v5977
    %v6060 = vpop.permute.xlu0 %6059
    %6063 = vset.pattern.permute.xlu0 0
    %6064 = vperm.xlu0 %6063, %v5978
    %v6065 = vpop.permute.xlu0 %6064
    %6068 = vset.pattern.permute.xlu0 0
    %6069 = vperm.xlu0 %6068, %v5979
    %v6070 = vpop.permute.xlu0 %6069
    %6073 = vset.pattern.permute.xlu0 0
    %6074 = vperm.xlu0 %6073, %v5980
    %v6075 = vpop.permute.xlu0 %6074
    %6078 = vset.pattern.permute.xlu0 0
    %6079 = vperm.xlu0 %6078, %v5981
    %v6080 = vpop.permute.xlu0 %6079
    %6083 = vset.pattern.permute.xlu0 0
    %6084 = vperm.xlu0 %6083, %v5982
    %v6085 = vpop.permute.xlu0 %6084
    %6088 = vset.pattern.permute.xlu0 0
    %6089 = vperm.xlu0 %6088, %v5983
    %v6090 = vpop.permute.xlu0 %6089
    %6093 = vset.pattern.permute.xlu0 0
    %6094 = vperm.xlu0 %6093, %v5984
    %v6095 = vpop.permute.xlu0 %6094
    %6098 = vset.pattern.permute.xlu0 0
    %6099 = vperm.xlu0 %6098, %v5985
    %v6100 = vpop.permute.xlu0 %6099
    %6103 = vset.pattern.permute.xlu0 0
    %6104 = vperm.xlu0 %6103, %v5986
    %v6105 = vpop.permute.xlu0 %6104
    %v6108 = vsel %vm284, %v5916, 0
    %v6111 = vsel %vm284, %v5918, 0
    %v6114 = vsel %vm284, %v5920, 0
    %v6117 = vsel %vm284, %v5922, 0
    %v6120 = vsel %vm284, %v5924, 0
    %v6123 = vsel %vm284, %v5926, 0
    %v6126 = vsel %vm284, %v5928, 0
    %v6129 = vsel %vm284, %v5930, 0
    %v6132 = vsel %vm284, %v5932, 0
    %v6135 = vsel %vm284, %v5934, 0
    %v6138 = vsel %vm284, %v5936, 0
    %v6141 = vsel %vm284, %v5938, 0
    %v6144 = vsel %vm284, %v5940, 0
    %v6147 = vsel %vm284, %v5942, 0
    %v6150 = vsel %vm284, %v5944, 0
    %v6153 = vsel %vm284, %v5946, 0
    %v6156 = vsel %vm284, %v5948, 0
    %v6159 = vsel %vm284, %v5950, 0
    %v6162 = vsel %vm284, %v5952, 0
    %v6165 = vsel %vm284, %v5954, 0
    %v6168 = vsel %vm284, %v5956, 0
    %v6171 = vsel %vm284, %v5958, 0
    %v6174 = vsel %vm284, %v5960, 0
    %v6177 = vsel %vm284, %v5962, 0
    %6179 = vmatprep.subr.mxu0 0.0
    %6180 = vmatpush1.msra.mxu0 %v5729
    %6181 = vmatprep.subr.mxu0 0.0
    %6182 = vmatpush1.msra.mxu0 %v5734
    %6183 = vmatprep.subr.mxu0 0.0
    %6184 = vmatpush1.msra.mxu0 %v5739
    %6185 = vmatprep.subr.mxu0 0.0
    %6186 = vmatpush1.msra.mxu0 %v5744
    %6187 = vmatprep.subr.mxu0 0.0
    %6188 = vmatpush1.msra.mxu0 %v5749
    %6189 = vmatprep.subr.mxu0 0.0
    %6190 = vmatpush1.msra.mxu0 %v5754
    %6191 = vmatprep.subr.mxu0 0.0
    %6192 = vmatpush1.msra.mxu0 %v5759
    %6193 = vmatprep.subr.mxu0 0.0
    %6194 = vmatpush1.msra.mxu0 %v5764
    %6195 = vmatprep.subr.mxu0 0.0
    %6196 = vmatpush1.msra.mxu0 %v5769
    %6197 = vmatprep.subr.mxu0 0.0
    %6198 = vmatpush1.msra.mxu0 %v5774
    %6199 = vmatprep.subr.mxu0 0.0
    %6200 = vmatpush1.msra.mxu0 %v5779
    %6201 = vmatprep.subr.mxu0 0.0
    %6202 = vmatpush1.msra.mxu0 %v5784
    %6203 = vmatprep.subr.mxu0 0.0
    %6204 = vmatpush1.msra.mxu0 %v5857
    %6205 = vmatprep.subr.mxu0 0.0
    %6206 = vmatpush1.msra.mxu0 %v5862
    %6207 = vmatprep.subr.mxu0 0.0
    %6208 = vmatpush1.msra.mxu0 %v5867
    %6209 = vmatprep.subr.mxu0 0.0
    %6210 = vmatpush1.msra.mxu0 %v5872
    %6211 = vmatprep.subr.mxu0 0.0
    %6212 = vmatpush1.msra.mxu0 %v5877
    %6213 = vmatprep.subr.mxu0 0.0
    %6214 = vmatpush1.msra.mxu0 %v5882
    %6215 = vmatprep.subr.mxu0 0.0
    %6216 = vmatpush1.msra.mxu0 %v5887
    %6217 = vmatprep.subr.mxu0 0.0
    %6218 = vmatpush1.msra.mxu0 %v5892
    %6219 = vmatprep.subr.mxu0 0.0
    %6220 = vmatpush1.msra.mxu0 %v5897
    %6221 = vmatprep.subr.mxu0 0.0
    %6222 = vmatpush1.msra.mxu0 %v5902
    %6223 = vmatprep.subr.mxu0 0.0
    %6224 = vmatpush1.msra.mxu0 %v5907
    %6225 = vmatprep.subr.mxu0 0.0
    %6226 = vmatpush1.msra.mxu0 %v5912
    %6227 = vmatprep.subr.mxu0 0.0
    %6228 = vmatpush1.msra.mxu0 0.0
    %6229 = vmatprep.subr.mxu0 0.0
    %6230 = vmatpush1.msra.mxu0 0.0
    %6231 = vmatprep.subr.mxu0 0.0
    %6232 = vmatpush1.msra.mxu0 0.0
    %6233 = vmatprep.subr.mxu0 0.0
    %6234 = vmatpush1.msra.mxu0 0.0
    %6235 = vmatprep.subr.mxu0 0.0
    %6236 = vmatpush1.msra.mxu0 0.0
    %6237 = vmatprep.subr.mxu0 0.0
    %6238 = vmatpush1.msra.mxu0 0.0
    %6239 = vmatprep.subr.mxu0 0.0
    %6240 = vmatpush1.msra.mxu0 0.0
    %6241 = vmatprep.subr.mxu0 0.0
    %6242 = vmatpush1.msra.mxu0 0.0
    %6243 = vmatprep.mubr.f32.mxu0 %v6108
    %6244 = vmatmul.mubr.f32.gmra.mrb[0].mxu0 %v5915
    %v6245 = vpop.f32.mrb[0].mxu0
    %v6246 = vadd.f32 %v5990, %v6245
    %v6247 = vpop.f32.mrb[0].mxu0
    %6248 = vmatprep.mubr.f32.mxu0 %v6111
    %6249 = vmatmul.mubr.f32.gmra.mrb[0].mxu0 %v5917
    %v6250 = vpop.f32.mrb[0].mxu0
    %v6251 = vadd.f32 %v5995, %v6250
    %v6252 = vpop.f32.mrb[0].mxu0
    %6253 = vmatprep.mubr.f32.mxu0 %v6114
    %6254 = vmatmul.mubr.f32.gmra.mrb[0].mxu0 %v5919
    %v6255 = vpop.f32.mrb[0].mxu0
    %v6256 = vadd.f32 %v6000, %v6255
    %v6257 = vpop.f32.mrb[0].mxu0
    %6258 = vmatprep.mubr.f32.mxu0 %v6117
    %6259 = vmatmul.mubr.f32.gmra.mrb[0].mxu0 %v5921
    %v6260 = vpop.f32.mrb[0].mxu0
    %v6261 = vadd.f32 %v6005, %v6260
    %v6262 = vpop.f32.mrb[0].mxu0
    %6263 = vmatprep.mubr.f32.mxu0 %v6120
    %6264 = vmatmul.mubr.f32.gmra.mrb[0].mxu0 %v5923
    %v6265 = vpop.f32.mrb[0].mxu0
    %v6266 = vadd.f32 %v6010, %v6265
    %v6267 = vpop.f32.mrb[0].mxu0
    %6268 = vmatprep.mubr.f32.mxu0 %v6123
    %6269 = vmatmul.mubr.f32.gmra.mrb[0].mxu0 %v5925
    %v6270 = vpop.f32.mrb[0].mxu0
    %v6271 = vadd.f32 %v6015, %v6270
    %v6272 = vpop.f32.mrb[0].mxu0
    %6273 = vmatprep.mubr.f32.mxu0 %v6126
    %6274 = vmatmul.mubr.f32.gmra.mrb[0].mxu0 %v5927
    %v6275 = vpop.f32.mrb[0].mxu0
    %v6276 = vadd.f32 %v6020, %v6275
    %v6277 = vpop.f32.mrb[0].mxu0
    %6278 = vmatprep.mubr.f32.mxu0 %v6129
    %6279 = vmatmul.mubr.f32.gmra.mrb[0].mxu0 %v5929
    %v6280 = vpop.f32.mrb[0].mxu0
    %v6281 = vadd.f32 %v6025, %v6280
    %v6282 = vpop.f32.mrb[0].mxu0
    %6283 = vmatprep.mubr.f32.mxu0 %v6132
    %6284 = vmatmul.mubr.f32.gmra.mrb[0].mxu0 %v5931
    %v6285 = vpop.f32.mrb[0].mxu0
    %v6286 = vadd.f32 %v6030, %v6285
    %v6287 = vpop.f32.mrb[0].mxu0
    %6288 = vmatprep.mubr.f32.mxu0 %v6135
    %6289 = vmatmul.mubr.f32.gmra.mrb[0].mxu0 %v5933
    %v6290 = vpop.f32.mrb[0].mxu0
    %v6291 = vadd.f32 %v6035, %v6290
    %v6292 = vpop.f32.mrb[0].mxu0
    %6293 = vmatprep.mubr.f32.mxu0 %v6138
    %6294 = vmatmul.mubr.f32.gmra.mrb[0].mxu0 %v5935
    %v6295 = vpop.f32.mrb[0].mxu0
    %v6296 = vadd.f32 %v6040, %v6295
    %v6297 = vpop.f32.mrb[0].mxu0
    %6298 = vmatprep.mubr.f32.mxu0 %v6141
    %6299 = vmatmul.mubr.f32.gmra.mrb[0].mxu0 %v5937
    %v6300 = vpop.f32.mrb[0].mxu0
    %v6301 = vadd.f32 %v6045, %v6300
    %v6302 = vpop.f32.mrb[0].mxu0
    %6303 = vmatprep.mubr.f32.mxu0 %v6144
    %6304 = vmatmul.mubr.f32.gmra.mrb[0].mxu0 %v5939
    %v6305 = vpop.f32.mrb[0].mxu0
    %v6306 = vadd.f32 %v6050, %v6305
    %v6307 = vpop.f32.mrb[0].mxu0
    %6308 = vmatprep.mubr.f32.mxu0 %v6147
    %6309 = vmatmul.mubr.f32.gmra.mrb[0].mxu0 %v5941
    %v6310 = vpop.f32.mrb[0].mxu0
    %v6311 = vadd.f32 %v6055, %v6310
    %v6312 = vpop.f32.mrb[0].mxu0
    %6313 = vmatprep.mubr.f32.mxu0 %v6150
    %6314 = vmatmul.mubr.f32.gmra.mrb[0].mxu0 %v5943
    %v6315 = vpop.f32.mrb[0].mxu0
    %v6316 = vadd.f32 %v6060, %v6315
    %v6317 = vpop.f32.mrb[0].mxu0
    %6318 = vmatprep.mubr.f32.mxu0 %v6153
    %6319 = vmatmul.mubr.f32.gmra.mrb[0].mxu0 %v5945
    %v6320 = vpop.f32.mrb[0].mxu0
    %v6321 = vadd.f32 %v6065, %v6320
    %v6322 = vpop.f32.mrb[0].mxu0
    %6323 = vmatprep.mubr.f32.mxu0 %v6156
    %6324 = vmatmul.mubr.f32.gmra.mrb[0].mxu0 %v5947
    %v6325 = vpop.f32.mrb[0].mxu0
    %v6326 = vadd.f32 %v6070, %v6325
    %v6327 = vpop.f32.mrb[0].mxu0
    %6328 = vmatprep.mubr.f32.mxu0 %v6159
    %6329 = vmatmul.mubr.f32.gmra.mrb[0].mxu0 %v5949
    %v6330 = vpop.f32.mrb[0].mxu0
    %v6331 = vadd.f32 %v6075, %v6330
    %v6332 = vpop.f32.mrb[0].mxu0
    %6333 = vmatprep.mubr.f32.mxu0 %v6162
    %6334 = vmatmul.mubr.f32.gmra.mrb[0].mxu0 %v5951
    %v6335 = vpop.f32.mrb[0].mxu0
    %v6336 = vadd.f32 %v6080, %v6335
    %v6337 = vpop.f32.mrb[0].mxu0
    %6338 = vmatprep.mubr.f32.mxu0 %v6165
    %6339 = vmatmul.mubr.f32.gmra.mrb[0].mxu0 %v5953
    %v6340 = vpop.f32.mrb[0].mxu0
    %v6341 = vadd.f32 %v6085, %v6340
    %v6342 = vpop.f32.mrb[0].mxu0
    %6343 = vmatprep.mubr.f32.mxu0 %v6168
    %6344 = vmatmul.mubr.f32.gmra.mrb[0].mxu0 %v5955
    %v6345 = vpop.f32.mrb[0].mxu0
    %v6346 = vadd.f32 %v6090, %v6345
    %v6347 = vpop.f32.mrb[0].mxu0
    %6348 = vmatprep.mubr.f32.mxu0 %v6171
    %6349 = vmatmul.mubr.f32.gmra.mrb[0].mxu0 %v5957
    %v6350 = vpop.f32.mrb[0].mxu0
    %v6351 = vadd.f32 %v6095, %v6350
    %v6352 = vpop.f32.mrb[0].mxu0
    %6353 = vmatprep.mubr.f32.mxu0 %v6174
    %6354 = vmatmul.mubr.f32.gmra.mrb[0].mxu0 %v5959
    %v6355 = vpop.f32.mrb[0].mxu0
    %v6356 = vadd.f32 %v6100, %v6355
    %v6357 = vpop.f32.mrb[0].mxu0
    %6358 = vmatprep.mubr.f32.mxu0 %v6177
    %6359 = vmatmul.mubr.f32.gmra.mrb[0].mxu0 %v5961
    %v6360 = vpop.f32.mrb[0].mxu0
    %v6361 = vadd.f32 %v6105, %v6360
    %v6362 = vpop.f32.mrb[0].mxu0
    %6363 = vdwg.mxu0
    %v6364 = vld [vmem:[#allocation15] sm:$0xff]
    %v6365 = vld [vmem:[#allocation15 + $0x8] sm:$0xff]
    %v6366 = vld [vmem:[#allocation15 + $0x10] sm:$0xff]
    %v6367 = vld [vmem:[#allocation15 + $0x18] sm:$0xff]
    %v6368 = vld [vmem:[#allocation15 + $0x20] sm:$0xff]
    %v6369 = vld [vmem:[#allocation15 + $0x28] sm:$0xff]
    %6370 = vxpose.xlu0.b32.start [1/16] %v4281, 128
    %6371 = vxpose.xlu0.b32.cont [2/16] %v4286, 128
    %6372 = vxpose.xlu0.b32.cont [3/16] %v4291, 128
    %6373 = vxpose.xlu0.b32.cont [4/16] %v4296, 128
    %6374 = vxpose.xlu0.b32.cont [5/16] %v4301, 128
    %6375 = vxpose.xlu0.b32.cont [6/16] %v4306, 128
    %6376 = vxpose.xlu0.b32.cont [7/16] 0.0, 128
    %6377 = vxpose.xlu0.b32.cont [8/16] 0.0, 128
    %6378 = vxpose.xlu0.b32.cont [9/16] 0.0, 128
    %6379 = vxpose.xlu0.b32.cont [10/16] 0.0, 128
    %6380 = vxpose.xlu0.b32.cont [11/16] 0.0, 128
    %6381 = vxpose.xlu0.b32.cont [12/16] 0.0, 128
    %6382 = vxpose.xlu0.b32.cont [13/16] 0.0, 128
    %6383 = vxpose.xlu0.b32.cont [14/16] 0.0, 128
    %6384 = vxpose.xlu0.b32.cont [15/16] 0.0, 128
    %6385 = vxpose.xlu0.b32.end [16/16] 0.0, 128
    %v6386 = vpop.trf.xlu0
    %v6387 = vpop.trf.xlu0
    %v6388 = vpop.trf.xlu0
    %v6389 = vpop.trf.xlu0
    %v6390 = vpop.trf.xlu0
    %v6391 = vpop.trf.xlu0
    %v6392 = vpop.trf.xlu0
    %v6393 = vpop.trf.xlu0
    %v6394 = vpop.trf.xlu0
    %v6395 = vpop.trf.xlu0
    %v6396 = vpop.trf.xlu0
    %v6397 = vpop.trf.xlu0
    %v6398 = vpop.trf.xlu0
    %v6399 = vpop.trf.xlu0
    %v6400 = vpop.trf.xlu0
    %v6401 = vpop.trf.xlu0
    %vm6402 = vcmask 392192
    %v6404 = vsel %vm6402, %v6386, 0
    %v6407 = vsel %vm6402, %v6387, 0
    %6409 = vmatprep.subr.mxu0 0.0
    %6410 = vmatpush1.msra.mxu0 %v6364
    %6411 = vmatprep.subr.mxu0 0.0
    %6412 = vmatpush1.msra.mxu0 %v6365
    %6413 = vmatprep.subr.mxu0 0.0
    %6414 = vmatpush1.msra.mxu0 %v6366
    %6415 = vmatprep.subr.mxu0 0.0
    %6416 = vmatpush1.msra.mxu0 %v6367
    %6417 = vmatprep.subr.mxu0 0.0
    %6418 = vmatpush1.msra.mxu0 %v6368
    %6419 = vmatprep.subr.mxu0 0.0
    %6420 = vmatpush1.msra.mxu0 %v6369
    %6421 = vmatprep.subr.mxu0 0.0
    %6422 = vmatpush1.msra.mxu0 0.0
    %6423 = vmatprep.subr.mxu0 0.0
    %6424 = vmatpush1.msra.mxu0 0.0
    %6425 = vmatprep.subr.mxu0 0.0
    %6426 = vmatpush1.msra.mxu0 0.0
    %6427 = vmatprep.subr.mxu0 0.0
    %6428 = vmatpush1.msra.mxu0 0.0
    %6429 = vmatprep.subr.mxu0 0.0
    %6430 = vmatpush1.msra.mxu0 0.0
    %6431 = vmatprep.subr.mxu0 0.0
    %6432 = vmatpush1.msra.mxu0 0.0
    %6433 = vmatprep.subr.mxu0 0.0
    %6434 = vmatpush1.msra.mxu0 0.0
    %6435 = vmatprep.subr.mxu0 0.0
    %6436 = vmatpush1.msra.mxu0 0.0
    %6437 = vmatprep.subr.mxu0 0.0
    %6438 = vmatpush1.msra.mxu0 0.0
    %6439 = vmatprep.subr.mxu0 0.0
    %6440 = vmatpush1.msra.mxu0 0.0
    %6441 = vmatprep.subr.mxu0 0.0
    %6442 = vmatpush1.msra.mxu0 0.0
    %6443 = vmatprep.subr.mxu0 0.0
    %6444 = vmatpush1.msra.mxu0 0.0
    %6445 = vmatprep.subr.mxu0 0.0
    %6446 = vmatpush1.msra.mxu0 0.0
    %6447 = vmatprep.subr.mxu0 0.0
    %6448 = vmatpush1.msra.mxu0 0.0
    %6449 = vmatprep.subr.mxu0 0.0
    %6450 = vmatpush1.msra.mxu0 0.0
    %6451 = vmatprep.subr.mxu0 0.0
    %6452 = vmatpush1.msra.mxu0 0.0
    %6453 = vmatprep.subr.mxu0 0.0
    %6454 = vmatpush1.msra.mxu0 0.0
    %6455 = vmatprep.subr.mxu0 0.0
    %6456 = vmatpush1.msra.mxu0 0.0
    %6457 = vmatprep.subr.mxu0 0.0
    %6458 = vmatpush1.msra.mxu0 0.0
    %6459 = vmatprep.subr.mxu0 0.0
    %6460 = vmatpush1.msra.mxu0 0.0
    %6461 = vmatprep.subr.mxu0 0.0
    %6462 = vmatpush1.msra.mxu0 0.0
    %6463 = vmatprep.subr.mxu0 0.0
    %6464 = vmatpush1.msra.mxu0 0.0
    %6465 = vmatprep.subr.mxu0 0.0
    %6466 = vmatpush1.msra.mxu0 0.0
    %6467 = vmatprep.subr.mxu0 0.0
    %6468 = vmatpush1.msra.mxu0 0.0
    %6469 = vmatprep.subr.mxu0 0.0
    %6470 = vmatpush1.msra.mxu0 0.0
    %6471 = vmatprep.subr.mxu0 0.0
    %6472 = vmatpush1.msra.mxu0 0.0
    %6473 = vmatprep.mubr.f32.mxu0 0.0
    %6474 = vmatmul.mubr.f32.gmra.mrb[0].mxu0 %v6404
    %v6475 = vpop.f32.mrb[0].mxu0
    %v6476 = vadd.f32 0.0, %v6475
    %v6477 = vpop.f32.mrb[0].mxu0
    %6478 = vmatprep.mubr.f32.mxu0 0.0
    %6479 = vmatmul.mubr.f32.gmra.mrb[0].mxu0 %v6407
    %v6480 = vpop.f32.mrb[0].mxu0
    %v6481 = vadd.f32 0.0, %v6480
    %v6482 = vpop.f32.mrb[0].mxu0
    %6483 = vdwg.mxu0
    %6484 = vst.msk [vmem:[%s23] sm:$0xff] %vm6402, %v6476
    %6485 = vst.msk [vmem:[%s23 + $0x60] sm:$0xff] %vm6402, %v6481
    %6486 = vxpose.xlu0.b32.start [1/16] %v4311, 128
    %6487 = vxpose.xlu0.b32.cont [2/16] %v4316, 128
    %6488 = vxpose.xlu0.b32.cont [3/16] %v4321, 128
    %6489 = vxpose.xlu0.b32.cont [4/16] %v4326, 128
    %6490 = vxpose.xlu0.b32.cont [5/16] %v4331, 128
    %6491 = vxpose.xlu0.b32.cont [6/16] %v4336, 128
    %6492 = vxpose.xlu0.b32.cont [7/16] 0.0, 128
    %6493 = vxpose.xlu0.b32.cont [8/16] 0.0, 128
    %6494 = vxpose.xlu0.b32.cont [9/16] 0.0, 128
    %6495 = vxpose.xlu0.b32.cont [10/16] 0.0, 128
    %6496 = vxpose.xlu0.b32.cont [11/16] 0.0, 128
    %6497 = vxpose.xlu0.b32.cont [12/16] 0.0, 128
    %6498 = vxpose.xlu0.b32.cont [13/16] 0.0, 128
    %6499 = vxpose.xlu0.b32.cont [14/16] 0.0, 128
    %6500 = vxpose.xlu0.b32.cont [15/16] 0.0, 128
    %6501 = vxpose.xlu0.b32.end [16/16] 0.0, 128
    %v6502 = vpop.trf.xlu0
    %v6503 = vpop.trf.xlu0
    %v6504 = vpop.trf.xlu0
    %v6505 = vpop.trf.xlu0
    %v6506 = vpop.trf.xlu0
    %v6507 = vpop.trf.xlu0
    %v6508 = vpop.trf.xlu0
    %v6509 = vpop.trf.xlu0
    %v6510 = vpop.trf.xlu0
    %v6511 = vpop.trf.xlu0
    %v6512 = vpop.trf.xlu0
    %v6513 = vpop.trf.xlu0
    %v6514 = vpop.trf.xlu0
    %v6515 = vpop.trf.xlu0
    %v6516 = vpop.trf.xlu0
    %v6517 = vpop.trf.xlu0
    %v6519 = vsel %vm6402, %v6502, 0
    %v6522 = vsel %vm6402, %v6503, 0
    %6524 = vmatprep.subr.mxu0 0.0
    %6525 = vmatpush1.msra.mxu0 %v6364
    %6526 = vmatprep.subr.mxu0 0.0
    %6527 = vmatpush1.msra.mxu0 %v6365
    %6528 = vmatprep.subr.mxu0 0.0
    %6529 = vmatpush1.msra.mxu0 %v6366
    %6530 = vmatprep.subr.mxu0 0.0
    %6531 = vmatpush1.msra.mxu0 %v6367
    %6532 = vmatprep.subr.mxu0 0.0
    %6533 = vmatpush1.msra.mxu0 %v6368
    %6534 = vmatprep.subr.mxu0 0.0
    %6535 = vmatpush1.msra.mxu0 %v6369
    %6536 = vmatprep.subr.mxu0 0.0
    %6537 = vmatpush1.msra.mxu0 0.0
    %6538 = vmatprep.subr.mxu0 0.0
    %6539 = vmatpush1.msra.mxu0 0.0
    %6540 = vmatprep.subr.mxu0 0.0
    %6541 = vmatpush1.msra.mxu0 0.0
    %6542 = vmatprep.subr.mxu0 0.0
    %6543 = vmatpush1.msra.mxu0 0.0
    %6544 = vmatprep.subr.mxu0 0.0
    %6545 = vmatpush1.msra.mxu0 0.0
    %6546 = vmatprep.subr.mxu0 0.0
    %6547 = vmatpush1.msra.mxu0 0.0
    %6548 = vmatprep.subr.mxu0 0.0
    %6549 = vmatpush1.msra.mxu0 0.0
    %6550 = vmatprep.subr.mxu0 0.0
    %6551 = vmatpush1.msra.mxu0 0.0
    %6552 = vmatprep.subr.mxu0 0.0
    %6553 = vmatpush1.msra.mxu0 0.0
    %6554 = vmatprep.subr.mxu0 0.0
    %6555 = vmatpush1.msra.mxu0 0.0
    %6556 = vmatprep.subr.mxu0 0.0
    %6557 = vmatpush1.msra.mxu0 0.0
    %6558 = vmatprep.subr.mxu0 0.0
    %6559 = vmatpush1.msra.mxu0 0.0
    %6560 = vmatprep.subr.mxu0 0.0
    %6561 = vmatpush1.msra.mxu0 0.0
    %6562 = vmatprep.subr.mxu0 0.0
    %6563 = vmatpush1.msra.mxu0 0.0
    %6564 = vmatprep.subr.mxu0 0.0
    %6565 = vmatpush1.msra.mxu0 0.0
    %6566 = vmatprep.subr.mxu0 0.0
    %6567 = vmatpush1.msra.mxu0 0.0
    %6568 = vmatprep.subr.mxu0 0.0
    %6569 = vmatpush1.msra.mxu0 0.0
    %6570 = vmatprep.subr.mxu0 0.0
    %6571 = vmatpush1.msra.mxu0 0.0
    %6572 = vmatprep.subr.mxu0 0.0
    %6573 = vmatpush1.msra.mxu0 0.0
    %6574 = vmatprep.subr.mxu0 0.0
    %6575 = vmatpush1.msra.mxu0 0.0
    %6576 = vmatprep.subr.mxu0 0.0
    %6577 = vmatpush1.msra.mxu0 0.0
    %6578 = vmatprep.subr.mxu0 0.0
    %6579 = vmatpush1.msra.mxu0 0.0
    %6580 = vmatprep.subr.mxu0 0.0
    %6581 = vmatpush1.msra.mxu0 0.0
    %6582 = vmatprep.subr.mxu0 0.0
    %6583 = vmatpush1.msra.mxu0 0.0
    %6584 = vmatprep.subr.mxu0 0.0
    %6585 = vmatpush1.msra.mxu0 0.0
    %6586 = vmatprep.subr.mxu0 0.0
    %6587 = vmatpush1.msra.mxu0 0.0
    %6588 = vmatprep.mubr.f32.mxu0 0.0
    %6589 = vmatmul.mubr.f32.gmra.mrb[0].mxu0 %v6519
    %v6590 = vpop.f32.mrb[0].mxu0
    %v6591 = vadd.f32 0.0, %v6590
    %v6592 = vpop.f32.mrb[0].mxu0
    %6593 = vmatprep.mubr.f32.mxu0 0.0
    %6594 = vmatmul.mubr.f32.gmra.mrb[0].mxu0 %v6522
    %v6595 = vpop.f32.mrb[0].mxu0
    %v6596 = vadd.f32 0.0, %v6595
    %v6597 = vpop.f32.mrb[0].mxu0
    %6598 = vdwg.mxu0
    %6599 = vst.msk [vmem:[%s23 + $0x8] sm:$0xff] %vm6402, %v6591
    %6600 = vst.msk [vmem:[%s23 + $0x68] sm:$0xff] %vm6402, %v6596
    %6601 = vxpose.xlu0.b32.start [1/16] %v4341, 128
    %6602 = vxpose.xlu0.b32.cont [2/16] %v4346, 128
    %6603 = vxpose.xlu0.b32.cont [3/16] %v4351, 128
    %6604 = vxpose.xlu0.b32.cont [4/16] %v4356, 128
    %6605 = vxpose.xlu0.b32.cont [5/16] %v4361, 128
    %6606 = vxpose.xlu0.b32.cont [6/16] %v4366, 128
    %6607 = vxpose.xlu0.b32.cont [7/16] 0.0, 128
    %6608 = vxpose.xlu0.b32.cont [8/16] 0.0, 128
    %6609 = vxpose.xlu0.b32.cont [9/16] 0.0, 128
    %6610 = vxpose.xlu0.b32.cont [10/16] 0.0, 128
    %6611 = vxpose.xlu0.b32.cont [11/16] 0.0, 128
    %6612 = vxpose.xlu0.b32.cont [12/16] 0.0, 128
    %6613 = vxpose.xlu0.b32.cont [13/16] 0.0, 128
    %6614 = vxpose.xlu0.b32.cont [14/16] 0.0, 128
    %6615 = vxpose.xlu0.b32.cont [15/16] 0.0, 128
    %6616 = vxpose.xlu0.b32.end [16/16] 0.0, 128
    %v6617 = vpop.trf.xlu0
    %v6618 = vpop.trf.xlu0
    %v6619 = vpop.trf.xlu0
    %v6620 = vpop.trf.xlu0
    %v6621 = vpop.trf.xlu0
    %v6622 = vpop.trf.xlu0
    %v6623 = vpop.trf.xlu0
    %v6624 = vpop.trf.xlu0
    %v6625 = vpop.trf.xlu0
    %v6626 = vpop.trf.xlu0
    %v6627 = vpop.trf.xlu0
    %v6628 = vpop.trf.xlu0
    %v6629 = vpop.trf.xlu0
    %v6630 = vpop.trf.xlu0
    %v6631 = vpop.trf.xlu0
    %v6632 = vpop.trf.xlu0
    %v6634 = vsel %vm6402, %v6617, 0
    %v6637 = vsel %vm6402, %v6618, 0
    %6639 = vmatprep.subr.mxu0 0.0
    %6640 = vmatpush1.msra.mxu0 %v6364
    %6641 = vmatprep.subr.mxu0 0.0
    %6642 = vmatpush1.msra.mxu0 %v6365
    %6643 = vmatprep.subr.mxu0 0.0
    %6644 = vmatpush1.msra.mxu0 %v6366
    %6645 = vmatprep.subr.mxu0 0.0
    %6646 = vmatpush1.msra.mxu0 %v6367
    %6647 = vmatprep.subr.mxu0 0.0
    %6648 = vmatpush1.msra.mxu0 %v6368
    %6649 = vmatprep.subr.mxu0 0.0
    %6650 = vmatpush1.msra.mxu0 %v6369
    %6651 = vmatprep.subr.mxu0 0.0
    %6652 = vmatpush1.msra.mxu0 0.0
    %6653 = vmatprep.subr.mxu0 0.0
    %6654 = vmatpush1.msra.mxu0 0.0
    %6655 = vmatprep.subr.mxu0 0.0
    %6656 = vmatpush1.msra.mxu0 0.0
    %6657 = vmatprep.subr.mxu0 0.0
    %6658 = vmatpush1.msra.mxu0 0.0
    %6659 = vmatprep.subr.mxu0 0.0
    %6660 = vmatpush1.msra.mxu0 0.0
    %6661 = vmatprep.subr.mxu0 0.0
    %6662 = vmatpush1.msra.mxu0 0.0
    %6663 = vmatprep.subr.mxu0 0.0
    %6664 = vmatpush1.msra.mxu0 0.0
    %6665 = vmatprep.subr.mxu0 0.0
    %6666 = vmatpush1.msra.mxu0 0.0
    %6667 = vmatprep.subr.mxu0 0.0
    %6668 = vmatpush1.msra.mxu0 0.0
    %6669 = vmatprep.subr.mxu0 0.0
    %6670 = vmatpush1.msra.mxu0 0.0
    %6671 = vmatprep.subr.mxu0 0.0
    %6672 = vmatpush1.msra.mxu0 0.0
    %6673 = vmatprep.subr.mxu0 0.0
    %6674 = vmatpush1.msra.mxu0 0.0
    %6675 = vmatprep.subr.mxu0 0.0
    %6676 = vmatpush1.msra.mxu0 0.0
    %6677 = vmatprep.subr.mxu0 0.0
    %6678 = vmatpush1.msra.mxu0 0.0
    %6679 = vmatprep.subr.mxu0 0.0
    %6680 = vmatpush1.msra.mxu0 0.0
    %6681 = vmatprep.subr.mxu0 0.0
    %6682 = vmatpush1.msra.mxu0 0.0
    %6683 = vmatprep.subr.mxu0 0.0
    %6684 = vmatpush1.msra.mxu0 0.0
    %6685 = vmatprep.subr.mxu0 0.0
    %6686 = vmatpush1.msra.mxu0 0.0
    %6687 = vmatprep.subr.mxu0 0.0
    %6688 = vmatpush1.msra.mxu0 0.0
    %6689 = vmatprep.subr.mxu0 0.0
    %6690 = vmatpush1.msra.mxu0 0.0
    %6691 = vmatprep.subr.mxu0 0.0
    %6692 = vmatpush1.msra.mxu0 0.0
    %6693 = vmatprep.subr.mxu0 0.0
    %6694 = vmatpush1.msra.mxu0 0.0
    %6695 = vmatprep.subr.mxu0 0.0
    %6696 = vmatpush1.msra.mxu0 0.0
    %6697 = vmatprep.subr.mxu0 0.0
    %6698 = vmatpush1.msra.mxu0 0.0
    %6699 = vmatprep.subr.mxu0 0.0
    %6700 = vmatpush1.msra.mxu0 0.0
    %6701 = vmatprep.subr.mxu0 0.0
    %6702 = vmatpush1.msra.mxu0 0.0
    %6703 = vmatprep.mubr.f32.mxu0 0.0
    %6704 = vmatmul.mubr.f32.gmra.mrb[0].mxu0 %v6634
    %v6705 = vpop.f32.mrb[0].mxu0
    %v6706 = vadd.f32 0.0, %v6705
    %v6707 = vpop.f32.mrb[0].mxu0
    %6708 = vmatprep.mubr.f32.mxu0 0.0
    %6709 = vmatmul.mubr.f32.gmra.mrb[0].mxu0 %v6637
    %v6710 = vpop.f32.mrb[0].mxu0
    %v6711 = vadd.f32 0.0, %v6710
    %v6712 = vpop.f32.mrb[0].mxu0
    %6713 = vdwg.mxu0
    %6714 = vst.msk [vmem:[%s23 + $0x10] sm:$0xff] %vm6402, %v6706
    %6715 = vst.msk [vmem:[%s23 + $0x70] sm:$0xff] %vm6402, %v6711
    %6716 = vxpose.xlu0.b32.start [1/16] %v4371, 128
    %6717 = vxpose.xlu0.b32.cont [2/16] %v4376, 128
    %6718 = vxpose.xlu0.b32.cont [3/16] %v4381, 128
    %6719 = vxpose.xlu0.b32.cont [4/16] %v4386, 128
    %6720 = vxpose.xlu0.b32.cont [5/16] %v4391, 128
    %6721 = vxpose.xlu0.b32.cont [6/16] %v4396, 128
    %6722 = vxpose.xlu0.b32.cont [7/16] 0.0, 128
    %6723 = vxpose.xlu0.b32.cont [8/16] 0.0, 128
    %6724 = vxpose.xlu0.b32.cont [9/16] 0.0, 128
    %6725 = vxpose.xlu0.b32.cont [10/16] 0.0, 128
    %6726 = vxpose.xlu0.b32.cont [11/16] 0.0, 128
    %6727 = vxpose.xlu0.b32.cont [12/16] 0.0, 128
    %6728 = vxpose.xlu0.b32.cont [13/16] 0.0, 128
    %6729 = vxpose.xlu0.b32.cont [14/16] 0.0, 128
    %6730 = vxpose.xlu0.b32.cont [15/16] 0.0, 128
    %6731 = vxpose.xlu0.b32.end [16/16] 0.0, 128
    %v6732 = vpop.trf.xlu0
    %v6733 = vpop.trf.xlu0
    %v6734 = vpop.trf.xlu0
    %v6735 = vpop.trf.xlu0
    %v6736 = vpop.trf.xlu0
    %v6737 = vpop.trf.xlu0
    %v6738 = vpop.trf.xlu0
    %v6739 = vpop.trf.xlu0
    %v6740 = vpop.trf.xlu0
    %v6741 = vpop.trf.xlu0
    %v6742 = vpop.trf.xlu0
    %v6743 = vpop.trf.xlu0
    %v6744 = vpop.trf.xlu0
    %v6745 = vpop.trf.xlu0
    %v6746 = vpop.trf.xlu0
    %v6747 = vpop.trf.xlu0
    %v6749 = vsel %vm6402, %v6732, 0
    %v6752 = vsel %vm6402, %v6733, 0
    %6754 = vmatprep.subr.mxu0 0.0
    %6755 = vmatpush1.msra.mxu0 %v6364
    %6756 = vmatprep.subr.mxu0 0.0
    %6757 = vmatpush1.msra.mxu0 %v6365
    %6758 = vmatprep.subr.mxu0 0.0
    %6759 = vmatpush1.msra.mxu0 %v6366
    %6760 = vmatprep.subr.mxu0 0.0
    %6761 = vmatpush1.msra.mxu0 %v6367
    %6762 = vmatprep.subr.mxu0 0.0
    %6763 = vmatpush1.msra.mxu0 %v6368
    %6764 = vmatprep.subr.mxu0 0.0
    %6765 = vmatpush1.msra.mxu0 %v6369
    %6766 = vmatprep.subr.mxu0 0.0
    %6767 = vmatpush1.msra.mxu0 0.0
    %6768 = vmatprep.subr.mxu0 0.0
    %6769 = vmatpush1.msra.mxu0 0.0
    %6770 = vmatprep.subr.mxu0 0.0
    %6771 = vmatpush1.msra.mxu0 0.0
    %6772 = vmatprep.subr.mxu0 0.0
    %6773 = vmatpush1.msra.mxu0 0.0
    %6774 = vmatprep.subr.mxu0 0.0
    %6775 = vmatpush1.msra.mxu0 0.0
    %6776 = vmatprep.subr.mxu0 0.0
    %6777 = vmatpush1.msra.mxu0 0.0
    %6778 = vmatprep.subr.mxu0 0.0
    %6779 = vmatpush1.msra.mxu0 0.0
    %6780 = vmatprep.subr.mxu0 0.0
    %6781 = vmatpush1.msra.mxu0 0.0
    %6782 = vmatprep.subr.mxu0 0.0
    %6783 = vmatpush1.msra.mxu0 0.0
    %6784 = vmatprep.subr.mxu0 0.0
    %6785 = vmatpush1.msra.mxu0 0.0
    %6786 = vmatprep.subr.mxu0 0.0
    %6787 = vmatpush1.msra.mxu0 0.0
    %6788 = vmatprep.subr.mxu0 0.0
    %6789 = vmatpush1.msra.mxu0 0.0
    %6790 = vmatprep.subr.mxu0 0.0
    %6791 = vmatpush1.msra.mxu0 0.0
    %6792 = vmatprep.subr.mxu0 0.0
    %6793 = vmatpush1.msra.mxu0 0.0
    %6794 = vmatprep.subr.mxu0 0.0
    %6795 = vmatpush1.msra.mxu0 0.0
    %6796 = vmatprep.subr.mxu0 0.0
    %6797 = vmatpush1.msra.mxu0 0.0
    %6798 = vmatprep.subr.mxu0 0.0
    %6799 = vmatpush1.msra.mxu0 0.0
    %6800 = vmatprep.subr.mxu0 0.0
    %6801 = vmatpush1.msra.mxu0 0.0
    %6802 = vmatprep.subr.mxu0 0.0
    %6803 = vmatpush1.msra.mxu0 0.0
    %6804 = vmatprep.subr.mxu0 0.0
    %6805 = vmatpush1.msra.mxu0 0.0
    %6806 = vmatprep.subr.mxu0 0.0
    %6807 = vmatpush1.msra.mxu0 0.0
    %6808 = vmatprep.subr.mxu0 0.0
    %6809 = vmatpush1.msra.mxu0 0.0
    %6810 = vmatprep.subr.mxu0 0.0
    %6811 = vmatpush1.msra.mxu0 0.0
    %6812 = vmatprep.subr.mxu0 0.0
    %6813 = vmatpush1.msra.mxu0 0.0
    %6814 = vmatprep.subr.mxu0 0.0
    %6815 = vmatpush1.msra.mxu0 0.0
    %6816 = vmatprep.subr.mxu0 0.0
    %6817 = vmatpush1.msra.mxu0 0.0
    %6818 = vmatprep.mubr.f32.mxu0 0.0
    %6819 = vmatmul.mubr.f32.gmra.mrb[0].mxu0 %v6749
    %v6820 = vpop.f32.mrb[0].mxu0
    %v6821 = vadd.f32 0.0, %v6820
    %v6822 = vpop.f32.mrb[0].mxu0
    %6823 = vmatprep.mubr.f32.mxu0 0.0
    %6824 = vmatmul.mubr.f32.gmra.mrb[0].mxu0 %v6752
    %v6825 = vpop.f32.mrb[0].mxu0
    %v6826 = vadd.f32 0.0, %v6825
    %v6827 = vpop.f32.mrb[0].mxu0
    %6828 = vdwg.mxu0
    %6829 = vst.msk [vmem:[%s23 + $0x18] sm:$0xff] %vm6402, %v6821
    %6830 = vst.msk [vmem:[%s23 + $0x78] sm:$0xff] %vm6402, %v6826
    %6831 = vxpose.xlu0.b32.start [1/16] %v4401, 128
    %6832 = vxpose.xlu0.b32.cont [2/16] %v4406, 128
    %6833 = vxpose.xlu0.b32.cont [3/16] %v4411, 128
    %6834 = vxpose.xlu0.b32.cont [4/16] %v4416, 128
    %6835 = vxpose.xlu0.b32.cont [5/16] %v4421, 128
    %6836 = vxpose.xlu0.b32.cont [6/16] %v4426, 128
    %6837 = vxpose.xlu0.b32.cont [7/16] 0.0, 128
    %6838 = vxpose.xlu0.b32.cont [8/16] 0.0, 128
    %6839 = vxpose.xlu0.b32.cont [9/16] 0.0, 128
    %6840 = vxpose.xlu0.b32.cont [10/16] 0.0, 128
    %6841 = vxpose.xlu0.b32.cont [11/16] 0.0, 128
    %6842 = vxpose.xlu0.b32.cont [12/16] 0.0, 128
    %6843 = vxpose.xlu0.b32.cont [13/16] 0.0, 128
    %6844 = vxpose.xlu0.b32.cont [14/16] 0.0, 128
    %6845 = vxpose.xlu0.b32.cont [15/16] 0.0, 128
    %6846 = vxpose.xlu0.b32.end [16/16] 0.0, 128
    %v6847 = vpop.trf.xlu0
    %v6848 = vpop.trf.xlu0
    %v6849 = vpop.trf.xlu0
    %v6850 = vpop.trf.xlu0
    %v6851 = vpop.trf.xlu0
    %v6852 = vpop.trf.xlu0
    %v6853 = vpop.trf.xlu0
    %v6854 = vpop.trf.xlu0
    %v6855 = vpop.trf.xlu0
    %v6856 = vpop.trf.xlu0
    %v6857 = vpop.trf.xlu0
    %v6858 = vpop.trf.xlu0
    %v6859 = vpop.trf.xlu0
    %v6860 = vpop.trf.xlu0
    %v6861 = vpop.trf.xlu0
    %v6862 = vpop.trf.xlu0
    %v6864 = vsel %vm6402, %v6847, 0
    %v6867 = vsel %vm6402, %v6848, 0
    %6869 = vmatprep.subr.mxu0 0.0
    %6870 = vmatpush1.msra.mxu0 %v6364
    %6871 = vmatprep.subr.mxu0 0.0
    %6872 = vmatpush1.msra.mxu0 %v6365
    %6873 = vmatprep.subr.mxu0 0.0
    %6874 = vmatpush1.msra.mxu0 %v6366
    %6875 = vmatprep.subr.mxu0 0.0
    %6876 = vmatpush1.msra.mxu0 %v6367
    %6877 = vmatprep.subr.mxu0 0.0
    %6878 = vmatpush1.msra.mxu0 %v6368
    %6879 = vmatprep.subr.mxu0 0.0
    %6880 = vmatpush1.msra.mxu0 %v6369
    %6881 = vmatprep.subr.mxu0 0.0
    %6882 = vmatpush1.msra.mxu0 0.0
    %6883 = vmatprep.subr.mxu0 0.0
    %6884 = vmatpush1.msra.mxu0 0.0
    %6885 = vmatprep.subr.mxu0 0.0
    %6886 = vmatpush1.msra.mxu0 0.0
    %6887 = vmatprep.subr.mxu0 0.0
    %6888 = vmatpush1.msra.mxu0 0.0
    %6889 = vmatprep.subr.mxu0 0.0
    %6890 = vmatpush1.msra.mxu0 0.0
    %6891 = vmatprep.subr.mxu0 0.0
    %6892 = vmatpush1.msra.mxu0 0.0
    %6893 = vmatprep.subr.mxu0 0.0
    %6894 = vmatpush1.msra.mxu0 0.0
    %6895 = vmatprep.subr.mxu0 0.0
    %6896 = vmatpush1.msra.mxu0 0.0
    %6897 = vmatprep.subr.mxu0 0.0
    %6898 = vmatpush1.msra.mxu0 0.0
    %6899 = vmatprep.subr.mxu0 0.0
    %6900 = vmatpush1.msra.mxu0 0.0
    %6901 = vmatprep.subr.mxu0 0.0
    %6902 = vmatpush1.msra.mxu0 0.0
    %6903 = vmatprep.subr.mxu0 0.0
    %6904 = vmatpush1.msra.mxu0 0.0
    %6905 = vmatprep.subr.mxu0 0.0
    %6906 = vmatpush1.msra.mxu0 0.0
    %6907 = vmatprep.subr.mxu0 0.0
    %6908 = vmatpush1.msra.mxu0 0.0
    %6909 = vmatprep.subr.mxu0 0.0
    %6910 = vmatpush1.msra.mxu0 0.0
    %6911 = vmatprep.subr.mxu0 0.0
    %6912 = vmatpush1.msra.mxu0 0.0
    %6913 = vmatprep.subr.mxu0 0.0
    %6914 = vmatpush1.msra.mxu0 0.0
    %6915 = vmatprep.subr.mxu0 0.0
    %6916 = vmatpush1.msra.mxu0 0.0
    %6917 = vmatprep.subr.mxu0 0.0
    %6918 = vmatpush1.msra.mxu0 0.0
    %6919 = vmatprep.subr.mxu0 0.0
    %6920 = vmatpush1.msra.mxu0 0.0
    %6921 = vmatprep.subr.mxu0 0.0
    %6922 = vmatpush1.msra.mxu0 0.0
    %6923 = vmatprep.subr.mxu0 0.0
    %6924 = vmatpush1.msra.mxu0 0.0
    %6925 = vmatprep.subr.mxu0 0.0
    %6926 = vmatpush1.msra.mxu0 0.0
    %6927 = vmatprep.subr.mxu0 0.0
    %6928 = vmatpush1.msra.mxu0 0.0
    %6929 = vmatprep.subr.mxu0 0.0
    %6930 = vmatpush1.msra.mxu0 0.0
    %6931 = vmatprep.subr.mxu0 0.0
    %6932 = vmatpush1.msra.mxu0 0.0
    %6933 = vmatprep.mubr.f32.mxu0 0.0
    %6934 = vmatmul.mubr.f32.gmra.mrb[0].mxu0 %v6864
    %v6935 = vpop.f32.mrb[0].mxu0
    %v6936 = vadd.f32 0.0, %v6935
    %v6937 = vpop.f32.mrb[0].mxu0
    %6938 = vmatprep.mubr.f32.mxu0 0.0
    %6939 = vmatmul.mubr.f32.gmra.mrb[0].mxu0 %v6867
    %v6940 = vpop.f32.mrb[0].mxu0
    %v6941 = vadd.f32 0.0, %v6940
    %v6942 = vpop.f32.mrb[0].mxu0
    %6943 = vdwg.mxu0
    %6944 = vst.msk [vmem:[%s23 + $0x20] sm:$0xff] %vm6402, %v6936
    %6945 = vst.msk [vmem:[%s23 + $0x80] sm:$0xff] %vm6402, %v6941
    %6946 = vxpose.xlu0.b32.start [1/16] %v4431, 128
    %6947 = vxpose.xlu0.b32.cont [2/16] %v4436, 128
    %6948 = vxpose.xlu0.b32.cont [3/16] %v4441, 128
    %6949 = vxpose.xlu0.b32.cont [4/16] %v4446, 128
    %6950 = vxpose.xlu0.b32.cont [5/16] %v4451, 128
    %6951 = vxpose.xlu0.b32.cont [6/16] %v4456, 128
    %6952 = vxpose.xlu0.b32.cont [7/16] 0.0, 128
    %6953 = vxpose.xlu0.b32.cont [8/16] 0.0, 128
    %6954 = vxpose.xlu0.b32.cont [9/16] 0.0, 128
    %6955 = vxpose.xlu0.b32.cont [10/16] 0.0, 128
    %6956 = vxpose.xlu0.b32.cont [11/16] 0.0, 128
    %6957 = vxpose.xlu0.b32.cont [12/16] 0.0, 128
    %6958 = vxpose.xlu0.b32.cont [13/16] 0.0, 128
    %6959 = vxpose.xlu0.b32.cont [14/16] 0.0, 128
    %6960 = vxpose.xlu0.b32.cont [15/16] 0.0, 128
    %6961 = vxpose.xlu0.b32.end [16/16] 0.0, 128
    %v6962 = vpop.trf.xlu0
    %v6963 = vpop.trf.xlu0
    %v6964 = vpop.trf.xlu0
    %v6965 = vpop.trf.xlu0
    %v6966 = vpop.trf.xlu0
    %v6967 = vpop.trf.xlu0
    %v6968 = vpop.trf.xlu0
    %v6969 = vpop.trf.xlu0
    %v6970 = vpop.trf.xlu0
    %v6971 = vpop.trf.xlu0
    %v6972 = vpop.trf.xlu0
    %v6973 = vpop.trf.xlu0
    %v6974 = vpop.trf.xlu0
    %v6975 = vpop.trf.xlu0
    %v6976 = vpop.trf.xlu0
    %v6977 = vpop.trf.xlu0
    %v6979 = vsel %vm6402, %v6962, 0
    %v6982 = vsel %vm6402, %v6963, 0
    %6984 = vmatprep.subr.mxu0 0.0
    %6985 = vmatpush1.msra.mxu0 %v6364
    %6986 = vmatprep.subr.mxu0 0.0
    %6987 = vmatpush1.msra.mxu0 %v6365
    %6988 = vmatprep.subr.mxu0 0.0
    %6989 = vmatpush1.msra.mxu0 %v6366
    %6990 = vmatprep.subr.mxu0 0.0
    %6991 = vmatpush1.msra.mxu0 %v6367
    %6992 = vmatprep.subr.mxu0 0.0
    %6993 = vmatpush1.msra.mxu0 %v6368
    %6994 = vmatprep.subr.mxu0 0.0
    %6995 = vmatpush1.msra.mxu0 %v6369
    %6996 = vmatprep.subr.mxu0 0.0
    %6997 = vmatpush1.msra.mxu0 0.0
    %6998 = vmatprep.subr.mxu0 0.0
    %6999 = vmatpush1.msra.mxu0 0.0
    %7000 = vmatprep.subr.mxu0 0.0
    %7001 = vmatpush1.msra.mxu0 0.0
    %7002 = vmatprep.subr.mxu0 0.0
    %7003 = vmatpush1.msra.mxu0 0.0
    %7004 = vmatprep.subr.mxu0 0.0
    %7005 = vmatpush1.msra.mxu0 0.0
    %7006 = vmatprep.subr.mxu0 0.0
    %7007 = vmatpush1.msra.mxu0 0.0
    %7008 = vmatprep.subr.mxu0 0.0
    %7009 = vmatpush1.msra.mxu0 0.0
    %7010 = vmatprep.subr.mxu0 0.0
    %7011 = vmatpush1.msra.mxu0 0.0
    %7012 = vmatprep.subr.mxu0 0.0
    %7013 = vmatpush1.msra.mxu0 0.0
    %7014 = vmatprep.subr.mxu0 0.0
    %7015 = vmatpush1.msra.mxu0 0.0
    %7016 = vmatprep.subr.mxu0 0.0
    %7017 = vmatpush1.msra.mxu0 0.0
    %7018 = vmatprep.subr.mxu0 0.0
    %7019 = vmatpush1.msra.mxu0 0.0
    %7020 = vmatprep.subr.mxu0 0.0
    %7021 = vmatpush1.msra.mxu0 0.0
    %7022 = vmatprep.subr.mxu0 0.0
    %7023 = vmatpush1.msra.mxu0 0.0
    %7024 = vmatprep.subr.mxu0 0.0
    %7025 = vmatpush1.msra.mxu0 0.0
    %7026 = vmatprep.subr.mxu0 0.0
    %7027 = vmatpush1.msra.mxu0 0.0
    %7028 = vmatprep.subr.mxu0 0.0
    %7029 = vmatpush1.msra.mxu0 0.0
    %7030 = vmatprep.subr.mxu0 0.0
    %7031 = vmatpush1.msra.mxu0 0.0
    %7032 = vmatprep.subr.mxu0 0.0
    %7033 = vmatpush1.msra.mxu0 0.0
    %7034 = vmatprep.subr.mxu0 0.0
    %7035 = vmatpush1.msra.mxu0 0.0
    %7036 = vmatprep.subr.mxu0 0.0
    %7037 = vmatpush1.msra.mxu0 0.0
    %7038 = vmatprep.subr.mxu0 0.0
    %7039 = vmatpush1.msra.mxu0 0.0
    %7040 = vmatprep.subr.mxu0 0.0
    %7041 = vmatpush1.msra.mxu0 0.0
    %7042 = vmatprep.subr.mxu0 0.0
    %7043 = vmatpush1.msra.mxu0 0.0
    %7044 = vmatprep.subr.mxu0 0.0
    %7045 = vmatpush1.msra.mxu0 0.0
    %7046 = vmatprep.subr.mxu0 0.0
    %7047 = vmatpush1.msra.mxu0 0.0
    %7048 = vmatprep.mubr.f32.mxu0 0.0
    %7049 = vmatmul.mubr.f32.gmra.mrb[0].mxu0 %v6979
    %v7050 = vpop.f32.mrb[0].mxu0
    %v7051 = vadd.f32 0.0, %v7050
    %v7052 = vpop.f32.mrb[0].mxu0
    %7053 = vmatprep.mubr.f32.mxu0 0.0
    %7054 = vmatmul.mubr.f32.gmra.mrb[0].mxu0 %v6982
    %v7055 = vpop.f32.mrb[0].mxu0
    %v7056 = vadd.f32 0.0, %v7055
    %v7057 = vpop.f32.mrb[0].mxu0
    %7058 = vdwg.mxu0
    %7059 = vst.msk [vmem:[%s23 + $0x28] sm:$0xff] %vm6402, %v7051
    %7060 = vst.msk [vmem:[%s23 + $0x88] sm:$0xff] %vm6402, %v7056
    %7061 = vxpose.xlu0.b32.start [1/16] %v4461, 128
    %7062 = vxpose.xlu0.b32.cont [2/16] %v4466, 128
    %7063 = vxpose.xlu0.b32.cont [3/16] %v4471, 128
    %7064 = vxpose.xlu0.b32.cont [4/16] %v4476, 128
    %7065 = vxpose.xlu0.b32.cont [5/16] %v4481, 128
    %7066 = vxpose.xlu0.b32.cont [6/16] %v4486, 128
    %7067 = vxpose.xlu0.b32.cont [7/16] 0.0, 128
    %7068 = vxpose.xlu0.b32.cont [8/16] 0.0, 128
    %7069 = vxpose.xlu0.b32.cont [9/16] 0.0, 128
    %7070 = vxpose.xlu0.b32.cont [10/16] 0.0, 128
    %7071 = vxpose.xlu0.b32.cont [11/16] 0.0, 128
    %7072 = vxpose.xlu0.b32.cont [12/16] 0.0, 128
    %7073 = vxpose.xlu0.b32.cont [13/16] 0.0, 128
    %7074 = vxpose.xlu0.b32.cont [14/16] 0.0, 128
    %7075 = vxpose.xlu0.b32.cont [15/16] 0.0, 128
    %7076 = vxpose.xlu0.b32.end [16/16] 0.0, 128
    %v7077 = vpop.trf.xlu0
    %v7078 = vpop.trf.xlu0
    %v7079 = vpop.trf.xlu0
    %v7080 = vpop.trf.xlu0
    %v7081 = vpop.trf.xlu0
    %v7082 = vpop.trf.xlu0
    %v7083 = vpop.trf.xlu0
    %v7084 = vpop.trf.xlu0
    %v7085 = vpop.trf.xlu0
    %v7086 = vpop.trf.xlu0
    %v7087 = vpop.trf.xlu0
    %v7088 = vpop.trf.xlu0
    %v7089 = vpop.trf.xlu0
    %v7090 = vpop.trf.xlu0
    %v7091 = vpop.trf.xlu0
    %v7092 = vpop.trf.xlu0
    %v7094 = vsel %vm6402, %v7077, 0
    %v7097 = vsel %vm6402, %v7078, 0
    %7099 = vmatprep.subr.mxu0 0.0
    %7100 = vmatpush1.msra.mxu0 %v6364
    %7101 = vmatprep.subr.mxu0 0.0
    %7102 = vmatpush1.msra.mxu0 %v6365
    %7103 = vmatprep.subr.mxu0 0.0
    %7104 = vmatpush1.msra.mxu0 %v6366
    %7105 = vmatprep.subr.mxu0 0.0
    %7106 = vmatpush1.msra.mxu0 %v6367
    %7107 = vmatprep.subr.mxu0 0.0
    %7108 = vmatpush1.msra.mxu0 %v6368
    %7109 = vmatprep.subr.mxu0 0.0
    %7110 = vmatpush1.msra.mxu0 %v6369
    %7111 = vmatprep.subr.mxu0 0.0
    %7112 = vmatpush1.msra.mxu0 0.0
    %7113 = vmatprep.subr.mxu0 0.0
    %7114 = vmatpush1.msra.mxu0 0.0
    %7115 = vmatprep.subr.mxu0 0.0
    %7116 = vmatpush1.msra.mxu0 0.0
    %7117 = vmatprep.subr.mxu0 0.0
    %7118 = vmatpush1.msra.mxu0 0.0
    %7119 = vmatprep.subr.mxu0 0.0
    %7120 = vmatpush1.msra.mxu0 0.0
    %7121 = vmatprep.subr.mxu0 0.0
    %7122 = vmatpush1.msra.mxu0 0.0
    %7123 = vmatprep.subr.mxu0 0.0
    %7124 = vmatpush1.msra.mxu0 0.0
    %7125 = vmatprep.subr.mxu0 0.0
    %7126 = vmatpush1.msra.mxu0 0.0
    %7127 = vmatprep.subr.mxu0 0.0
    %7128 = vmatpush1.msra.mxu0 0.0
    %7129 = vmatprep.subr.mxu0 0.0
    %7130 = vmatpush1.msra.mxu0 0.0
    %7131 = vmatprep.subr.mxu0 0.0
    %7132 = vmatpush1.msra.mxu0 0.0
    %7133 = vmatprep.subr.mxu0 0.0
    %7134 = vmatpush1.msra.mxu0 0.0
    %7135 = vmatprep.subr.mxu0 0.0
    %7136 = vmatpush1.msra.mxu0 0.0
    %7137 = vmatprep.subr.mxu0 0.0
    %7138 = vmatpush1.msra.mxu0 0.0
    %7139 = vmatprep.subr.mxu0 0.0
    %7140 = vmatpush1.msra.mxu0 0.0
    %7141 = vmatprep.subr.mxu0 0.0
    %7142 = vmatpush1.msra.mxu0 0.0
    %7143 = vmatprep.subr.mxu0 0.0
    %7144 = vmatpush1.msra.mxu0 0.0
    %7145 = vmatprep.subr.mxu0 0.0
    %7146 = vmatpush1.msra.mxu0 0.0
    %7147 = vmatprep.subr.mxu0 0.0
    %7148 = vmatpush1.msra.mxu0 0.0
    %7149 = vmatprep.subr.mxu0 0.0
    %7150 = vmatpush1.msra.mxu0 0.0
    %7151 = vmatprep.subr.mxu0 0.0
    %7152 = vmatpush1.msra.mxu0 0.0
    %7153 = vmatprep.subr.mxu0 0.0
    %7154 = vmatpush1.msra.mxu0 0.0
    %7155 = vmatprep.subr.mxu0 0.0
    %7156 = vmatpush1.msra.mxu0 0.0
    %7157 = vmatprep.subr.mxu0 0.0
    %7158 = vmatpush1.msra.mxu0 0.0
    %7159 = vmatprep.subr.mxu0 0.0
    %7160 = vmatpush1.msra.mxu0 0.0
    %7161 = vmatprep.subr.mxu0 0.0
    %7162 = vmatpush1.msra.mxu0 0.0
    %7163 = vmatprep.mubr.f32.mxu0 0.0
    %7164 = vmatmul.mubr.f32.gmra.mrb[0].mxu0 %v7094
    %v7165 = vpop.f32.mrb[0].mxu0
    %v7166 = vadd.f32 0.0, %v7165
    %v7167 = vpop.f32.mrb[0].mxu0
    %7168 = vmatprep.mubr.f32.mxu0 0.0
    %7169 = vmatmul.mubr.f32.gmra.mrb[0].mxu0 %v7097
    %v7170 = vpop.f32.mrb[0].mxu0
    %v7171 = vadd.f32 0.0, %v7170
    %v7172 = vpop.f32.mrb[0].mxu0
    %7173 = vdwg.mxu0
    %7174 = vst.msk [vmem:[%s23 + $0x30] sm:$0xff] %vm6402, %v7166
    %7175 = vst.msk [vmem:[%s23 + $0x90] sm:$0xff] %vm6402, %v7171
    %7176 = vxpose.xlu0.b32.start [1/16] %v4491, 128
    %7177 = vxpose.xlu0.b32.cont [2/16] %v4496, 128
    %7178 = vxpose.xlu0.b32.cont [3/16] %v4501, 128
    %7179 = vxpose.xlu0.b32.cont [4/16] %v4506, 128
    %7180 = vxpose.xlu0.b32.cont [5/16] %v4511, 128
    %7181 = vxpose.xlu0.b32.cont [6/16] %v4516, 128
    %7182 = vxpose.xlu0.b32.cont [7/16] 0.0, 128
    %7183 = vxpose.xlu0.b32.cont [8/16] 0.0, 128
    %7184 = vxpose.xlu0.b32.cont [9/16] 0.0, 128
    %7185 = vxpose.xlu0.b32.cont [10/16] 0.0, 128
    %7186 = vxpose.xlu0.b32.cont [11/16] 0.0, 128
    %7187 = vxpose.xlu0.b32.cont [12/16] 0.0, 128
    %7188 = vxpose.xlu0.b32.cont [13/16] 0.0, 128
    %7189 = vxpose.xlu0.b32.cont [14/16] 0.0, 128
    %7190 = vxpose.xlu0.b32.cont [15/16] 0.0, 128
    %7191 = vxpose.xlu0.b32.end [16/16] 0.0, 128
    %v7192 = vpop.trf.xlu0
    %v7193 = vpop.trf.xlu0
    %v7194 = vpop.trf.xlu0
    %v7195 = vpop.trf.xlu0
    %v7196 = vpop.trf.xlu0
    %v7197 = vpop.trf.xlu0
    %v7198 = vpop.trf.xlu0
    %v7199 = vpop.trf.xlu0
    %v7200 = vpop.trf.xlu0
    %v7201 = vpop.trf.xlu0
    %v7202 = vpop.trf.xlu0
    %v7203 = vpop.trf.xlu0
    %v7204 = vpop.trf.xlu0
    %v7205 = vpop.trf.xlu0
    %v7206 = vpop.trf.xlu0
    %v7207 = vpop.trf.xlu0
    %v7209 = vsel %vm6402, %v7192, 0
    %v7212 = vsel %vm6402, %v7193, 0
    %7214 = vmatprep.subr.mxu0 0.0
    %7215 = vmatpush1.msra.mxu0 %v6364
    %7216 = vmatprep.subr.mxu0 0.0
    %7217 = vmatpush1.msra.mxu0 %v6365
    %7218 = vmatprep.subr.mxu0 0.0
    %7219 = vmatpush1.msra.mxu0 %v6366
    %7220 = vmatprep.subr.mxu0 0.0
    %7221 = vmatpush1.msra.mxu0 %v6367
    %7222 = vmatprep.subr.mxu0 0.0
    %7223 = vmatpush1.msra.mxu0 %v6368
    %7224 = vmatprep.subr.mxu0 0.0
    %7225 = vmatpush1.msra.mxu0 %v6369
    %7226 = vmatprep.subr.mxu0 0.0
    %7227 = vmatpush1.msra.mxu0 0.0
    %7228 = vmatprep.subr.mxu0 0.0
    %7229 = vmatpush1.msra.mxu0 0.0
    %7230 = vmatprep.subr.mxu0 0.0
    %7231 = vmatpush1.msra.mxu0 0.0
    %7232 = vmatprep.subr.mxu0 0.0
    %7233 = vmatpush1.msra.mxu0 0.0
    %7234 = vmatprep.subr.mxu0 0.0
    %7235 = vmatpush1.msra.mxu0 0.0
    %7236 = vmatprep.subr.mxu0 0.0
    %7237 = vmatpush1.msra.mxu0 0.0
    %7238 = vmatprep.subr.mxu0 0.0
    %7239 = vmatpush1.msra.mxu0 0.0
    %7240 = vmatprep.subr.mxu0 0.0
    %7241 = vmatpush1.msra.mxu0 0.0
    %7242 = vmatprep.subr.mxu0 0.0
    %7243 = vmatpush1.msra.mxu0 0.0
    %7244 = vmatprep.subr.mxu0 0.0
    %7245 = vmatpush1.msra.mxu0 0.0
    %7246 = vmatprep.subr.mxu0 0.0
    %7247 = vmatpush1.msra.mxu0 0.0
    %7248 = vmatprep.subr.mxu0 0.0
    %7249 = vmatpush1.msra.mxu0 0.0
    %7250 = vmatprep.subr.mxu0 0.0
    %7251 = vmatpush1.msra.mxu0 0.0
    %7252 = vmatprep.subr.mxu0 0.0
    %7253 = vmatpush1.msra.mxu0 0.0
    %7254 = vmatprep.subr.mxu0 0.0
    %7255 = vmatpush1.msra.mxu0 0.0
    %7256 = vmatprep.subr.mxu0 0.0
    %7257 = vmatpush1.msra.mxu0 0.0
    %7258 = vmatprep.subr.mxu0 0.0
    %7259 = vmatpush1.msra.mxu0 0.0
    %7260 = vmatprep.subr.mxu0 0.0
    %7261 = vmatpush1.msra.mxu0 0.0
    %7262 = vmatprep.subr.mxu0 0.0
    %7263 = vmatpush1.msra.mxu0 0.0
    %7264 = vmatprep.subr.mxu0 0.0
    %7265 = vmatpush1.msra.mxu0 0.0
    %7266 = vmatprep.subr.mxu0 0.0
    %7267 = vmatpush1.msra.mxu0 0.0
    %7268 = vmatprep.subr.mxu0 0.0
    %7269 = vmatpush1.msra.mxu0 0.0
    %7270 = vmatprep.subr.mxu0 0.0
    %7271 = vmatpush1.msra.mxu0 0.0
    %7272 = vmatprep.subr.mxu0 0.0
    %7273 = vmatpush1.msra.mxu0 0.0
    %7274 = vmatprep.subr.mxu0 0.0
    %7275 = vmatpush1.msra.mxu0 0.0
    %7276 = vmatprep.subr.mxu0 0.0
    %7277 = vmatpush1.msra.mxu0 0.0
    %7278 = vmatprep.mubr.f32.mxu0 0.0
    %7279 = vmatmul.mubr.f32.gmra.mrb[0].mxu0 %v7209
    %v7280 = vpop.f32.mrb[0].mxu0
    %v7281 = vadd.f32 0.0, %v7280
    %v7282 = vpop.f32.mrb[0].mxu0
    %7283 = vmatprep.mubr.f32.mxu0 0.0
    %7284 = vmatmul.mubr.f32.gmra.mrb[0].mxu0 %v7212
    %v7285 = vpop.f32.mrb[0].mxu0
    %v7286 = vadd.f32 0.0, %v7285
    %v7287 = vpop.f32.mrb[0].mxu0
    %7288 = vdwg.mxu0
    %7289 = vst.msk [vmem:[%s23 + $0x38] sm:$0xff] %vm6402, %v7281
    %7290 = vst.msk [vmem:[%s23 + $0x98] sm:$0xff] %vm6402, %v7286
    %7291 = vxpose.xlu0.b32.start [1/16] %v5506, 128
    %7292 = vxpose.xlu0.b32.cont [2/16] %v5511, 128
    %7293 = vxpose.xlu0.b32.cont [3/16] %v5516, 128
    %7294 = vxpose.xlu0.b32.cont [4/16] %v5521, 128
    %7295 = vxpose.xlu0.b32.cont [5/16] %v5526, 128
    %7296 = vxpose.xlu0.b32.cont [6/16] %v5531, 128
    %7297 = vxpose.xlu0.b32.cont [7/16] 0.0, 128
    %7298 = vxpose.xlu0.b32.cont [8/16] 0.0, 128
    %7299 = vxpose.xlu0.b32.cont [9/16] 0.0, 128
    %7300 = vxpose.xlu0.b32.cont [10/16] 0.0, 128
    %7301 = vxpose.xlu0.b32.cont [11/16] 0.0, 128
    %7302 = vxpose.xlu0.b32.cont [12/16] 0.0, 128
    %7303 = vxpose.xlu0.b32.cont [13/16] 0.0, 128
    %7304 = vxpose.xlu0.b32.cont [14/16] 0.0, 128
    %7305 = vxpose.xlu0.b32.cont [15/16] 0.0, 128
    %7306 = vxpose.xlu0.b32.end [16/16] 0.0, 128
    %v7307 = vpop.trf.xlu0
    %v7308 = vpop.trf.xlu0
    %v7309 = vpop.trf.xlu0
    %v7310 = vpop.trf.xlu0
    %v7311 = vpop.trf.xlu0
    %v7312 = vpop.trf.xlu0
    %v7313 = vpop.trf.xlu0
    %v7314 = vpop.trf.xlu0
    %v7315 = vpop.trf.xlu0
    %v7316 = vpop.trf.xlu0
    %v7317 = vpop.trf.xlu0
    %v7318 = vpop.trf.xlu0
    %v7319 = vpop.trf.xlu0
    %v7320 = vpop.trf.xlu0
    %v7321 = vpop.trf.xlu0
    %v7322 = vpop.trf.xlu0
    %v7324 = vsel %vm6402, %v7307, 0
    %7326 = vmatprep.subr.mxu0 0.0
    %7327 = vmatpush1.msra.mxu0 %v6364
    %7328 = vmatprep.subr.mxu0 0.0
    %7329 = vmatpush1.msra.mxu0 %v6365
    %7330 = vmatprep.subr.mxu0 0.0
    %7331 = vmatpush1.msra.mxu0 %v6366
    %7332 = vmatprep.subr.mxu0 0.0
    %7333 = vmatpush1.msra.mxu0 %v6367
    %7334 = vmatprep.subr.mxu0 0.0
    %7335 = vmatpush1.msra.mxu0 %v6368
    %7336 = vmatprep.subr.mxu0 0.0
    %7337 = vmatpush1.msra.mxu0 %v6369
    %7338 = vmatprep.subr.mxu0 0.0
    %7339 = vmatpush1.msra.mxu0 0.0
    %7340 = vmatprep.subr.mxu0 0.0
    %7341 = vmatpush1.msra.mxu0 0.0
    %7342 = vmatprep.subr.mxu0 0.0
    %7343 = vmatpush1.msra.mxu0 0.0
    %7344 = vmatprep.subr.mxu0 0.0
    %7345 = vmatpush1.msra.mxu0 0.0
    %7346 = vmatprep.subr.mxu0 0.0
    %7347 = vmatpush1.msra.mxu0 0.0
    %7348 = vmatprep.subr.mxu0 0.0
    %7349 = vmatpush1.msra.mxu0 0.0
    %7350 = vmatprep.subr.mxu0 0.0
    %7351 = vmatpush1.msra.mxu0 0.0
    %7352 = vmatprep.subr.mxu0 0.0
    %7353 = vmatpush1.msra.mxu0 0.0
    %7354 = vmatprep.subr.mxu0 0.0
    %7355 = vmatpush1.msra.mxu0 0.0
    %7356 = vmatprep.subr.mxu0 0.0
    %7357 = vmatpush1.msra.mxu0 0.0
    %7358 = vmatprep.subr.mxu0 0.0
    %7359 = vmatpush1.msra.mxu0 0.0
    %7360 = vmatprep.subr.mxu0 0.0
    %7361 = vmatpush1.msra.mxu0 0.0
    %7362 = vmatprep.subr.mxu0 0.0
    %7363 = vmatpush1.msra.mxu0 0.0
    %7364 = vmatprep.subr.mxu0 0.0
    %7365 = vmatpush1.msra.mxu0 0.0
    %7366 = vmatprep.subr.mxu0 0.0
    %7367 = vmatpush1.msra.mxu0 0.0
    %7368 = vmatprep.subr.mxu0 0.0
    %7369 = vmatpush1.msra.mxu0 0.0
    %7370 = vmatprep.subr.mxu0 0.0
    %7371 = vmatpush1.msra.mxu0 0.0
    %7372 = vmatprep.subr.mxu0 0.0
    %7373 = vmatpush1.msra.mxu0 0.0
    %7374 = vmatprep.subr.mxu0 0.0
    %7375 = vmatpush1.msra.mxu0 0.0
    %7376 = vmatprep.subr.mxu0 0.0
    %7377 = vmatpush1.msra.mxu0 0.0
    %7378 = vmatprep.subr.mxu0 0.0
    %7379 = vmatpush1.msra.mxu0 0.0
    %7380 = vmatprep.subr.mxu0 0.0
    %7381 = vmatpush1.msra.mxu0 0.0
    %7382 = vmatprep.subr.mxu0 0.0
    %7383 = vmatpush1.msra.mxu0 0.0
    %7384 = vmatprep.subr.mxu0 0.0
    %7385 = vmatpush1.msra.mxu0 0.0
    %7386 = vmatprep.subr.mxu0 0.0
    %7387 = vmatpush1.msra.mxu0 0.0
    %7388 = vmatprep.subr.mxu0 0.0
    %7389 = vmatpush1.msra.mxu0 0.0
    %7390 = vmatprep.mubr.f32.mxu0 0.0
    %7391 = vmatmul.mubr.f32.gmra.mrb[0].mxu0 %v7324
    %v7392 = vpop.f32.mrb[0].mxu0
    %v7393 = vadd.f32 0.0, %v7392
    %v7394 = vpop.f32.mrb[0].mxu0
    %7395 = vdwg.mxu0
    %v7397 = vcombine.high %v7393, %v7393
    %vm7399 = vcmask 388096
    %7400 = vst.msk [vmem:[%s23 + $0x40] sm:$0xf] %vm7399, %v7393
    %7401 = vst.msk [vmem:[%s23 + $0xa0] sm:$0xf] %vm7399, %v7397
    %7402 = vxpose.xlu0.b32.start [1/16] %v5536, 128
    %7403 = vxpose.xlu0.b32.cont [2/16] %v5541, 128
    %7404 = vxpose.xlu0.b32.cont [3/16] %v5546, 128
    %7405 = vxpose.xlu0.b32.cont [4/16] %v5551, 128
    %7406 = vxpose.xlu0.b32.cont [5/16] %v5556, 128
    %7407 = vxpose.xlu0.b32.cont [6/16] %v5561, 128
    %7408 = vxpose.xlu0.b32.cont [7/16] 0.0, 128
    %7409 = vxpose.xlu0.b32.cont [8/16] 0.0, 128
    %7410 = vxpose.xlu0.b32.cont [9/16] 0.0, 128
    %7411 = vxpose.xlu0.b32.cont [10/16] 0.0, 128
    %7412 = vxpose.xlu0.b32.cont [11/16] 0.0, 128
    %7413 = vxpose.xlu0.b32.cont [12/16] 0.0, 128
    %7414 = vxpose.xlu0.b32.cont [13/16] 0.0, 128
    %7415 = vxpose.xlu0.b32.cont [14/16] 0.0, 128
    %7416 = vxpose.xlu0.b32.cont [15/16] 0.0, 128
    %7417 = vxpose.xlu0.b32.end [16/16] 0.0, 128
    %v7418 = vpop.trf.xlu0
    %v7419 = vpop.trf.xlu0
    %v7420 = vpop.trf.xlu0
    %v7421 = vpop.trf.xlu0
    %v7422 = vpop.trf.xlu0
    %v7423 = vpop.trf.xlu0
    %v7424 = vpop.trf.xlu0
    %v7425 = vpop.trf.xlu0
    %v7426 = vpop.trf.xlu0
    %v7427 = vpop.trf.xlu0
    %v7428 = vpop.trf.xlu0
    %v7429 = vpop.trf.xlu0
    %v7430 = vpop.trf.xlu0
    %v7431 = vpop.trf.xlu0
    %v7432 = vpop.trf.xlu0
    %v7433 = vpop.trf.xlu0
    %v7435 = vsel %vm6402, %v7418, 0
    %7437 = vmatprep.subr.mxu0 0.0
    %7438 = vmatpush1.msra.mxu0 %v6364
    %7439 = vmatprep.subr.mxu0 0.0
    %7440 = vmatpush1.msra.mxu0 %v6365
    %7441 = vmatprep.subr.mxu0 0.0
    %7442 = vmatpush1.msra.mxu0 %v6366
    %7443 = vmatprep.subr.mxu0 0.0
    %7444 = vmatpush1.msra.mxu0 %v6367
    %7445 = vmatprep.subr.mxu0 0.0
    %7446 = vmatpush1.msra.mxu0 %v6368
    %7447 = vmatprep.subr.mxu0 0.0
    %7448 = vmatpush1.msra.mxu0 %v6369
    %7449 = vmatprep.subr.mxu0 0.0
    %7450 = vmatpush1.msra.mxu0 0.0
    %7451 = vmatprep.subr.mxu0 0.0
    %7452 = vmatpush1.msra.mxu0 0.0
    %7453 = vmatprep.subr.mxu0 0.0
    %7454 = vmatpush1.msra.mxu0 0.0
    %7455 = vmatprep.subr.mxu0 0.0
    %7456 = vmatpush1.msra.mxu0 0.0
    %7457 = vmatprep.subr.mxu0 0.0
    %7458 = vmatpush1.msra.mxu0 0.0
    %7459 = vmatprep.subr.mxu0 0.0
    %7460 = vmatpush1.msra.mxu0 0.0
    %7461 = vmatprep.subr.mxu0 0.0
    %7462 = vmatpush1.msra.mxu0 0.0
    %7463 = vmatprep.subr.mxu0 0.0
    %7464 = vmatpush1.msra.mxu0 0.0
    %7465 = vmatprep.subr.mxu0 0.0
    %7466 = vmatpush1.msra.mxu0 0.0
    %7467 = vmatprep.subr.mxu0 0.0
    %7468 = vmatpush1.msra.mxu0 0.0
    %7469 = vmatprep.subr.mxu0 0.0
    %7470 = vmatpush1.msra.mxu0 0.0
    %7471 = vmatprep.subr.mxu0 0.0
    %7472 = vmatpush1.msra.mxu0 0.0
    %7473 = vmatprep.subr.mxu0 0.0
    %7474 = vmatpush1.msra.mxu0 0.0
    %7475 = vmatprep.subr.mxu0 0.0
    %7476 = vmatpush1.msra.mxu0 0.0
    %7477 = vmatprep.subr.mxu0 0.0
    %7478 = vmatpush1.msra.mxu0 0.0
    %7479 = vmatprep.subr.mxu0 0.0
    %7480 = vmatpush1.msra.mxu0 0.0
    %7481 = vmatprep.subr.mxu0 0.0
    %7482 = vmatpush1.msra.mxu0 0.0
    %7483 = vmatprep.subr.mxu0 0.0
    %7484 = vmatpush1.msra.mxu0 0.0
    %7485 = vmatprep.subr.mxu0 0.0
    %7486 = vmatpush1.msra.mxu0 0.0
    %7487 = vmatprep.subr.mxu0 0.0
    %7488 = vmatpush1.msra.mxu0 0.0
    %7489 = vmatprep.subr.mxu0 0.0
    %7490 = vmatpush1.msra.mxu0 0.0
    %7491 = vmatprep.subr.mxu0 0.0
    %7492 = vmatpush1.msra.mxu0 0.0
    %7493 = vmatprep.subr.mxu0 0.0
    %7494 = vmatpush1.msra.mxu0 0.0
    %7495 = vmatprep.subr.mxu0 0.0
    %7496 = vmatpush1.msra.mxu0 0.0
    %7497 = vmatprep.subr.mxu0 0.0
    %7498 = vmatpush1.msra.mxu0 0.0
    %7499 = vmatprep.subr.mxu0 0.0
    %7500 = vmatpush1.msra.mxu0 0.0
    %7501 = vmatprep.mubr.f32.mxu0 0.0
    %7502 = vmatmul.mubr.f32.gmra.mrb[0].mxu0 %v7435
    %v7503 = vpop.f32.mrb[0].mxu0
    %v7504 = vadd.f32 0.0, %v7503
    %v7505 = vpop.f32.mrb[0].mxu0
    %7506 = vdwg.mxu0
    %v7508 = vcombine.high %v7504, %v7504
    %7510 = vst.msk [vmem:[%s23 + $0x44] sm:$0xf] %vm7399, %v7504
    %7511 = vst.msk [vmem:[%s23 + $0xa4] sm:$0xf] %vm7399, %v7508
    %7512 = vxpose.xlu0.b32.start [1/16] %v5566, 128
    %7513 = vxpose.xlu0.b32.cont [2/16] %v5571, 128
    %7514 = vxpose.xlu0.b32.cont [3/16] %v5576, 128
    %7515 = vxpose.xlu0.b32.cont [4/16] %v5581, 128
    %7516 = vxpose.xlu0.b32.cont [5/16] %v5586, 128
    %7517 = vxpose.xlu0.b32.cont [6/16] %v5591, 128
    %7518 = vxpose.xlu0.b32.cont [7/16] 0.0, 128
    %7519 = vxpose.xlu0.b32.cont [8/16] 0.0, 128
    %7520 = vxpose.xlu0.b32.cont [9/16] 0.0, 128
    %7521 = vxpose.xlu0.b32.cont [10/16] 0.0, 128
    %7522 = vxpose.xlu0.b32.cont [11/16] 0.0, 128
    %7523 = vxpose.xlu0.b32.cont [12/16] 0.0, 128
    %7524 = vxpose.xlu0.b32.cont [13/16] 0.0, 128
    %7525 = vxpose.xlu0.b32.cont [14/16] 0.0, 128
    %7526 = vxpose.xlu0.b32.cont [15/16] 0.0, 128
    %7527 = vxpose.xlu0.b32.end [16/16] 0.0, 128
    %v7528 = vpop.trf.xlu0
    %v7529 = vpop.trf.xlu0
    %v7530 = vpop.trf.xlu0
    %v7531 = vpop.trf.xlu0
    %v7532 = vpop.trf.xlu0
    %v7533 = vpop.trf.xlu0
    %v7534 = vpop.trf.xlu0
    %v7535 = vpop.trf.xlu0
    %v7536 = vpop.trf.xlu0
    %v7537 = vpop.trf.xlu0
    %v7538 = vpop.trf.xlu0
    %v7539 = vpop.trf.xlu0
    %v7540 = vpop.trf.xlu0
    %v7541 = vpop.trf.xlu0
    %v7542 = vpop.trf.xlu0
    %v7543 = vpop.trf.xlu0
    %v7545 = vsel %vm6402, %v7528, 0
    %7547 = vmatprep.subr.mxu0 0.0
    %7548 = vmatpush1.msra.mxu0 %v6364
    %7549 = vmatprep.subr.mxu0 0.0
    %7550 = vmatpush1.msra.mxu0 %v6365
    %7551 = vmatprep.subr.mxu0 0.0
    %7552 = vmatpush1.msra.mxu0 %v6366
    %7553 = vmatprep.subr.mxu0 0.0
    %7554 = vmatpush1.msra.mxu0 %v6367
    %7555 = vmatprep.subr.mxu0 0.0
    %7556 = vmatpush1.msra.mxu0 %v6368
    %7557 = vmatprep.subr.mxu0 0.0
    %7558 = vmatpush1.msra.mxu0 %v6369
    %7559 = vmatprep.subr.mxu0 0.0
    %7560 = vmatpush1.msra.mxu0 0.0
    %7561 = vmatprep.subr.mxu0 0.0
    %7562 = vmatpush1.msra.mxu0 0.0
    %7563 = vmatprep.subr.mxu0 0.0
    %7564 = vmatpush1.msra.mxu0 0.0
    %7565 = vmatprep.subr.mxu0 0.0
    %7566 = vmatpush1.msra.mxu0 0.0
    %7567 = vmatprep.subr.mxu0 0.0
    %7568 = vmatpush1.msra.mxu0 0.0
    %7569 = vmatprep.subr.mxu0 0.0
    %7570 = vmatpush1.msra.mxu0 0.0
    %7571 = vmatprep.subr.mxu0 0.0
    %7572 = vmatpush1.msra.mxu0 0.0
    %7573 = vmatprep.subr.mxu0 0.0
    %7574 = vmatpush1.msra.mxu0 0.0
    %7575 = vmatprep.subr.mxu0 0.0
    %7576 = vmatpush1.msra.mxu0 0.0
    %7577 = vmatprep.subr.mxu0 0.0
    %7578 = vmatpush1.msra.mxu0 0.0
    %7579 = vmatprep.subr.mxu0 0.0
    %7580 = vmatpush1.msra.mxu0 0.0
    %7581 = vmatprep.subr.mxu0 0.0
    %7582 = vmatpush1.msra.mxu0 0.0
    %7583 = vmatprep.subr.mxu0 0.0
    %7584 = vmatpush1.msra.mxu0 0.0
    %7585 = vmatprep.subr.mxu0 0.0
    %7586 = vmatpush1.msra.mxu0 0.0
    %7587 = vmatprep.subr.mxu0 0.0
    %7588 = vmatpush1.msra.mxu0 0.0
    %7589 = vmatprep.subr.mxu0 0.0
    %7590 = vmatpush1.msra.mxu0 0.0
    %7591 = vmatprep.subr.mxu0 0.0
    %7592 = vmatpush1.msra.mxu0 0.0
    %7593 = vmatprep.subr.mxu0 0.0
    %7594 = vmatpush1.msra.mxu0 0.0
    %7595 = vmatprep.subr.mxu0 0.0
    %7596 = vmatpush1.msra.mxu0 0.0
    %7597 = vmatprep.subr.mxu0 0.0
    %7598 = vmatpush1.msra.mxu0 0.0
    %7599 = vmatprep.subr.mxu0 0.0
    %7600 = vmatpush1.msra.mxu0 0.0
    %7601 = vmatprep.subr.mxu0 0.0
    %7602 = vmatpush1.msra.mxu0 0.0
    %7603 = vmatprep.subr.mxu0 0.0
    %7604 = vmatpush1.msra.mxu0 0.0
    %7605 = vmatprep.subr.mxu0 0.0
    %7606 = vmatpush1.msra.mxu0 0.0
    %7607 = vmatprep.subr.mxu0 0.0
    %7608 = vmatpush1.msra.mxu0 0.0
    %7609 = vmatprep.subr.mxu0 0.0
    %7610 = vmatpush1.msra.mxu0 0.0
    %7611 = vmatprep.mubr.f32.mxu0 0.0
    %7612 = vmatmul.mubr.f32.gmra.mrb[0].mxu0 %v7545
    %v7613 = vpop.f32.mrb[0].mxu0
    %v7614 = vadd.f32 0.0, %v7613
    %v7615 = vpop.f32.mrb[0].mxu0
    %7616 = vdwg.mxu0
    %v7618 = vcombine.high %v7614, %v7614
    %7620 = vst.msk [vmem:[%s23 + $0x48] sm:$0xf] %vm7399, %v7614
    %7621 = vst.msk [vmem:[%s23 + $0xa8] sm:$0xf] %vm7399, %v7618
    %7622 = vxpose.xlu0.b32.start [1/16] %v5596, 128
    %7623 = vxpose.xlu0.b32.cont [2/16] %v5601, 128
    %7624 = vxpose.xlu0.b32.cont [3/16] %v5606, 128
    %7625 = vxpose.xlu0.b32.cont [4/16] %v5611, 128
    %7626 = vxpose.xlu0.b32.cont [5/16] %v5616, 128
    %7627 = vxpose.xlu0.b32.cont [6/16] %v5621, 128
    %7628 = vxpose.xlu0.b32.cont [7/16] 0.0, 128
    %7629 = vxpose.xlu0.b32.cont [8/16] 0.0, 128
    %7630 = vxpose.xlu0.b32.cont [9/16] 0.0, 128
    %7631 = vxpose.xlu0.b32.cont [10/16] 0.0, 128
    %7632 = vxpose.xlu0.b32.cont [11/16] 0.0, 128
    %7633 = vxpose.xlu0.b32.cont [12/16] 0.0, 128
    %7634 = vxpose.xlu0.b32.cont [13/16] 0.0, 128
    %7635 = vxpose.xlu0.b32.cont [14/16] 0.0, 128
    %7636 = vxpose.xlu0.b32.cont [15/16] 0.0, 128
    %7637 = vxpose.xlu0.b32.end [16/16] 0.0, 128
    %v7638 = vpop.trf.xlu0
    %v7639 = vpop.trf.xlu0
    %v7640 = vpop.trf.xlu0
    %v7641 = vpop.trf.xlu0
    %v7642 = vpop.trf.xlu0
    %v7643 = vpop.trf.xlu0
    %v7644 = vpop.trf.xlu0
    %v7645 = vpop.trf.xlu0
    %v7646 = vpop.trf.xlu0
    %v7647 = vpop.trf.xlu0
    %v7648 = vpop.trf.xlu0
    %v7649 = vpop.trf.xlu0
    %v7650 = vpop.trf.xlu0
    %v7651 = vpop.trf.xlu0
    %v7652 = vpop.trf.xlu0
    %v7653 = vpop.trf.xlu0
    %v7655 = vsel %vm6402, %v7638, 0
    %7657 = vmatprep.subr.mxu0 0.0
    %7658 = vmatpush1.msra.mxu0 %v6364
    %7659 = vmatprep.subr.mxu0 0.0
    %7660 = vmatpush1.msra.mxu0 %v6365
    %7661 = vmatprep.subr.mxu0 0.0
    %7662 = vmatpush1.msra.mxu0 %v6366
    %7663 = vmatprep.subr.mxu0 0.0
    %7664 = vmatpush1.msra.mxu0 %v6367
    %7665 = vmatprep.subr.mxu0 0.0
    %7666 = vmatpush1.msra.mxu0 %v6368
    %7667 = vmatprep.subr.mxu0 0.0
    %7668 = vmatpush1.msra.mxu0 %v6369
    %7669 = vmatprep.subr.mxu0 0.0
    %7670 = vmatpush1.msra.mxu0 0.0
    %7671 = vmatprep.subr.mxu0 0.0
    %7672 = vmatpush1.msra.mxu0 0.0
    %7673 = vmatprep.subr.mxu0 0.0
    %7674 = vmatpush1.msra.mxu0 0.0
    %7675 = vmatprep.subr.mxu0 0.0
    %7676 = vmatpush1.msra.mxu0 0.0
    %7677 = vmatprep.subr.mxu0 0.0
    %7678 = vmatpush1.msra.mxu0 0.0
    %7679 = vmatprep.subr.mxu0 0.0
    %7680 = vmatpush1.msra.mxu0 0.0
    %7681 = vmatprep.subr.mxu0 0.0
    %7682 = vmatpush1.msra.mxu0 0.0
    %7683 = vmatprep.subr.mxu0 0.0
    %7684 = vmatpush1.msra.mxu0 0.0
    %7685 = vmatprep.subr.mxu0 0.0
    %7686 = vmatpush1.msra.mxu0 0.0
    %7687 = vmatprep.subr.mxu0 0.0
    %7688 = vmatpush1.msra.mxu0 0.0
    %7689 = vmatprep.subr.mxu0 0.0
    %7690 = vmatpush1.msra.mxu0 0.0
    %7691 = vmatprep.subr.mxu0 0.0
    %7692 = vmatpush1.msra.mxu0 0.0
    %7693 = vmatprep.subr.mxu0 0.0
    %7694 = vmatpush1.msra.mxu0 0.0
    %7695 = vmatprep.subr.mxu0 0.0
    %7696 = vmatpush1.msra.mxu0 0.0
    %7697 = vmatprep.subr.mxu0 0.0
    %7698 = vmatpush1.msra.mxu0 0.0
    %7699 = vmatprep.subr.mxu0 0.0
    %7700 = vmatpush1.msra.mxu0 0.0
    %7701 = vmatprep.subr.mxu0 0.0
    %7702 = vmatpush1.msra.mxu0 0.0
    %7703 = vmatprep.subr.mxu0 0.0
    %7704 = vmatpush1.msra.mxu0 0.0
    %7705 = vmatprep.subr.mxu0 0.0
    %7706 = vmatpush1.msra.mxu0 0.0
    %7707 = vmatprep.subr.mxu0 0.0
    %7708 = vmatpush1.msra.mxu0 0.0
    %7709 = vmatprep.subr.mxu0 0.0
    %7710 = vmatpush1.msra.mxu0 0.0
    %7711 = vmatprep.subr.mxu0 0.0
    %7712 = vmatpush1.msra.mxu0 0.0
    %7713 = vmatprep.subr.mxu0 0.0
    %7714 = vmatpush1.msra.mxu0 0.0
    %7715 = vmatprep.subr.mxu0 0.0
    %7716 = vmatpush1.msra.mxu0 0.0
    %7717 = vmatprep.subr.mxu0 0.0
    %7718 = vmatpush1.msra.mxu0 0.0
    %7719 = vmatprep.subr.mxu0 0.0
    %7720 = vmatpush1.msra.mxu0 0.0
    %7721 = vmatprep.mubr.f32.mxu0 0.0
    %7722 = vmatmul.mubr.f32.gmra.mrb[0].mxu0 %v7655
    %v7723 = vpop.f32.mrb[0].mxu0
    %v7724 = vadd.f32 0.0, %v7723
    %v7725 = vpop.f32.mrb[0].mxu0
    %7726 = vdwg.mxu0
    %v7728 = vcombine.high %v7724, %v7724
    %7730 = vst.msk [vmem:[%s23 + $0x4c] sm:$0xf] %vm7399, %v7724
    %7731 = vst.msk [vmem:[%s23 + $0xac] sm:$0xf] %vm7399, %v7728
    %7732 = vxpose.xlu0.b32.start [1/16] %v6246, 128
    %7733 = vxpose.xlu0.b32.cont [2/16] %v6251, 128
    %7734 = vxpose.xlu0.b32.cont [3/16] %v6256, 128
    %7735 = vxpose.xlu0.b32.cont [4/16] %v6261, 128
    %7736 = vxpose.xlu0.b32.cont [5/16] %v6266, 128
    %7737 = vxpose.xlu0.b32.cont [6/16] %v6271, 128
    %7738 = vxpose.xlu0.b32.cont [7/16] 0.0, 128
    %7739 = vxpose.xlu0.b32.cont [8/16] 0.0, 128
    %7740 = vxpose.xlu0.b32.cont [9/16] 0.0, 128
    %7741 = vxpose.xlu0.b32.cont [10/16] 0.0, 128
    %7742 = vxpose.xlu0.b32.cont [11/16] 0.0, 128
    %7743 = vxpose.xlu0.b32.cont [12/16] 0.0, 128
    %7744 = vxpose.xlu0.b32.cont [13/16] 0.0, 128
    %7745 = vxpose.xlu0.b32.cont [14/16] 0.0, 128
    %7746 = vxpose.xlu0.b32.cont [15/16] 0.0, 128
    %7747 = vxpose.xlu0.b32.end [16/16] 0.0, 128
    %v7748 = vpop.trf.xlu0
    %v7749 = vpop.trf.xlu0
    %v7750 = vpop.trf.xlu0
    %v7751 = vpop.trf.xlu0
    %v7752 = vpop.trf.xlu0
    %v7753 = vpop.trf.xlu0
    %v7754 = vpop.trf.xlu0
    %v7755 = vpop.trf.xlu0
    %v7756 = vpop.trf.xlu0
    %v7757 = vpop.trf.xlu0
    %v7758 = vpop.trf.xlu0
    %v7759 = vpop.trf.xlu0
    %v7760 = vpop.trf.xlu0
    %v7761 = vpop.trf.xlu0
    %v7762 = vpop.trf.xlu0
    %v7763 = vpop.trf.xlu0
    %v7765 = vsel %vm6402, %v7748, 0
    %7767 = vmatprep.subr.mxu0 0.0
    %7768 = vmatpush1.msra.mxu0 %v6364
    %7769 = vmatprep.subr.mxu0 0.0
    %7770 = vmatpush1.msra.mxu0 %v6365
    %7771 = vmatprep.subr.mxu0 0.0
    %7772 = vmatpush1.msra.mxu0 %v6366
    %7773 = vmatprep.subr.mxu0 0.0
    %7774 = vmatpush1.msra.mxu0 %v6367
    %7775 = vmatprep.subr.mxu0 0.0
    %7776 = vmatpush1.msra.mxu0 %v6368
    %7777 = vmatprep.subr.mxu0 0.0
    %7778 = vmatpush1.msra.mxu0 %v6369
    %7779 = vmatprep.subr.mxu0 0.0
    %7780 = vmatpush1.msra.mxu0 0.0
    %7781 = vmatprep.subr.mxu0 0.0
    %7782 = vmatpush1.msra.mxu0 0.0
    %7783 = vmatprep.subr.mxu0 0.0
    %7784 = vmatpush1.msra.mxu0 0.0
    %7785 = vmatprep.subr.mxu0 0.0
    %7786 = vmatpush1.msra.mxu0 0.0
    %7787 = vmatprep.subr.mxu0 0.0
    %7788 = vmatpush1.msra.mxu0 0.0
    %7789 = vmatprep.subr.mxu0 0.0
    %7790 = vmatpush1.msra.mxu0 0.0
    %7791 = vmatprep.subr.mxu0 0.0
    %7792 = vmatpush1.msra.mxu0 0.0
    %7793 = vmatprep.subr.mxu0 0.0
    %7794 = vmatpush1.msra.mxu0 0.0
    %7795 = vmatprep.subr.mxu0 0.0
    %7796 = vmatpush1.msra.mxu0 0.0
    %7797 = vmatprep.subr.mxu0 0.0
    %7798 = vmatpush1.msra.mxu0 0.0
    %7799 = vmatprep.subr.mxu0 0.0
    %7800 = vmatpush1.msra.mxu0 0.0
    %7801 = vmatprep.subr.mxu0 0.0
    %7802 = vmatpush1.msra.mxu0 0.0
    %7803 = vmatprep.subr.mxu0 0.0
    %7804 = vmatpush1.msra.mxu0 0.0
    %7805 = vmatprep.subr.mxu0 0.0
    %7806 = vmatpush1.msra.mxu0 0.0
    %7807 = vmatprep.subr.mxu0 0.0
    %7808 = vmatpush1.msra.mxu0 0.0
    %7809 = vmatprep.subr.mxu0 0.0
    %7810 = vmatpush1.msra.mxu0 0.0
    %7811 = vmatprep.subr.mxu0 0.0
    %7812 = vmatpush1.msra.mxu0 0.0
    %7813 = vmatprep.subr.mxu0 0.0
    %7814 = vmatpush1.msra.mxu0 0.0
    %7815 = vmatprep.subr.mxu0 0.0
    %7816 = vmatpush1.msra.mxu0 0.0
    %7817 = vmatprep.subr.mxu0 0.0
    %7818 = vmatpush1.msra.mxu0 0.0
    %7819 = vmatprep.subr.mxu0 0.0
    %7820 = vmatpush1.msra.mxu0 0.0
    %7821 = vmatprep.subr.mxu0 0.0
    %7822 = vmatpush1.msra.mxu0 0.0
    %7823 = vmatprep.subr.mxu0 0.0
    %7824 = vmatpush1.msra.mxu0 0.0
    %7825 = vmatprep.subr.mxu0 0.0
    %7826 = vmatpush1.msra.mxu0 0.0
    %7827 = vmatprep.subr.mxu0 0.0
    %7828 = vmatpush1.msra.mxu0 0.0
    %7829 = vmatprep.subr.mxu0 0.0
    %7830 = vmatpush1.msra.mxu0 0.0
    %7831 = vmatprep.mubr.f32.mxu0 0.0
    %7832 = vmatmul.mubr.f32.gmra.mrb[0].mxu0 %v7765
    %v7833 = vpop.f32.mrb[0].mxu0
    %v7834 = vadd.f32 0.0, %v7833
    %v7835 = vpop.f32.mrb[0].mxu0
    %7836 = vdwg.mxu0
    %v7838 = vcombine.high %v7834, %v7834
    %7840 = vst.msk [vmem:[%s23 + $0x50] sm:$0xf] %vm7399, %v7834
    %7841 = vst.msk [vmem:[%s23 + $0xb0] sm:$0xf] %vm7399, %v7838
    %7842 = vxpose.xlu0.b32.start [1/16] %v6276, 128
    %7843 = vxpose.xlu0.b32.cont [2/16] %v6281, 128
    %7844 = vxpose.xlu0.b32.cont [3/16] %v6286, 128
    %7845 = vxpose.xlu0.b32.cont [4/16] %v6291, 128
    %7846 = vxpose.xlu0.b32.cont [5/16] %v6296, 128
    %7847 = vxpose.xlu0.b32.cont [6/16] %v6301, 128
    %7848 = vxpose.xlu0.b32.cont [7/16] 0.0, 128
    %7849 = vxpose.xlu0.b32.cont [8/16] 0.0, 128
    %7850 = vxpose.xlu0.b32.cont [9/16] 0.0, 128
    %7851 = vxpose.xlu0.b32.cont [10/16] 0.0, 128
    %7852 = vxpose.xlu0.b32.cont [11/16] 0.0, 128
    %7853 = vxpose.xlu0.b32.cont [12/16] 0.0, 128
    %7854 = vxpose.xlu0.b32.cont [13/16] 0.0, 128
    %7855 = vxpose.xlu0.b32.cont [14/16] 0.0, 128
    %7856 = vxpose.xlu0.b32.cont [15/16] 0.0, 128
    %7857 = vxpose.xlu0.b32.end [16/16] 0.0, 128
    %v7858 = vpop.trf.xlu0
    %v7859 = vpop.trf.xlu0
    %v7860 = vpop.trf.xlu0
    %v7861 = vpop.trf.xlu0
    %v7862 = vpop.trf.xlu0
    %v7863 = vpop.trf.xlu0
    %v7864 = vpop.trf.xlu0
    %v7865 = vpop.trf.xlu0
    %v7866 = vpop.trf.xlu0
    %v7867 = vpop.trf.xlu0
    %v7868 = vpop.trf.xlu0
    %v7869 = vpop.trf.xlu0
    %v7870 = vpop.trf.xlu0
    %v7871 = vpop.trf.xlu0
    %v7872 = vpop.trf.xlu0
    %v7873 = vpop.trf.xlu0
    %v7875 = vsel %vm6402, %v7858, 0
    %7877 = vmatprep.subr.mxu0 0.0
    %7878 = vmatpush1.msra.mxu0 %v6364
    %7879 = vmatprep.subr.mxu0 0.0
    %7880 = vmatpush1.msra.mxu0 %v6365
    %7881 = vmatprep.subr.mxu0 0.0
    %7882 = vmatpush1.msra.mxu0 %v6366
    %7883 = vmatprep.subr.mxu0 0.0
    %7884 = vmatpush1.msra.mxu0 %v6367
    %7885 = vmatprep.subr.mxu0 0.0
    %7886 = vmatpush1.msra.mxu0 %v6368
    %7887 = vmatprep.subr.mxu0 0.0
    %7888 = vmatpush1.msra.mxu0 %v6369
    %7889 = vmatprep.subr.mxu0 0.0
    %7890 = vmatpush1.msra.mxu0 0.0
    %7891 = vmatprep.subr.mxu0 0.0
    %7892 = vmatpush1.msra.mxu0 0.0
    %7893 = vmatprep.subr.mxu0 0.0
    %7894 = vmatpush1.msra.mxu0 0.0
    %7895 = vmatprep.subr.mxu0 0.0
    %7896 = vmatpush1.msra.mxu0 0.0
    %7897 = vmatprep.subr.mxu0 0.0
    %7898 = vmatpush1.msra.mxu0 0.0
    %7899 = vmatprep.subr.mxu0 0.0
    %7900 = vmatpush1.msra.mxu0 0.0
    %7901 = vmatprep.subr.mxu0 0.0
    %7902 = vmatpush1.msra.mxu0 0.0
    %7903 = vmatprep.subr.mxu0 0.0
    %7904 = vmatpush1.msra.mxu0 0.0
    %7905 = vmatprep.subr.mxu0 0.0
    %7906 = vmatpush1.msra.mxu0 0.0
    %7907 = vmatprep.subr.mxu0 0.0
    %7908 = vmatpush1.msra.mxu0 0.0
    %7909 = vmatprep.subr.mxu0 0.0
    %7910 = vmatpush1.msra.mxu0 0.0
    %7911 = vmatprep.subr.mxu0 0.0
    %7912 = vmatpush1.msra.mxu0 0.0
    %7913 = vmatprep.subr.mxu0 0.0
    %7914 = vmatpush1.msra.mxu0 0.0
    %7915 = vmatprep.subr.mxu0 0.0
    %7916 = vmatpush1.msra.mxu0 0.0
    %7917 = vmatprep.subr.mxu0 0.0
    %7918 = vmatpush1.msra.mxu0 0.0
    %7919 = vmatprep.subr.mxu0 0.0
    %7920 = vmatpush1.msra.mxu0 0.0
    %7921 = vmatprep.subr.mxu0 0.0
    %7922 = vmatpush1.msra.mxu0 0.0
    %7923 = vmatprep.subr.mxu0 0.0
    %7924 = vmatpush1.msra.mxu0 0.0
    %7925 = vmatprep.subr.mxu0 0.0
    %7926 = vmatpush1.msra.mxu0 0.0
    %7927 = vmatprep.subr.mxu0 0.0
    %7928 = vmatpush1.msra.mxu0 0.0
    %7929 = vmatprep.subr.mxu0 0.0
    %7930 = vmatpush1.msra.mxu0 0.0
    %7931 = vmatprep.subr.mxu0 0.0
    %7932 = vmatpush1.msra.mxu0 0.0
    %7933 = vmatprep.subr.mxu0 0.0
    %7934 = vmatpush1.msra.mxu0 0.0
    %7935 = vmatprep.subr.mxu0 0.0
    %7936 = vmatpush1.msra.mxu0 0.0
    %7937 = vmatprep.subr.mxu0 0.0
    %7938 = vmatpush1.msra.mxu0 0.0
    %7939 = vmatprep.subr.mxu0 0.0
    %7940 = vmatpush1.msra.mxu0 0.0
    %7941 = vmatprep.mubr.f32.mxu0 0.0
    %7942 = vmatmul.mubr.f32.gmra.mrb[0].mxu0 %v7875
    %v7943 = vpop.f32.mrb[0].mxu0
    %v7944 = vadd.f32 0.0, %v7943
    %v7945 = vpop.f32.mrb[0].mxu0
    %7946 = vdwg.mxu0
    %v7948 = vcombine.high %v7944, %v7944
    %7950 = vst.msk [vmem:[%s23 + $0x54] sm:$0xf] %vm7399, %v7944
    %7951 = vst.msk [vmem:[%s23 + $0xb4] sm:$0xf] %vm7399, %v7948
    %7952 = vxpose.xlu0.b32.start [1/16] %v6306, 128
    %7953 = vxpose.xlu0.b32.cont [2/16] %v6311, 128
    %7954 = vxpose.xlu0.b32.cont [3/16] %v6316, 128
    %7955 = vxpose.xlu0.b32.cont [4/16] %v6321, 128
    %7956 = vxpose.xlu0.b32.cont [5/16] %v6326, 128
    %7957 = vxpose.xlu0.b32.cont [6/16] %v6331, 128
    %7958 = vxpose.xlu0.b32.cont [7/16] 0.0, 128
    %7959 = vxpose.xlu0.b32.cont [8/16] 0.0, 128
    %7960 = vxpose.xlu0.b32.cont [9/16] 0.0, 128
    %7961 = vxpose.xlu0.b32.cont [10/16] 0.0, 128
    %7962 = vxpose.xlu0.b32.cont [11/16] 0.0, 128
    %7963 = vxpose.xlu0.b32.cont [12/16] 0.0, 128
    %7964 = vxpose.xlu0.b32.cont [13/16] 0.0, 128
    %7965 = vxpose.xlu0.b32.cont [14/16] 0.0, 128
    %7966 = vxpose.xlu0.b32.cont [15/16] 0.0, 128
    %7967 = vxpose.xlu0.b32.end [16/16] 0.0, 128
    %v7968 = vpop.trf.xlu0
    %v7969 = vpop.trf.xlu0
    %v7970 = vpop.trf.xlu0
    %v7971 = vpop.trf.xlu0
    %v7972 = vpop.trf.xlu0
    %v7973 = vpop.trf.xlu0
    %v7974 = vpop.trf.xlu0
    %v7975 = vpop.trf.xlu0
    %v7976 = vpop.trf.xlu0
    %v7977 = vpop.trf.xlu0
    %v7978 = vpop.trf.xlu0
    %v7979 = vpop.trf.xlu0
    %v7980 = vpop.trf.xlu0
    %v7981 = vpop.trf.xlu0
    %v7982 = vpop.trf.xlu0
    %v7983 = vpop.trf.xlu0
    %v7985 = vsel %vm6402, %v7968, 0
    %7987 = vmatprep.subr.mxu0 0.0
    %7988 = vmatpush1.msra.mxu0 %v6364
    %7989 = vmatprep.subr.mxu0 0.0
    %7990 = vmatpush1.msra.mxu0 %v6365
    %7991 = vmatprep.subr.mxu0 0.0
    %7992 = vmatpush1.msra.mxu0 %v6366
    %7993 = vmatprep.subr.mxu0 0.0
    %7994 = vmatpush1.msra.mxu0 %v6367
    %7995 = vmatprep.subr.mxu0 0.0
    %7996 = vmatpush1.msra.mxu0 %v6368
    %7997 = vmatprep.subr.mxu0 0.0
    %7998 = vmatpush1.msra.mxu0 %v6369
    %7999 = vmatprep.subr.mxu0 0.0
    %8000 = vmatpush1.msra.mxu0 0.0
    %8001 = vmatprep.subr.mxu0 0.0
    %8002 = vmatpush1.msra.mxu0 0.0
    %8003 = vmatprep.subr.mxu0 0.0
    %8004 = vmatpush1.msra.mxu0 0.0
    %8005 = vmatprep.subr.mxu0 0.0
    %8006 = vmatpush1.msra.mxu0 0.0
    %8007 = vmatprep.subr.mxu0 0.0
    %8008 = vmatpush1.msra.mxu0 0.0
    %8009 = vmatprep.subr.mxu0 0.0
    %8010 = vmatpush1.msra.mxu0 0.0
    %8011 = vmatprep.subr.mxu0 0.0
    %8012 = vmatpush1.msra.mxu0 0.0
    %8013 = vmatprep.subr.mxu0 0.0
    %8014 = vmatpush1.msra.mxu0 0.0
    %8015 = vmatprep.subr.mxu0 0.0
    %8016 = vmatpush1.msra.mxu0 0.0
    %8017 = vmatprep.subr.mxu0 0.0
    %8018 = vmatpush1.msra.mxu0 0.0
    %8019 = vmatprep.subr.mxu0 0.0
    %8020 = vmatpush1.msra.mxu0 0.0
    %8021 = vmatprep.subr.mxu0 0.0
    %8022 = vmatpush1.msra.mxu0 0.0
    %8023 = vmatprep.subr.mxu0 0.0
    %8024 = vmatpush1.msra.mxu0 0.0
    %8025 = vmatprep.subr.mxu0 0.0
    %8026 = vmatpush1.msra.mxu0 0.0
    %8027 = vmatprep.subr.mxu0 0.0
    %8028 = vmatpush1.msra.mxu0 0.0
    %8029 = vmatprep.subr.mxu0 0.0
    %8030 = vmatpush1.msra.mxu0 0.0
    %8031 = vmatprep.subr.mxu0 0.0
    %8032 = vmatpush1.msra.mxu0 0.0
    %8033 = vmatprep.subr.mxu0 0.0
    %8034 = vmatpush1.msra.mxu0 0.0
    %8035 = vmatprep.subr.mxu0 0.0
    %8036 = vmatpush1.msra.mxu0 0.0
    %8037 = vmatprep.subr.mxu0 0.0
    %8038 = vmatpush1.msra.mxu0 0.0
    %8039 = vmatprep.subr.mxu0 0.0
    %8040 = vmatpush1.msra.mxu0 0.0
    %8041 = vmatprep.subr.mxu0 0.0
    %8042 = vmatpush1.msra.mxu0 0.0
    %8043 = vmatprep.subr.mxu0 0.0
    %8044 = vmatpush1.msra.mxu0 0.0
    %8045 = vmatprep.subr.mxu0 0.0
    %8046 = vmatpush1.msra.mxu0 0.0
    %8047 = vmatprep.subr.mxu0 0.0
    %8048 = vmatpush1.msra.mxu0 0.0
    %8049 = vmatprep.subr.mxu0 0.0
    %8050 = vmatpush1.msra.mxu0 0.0
    %8051 = vmatprep.mubr.f32.mxu0 0.0
    %8052 = vmatmul.mubr.f32.gmra.mrb[0].mxu0 %v7985
    %v8053 = vpop.f32.mrb[0].mxu0
    %v8054 = vadd.f32 0.0, %v8053
    %v8055 = vpop.f32.mrb[0].mxu0
    %8056 = vdwg.mxu0
    %v8058 = vcombine.high %v8054, %v8054
    %8060 = vst.msk [vmem:[%s23 + $0x58] sm:$0xf] %vm7399, %v8054
    %8061 = vst.msk [vmem:[%s23 + $0xb8] sm:$0xf] %vm7399, %v8058
    %8062 = vxpose.xlu0.b32.start [1/16] %v6336, 128
    %8063 = vxpose.xlu0.b32.cont [2/16] %v6341, 128
    %8064 = vxpose.xlu0.b32.cont [3/16] %v6346, 128
    %8065 = vxpose.xlu0.b32.cont [4/16] %v6351, 128
    %8066 = vxpose.xlu0.b32.cont [5/16] %v6356, 128
    %8067 = vxpose.xlu0.b32.cont [6/16] %v6361, 128
    %8068 = vxpose.xlu0.b32.cont [7/16] 0.0, 128
    %8069 = vxpose.xlu0.b32.cont [8/16] 0.0, 128
    %8070 = vxpose.xlu0.b32.cont [9/16] 0.0, 128
    %8071 = vxpose.xlu0.b32.cont [10/16] 0.0, 128
    %8072 = vxpose.xlu0.b32.cont [11/16] 0.0, 128
    %8073 = vxpose.xlu0.b32.cont [12/16] 0.0, 128
    %8074 = vxpose.xlu0.b32.cont [13/16] 0.0, 128
    %8075 = vxpose.xlu0.b32.cont [14/16] 0.0, 128
    %8076 = vxpose.xlu0.b32.cont [15/16] 0.0, 128
    %8077 = vxpose.xlu0.b32.end [16/16] 0.0, 128
    %v8078 = vpop.trf.xlu0
    %v8079 = vpop.trf.xlu0
    %v8080 = vpop.trf.xlu0
    %v8081 = vpop.trf.xlu0
    %v8082 = vpop.trf.xlu0
    %v8083 = vpop.trf.xlu0
    %v8084 = vpop.trf.xlu0
    %v8085 = vpop.trf.xlu0
    %v8086 = vpop.trf.xlu0
    %v8087 = vpop.trf.xlu0
    %v8088 = vpop.trf.xlu0
    %v8089 = vpop.trf.xlu0
    %v8090 = vpop.trf.xlu0
    %v8091 = vpop.trf.xlu0
    %v8092 = vpop.trf.xlu0
    %v8093 = vpop.trf.xlu0
    %v8095 = vsel %vm6402, %v8078, 0
    %8097 = vmatprep.subr.mxu0 0.0
    %8098 = vmatpush1.msra.mxu0 %v6364
    %8099 = vmatprep.subr.mxu0 0.0
    %8100 = vmatpush1.msra.mxu0 %v6365
    %8101 = vmatprep.subr.mxu0 0.0
    %8102 = vmatpush1.msra.mxu0 %v6366
    %8103 = vmatprep.subr.mxu0 0.0
    %8104 = vmatpush1.msra.mxu0 %v6367
    %8105 = vmatprep.subr.mxu0 0.0
    %8106 = vmatpush1.msra.mxu0 %v6368
    %8107 = vmatprep.subr.mxu0 0.0
    %8108 = vmatpush1.msra.mxu0 %v6369
    %8109 = vmatprep.subr.mxu0 0.0
    %8110 = vmatpush1.msra.mxu0 0.0
    %8111 = vmatprep.subr.mxu0 0.0
    %8112 = vmatpush1.msra.mxu0 0.0
    %8113 = vmatprep.subr.mxu0 0.0
    %8114 = vmatpush1.msra.mxu0 0.0
    %8115 = vmatprep.subr.mxu0 0.0
    %8116 = vmatpush1.msra.mxu0 0.0
    %8117 = vmatprep.subr.mxu0 0.0
    %8118 = vmatpush1.msra.mxu0 0.0
    %8119 = vmatprep.subr.mxu0 0.0
    %8120 = vmatpush1.msra.mxu0 0.0
    %8121 = vmatprep.subr.mxu0 0.0
    %8122 = vmatpush1.msra.mxu0 0.0
    %8123 = vmatprep.subr.mxu0 0.0
    %8124 = vmatpush1.msra.mxu0 0.0
    %8125 = vmatprep.subr.mxu0 0.0
    %8126 = vmatpush1.msra.mxu0 0.0
    %8127 = vmatprep.subr.mxu0 0.0
    %8128 = vmatpush1.msra.mxu0 0.0
    %8129 = vmatprep.subr.mxu0 0.0
    %8130 = vmatpush1.msra.mxu0 0.0
    %8131 = vmatprep.subr.mxu0 0.0
    %8132 = vmatpush1.msra.mxu0 0.0
    %8133 = vmatprep.subr.mxu0 0.0
    %8134 = vmatpush1.msra.mxu0 0.0
    %8135 = vmatprep.subr.mxu0 0.0
    %8136 = vmatpush1.msra.mxu0 0.0
    %8137 = vmatprep.subr.mxu0 0.0
    %8138 = vmatpush1.msra.mxu0 0.0
    %8139 = vmatprep.subr.mxu0 0.0
    %8140 = vmatpush1.msra.mxu0 0.0
    %8141 = vmatprep.subr.mxu0 0.0
    %8142 = vmatpush1.msra.mxu0 0.0
    %8143 = vmatprep.subr.mxu0 0.0
    %8144 = vmatpush1.msra.mxu0 0.0
    %8145 = vmatprep.subr.mxu0 0.0
    %8146 = vmatpush1.msra.mxu0 0.0
    %8147 = vmatprep.subr.mxu0 0.0
    %8148 = vmatpush1.msra.mxu0 0.0
    %8149 = vmatprep.subr.mxu0 0.0
    %8150 = vmatpush1.msra.mxu0 0.0
    %8151 = vmatprep.subr.mxu0 0.0
    %8152 = vmatpush1.msra.mxu0 0.0
    %8153 = vmatprep.subr.mxu0 0.0
    %8154 = vmatpush1.msra.mxu0 0.0
    %8155 = vmatprep.subr.mxu0 0.0
    %8156 = vmatpush1.msra.mxu0 0.0
    %8157 = vmatprep.subr.mxu0 0.0
    %8158 = vmatpush1.msra.mxu0 0.0
    %8159 = vmatprep.subr.mxu0 0.0
    %8160 = vmatpush1.msra.mxu0 0.0
    %8161 = vmatprep.mubr.f32.mxu0 0.0
    %8162 = vmatmul.mubr.f32.gmra.mrb[0].mxu0 %v8095
    %v8163 = vpop.f32.mrb[0].mxu0
    %v8164 = vadd.f32 0.0, %v8163
    %v8165 = vpop.f32.mrb[0].mxu0
    %8166 = vdwg.mxu0
    %v8168 = vcombine.high %v8164, %v8164
    %8170 = vst.msk [vmem:[%s23 + $0x5c] sm:$0xf] %vm7399, %v8164
    %8171 = vst.msk [vmem:[%s23 + $0xbc] sm:$0xf] %vm7399, %v8168
    // Predicated region
    $region130: #{blk_forward.1} parent=1 // pred_check
      _
    $region131: #{blk_forward.1} parent=1 // pred_check_branch
      %8173 = sbr.rel (0) target = $region133
    $region132: #{blk_forward.1} parent=1 // pred_region
      _
    $region133: #{blk_forward.1} parent=1 // pred_fallthru
      _
    // Predicated region
    $region134: #{blk_forward.1} parent=1 // pred_check
      _
    $region135: #{blk_forward.1} parent=1 // pred_check_branch
      %8175 = sbr.rel (0) target = $region137
    $region136: #{blk_forward.1} parent=1 // pred_region
      _
    $region137: #{blk_forward.1} parent=1 // pred_fallthru
      _
    %8176 = vsyncpa [#allocation3], 1
    %8177 = vsyncpa [#allocation5], 1
    %8178 = vsyncpa [#allocation8], 1
    %8179 = vsyncpa [#allocation11], 1
    %8180 = vsyncpa [#allocation14], 1

</llo_original>
